<compile_context>
chip_gen: v7x
topology: tpu7x:2x2x1
jax: 0.10.0
libtpu: 0.0.40
codegen_flags: <defaults>
</compile_context>

<pallas_src>
import math

import jax
import jax.numpy as jnp
from jax.experimental import pallas as pl
from jax.experimental.pallas import tpu as pltpu

LANE = 128  # TPU lane width; channel axis of all intermediate activations.


# ----------------------------------------------------------------------------- #
# In-kernel helpers
# ----------------------------------------------------------------------------- #
def _im2col_d2(xpad_ref, H, W):
    """Gather the 9 dilation-2 taps from the zero-padded VMEM scratch into one
    (H*W, 9*Cin) slab -> a single MXU contraction instead of nine tiny ones."""
    taps = [xpad_ref[2 * kh:2 * kh + H, 2 * kw:2 * kw + W, :]
            for kh in range(3) for kw in range(3)]
    cin = xpad_ref.shape[-1]
    return jnp.concatenate(taps, axis=-1).reshape(H * W, 9 * cin)


# ----------------------------------------------------------------------------- #
# Pallas kernels
# ----------------------------------------------------------------------------- #
def _dconv_bn_relu_kernel(x_ref, w_ref, shift_ref, o_ref, xpad_ref):
    """One batch element: 3x3 dilation-2 conv (+folded BN) + ReLU, single matmul.

    x_ref     : (H, W, Cin)       input tile (VMEM)
    w_ref     : (9*Cin, Cp)       BN-folded, im2col-flattened weights
    shift_ref : (1, Cp)           folded BN shift (includes conv bias)
    o_ref     : (H, W, Cp)        Cp = 128-padded output channels
    xpad_ref  : (H+4, W+4, Cin)   VMEM scratch holding the 2-pixel zero halo
    """
    H, W, Cp = o_ref.shape
    xpad_ref[...] = jnp.zeros_like(xpad_ref)          # cheap; halo stays zero
    xpad_ref[2:2 + H, 2:2 + W, :] = x_ref[...]
    slab = _im2col_d2(xpad_ref, H, W)                 # (H*W, 9*Cin)
    y = jnp.dot(slab, w_ref[...], preferred_element_type=jnp.float32)
    y = jnp.maximum(y + shift_ref[...], 0.0)
    o_ref[...] = y.reshape(H, W, Cp).astype(o_ref.dtype)


def _dconv2_bn_relu_kernel(xa_ref, xb_ref, wa_ref, wb_ref, shift_ref, o_ref,
                           apad_ref, bpad_ref):
    """Decoder block: conv over [upsampled, skip] without materializing the
    channel concat in HBM -- two accumulating matmuls, one BN/ReLU epilogue."""
    H, W, Cp = o_ref.shape
    apad_ref[...] = jnp.zeros_like(apad_ref)
    bpad_ref[...] = jnp.zeros_like(bpad_ref)
    apad_ref[2:2 + H, 2:2 + W, :] = xa_ref[...]
    bpad_ref[2:2 + H, 2:2 + W, :] = xb_ref[...]
    y = jnp.dot(_im2col_d2(apad_ref, H, W), wa_ref[...],
                preferred_element_type=jnp.float32)
    y = y + jnp.dot(_im2col_d2(bpad_ref, H, W), wb_ref[...],
                    preferred_element_type=jnp.float32)
    y = jnp.maximum(y + shift_ref[...], 0.0)
    o_ref[...] = y.reshape(H, W, Cp).astype(o_ref.dtype)


def _dconv2_bn_relu_final_kernel(xa_ref, xb_ref, wa_ref, wb_ref, shift_ref,
                                 wf_ref, bf_ref, o_ref, apad_ref, bpad_ref):
    """dec1 block + fused final 1x1 conv (saves an HBM round trip of d1)."""
    H, W, Cf = o_ref.shape
    apad_ref[...] = jnp.zeros_like(apad_ref)
    bpad_ref[...] = jnp.zeros_like(bpad_ref)
    apad_ref[2:2 + H, 2:2 + W, :] = xa_ref[...]
    bpad_ref[2:2 + H, 2:2 + W, :] = xb_ref[...]
    y = jnp.dot(_im2col_d2(apad_ref, H, W), wa_ref[...],
                preferred_element_type=jnp.float32)
    y = y + jnp.dot(_im2col_d2(bpad_ref, H, W), wb_ref[...],
                    preferred_element_type=jnp.float32)
    y = jnp.maximum(y + shift_ref[...], 0.0)                      # d1: (H*W, Cp)
    z = jnp.dot(y, wf_ref[...], preferred_element_type=jnp.float32) + bf_ref[...]
    o_ref[...] = z.reshape(H, W, Cf).astype(o_ref.dtype)


# ----------------------------------------------------------------------------- #
# Wrapper-side weight preparation (BN fold + channel padding + im2col flatten)
# ----------------------------------------------------------------------------- #
def _fold_bn(p, cin_pad, cout_pad, eps=1e-5):
    w = p["w"]                                     # (3, 3, cin, cout) HWIO
    cin, cout = w.shape[2], w.shape[3]
    scale = p["gamma"] / jnp.sqrt(p["var"] + eps)
    shift = (p["b"] - p["mean"]) * scale + p["beta"]
    wf = w * scale                                 # fold BN scale into weights
    wf = jnp.pad(wf, ((0, 0), (0, 0), (0, cin_pad - cin), (0, cout_pad - cout)))
    shift = jnp.pad(shift, (0, cout_pad - cout))
    return wf.reshape(9 * cin_pad, cout_pad), shift.reshape(1, cout_pad)


def _fold_bn_split(p, split, cina_pad, cinb_pad, cout_pad, eps=1e-5):
    """BN fold, then split input channels into [0:split] (upsampled branch) and
    [split:] (skip branch) so the decoder avoids the HBM concat."""
    w = p["w"]
    cin, cout = w.shape[2], w.shape[3]
    scale = p["gamma"] / jnp.sqrt(p["var"] + eps)
    shift = (p["b"] - p["mean"]) * scale + p["beta"]
    wf = w * scale
    wa = jnp.pad(wf[:, :, :split, :],
                 ((0, 0), (0, 0), (0, cina_pad - split), (0, cout_pad - cout)))
    wb = jnp.pad(wf[:, :, split:, :],
                 ((0, 0), (0, 0), (0, cinb_pad - (cin - split)),
                  (0, cout_pad - cout)))
    shift = jnp.pad(shift, (0, cout_pad - cout)).reshape(1, cout_pad)
    return (wa.reshape(9 * cina_pad, cout_pad),
            wb.reshape(9 * cinb_pad, cout_pad),
            shift)


# ----------------------------------------------------------------------------- #
# pallas_call wrappers
# ----------------------------------------------------------------------------- #
def dilated_conv_block(x, p, cout_pad=LANE):
    """x: (N, H, W, Cin) NHWC -> (N, H, W, cout_pad)."""
    N, H, W, Cin = x.shape
    w2d, shift = _fold_bn(p, Cin, cout_pad)
    return pl.pallas_call(
        _dconv_bn_relu_kernel,
        out_shape=jax.ShapeDtypeStruct((N, H, W, cout_pad), x.dtype),
        grid=(N,),
        in_specs=[
            pl.BlockSpec((None, H, W, Cin), lambda n: (n, 0, 0, 0)),
            pl.BlockSpec((9 * Cin, cout_pad), lambda n: (0, 0)),
            pl.BlockSpec((1, cout_pad), lambda n: (0, 0)),
        ],
        out_specs=pl.BlockSpec((None, H, W, cout_pad), lambda n: (n, 0, 0, 0)),
        scratch_shapes=[pltpu.VMEM((H + 4, W + 4, Cin), x.dtype)],
        compiler_params=pltpu.CompilerParams(dimension_semantics=("parallel",)),
    )(x, w2d, shift)


def dilated_conv_block_2in(xa, xb, p, split, cout_pad=LANE):
    """Decoder block on (upsampled xa, skip xb); no HBM channel concat."""
    N, H, W, Ca = xa.shape
    Cb = xb.shape[-1]
    wa, wb, shift = _fold_bn_split(p, split, Ca, Cb, cout_pad)
    return pl.pallas_call(
        _dconv2_bn_relu_kernel,
        out_shape=jax.ShapeDtypeStruct((N, H, W, cout_pad), xa.dtype),
        grid=(N,),
        in_specs=[
            pl.BlockSpec((None, H, W, Ca), lambda n: (n, 0, 0, 0)),
            pl.BlockSpec((None, H, W, Cb), lambda n: (n, 0, 0, 0)),
            pl.BlockSpec((9 * Ca, cout_pad), lambda n: (0, 0)),
            pl.BlockSpec((9 * Cb, cout_pad), lambda n: (0, 0)),
            pl.BlockSpec((1, cout_pad), lambda n: (0, 0)),
        ],
        out_specs=pl.BlockSpec((None, H, W, cout_pad), lambda n: (n, 0, 0, 0)),
        scratch_shapes=[pltpu.VMEM((H + 4, W + 4, Ca), xa.dtype),
                        pltpu.VMEM((H + 4, W + 4, Cb), xb.dtype)],
        compiler_params=pltpu.CompilerParams(dimension_semantics=("parallel",)),
    )(xa, xb, wa, wb, shift)


def dilated_conv_block_2in_final(xa, xb, p, p_final, split,
                                 cout_pad=LANE, cf_pad=LANE):
    """dec1 decoder block with the final 1x1 conv fused into the epilogue."""
    N, H, W, Ca = xa.shape
    Cb = xb.shape[-1]
    wa, wb, shift = _fold_bn_split(p, split, Ca, Cb, cout_pad)
    cin_f, cf = p_final["w"].shape
    wf = jnp.pad(p_final["w"], ((0, cout_pad - cin_f), (0, cf_pad - cf)))
    bf = jnp.pad(p_final["b"], (0, cf_pad - cf)).reshape(1, cf_pad)
    return pl.pallas_call(
        _dconv2_bn_relu_final_kernel,
        out_shape=jax.ShapeDtypeStruct((N, H, W, cf_pad), xa.dtype),
        grid=(N,),
        in_specs=[
            pl.BlockSpec((None, H, W, Ca), lambda n: (n, 0, 0, 0)),
            pl.BlockSpec((None, H, W, Cb), lambda n: (n, 0, 0, 0)),
            pl.BlockSpec((9 * Ca, cout_pad), lambda n: (0, 0)),
            pl.BlockSpec((9 * Cb, cout_pad), lambda n: (0, 0)),
            pl.BlockSpec((1, cout_pad), lambda n: (0, 0)),
            pl.BlockSpec((cout_pad, cf_pad), lambda n: (0, 0)),
            pl.BlockSpec((1, cf_pad), lambda n: (0, 0)),
        ],
        out_specs=pl.BlockSpec((None, H, W, cf_pad), lambda n: (n, 0, 0, 0)),
        scratch_shapes=[pltpu.VMEM((H + 4, W + 4, Ca), xa.dtype),
                        pltpu.VMEM((H + 4, W + 4, Cb), xb.dtype)],
        compiler_params=pltpu.CompilerParams(dimension_semantics=("parallel",)),
    )(xa, xb, wa, wb, shift, wf, bf)


# ----------------------------------------------------------------------------- #
# Plain-JAX glue (tiny: pooling / nearest upsampling)
# ----------------------------------------------------------------------------- #
def maxpool2(x):
    N, H, W, C = x.shape
    return x.reshape(N, H // 2, 2, W // 2, 2, C).max(axis=(2, 4))


def upsample2(x):
    return jnp.repeat(jnp.repeat(x, 2, axis=1), 2, axis=2)


# ----------------------------------------------------------------------------- #
# Parameter initialization (deterministic, synthetic; logical channel counts)
# ----------------------------------------------------------------------------- #
def init_dilated_block(key, cin, cout):
    k = jax.random.split(key, 6)
    fan_in = cin * 9
    return {
        "w": jax.random.normal(k[0], (3, 3, cin, cout), jnp.float32)
             * (1.0 / math.sqrt(fan_in)),
        "b": 0.05 * jax.random.normal(k[1], (cout,), jnp.float32),
        "gamma": 1.0 + 0.1 * jax.random.normal(k[2], (cout,), jnp.float32),
        "beta": 0.1 * jax.random.normal(k[3], (cout,), jnp.float32),
        "mean": 0.1 * jax.random.normal(k[4], (cout,), jnp.float32),
        "var": jnp.abs(jax.random.normal(k[5], (cout,), jnp.float32)) + 0.5,
    }


def init_pointwise(key, cin, cout):
    k = jax.random.split(key, 2)
    return {
        "w": jax.random.normal(k[0], (cin, cout), jnp.float32) / math.sqrt(cin),
        "b": 0.05 * jax.random.normal(k[1], (cout,), jnp.float32),
    }


def init_sdunet_params(key, in_channels, out_channels, base=8):
    ks = jax.random.split(key, 6)
    c1, c2, c3 = base, base * 2, base * 4
    return {
        "enc1": init_dilated_block(ks[0], in_channels, c1),
        "enc2": init_dilated_block(ks[1], c1, c2),
        "bottleneck": init_dilated_block(ks[2], c2, c3),
        "dec2": init_dilated_block(ks[3], c3 + c2, c2),
        "dec1": init_dilated_block(ks[4], c2 + c1, c1),
        "final": init_pointwise(ks[5], c1, out_channels),
    }


# ----------------------------------------------------------------------------- #
# SDUNet forward
# ----------------------------------------------------------------------------- #
def sdunet_forward(params, x_nchw):
    c2 = params["enc2"]["w"].shape[-1]
    c3 = params["bottleneck"]["w"].shape[-1]
    out_ch = params["final"]["w"].shape[-1]

    # NCHW (PyTorch convention) -> NHWC for the TPU kernels.
    x = jnp.transpose(x_nchw, (0, 2, 3, 1))

    e1 = dilated_conv_block(x, params["enc1"])               # (N,H,  W,  128)
    p1 = maxpool2(e1)                                        # (N,H/2,W/2,128)
    e2 = dilated_conv_block(p1, params["enc2"])              # (N,H/2,W/2,128)
    p2 = maxpool2(e2)                                        # (N,H/4,W/4,128)
    b = dilated_conv_block(p2, params["bottleneck"])         # (N,H/4,W/4,128)

    u2 = upsample2(b)                                        # (N,H/2,W/2,128)
    d2 = dilated_conv_block_2in(u2, e2, params["dec2"], split=c3)
    u1 = upsample2(d2)                                       # (N,H,  W,  128)
    out = dilated_conv_block_2in_final(u1, e1, params["dec1"], params["final"],
                                       split=c2)             # (N,H,W,128)

    # Drop the channel padding and return NCHW like the PyTorch module.
    return jnp.transpose(out[..., :out_ch], (0, 3, 1, 2))


# ----------------------------------------------------------------------------- #
if __name__ == "__main__":
    in_channels, out_channels = 4, 3
    N, H, W = 2, 16, 16

    key = jax.random.PRNGKey(0)
    kx, kp = jax.random.split(key)
    x = jax.random.normal(kx, (N, in_channels, H, W), jnp.float32)
    params = init_sdunet_params(kp, in_channels, out_channels, base=8)

    fwd = jax.jit(sdunet_forward)
    y = fwd(params, x)
    jax.block_until_ready(y)

    assert y.shape == (N, out_channels, H, W), y.shape
    assert jnp.all(jnp.isfinite(y))
    print("KERNEL_OK")
</pallas_src>

<mosaic_0001>
module attributes {stable_mosaic.version = 11 : i64} {
  func.func @_dconv_bn_relu_kernel(%arg0: i32, %arg1: memref<1x16x16x4xf32, #tpu.memory_space<vmem>>, %arg2: memref<36x128xf32, #tpu.memory_space<vmem>>, %arg3: memref<1x128xf32, #tpu.memory_space<vmem>>, %arg4: memref<1x16x16x128xf32, #tpu.memory_space<vmem>>, %arg5: memref<20x20x4xf32, #tpu.memory_space<vmem>>) attributes {dimension_semantics = [#tpu.dimension_semantics<parallel>], iteration_bounds = array<i64: 2>, scalar_prefetch = 0 : i64, scratch_operands = 1 : i64, tpu.core_type = #tpu.core_type<tc>, window_params = [{transform_indices = @transform_0, window_bounds = array<i64: 1, 16, 16, 4>}, {pipeline_mode = #tpu.pipeline_mode<synchronous>, transform_indices = @transform_1, window_bounds = array<i64: 36, 128>}, {pipeline_mode = #tpu.pipeline_mode<synchronous>, transform_indices = @transform_2, window_bounds = array<i64: 1, 128>}, {transform_indices = @transform_3, window_bounds = array<i64: 1, 16, 16, 128>}]} {
    %cst = arith.constant 0.000000e+00 : f32
    %0 = vector.broadcast %cst : f32 to vector<20x20x4xf32>
    %c0 = arith.constant 0 : index
    %c0_0 = arith.constant 0 : index
    %c0_1 = arith.constant 0 : index
    %1 = vector.load %arg5[%c0, %c0_0, %c0_1] : memref<20x20x4xf32, #tpu.memory_space<vmem>>, vector<20x20x4xf32>
    tpu.vector_store %arg5[%c0, %c0_0, %c0_1], %0 {strides = array<i32>} : memref<20x20x4xf32, #tpu.memory_space<vmem>>, vector<20x20x4xf32>,
    %c0_2 = arith.constant 0 : index
    %c0_3 = arith.constant 0 : index
    %c0_4 = arith.constant 0 : index
    %c0_5 = arith.constant 0 : index
    %2 = vector.load %arg1[%c0_2, %c0_3, %c0_4, %c0_5] : memref<1x16x16x4xf32, #tpu.memory_space<vmem>>, vector<1x16x16x4xf32>
    %3 = vector.shape_cast %2 : vector<1x16x16x4xf32> to vector<16x16x4xf32>
    %c2 = arith.constant 2 : index
    %c2_6 = arith.constant 2 : index
    %c0_7 = arith.constant 0 : index
    %4 = vector.load %arg5[%c2, %c2_6, %c0_7] : memref<20x20x4xf32, #tpu.memory_space<vmem>>, vector<16x16x4xf32>
    tpu.vector_store %arg5[%c2, %c2_6, %c0_7], %3 {strides = array<i32>} : memref<20x20x4xf32, #tpu.memory_space<vmem>>, vector<16x16x4xf32>,
    %c0_8 = arith.constant 0 : index
    %c0_9 = arith.constant 0 : index
    %c0_10 = arith.constant 0 : index
    %5 = vector.load %arg5[%c0_8, %c0_9, %c0_10] : memref<20x20x4xf32, #tpu.memory_space<vmem>>, vector<16x16x4xf32>
    %c0_11 = arith.constant 0 : index
    %c2_12 = arith.constant 2 : index
    %c0_13 = arith.constant 0 : index
    %6 = vector.load %arg5[%c0_11, %c2_12, %c0_13] : memref<20x20x4xf32, #tpu.memory_space<vmem>>, vector<16x16x4xf32>
    %c0_14 = arith.constant 0 : index
    %c4 = arith.constant 4 : index
    %c0_15 = arith.constant 0 : index
    %7 = vector.load %arg5[%c0_14, %c4, %c0_15] : memref<20x20x4xf32, #tpu.memory_space<vmem>>, vector<16x16x4xf32>
    %c2_16 = arith.constant 2 : index
    %c0_17 = arith.constant 0 : index
    %c0_18 = arith.constant 0 : index
    %8 = vector.load %arg5[%c2_16, %c0_17, %c0_18] : memref<20x20x4xf32, #tpu.memory_space<vmem>>, vector<16x16x4xf32>
    %c2_19 = arith.constant 2 : index
    %c2_20 = arith.constant 2 : index
    %c0_21 = arith.constant 0 : index
    %9 = vector.load %arg5[%c2_19, %c2_20, %c0_21] : memref<20x20x4xf32, #tpu.memory_space<vmem>>, vector<16x16x4xf32>
    %c2_22 = arith.constant 2 : index
    %c4_23 = arith.constant 4 : index
    %c0_24 = arith.constant 0 : index
    %10 = vector.load %arg5[%c2_22, %c4_23, %c0_24] : memref<20x20x4xf32, #tpu.memory_space<vmem>>, vector<16x16x4xf32>
    %c4_25 = arith.constant 4 : index
    %c0_26 = arith.constant 0 : index
    %c0_27 = arith.constant 0 : index
    %11 = vector.load %arg5[%c4_25, %c0_26, %c0_27] : memref<20x20x4xf32, #tpu.memory_space<vmem>>, vector<16x16x4xf32>
    %c4_28 = arith.constant 4 : index
    %c2_29 = arith.constant 2 : index
    %c0_30 = arith.constant 0 : index
    %12 = vector.load %arg5[%c4_28, %c2_29, %c0_30] : memref<20x20x4xf32, #tpu.memory_space<vmem>>, vector<16x16x4xf32>
    %c4_31 = arith.constant 4 : index
    %c4_32 = arith.constant 4 : index
    %c0_33 = arith.constant 0 : index
    %13 = vector.load %arg5[%c4_31, %c4_32, %c0_33] : memref<20x20x4xf32, #tpu.memory_space<vmem>>, vector<16x16x4xf32>
    %14 = tpu.concatenate %5, %6, %7, %8, %9, %10, %11, %12, %13 in 2 : vector<16x16x4xf32>, vector<16x16x4xf32>, vector<16x16x4xf32>, vector<16x16x4xf32>, vector<16x16x4xf32>, vector<16x16x4xf32>, vector<16x16x4xf32>, vector<16x16x4xf32>, vector<16x16x4xf32> -> vector<16x16x36xf32>
    %15 = vector.shape_cast %14 : vector<16x16x36xf32> to vector<256x36xf32>
    %c0_34 = arith.constant 0 : index
    %c0_35 = arith.constant 0 : index
    %16 = vector.load %arg2[%c0_34, %c0_35] : memref<36x128xf32, #tpu.memory_space<vmem>>, vector<36x128xf32>
    %cst_36 = arith.constant dense<0.000000e+00> : vector<256x128xf32>
    %17 = tpu.matmul %15, %16, %cst_36 {dimension_numbers = #tpu.dot_dimension_numbers<[1], [0], [0], [1], [0, 0, 1, 1], [], []>} : vector<256x36xf32>, vector<36x128xf32>, vector<256x128xf32> -> vector<256x128xf32>
    %c0_37 = arith.constant 0 : index
    %c0_38 = arith.constant 0 : index
    %18 = vector.load %arg3[%c0_37, %c0_38] : memref<1x128xf32, #tpu.memory_space<vmem>>, vector<1x128xf32>
    %19 = vector.broadcast %18 : vector<1x128xf32> to vector<256x128xf32>
    %20 = arith.addf %17, %19 : vector<256x128xf32>
    %cst_39 = arith.constant 0.000000e+00 : f32
    %21 = vector.broadcast %cst_39 : f32 to vector<256x128xf32>
    %22 = arith.maximumf %20, %21 : vector<256x128xf32>
    %23 = vector.shape_cast %22 : vector<256x128xf32> to vector<16x16x128xf32>
    %c0_40 = arith.constant 0 : index
    %c0_41 = arith.constant 0 : index
    %c0_42 = arith.constant 0 : index
    %c0_43 = arith.constant 0 : index
    %24 = vector.load %arg4[%c0_40, %c0_41, %c0_42, %c0_43] : memref<1x16x16x128xf32, #tpu.memory_space<vmem>>, vector<1x16x16x128xf32>
    %25 = vector.shape_cast %24 : vector<1x16x16x128xf32> to vector<16x16x128xf32>
    %26 = vector.shape_cast %23 : vector<16x16x128xf32> to vector<1x16x16x128xf32>
    tpu.vector_store %arg4[%c0_40, %c0_41, %c0_42, %c0_43], %26 {strides = array<i32>} : memref<1x16x16x128xf32, #tpu.memory_space<vmem>>, vector<1x16x16x128xf32>,
    return
  }
  func.func @transform_0(%arg0: i32) -> (i32, i32, i32, i32) {
    %c0_i32 = arith.constant 0 : i32
    %c0_i32_0 = arith.constant 0 : i32
    %c0_i32_1 = arith.constant 0 : i32
    %c0_i32_2 = arith.constant 0 : i32
    return %arg0, %c0_i32, %c0_i32_0, %c0_i32_1 : i32, i32, i32, i32
  }
  func.func @transform_1(%arg0: i32) -> (i32, i32) {
    %c0_i32 = arith.constant 0 : i32
    %c0_i32_0 = arith.constant 0 : i32
    %c0_i32_1 = arith.constant 0 : i32
    return %c0_i32, %c0_i32_0 : i32, i32
  }
  func.func @transform_2(%arg0: i32) -> (i32, i32) {
    %c0_i32 = arith.constant 0 : i32
    %c0_i32_0 = arith.constant 0 : i32
    %c0_i32_1 = arith.constant 0 : i32
    return %c0_i32, %c0_i32_0 : i32, i32
  }
  func.func @transform_3(%arg0: i32) -> (i32, i32, i32, i32) {
    %c0_i32 = arith.constant 0 : i32
    %c0_i32_0 = arith.constant 0 : i32
    %c0_i32_1 = arith.constant 0 : i32
    %c0_i32_2 = arith.constant 0 : i32
    return %arg0, %c0_i32, %c0_i32_0, %c0_i32_1 : i32, i32, i32, i32
  }
}

module attributes {stable_mosaic.version = 11 : i64} {
  func.func @_dconv_bn_relu_kernel(%arg0: i32, %arg1: memref<1x8x8x128xf32, #tpu.memory_space<vmem>>, %arg2: memref<1152x128xf32, #tpu.memory_space<vmem>>, %arg3: memref<1x128xf32, #tpu.memory_space<vmem>>, %arg4: memref<1x8x8x128xf32, #tpu.memory_space<vmem>>, %arg5: memref<12x12x128xf32, #tpu.memory_space<vmem>>) attributes {dimension_semantics = [#tpu.dimension_semantics<parallel>], iteration_bounds = array<i64: 2>, scalar_prefetch = 0 : i64, scratch_operands = 1 : i64, tpu.core_type = #tpu.core_type<tc>, window_params = [{transform_indices = @transform_0, window_bounds = array<i64: 1, 8, 8, 128>}, {pipeline_mode = #tpu.pipeline_mode<synchronous>, transform_indices = @transform_1, window_bounds = array<i64: 1152, 128>}, {pipeline_mode = #tpu.pipeline_mode<synchronous>, transform_indices = @transform_2, window_bounds = array<i64: 1, 128>}, {transform_indices = @transform_3, window_bounds = array<i64: 1, 8, 8, 128>}]} {
    %cst = arith.constant 0.000000e+00 : f32
    %0 = vector.broadcast %cst : f32 to vector<12x12x128xf32>
    %c0 = arith.constant 0 : index
    %c0_0 = arith.constant 0 : index
    %c0_1 = arith.constant 0 : index
    %1 = vector.load %arg5[%c0, %c0_0, %c0_1] : memref<12x12x128xf32, #tpu.memory_space<vmem>>, vector<12x12x128xf32>
    tpu.vector_store %arg5[%c0, %c0_0, %c0_1], %0 {strides = array<i32>} : memref<12x12x128xf32, #tpu.memory_space<vmem>>, vector<12x12x128xf32>,
    %c0_2 = arith.constant 0 : index
    %c0_3 = arith.constant 0 : index
    %c0_4 = arith.constant 0 : index
    %c0_5 = arith.constant 0 : index
    %2 = vector.load %arg1[%c0_2, %c0_3, %c0_4, %c0_5] : memref<1x8x8x128xf32, #tpu.memory_space<vmem>>, vector<1x8x8x128xf32>
    %3 = vector.shape_cast %2 : vector<1x8x8x128xf32> to vector<8x8x128xf32>
    %c2 = arith.constant 2 : index
    %c2_6 = arith.constant 2 : index
    %c0_7 = arith.constant 0 : index
    %4 = vector.load %arg5[%c2, %c2_6, %c0_7] : memref<12x12x128xf32, #tpu.memory_space<vmem>>, vector<8x8x128xf32>
    tpu.vector_store %arg5[%c2, %c2_6, %c0_7], %3 {strides = array<i32>} : memref<12x12x128xf32, #tpu.memory_space<vmem>>, vector<8x8x128xf32>,
    %c0_8 = arith.constant 0 : index
    %c0_9 = arith.constant 0 : index
    %c0_10 = arith.constant 0 : index
    %5 = vector.load %arg5[%c0_8, %c0_9, %c0_10] : memref<12x12x128xf32, #tpu.memory_space<vmem>>, vector<8x8x128xf32>
    %c0_11 = arith.constant 0 : index
    %c2_12 = arith.constant 2 : index
    %c0_13 = arith.constant 0 : index
    %6 = vector.load %arg5[%c0_11, %c2_12, %c0_13] : memref<12x12x128xf32, #tpu.memory_space<vmem>>, vector<8x8x128xf32>
    %c0_14 = arith.constant 0 : index
    %c4 = arith.constant 4 : index
    %c0_15 = arith.constant 0 : index
    %7 = vector.load %arg5[%c0_14, %c4, %c0_15] : memref<12x12x128xf32, #tpu.memory_space<vmem>>, vector<8x8x128xf32>
    %c2_16 = arith.constant 2 : index
    %c0_17 = arith.constant 0 : index
    %c0_18 = arith.constant 0 : index
    %8 = vector.load %arg5[%c2_16, %c0_17, %c0_18] : memref<12x12x128xf32, #tpu.memory_space<vmem>>, vector<8x8x128xf32>
    %c2_19 = arith.constant 2 : index
    %c2_20 = arith.constant 2 : index
    %c0_21 = arith.constant 0 : index
    %9 = vector.load %arg5[%c2_19, %c2_20, %c0_21] : memref<12x12x128xf32, #tpu.memory_space<vmem>>, vector<8x8x128xf32>
    %c2_22 = arith.constant 2 : index
    %c4_23 = arith.constant 4 : index
    %c0_24 = arith.constant 0 : index
    %10 = vector.load %arg5[%c2_22, %c4_23, %c0_24] : memref<12x12x128xf32, #tpu.memory_space<vmem>>, vector<8x8x128xf32>
    %c4_25 = arith.constant 4 : index
    %c0_26 = arith.constant 0 : index
    %c0_27 = arith.constant 0 : index
    %11 = vector.load %arg5[%c4_25, %c0_26, %c0_27] : memref<12x12x128xf32, #tpu.memory_space<vmem>>, vector<8x8x128xf32>
    %c4_28 = arith.constant 4 : index
    %c2_29 = arith.constant 2 : index
    %c0_30 = arith.constant 0 : index
    %12 = vector.load %arg5[%c4_28, %c2_29, %c0_30] : memref<12x12x128xf32, #tpu.memory_space<vmem>>, vector<8x8x128xf32>
    %c4_31 = arith.constant 4 : index
    %c4_32 = arith.constant 4 : index
    %c0_33 = arith.constant 0 : index
    %13 = vector.load %arg5[%c4_31, %c4_32, %c0_33] : memref<12x12x128xf32, #tpu.memory_space<vmem>>, vector<8x8x128xf32>
    %14 = tpu.concatenate %5, %6, %7, %8, %9, %10, %11, %12, %13 in 2 : vector<8x8x128xf32>, vector<8x8x128xf32>, vector<8x8x128xf32>, vector<8x8x128xf32>, vector<8x8x128xf32>, vector<8x8x128xf32>, vector<8x8x128xf32>, vector<8x8x128xf32>, vector<8x8x128xf32> -> vector<8x8x1152xf32>
    %15 = vector.shape_cast %14 : vector<8x8x1152xf32> to vector<64x1152xf32>
    %c0_34 = arith.constant 0 : index
    %c0_35 = arith.constant 0 : index
    %16 = vector.load %arg2[%c0_34, %c0_35] : memref<1152x128xf32, #tpu.memory_space<vmem>>, vector<1152x128xf32>
    %cst_36 = arith.constant dense<0.000000e+00> : vector<64x128xf32>
    %17 = tpu.matmul %15, %16, %cst_36 {dimension_numbers = #tpu.dot_dimension_numbers<[1], [0], [0], [1], [0, 0, 1, 1], [], []>} : vector<64x1152xf32>, vector<1152x128xf32>, vector<64x128xf32> -> vector<64x128xf32>
    %c0_37 = arith.constant 0 : index
    %c0_38 = arith.constant 0 : index
    %18 = vector.load %arg3[%c0_37, %c0_38] : memref<1x128xf32, #tpu.memory_space<vmem>>, vector<1x128xf32>
    %19 = vector.broadcast %18 : vector<1x128xf32> to vector<64x128xf32>
    %20 = arith.addf %17, %19 : vector<64x128xf32>
    %cst_39 = arith.constant 0.000000e+00 : f32
    %21 = vector.broadcast %cst_39 : f32 to vector<64x128xf32>
    %22 = arith.maximumf %20, %21 : vector<64x128xf32>
    %23 = vector.shape_cast %22 : vector<64x128xf32> to vector<8x8x128xf32>
    %c0_40 = arith.constant 0 : index
    %c0_41 = arith.constant 0 : index
    %c0_42 = arith.constant 0 : index
    %c0_43 = arith.constant 0 : index
    %24 = vector.load %arg4[%c0_40, %c0_41, %c0_42, %c0_43] : memref<1x8x8x128xf32, #tpu.memory_space<vmem>>, vector<1x8x8x128xf32>
    %25 = vector.shape_cast %24 : vector<1x8x8x128xf32> to vector<8x8x128xf32>
    %26 = vector.shape_cast %23 : vector<8x8x128xf32> to vector<1x8x8x128xf32>
    tpu.vector_store %arg4[%c0_40, %c0_41, %c0_42, %c0_43], %26 {strides = array<i32>} : memref<1x8x8x128xf32, #tpu.memory_space<vmem>>, vector<1x8x8x128xf32>,
    return
  }
  func.func @transform_0(%arg0: i32) -> (i32, i32, i32, i32) {
    %c0_i32 = arith.constant 0 : i32
    %c0_i32_0 = arith.constant 0 : i32
    %c0_i32_1 = arith.constant 0 : i32
    %c0_i32_2 = arith.constant 0 : i32
    return %arg0, %c0_i32, %c0_i32_0, %c0_i32_1 : i32, i32, i32, i32
  }
  func.func @transform_1(%arg0: i32) -> (i32, i32) {
    %c0_i32 = arith.constant 0 : i32
    %c0_i32_0 = arith.constant 0 : i32
    %c0_i32_1 = arith.constant 0 : i32
    return %c0_i32, %c0_i32_0 : i32, i32
  }
  func.func @transform_2(%arg0: i32) -> (i32, i32) {
    %c0_i32 = arith.constant 0 : i32
    %c0_i32_0 = arith.constant 0 : i32
    %c0_i32_1 = arith.constant 0 : i32
    return %c0_i32, %c0_i32_0 : i32, i32
  }
  func.func @transform_3(%arg0: i32) -> (i32, i32, i32, i32) {
    %c0_i32 = arith.constant 0 : i32
    %c0_i32_0 = arith.constant 0 : i32
    %c0_i32_1 = arith.constant 0 : i32
    %c0_i32_2 = arith.constant 0 : i32
    return %arg0, %c0_i32, %c0_i32_0, %c0_i32_1 : i32, i32, i32, i32
  }
}

module attributes {stable_mosaic.version = 11 : i64} {
  func.func @_dconv_bn_relu_kernel(%arg0: i32, %arg1: memref<1x4x4x128xf32, #tpu.memory_space<vmem>>, %arg2: memref<1152x128xf32, #tpu.memory_space<vmem>>, %arg3: memref<1x128xf32, #tpu.memory_space<vmem>>, %arg4: memref<1x4x4x128xf32, #tpu.memory_space<vmem>>, %arg5: memref<8x8x128xf32, #tpu.memory_space<vmem>>) attributes {dimension_semantics = [#tpu.dimension_semantics<parallel>], iteration_bounds = array<i64: 2>, scalar_prefetch = 0 : i64, scratch_operands = 1 : i64, tpu.core_type = #tpu.core_type<tc>, window_params = [{transform_indices = @transform_0, window_bounds = array<i64: 1, 4, 4, 128>}, {pipeline_mode = #tpu.pipeline_mode<synchronous>, transform_indices = @transform_1, window_bounds = array<i64: 1152, 128>}, {pipeline_mode = #tpu.pipeline_mode<synchronous>, transform_indices = @transform_2, window_bounds = array<i64: 1, 128>}, {transform_indices = @transform_3, window_bounds = array<i64: 1, 4, 4, 128>}]} {
    %cst = arith.constant 0.000000e+00 : f32
    %0 = vector.broadcast %cst : f32 to vector<8x8x128xf32>
    %c0 = arith.constant 0 : index
    %c0_0 = arith.constant 0 : index
    %c0_1 = arith.constant 0 : index
    %1 = vector.load %arg5[%c0, %c0_0, %c0_1] : memref<8x8x128xf32, #tpu.memory_space<vmem>>, vector<8x8x128xf32>
    tpu.vector_store %arg5[%c0, %c0_0, %c0_1], %0 {strides = array<i32>} : memref<8x8x128xf32, #tpu.memory_space<vmem>>, vector<8x8x128xf32>,
    %c0_2 = arith.constant 0 : index
    %c0_3 = arith.constant 0 : index
    %c0_4 = arith.constant 0 : index
    %c0_5 = arith.constant 0 : index
    %2 = vector.load %arg1[%c0_2, %c0_3, %c0_4, %c0_5] : memref<1x4x4x128xf32, #tpu.memory_space<vmem>>, vector<1x4x4x128xf32>
    %3 = vector.shape_cast %2 : vector<1x4x4x128xf32> to vector<4x4x128xf32>
    %c2 = arith.constant 2 : index
    %c2_6 = arith.constant 2 : index
    %c0_7 = arith.constant 0 : index
    %4 = vector.load %arg5[%c2, %c2_6, %c0_7] : memref<8x8x128xf32, #tpu.memory_space<vmem>>, vector<4x4x128xf32>
    tpu.vector_store %arg5[%c2, %c2_6, %c0_7], %3 {strides = array<i32>} : memref<8x8x128xf32, #tpu.memory_space<vmem>>, vector<4x4x128xf32>,
    %c0_8 = arith.constant 0 : index
    %c0_9 = arith.constant 0 : index
    %c0_10 = arith.constant 0 : index
    %5 = vector.load %arg5[%c0_8, %c0_9, %c0_10] : memref<8x8x128xf32, #tpu.memory_space<vmem>>, vector<4x4x128xf32>
    %c0_11 = arith.constant 0 : index
    %c2_12 = arith.constant 2 : index
    %c0_13 = arith.constant 0 : index
    %6 = vector.load %arg5[%c0_11, %c2_12, %c0_13] : memref<8x8x128xf32, #tpu.memory_space<vmem>>, vector<4x4x128xf32>
    %c0_14 = arith.constant 0 : index
    %c4 = arith.constant 4 : index
    %c0_15 = arith.constant 0 : index
    %7 = vector.load %arg5[%c0_14, %c4, %c0_15] : memref<8x8x128xf32, #tpu.memory_space<vmem>>, vector<4x4x128xf32>
    %c2_16 = arith.constant 2 : index
    %c0_17 = arith.constant 0 : index
    %c0_18 = arith.constant 0 : index
    %8 = vector.load %arg5[%c2_16, %c0_17, %c0_18] : memref<8x8x128xf32, #tpu.memory_space<vmem>>, vector<4x4x128xf32>
    %c2_19 = arith.constant 2 : index
    %c2_20 = arith.constant 2 : index
    %c0_21 = arith.constant 0 : index
    %9 = vector.load %arg5[%c2_19, %c2_20, %c0_21] : memref<8x8x128xf32, #tpu.memory_space<vmem>>, vector<4x4x128xf32>
    %c2_22 = arith.constant 2 : index
    %c4_23 = arith.constant 4 : index
    %c0_24 = arith.constant 0 : index
    %10 = vector.load %arg5[%c2_22, %c4_23, %c0_24] : memref<8x8x128xf32, #tpu.memory_space<vmem>>, vector<4x4x128xf32>
    %c4_25 = arith.constant 4 : index
    %c0_26 = arith.constant 0 : index
    %c0_27 = arith.constant 0 : index
    %11 = vector.load %arg5[%c4_25, %c0_26, %c0_27] : memref<8x8x128xf32, #tpu.memory_space<vmem>>, vector<4x4x128xf32>
    %c4_28 = arith.constant 4 : index
    %c2_29 = arith.constant 2 : index
    %c0_30 = arith.constant 0 : index
    %12 = vector.load %arg5[%c4_28, %c2_29, %c0_30] : memref<8x8x128xf32, #tpu.memory_space<vmem>>, vector<4x4x128xf32>
    %c4_31 = arith.constant 4 : index
    %c4_32 = arith.constant 4 : index
    %c0_33 = arith.constant 0 : index
    %13 = vector.load %arg5[%c4_31, %c4_32, %c0_33] : memref<8x8x128xf32, #tpu.memory_space<vmem>>, vector<4x4x128xf32>
    %14 = tpu.concatenate %5, %6, %7, %8, %9, %10, %11, %12, %13 in 2 : vector<4x4x128xf32>, vector<4x4x128xf32>, vector<4x4x128xf32>, vector<4x4x128xf32>, vector<4x4x128xf32>, vector<4x4x128xf32>, vector<4x4x128xf32>, vector<4x4x128xf32>, vector<4x4x128xf32> -> vector<4x4x1152xf32>
    %15 = vector.shape_cast %14 : vector<4x4x1152xf32> to vector<16x1152xf32>
    %c0_34 = arith.constant 0 : index
    %c0_35 = arith.constant 0 : index
    %16 = vector.load %arg2[%c0_34, %c0_35] : memref<1152x128xf32, #tpu.memory_space<vmem>>, vector<1152x128xf32>
    %cst_36 = arith.constant dense<0.000000e+00> : vector<16x128xf32>
    %17 = tpu.matmul %15, %16, %cst_36 {dimension_numbers = #tpu.dot_dimension_numbers<[1], [0], [0], [1], [0, 0, 1, 1], [], []>} : vector<16x1152xf32>, vector<1152x128xf32>, vector<16x128xf32> -> vector<16x128xf32>
    %c0_37 = arith.constant 0 : index
    %c0_38 = arith.constant 0 : index
    %18 = vector.load %arg3[%c0_37, %c0_38] : memref<1x128xf32, #tpu.memory_space<vmem>>, vector<1x128xf32>
    %19 = vector.broadcast %18 : vector<1x128xf32> to vector<16x128xf32>
    %20 = arith.addf %17, %19 : vector<16x128xf32>
    %cst_39 = arith.constant 0.000000e+00 : f32
    %21 = vector.broadcast %cst_39 : f32 to vector<16x128xf32>
    %22 = arith.maximumf %20, %21 : vector<16x128xf32>
    %23 = vector.shape_cast %22 : vector<16x128xf32> to vector<4x4x128xf32>
    %c0_40 = arith.constant 0 : index
    %c0_41 = arith.constant 0 : index
    %c0_42 = arith.constant 0 : index
    %c0_43 = arith.constant 0 : index
    %24 = vector.load %arg4[%c0_40, %c0_41, %c0_42, %c0_43] : memref<1x4x4x128xf32, #tpu.memory_space<vmem>>, vector<1x4x4x128xf32>
    %25 = vector.shape_cast %24 : vector<1x4x4x128xf32> to vector<4x4x128xf32>
    %26 = vector.shape_cast %23 : vector<4x4x128xf32> to vector<1x4x4x128xf32>
    tpu.vector_store %arg4[%c0_40, %c0_41, %c0_42, %c0_43], %26 {strides = array<i32>} : memref<1x4x4x128xf32, #tpu.memory_space<vmem>>, vector<1x4x4x128xf32>,
    return
  }
  func.func @transform_0(%arg0: i32) -> (i32, i32, i32, i32) {
    %c0_i32 = arith.constant 0 : i32
    %c0_i32_0 = arith.constant 0 : i32
    %c0_i32_1 = arith.constant 0 : i32
    %c0_i32_2 = arith.constant 0 : i32
    return %arg0, %c0_i32, %c0_i32_0, %c0_i32_1 : i32, i32, i32, i32
  }
  func.func @transform_1(%arg0: i32) -> (i32, i32) {
    %c0_i32 = arith.constant 0 : i32
    %c0_i32_0 = arith.constant 0 : i32
    %c0_i32_1 = arith.constant 0 : i32
    return %c0_i32, %c0_i32_0 : i32, i32
  }
  func.func @transform_2(%arg0: i32) -> (i32, i32) {
    %c0_i32 = arith.constant 0 : i32
    %c0_i32_0 = arith.constant 0 : i32
    %c0_i32_1 = arith.constant 0 : i32
    return %c0_i32, %c0_i32_0 : i32, i32
  }
  func.func @transform_3(%arg0: i32) -> (i32, i32, i32, i32) {
    %c0_i32 = arith.constant 0 : i32
    %c0_i32_0 = arith.constant 0 : i32
    %c0_i32_1 = arith.constant 0 : i32
    %c0_i32_2 = arith.constant 0 : i32
    return %arg0, %c0_i32, %c0_i32_0, %c0_i32_1 : i32, i32, i32, i32
  }
}

module attributes {stable_mosaic.version = 11 : i64} {
  func.func @_dconv2_bn_relu_kernel(%arg0: i32, %arg1: memref<1x8x8x128xf32, #tpu.memory_space<vmem>>, %arg2: memref<1x8x8x128xf32, #tpu.memory_space<vmem>>, %arg3: memref<1152x128xf32, #tpu.memory_space<vmem>>, %arg4: memref<1152x128xf32, #tpu.memory_space<vmem>>, %arg5: memref<1x128xf32, #tpu.memory_space<vmem>>, %arg6: memref<1x8x8x128xf32, #tpu.memory_space<vmem>>, %arg7: memref<12x12x128xf32, #tpu.memory_space<vmem>>, %arg8: memref<12x12x128xf32, #tpu.memory_space<vmem>>) attributes {dimension_semantics = [#tpu.dimension_semantics<parallel>], iteration_bounds = array<i64: 2>, scalar_prefetch = 0 : i64, scratch_operands = 2 : i64, tpu.core_type = #tpu.core_type<tc>, window_params = [{transform_indices = @transform_0, window_bounds = array<i64: 1, 8, 8, 128>}, {transform_indices = @transform_1, window_bounds = array<i64: 1, 8, 8, 128>}, {pipeline_mode = #tpu.pipeline_mode<synchronous>, transform_indices = @transform_2, window_bounds = array<i64: 1152, 128>}, {pipeline_mode = #tpu.pipeline_mode<synchronous>, transform_indices = @transform_3, window_bounds = array<i64: 1152, 128>}, {pipeline_mode = #tpu.pipeline_mode<synchronous>, transform_indices = @transform_4, window_bounds = array<i64: 1, 128>}, {transform_indices = @transform_5, window_bounds = array<i64: 1, 8, 8, 128>}]} {
    %cst = arith.constant 0.000000e+00 : f32
    %0 = vector.broadcast %cst : f32 to vector<12x12x128xf32>
    %c0 = arith.constant 0 : index
    %c0_0 = arith.constant 0 : index
    %c0_1 = arith.constant 0 : index
    %1 = vector.load %arg7[%c0, %c0_0, %c0_1] : memref<12x12x128xf32, #tpu.memory_space<vmem>>, vector<12x12x128xf32>
    tpu.vector_store %arg7[%c0, %c0_0, %c0_1], %0 {strides = array<i32>} : memref<12x12x128xf32, #tpu.memory_space<vmem>>, vector<12x12x128xf32>,
    %cst_2 = arith.constant 0.000000e+00 : f32
    %2 = vector.broadcast %cst_2 : f32 to vector<12x12x128xf32>
    %c0_3 = arith.constant 0 : index
    %c0_4 = arith.constant 0 : index
    %c0_5 = arith.constant 0 : index
    %3 = vector.load %arg8[%c0_3, %c0_4, %c0_5] : memref<12x12x128xf32, #tpu.memory_space<vmem>>, vector<12x12x128xf32>
    tpu.vector_store %arg8[%c0_3, %c0_4, %c0_5], %2 {strides = array<i32>} : memref<12x12x128xf32, #tpu.memory_space<vmem>>, vector<12x12x128xf32>,
    %c0_6 = arith.constant 0 : index
    %c0_7 = arith.constant 0 : index
    %c0_8 = arith.constant 0 : index
    %c0_9 = arith.constant 0 : index
    %4 = vector.load %arg1[%c0_6, %c0_7, %c0_8, %c0_9] : memref<1x8x8x128xf32, #tpu.memory_space<vmem>>, vector<1x8x8x128xf32>
    %5 = vector.shape_cast %4 : vector<1x8x8x128xf32> to vector<8x8x128xf32>
    %c2 = arith.constant 2 : index
    %c2_10 = arith.constant 2 : index
    %c0_11 = arith.constant 0 : index
    %6 = vector.load %arg7[%c2, %c2_10, %c0_11] : memref<12x12x128xf32, #tpu.memory_space<vmem>>, vector<8x8x128xf32>
    tpu.vector_store %arg7[%c2, %c2_10, %c0_11], %5 {strides = array<i32>} : memref<12x12x128xf32, #tpu.memory_space<vmem>>, vector<8x8x128xf32>,
    %c0_12 = arith.constant 0 : index
    %c0_13 = arith.constant 0 : index
    %c0_14 = arith.constant 0 : index
    %c0_15 = arith.constant 0 : index
    %7 = vector.load %arg2[%c0_12, %c0_13, %c0_14, %c0_15] : memref<1x8x8x128xf32, #tpu.memory_space<vmem>>, vector<1x8x8x128xf32>
    %8 = vector.shape_cast %7 : vector<1x8x8x128xf32> to vector<8x8x128xf32>
    %c2_16 = arith.constant 2 : index
    %c2_17 = arith.constant 2 : index
    %c0_18 = arith.constant 0 : index
    %9 = vector.load %arg8[%c2_16, %c2_17, %c0_18] : memref<12x12x128xf32, #tpu.memory_space<vmem>>, vector<8x8x128xf32>
    tpu.vector_store %arg8[%c2_16, %c2_17, %c0_18], %8 {strides = array<i32>} : memref<12x12x128xf32, #tpu.memory_space<vmem>>, vector<8x8x128xf32>,
    %c0_19 = arith.constant 0 : index
    %c0_20 = arith.constant 0 : index
    %c0_21 = arith.constant 0 : index
    %10 = vector.load %arg7[%c0_19, %c0_20, %c0_21] : memref<12x12x128xf32, #tpu.memory_space<vmem>>, vector<8x8x128xf32>
    %c0_22 = arith.constant 0 : index
    %c2_23 = arith.constant 2 : index
    %c0_24 = arith.constant 0 : index
    %11 = vector.load %arg7[%c0_22, %c2_23, %c0_24] : memref<12x12x128xf32, #tpu.memory_space<vmem>>, vector<8x8x128xf32>
    %c0_25 = arith.constant 0 : index
    %c4 = arith.constant 4 : index
    %c0_26 = arith.constant 0 : index
    %12 = vector.load %arg7[%c0_25, %c4, %c0_26] : memref<12x12x128xf32, #tpu.memory_space<vmem>>, vector<8x8x128xf32>
    %c2_27 = arith.constant 2 : index
    %c0_28 = arith.constant 0 : index
    %c0_29 = arith.constant 0 : index
    %13 = vector.load %arg7[%c2_27, %c0_28, %c0_29] : memref<12x12x128xf32, #tpu.memory_space<vmem>>, vector<8x8x128xf32>
    %c2_30 = arith.constant 2 : index
    %c2_31 = arith.constant 2 : index
    %c0_32 = arith.constant 0 : index
    %14 = vector.load %arg7[%c2_30, %c2_31, %c0_32] : memref<12x12x128xf32, #tpu.memory_space<vmem>>, vector<8x8x128xf32>
    %c2_33 = arith.constant 2 : index
    %c4_34 = arith.constant 4 : index
    %c0_35 = arith.constant 0 : index
    %15 = vector.load %arg7[%c2_33, %c4_34, %c0_35] : memref<12x12x128xf32, #tpu.memory_space<vmem>>, vector<8x8x128xf32>
    %c4_36 = arith.constant 4 : index
    %c0_37 = arith.constant 0 : index
    %c0_38 = arith.constant 0 : index
    %16 = vector.load %arg7[%c4_36, %c0_37, %c0_38] : memref<12x12x128xf32, #tpu.memory_space<vmem>>, vector<8x8x128xf32>
    %c4_39 = arith.constant 4 : index
    %c2_40 = arith.constant 2 : index
    %c0_41 = arith.constant 0 : index
    %17 = vector.load %arg7[%c4_39, %c2_40, %c0_41] : memref<12x12x128xf32, #tpu.memory_space<vmem>>, vector<8x8x128xf32>
    %c4_42 = arith.constant 4 : index
    %c4_43 = arith.constant 4 : index
    %c0_44 = arith.constant 0 : index
    %18 = vector.load %arg7[%c4_42, %c4_43, %c0_44] : memref<12x12x128xf32, #tpu.memory_space<vmem>>, vector<8x8x128xf32>
    %19 = tpu.concatenate %10, %11, %12, %13, %14, %15, %16, %17, %18 in 2 : vector<8x8x128xf32>, vector<8x8x128xf32>, vector<8x8x128xf32>, vector<8x8x128xf32>, vector<8x8x128xf32>, vector<8x8x128xf32>, vector<8x8x128xf32>, vector<8x8x128xf32>, vector<8x8x128xf32> -> vector<8x8x1152xf32>
    %20 = vector.shape_cast %19 : vector<8x8x1152xf32> to vector<64x1152xf32>
    %c0_45 = arith.constant 0 : index
    %c0_46 = arith.constant 0 : index
    %21 = vector.load %arg3[%c0_45, %c0_46] : memref<1152x128xf32, #tpu.memory_space<vmem>>, vector<1152x128xf32>
    %cst_47 = arith.constant dense<0.000000e+00> : vector<64x128xf32>
    %22 = tpu.matmul %20, %21, %cst_47 {dimension_numbers = #tpu.dot_dimension_numbers<[1], [0], [0], [1], [0, 0, 1, 1], [], []>} : vector<64x1152xf32>, vector<1152x128xf32>, vector<64x128xf32> -> vector<64x128xf32>
    %c0_48 = arith.constant 0 : index
    %c0_49 = arith.constant 0 : index
    %c0_50 = arith.constant 0 : index
    %23 = vector.load %arg8[%c0_48, %c0_49, %c0_50] : memref<12x12x128xf32, #tpu.memory_space<vmem>>, vector<8x8x128xf32>
    %c0_51 = arith.constant 0 : index
    %c2_52 = arith.constant 2 : index
    %c0_53 = arith.constant 0 : index
    %24 = vector.load %arg8[%c0_51, %c2_52, %c0_53] : memref<12x12x128xf32, #tpu.memory_space<vmem>>, vector<8x8x128xf32>
    %c0_54 = arith.constant 0 : index
    %c4_55 = arith.constant 4 : index
    %c0_56 = arith.constant 0 : index
    %25 = vector.load %arg8[%c0_54, %c4_55, %c0_56] : memref<12x12x128xf32, #tpu.memory_space<vmem>>, vector<8x8x128xf32>
    %c2_57 = arith.constant 2 : index
    %c0_58 = arith.constant 0 : index
    %c0_59 = arith.constant 0 : index
    %26 = vector.load %arg8[%c2_57, %c0_58, %c0_59] : memref<12x12x128xf32, #tpu.memory_space<vmem>>, vector<8x8x128xf32>
    %c2_60 = arith.constant 2 : index
    %c2_61 = arith.constant 2 : index
    %c0_62 = arith.constant 0 : index
    %27 = vector.load %arg8[%c2_60, %c2_61, %c0_62] : memref<12x12x128xf32, #tpu.memory_space<vmem>>, vector<8x8x128xf32>
    %c2_63 = arith.constant 2 : index
    %c4_64 = arith.constant 4 : index
    %c0_65 = arith.constant 0 : index
    %28 = vector.load %arg8[%c2_63, %c4_64, %c0_65] : memref<12x12x128xf32, #tpu.memory_space<vmem>>, vector<8x8x128xf32>
    %c4_66 = arith.constant 4 : index
    %c0_67 = arith.constant 0 : index
    %c0_68 = arith.constant 0 : index
    %29 = vector.load %arg8[%c4_66, %c0_67, %c0_68] : memref<12x12x128xf32, #tpu.memory_space<vmem>>, vector<8x8x128xf32>
    %c4_69 = arith.constant 4 : index
    %c2_70 = arith.constant 2 : index
    %c0_71 = arith.constant 0 : index
    %30 = vector.load %arg8[%c4_69, %c2_70, %c0_71] : memref<12x12x128xf32, #tpu.memory_space<vmem>>, vector<8x8x128xf32>
    %c4_72 = arith.constant 4 : index
    %c4_73 = arith.constant 4 : index
    %c0_74 = arith.constant 0 : index
    %31 = vector.load %arg8[%c4_72, %c4_73, %c0_74] : memref<12x12x128xf32, #tpu.memory_space<vmem>>, vector<8x8x128xf32>
    %32 = tpu.concatenate %23, %24, %25, %26, %27, %28, %29, %30, %31 in 2 : vector<8x8x128xf32>, vector<8x8x128xf32>, vector<8x8x128xf32>, vector<8x8x128xf32>, vector<8x8x128xf32>, vector<8x8x128xf32>, vector<8x8x128xf32>, vector<8x8x128xf32>, vector<8x8x128xf32> -> vector<8x8x1152xf32>
    %33 = vector.shape_cast %32 : vector<8x8x1152xf32> to vector<64x1152xf32>
    %c0_75 = arith.constant 0 : index
    %c0_76 = arith.constant 0 : index
    %34 = vector.load %arg4[%c0_75, %c0_76] : memref<1152x128xf32, #tpu.memory_space<vmem>>, vector<1152x128xf32>
    %cst_77 = arith.constant dense<0.000000e+00> : vector<64x128xf32>
    %35 = tpu.matmul %33, %34, %cst_77 {dimension_numbers = #tpu.dot_dimension_numbers<[1], [0], [0], [1], [0, 0, 1, 1], [], []>} : vector<64x1152xf32>, vector<1152x128xf32>, vector<64x128xf32> -> vector<64x128xf32>
    %36 = arith.addf %22, %35 : vector<64x128xf32>
    %c0_78 = arith.constant 0 : index
    %c0_79 = arith.constant 0 : index
    %37 = vector.load %arg5[%c0_78, %c0_79] : memref<1x128xf32, #tpu.memory_space<vmem>>, vector<1x128xf32>
    %38 = vector.broadcast %37 : vector<1x128xf32> to vector<64x128xf32>
    %39 = arith.addf %36, %38 : vector<64x128xf32>
    %cst_80 = arith.constant 0.000000e+00 : f32
    %40 = vector.broadcast %cst_80 : f32 to vector<64x128xf32>
    %41 = arith.maximumf %39, %40 : vector<64x128xf32>
    %42 = vector.shape_cast %41 : vector<64x128xf32> to vector<8x8x128xf32>
    %c0_81 = arith.constant 0 : index
    %c0_82 = arith.constant 0 : index
    %c0_83 = arith.constant 0 : index
    %c0_84 = arith.constant 0 : index
    %43 = vector.load %arg6[%c0_81, %c0_82, %c0_83, %c0_84] : memref<1x8x8x128xf32, #tpu.memory_space<vmem>>, vector<1x8x8x128xf32>
    %44 = vector.shape_cast %43 : vector<1x8x8x128xf32> to vector<8x8x128xf32>
    %45 = vector.shape_cast %42 : vector<8x8x128xf32> to vector<1x8x8x128xf32>
    tpu.vector_store %arg6[%c0_81, %c0_82, %c0_83, %c0_84], %45 {strides = array<i32>} : memref<1x8x8x128xf32, #tpu.memory_space<vmem>>, vector<1x8x8x128xf32>,
    return
  }
  func.func @transform_0(%arg0: i32) -> (i32, i32, i32, i32) {
    %c0_i32 = arith.constant 0 : i32
    %c0_i32_0 = arith.constant 0 : i32
    %c0_i32_1 = arith.constant 0 : i32
    %c0_i32_2 = arith.constant 0 : i32
    return %arg0, %c0_i32, %c0_i32_0, %c0_i32_1 : i32, i32, i32, i32
  }
  func.func @transform_1(%arg0: i32) -> (i32, i32, i32, i32) {
    %c0_i32 = arith.constant 0 : i32
    %c0_i32_0 = arith.constant 0 : i32
    %c0_i32_1 = arith.constant 0 : i32
    %c0_i32_2 = arith.constant 0 : i32
    return %arg0, %c0_i32, %c0_i32_0, %c0_i32_1 : i32, i32, i32, i32
  }
  func.func @transform_2(%arg0: i32) -> (i32, i32) {
    %c0_i32 = arith.constant 0 : i32
    %c0_i32_0 = arith.constant 0 : i32
    %c0_i32_1 = arith.constant 0 : i32
    return %c0_i32, %c0_i32_0 : i32, i32
  }
  func.func @transform_3(%arg0: i32) -> (i32, i32) {
    %c0_i32 = arith.constant 0 : i32
    %c0_i32_0 = arith.constant 0 : i32
    %c0_i32_1 = arith.constant 0 : i32
    return %c0_i32, %c0_i32_0 : i32, i32
  }
  func.func @transform_4(%arg0: i32) -> (i32, i32) {
    %c0_i32 = arith.constant 0 : i32
    %c0_i32_0 = arith.constant 0 : i32
    %c0_i32_1 = arith.constant 0 : i32
    return %c0_i32, %c0_i32_0 : i32, i32
  }
  func.func @transform_5(%arg0: i32) -> (i32, i32, i32, i32) {
    %c0_i32 = arith.constant 0 : i32
    %c0_i32_0 = arith.constant 0 : i32
    %c0_i32_1 = arith.constant 0 : i32
    %c0_i32_2 = arith.constant 0 : i32
    return %arg0, %c0_i32, %c0_i32_0, %c0_i32_1 : i32, i32, i32, i32
  }
}

module attributes {stable_mosaic.version = 11 : i64} {
  func.func @_dconv2_bn_relu_final_kernel(%arg0: i32, %arg1: memref<1x16x16x128xf32, #tpu.memory_space<vmem>>, %arg2: memref<1x16x16x128xf32, #tpu.memory_space<vmem>>, %arg3: memref<1152x128xf32, #tpu.memory_space<vmem>>, %arg4: memref<1152x128xf32, #tpu.memory_space<vmem>>, %arg5: memref<1x128xf32, #tpu.memory_space<vmem>>, %arg6: memref<128x128xf32, #tpu.memory_space<vmem>>, %arg7: memref<1x128xf32, #tpu.memory_space<vmem>>, %arg8: memref<1x16x16x128xf32, #tpu.memory_space<vmem>>, %arg9: memref<20x20x128xf32, #tpu.memory_space<vmem>>, %arg10: memref<20x20x128xf32, #tpu.memory_space<vmem>>) attributes {dimension_semantics = [#tpu.dimension_semantics<parallel>], iteration_bounds = array<i64: 2>, scalar_prefetch = 0 : i64, scratch_operands = 2 : i64, tpu.core_type = #tpu.core_type<tc>, window_params = [{transform_indices = @transform_0, window_bounds = array<i64: 1, 16, 16, 128>}, {transform_indices = @transform_1, window_bounds = array<i64: 1, 16, 16, 128>}, {pipeline_mode = #tpu.pipeline_mode<synchronous>, transform_indices = @transform_2, window_bounds = array<i64: 1152, 128>}, {pipeline_mode = #tpu.pipeline_mode<synchronous>, transform_indices = @transform_3, window_bounds = array<i64: 1152, 128>}, {pipeline_mode = #tpu.pipeline_mode<synchronous>, transform_indices = @transform_4, window_bounds = array<i64: 1, 128>}, {pipeline_mode = #tpu.pipeline_mode<synchronous>, transform_indices = @transform_5, window_bounds = array<i64: 128, 128>}, {pipeline_mode = #tpu.pipeline_mode<synchronous>, transform_indices = @transform_6, window_bounds = array<i64: 1, 128>}, {transform_indices = @transform_7, window_bounds = array<i64: 1, 16, 16, 128>}]} {
    %cst = arith.constant 0.000000e+00 : f32
    %0 = vector.broadcast %cst : f32 to vector<20x20x128xf32>
    %c0 = arith.constant 0 : index
    %c0_0 = arith.constant 0 : index
    %c0_1 = arith.constant 0 : index
    %1 = vector.load %arg9[%c0, %c0_0, %c0_1] : memref<20x20x128xf32, #tpu.memory_space<vmem>>, vector<20x20x128xf32>
    tpu.vector_store %arg9[%c0, %c0_0, %c0_1], %0 {strides = array<i32>} : memref<20x20x128xf32, #tpu.memory_space<vmem>>, vector<20x20x128xf32>,
    %cst_2 = arith.constant 0.000000e+00 : f32
    %2 = vector.broadcast %cst_2 : f32 to vector<20x20x128xf32>
    %c0_3 = arith.constant 0 : index
    %c0_4 = arith.constant 0 : index
    %c0_5 = arith.constant 0 : index
    %3 = vector.load %arg10[%c0_3, %c0_4, %c0_5] : memref<20x20x128xf32, #tpu.memory_space<vmem>>, vector<20x20x128xf32>
    tpu.vector_store %arg10[%c0_3, %c0_4, %c0_5], %2 {strides = array<i32>} : memref<20x20x128xf32, #tpu.memory_space<vmem>>, vector<20x20x128xf32>,
    %c0_6 = arith.constant 0 : index
    %c0_7 = arith.constant 0 : index
    %c0_8 = arith.constant 0 : index
    %c0_9 = arith.constant 0 : index
    %4 = vector.load %arg1[%c0_6, %c0_7, %c0_8, %c0_9] : memref<1x16x16x128xf32, #tpu.memory_space<vmem>>, vector<1x16x16x128xf32>
    %5 = vector.shape_cast %4 : vector<1x16x16x128xf32> to vector<16x16x128xf32>
    %c2 = arith.constant 2 : index
    %c2_10 = arith.constant 2 : index
    %c0_11 = arith.constant 0 : index
    %6 = vector.load %arg9[%c2, %c2_10, %c0_11] : memref<20x20x128xf32, #tpu.memory_space<vmem>>, vector<16x16x128xf32>
    tpu.vector_store %arg9[%c2, %c2_10, %c0_11], %5 {strides = array<i32>} : memref<20x20x128xf32, #tpu.memory_space<vmem>>, vector<16x16x128xf32>,
    %c0_12 = arith.constant 0 : index
    %c0_13 = arith.constant 0 : index
    %c0_14 = arith.constant 0 : index
    %c0_15 = arith.constant 0 : index
    %7 = vector.load %arg2[%c0_12, %c0_13, %c0_14, %c0_15] : memref<1x16x16x128xf32, #tpu.memory_space<vmem>>, vector<1x16x16x128xf32>
    %8 = vector.shape_cast %7 : vector<1x16x16x128xf32> to vector<16x16x128xf32>
    %c2_16 = arith.constant 2 : index
    %c2_17 = arith.constant 2 : index
    %c0_18 = arith.constant 0 : index
    %9 = vector.load %arg10[%c2_16, %c2_17, %c0_18] : memref<20x20x128xf32, #tpu.memory_space<vmem>>, vector<16x16x128xf32>
    tpu.vector_store %arg10[%c2_16, %c2_17, %c0_18], %8 {strides = array<i32>} : memref<20x20x128xf32, #tpu.memory_space<vmem>>, vector<16x16x128xf32>,
    %c0_19 = arith.constant 0 : index
    %c0_20 = arith.constant 0 : index
    %c0_21 = arith.constant 0 : index
    %10 = vector.load %arg9[%c0_19, %c0_20, %c0_21] : memref<20x20x128xf32, #tpu.memory_space<vmem>>, vector<16x16x128xf32>
    %c0_22 = arith.constant 0 : index
    %c2_23 = arith.constant 2 : index
    %c0_24 = arith.constant 0 : index
    %11 = vector.load %arg9[%c0_22, %c2_23, %c0_24] : memref<20x20x128xf32, #tpu.memory_space<vmem>>, vector<16x16x128xf32>
    %c0_25 = arith.constant 0 : index
    %c4 = arith.constant 4 : index
    %c0_26 = arith.constant 0 : index
    %12 = vector.load %arg9[%c0_25, %c4, %c0_26] : memref<20x20x128xf32, #tpu.memory_space<vmem>>, vector<16x16x128xf32>
    %c2_27 = arith.constant 2 : index
    %c0_28 = arith.constant 0 : index
    %c0_29 = arith.constant 0 : index
    %13 = vector.load %arg9[%c2_27, %c0_28, %c0_29] : memref<20x20x128xf32, #tpu.memory_space<vmem>>, vector<16x16x128xf32>
    %c2_30 = arith.constant 2 : index
    %c2_31 = arith.constant 2 : index
    %c0_32 = arith.constant 0 : index
    %14 = vector.load %arg9[%c2_30, %c2_31, %c0_32] : memref<20x20x128xf32, #tpu.memory_space<vmem>>, vector<16x16x128xf32>
    %c2_33 = arith.constant 2 : index
    %c4_34 = arith.constant 4 : index
    %c0_35 = arith.constant 0 : index
    %15 = vector.load %arg9[%c2_33, %c4_34, %c0_35] : memref<20x20x128xf32, #tpu.memory_space<vmem>>, vector<16x16x128xf32>
    %c4_36 = arith.constant 4 : index
    %c0_37 = arith.constant 0 : index
    %c0_38 = arith.constant 0 : index
    %16 = vector.load %arg9[%c4_36, %c0_37, %c0_38] : memref<20x20x128xf32, #tpu.memory_space<vmem>>, vector<16x16x128xf32>
    %c4_39 = arith.constant 4 : index
    %c2_40 = arith.constant 2 : index
    %c0_41 = arith.constant 0 : index
    %17 = vector.load %arg9[%c4_39, %c2_40, %c0_41] : memref<20x20x128xf32, #tpu.memory_space<vmem>>, vector<16x16x128xf32>
    %c4_42 = arith.constant 4 : index
    %c4_43 = arith.constant 4 : index
    %c0_44 = arith.constant 0 : index
    %18 = vector.load %arg9[%c4_42, %c4_43, %c0_44] : memref<20x20x128xf32, #tpu.memory_space<vmem>>, vector<16x16x128xf32>
    %19 = tpu.concatenate %10, %11, %12, %13, %14, %15, %16, %17, %18 in 2 : vector<16x16x128xf32>, vector<16x16x128xf32>, vector<16x16x128xf32>, vector<16x16x128xf32>, vector<16x16x128xf32>, vector<16x16x128xf32>, vector<16x16x128xf32>, vector<16x16x128xf32>, vector<16x16x128xf32> -> vector<16x16x1152xf32>
    %20 = vector.shape_cast %19 : vector<16x16x1152xf32> to vector<256x1152xf32>
    %c0_45 = arith.constant 0 : index
    %c0_46 = arith.constant 0 : index
    %21 = vector.load %arg3[%c0_45, %c0_46] : memref<1152x128xf32, #tpu.memory_space<vmem>>, vector<1152x128xf32>
    %cst_47 = arith.constant dense<0.000000e+00> : vector<256x128xf32>
    %22 = tpu.matmul %20, %21, %cst_47 {dimension_numbers = #tpu.dot_dimension_numbers<[1], [0], [0], [1], [0, 0, 1, 1], [], []>} : vector<256x1152xf32>, vector<1152x128xf32>, vector<256x128xf32> -> vector<256x128xf32>
    %c0_48 = arith.constant 0 : index
    %c0_49 = arith.constant 0 : index
    %c0_50 = arith.constant 0 : index
    %23 = vector.load %arg10[%c0_48, %c0_49, %c0_50] : memref<20x20x128xf32, #tpu.memory_space<vmem>>, vector<16x16x128xf32>
    %c0_51 = arith.constant 0 : index
    %c2_52 = arith.constant 2 : index
    %c0_53 = arith.constant 0 : index
    %24 = vector.load %arg10[%c0_51, %c2_52, %c0_53] : memref<20x20x128xf32, #tpu.memory_space<vmem>>, vector<16x16x128xf32>
    %c0_54 = arith.constant 0 : index
    %c4_55 = arith.constant 4 : index
    %c0_56 = arith.constant 0 : index
    %25 = vector.load %arg10[%c0_54, %c4_55, %c0_56] : memref<20x20x128xf32, #tpu.memory_space<vmem>>, vector<16x16x128xf32>
    %c2_57 = arith.constant 2 : index
    %c0_58 = arith.constant 0 : index
    %c0_59 = arith.constant 0 : index
    %26 = vector.load %arg10[%c2_57, %c0_58, %c0_59] : memref<20x20x128xf32, #tpu.memory_space<vmem>>, vector<16x16x128xf32>
    %c2_60 = arith.constant 2 : index
    %c2_61 = arith.constant 2 : index
    %c0_62 = arith.constant 0 : index
    %27 = vector.load %arg10[%c2_60, %c2_61, %c0_62] : memref<20x20x128xf32, #tpu.memory_space<vmem>>, vector<16x16x128xf32>
    %c2_63 = arith.constant 2 : index
    %c4_64 = arith.constant 4 : index
    %c0_65 = arith.constant 0 : index
    %28 = vector.load %arg10[%c2_63, %c4_64, %c0_65] : memref<20x20x128xf32, #tpu.memory_space<vmem>>, vector<16x16x128xf32>
    %c4_66 = arith.constant 4 : index
    %c0_67 = arith.constant 0 : index
    %c0_68 = arith.constant 0 : index
    %29 = vector.load %arg10[%c4_66, %c0_67, %c0_68] : memref<20x20x128xf32, #tpu.memory_space<vmem>>, vector<16x16x128xf32>
    %c4_69 = arith.constant 4 : index
    %c2_70 = arith.constant 2 : index
    %c0_71 = arith.constant 0 : index
    %30 = vector.load %arg10[%c4_69, %c2_70, %c0_71] : memref<20x20x128xf32, #tpu.memory_space<vmem>>, vector<16x16x128xf32>
    %c4_72 = arith.constant 4 : index
    %c4_73 = arith.constant 4 : index
    %c0_74 = arith.constant 0 : index
    %31 = vector.load %arg10[%c4_72, %c4_73, %c0_74] : memref<20x20x128xf32, #tpu.memory_space<vmem>>, vector<16x16x128xf32>
    %32 = tpu.concatenate %23, %24, %25, %26, %27, %28, %29, %30, %31 in 2 : vector<16x16x128xf32>, vector<16x16x128xf32>, vector<16x16x128xf32>, vector<16x16x128xf32>, vector<16x16x128xf32>, vector<16x16x128xf32>, vector<16x16x128xf32>, vector<16x16x128xf32>, vector<16x16x128xf32> -> vector<16x16x1152xf32>
    %33 = vector.shape_cast %32 : vector<16x16x1152xf32> to vector<256x1152xf32>
    %c0_75 = arith.constant 0 : index
    %c0_76 = arith.constant 0 : index
    %34 = vector.load %arg4[%c0_75, %c0_76] : memref<1152x128xf32, #tpu.memory_space<vmem>>, vector<1152x128xf32>
    %cst_77 = arith.constant dense<0.000000e+00> : vector<256x128xf32>
    %35 = tpu.matmul %33, %34, %cst_77 {dimension_numbers = #tpu.dot_dimension_numbers<[1], [0], [0], [1], [0, 0, 1, 1], [], []>} : vector<256x1152xf32>, vector<1152x128xf32>, vector<256x128xf32> -> vector<256x128xf32>
    %36 = arith.addf %22, %35 : vector<256x128xf32>
    %c0_78 = arith.constant 0 : index
    %c0_79 = arith.constant 0 : index
    %37 = vector.load %arg5[%c0_78, %c0_79] : memref<1x128xf32, #tpu.memory_space<vmem>>, vector<1x128xf32>
    %38 = vector.broadcast %37 : vector<1x128xf32> to vector<256x128xf32>
    %39 = arith.addf %36, %38 : vector<256x128xf32>
    %cst_80 = arith.constant 0.000000e+00 : f32
    %40 = vector.broadcast %cst_80 : f32 to vector<256x128xf32>
    %41 = arith.maximumf %39, %40 : vector<256x128xf32>
    %c0_81 = arith.constant 0 : index
    %c0_82 = arith.constant 0 : index
    %42 = vector.load %arg6[%c0_81, %c0_82] : memref<128x128xf32, #tpu.memory_space<vmem>>, vector<128x128xf32>
    %cst_83 = arith.constant dense<0.000000e+00> : vector<256x128xf32>
    %43 = tpu.matmul %41, %42, %cst_83 {dimension_numbers = #tpu.dot_dimension_numbers<[1], [0], [0], [1], [0, 0, 1, 1], [], []>} : vector<256x128xf32>, vector<128x128xf32>, vector<256x128xf32> -> vector<256x128xf32>
    %c0_84 = arith.constant 0 : index
    %c0_85 = arith.constant 0 : index
    %44 = vector.load %arg7[%c0_84, %c0_85] : memref<1x128xf32, #tpu.memory_space<vmem>>, vector<1x128xf32>
    %45 = vector.broadcast %44 : vector<1x128xf32> to vector<256x128xf32>
    %46 = arith.addf %43, %45 : vector<256x128xf32>
    %47 = vector.shape_cast %46 : vector<256x128xf32> to vector<16x16x128xf32>
    %c0_86 = arith.constant 0 : index
    %c0_87 = arith.constant 0 : index
    %c0_88 = arith.constant 0 : index
    %c0_89 = arith.constant 0 : index
    %48 = vector.load %arg8[%c0_86, %c0_87, %c0_88, %c0_89] : memref<1x16x16x128xf32, #tpu.memory_space<vmem>>, vector<1x16x16x128xf32>
    %49 = vector.shape_cast %48 : vector<1x16x16x128xf32> to vector<16x16x128xf32>
    %50 = vector.shape_cast %47 : vector<16x16x128xf32> to vector<1x16x16x128xf32>
    tpu.vector_store %arg8[%c0_86, %c0_87, %c0_88, %c0_89], %50 {strides = array<i32>} : memref<1x16x16x128xf32, #tpu.memory_space<vmem>>, vector<1x16x16x128xf32>,
    return
  }
  func.func @transform_0(%arg0: i32) -> (i32, i32, i32, i32) {
    %c0_i32 = arith.constant 0 : i32
    %c0_i32_0 = arith.constant 0 : i32
    %c0_i32_1 = arith.constant 0 : i32
    %c0_i32_2 = arith.constant 0 : i32
    return %arg0, %c0_i32, %c0_i32_0, %c0_i32_1 : i32, i32, i32, i32
  }
  func.func @transform_1(%arg0: i32) -> (i32, i32, i32, i32) {
    %c0_i32 = arith.constant 0 : i32
    %c0_i32_0 = arith.constant 0 : i32
    %c0_i32_1 = arith.constant 0 : i32
    %c0_i32_2 = arith.constant 0 : i32
    return %arg0, %c0_i32, %c0_i32_0, %c0_i32_1 : i32, i32, i32, i32
  }
  func.func @transform_2(%arg0: i32) -> (i32, i32) {
    %c0_i32 = arith.constant 0 : i32
    %c0_i32_0 = arith.constant 0 : i32
    %c0_i32_1 = arith.constant 0 : i32
    return %c0_i32, %c0_i32_0 : i32, i32
  }
  func.func @transform_3(%arg0: i32) -> (i32, i32) {
    %c0_i32 = arith.constant 0 : i32
    %c0_i32_0 = arith.constant 0 : i32
    %c0_i32_1 = arith.constant 0 : i32
    return %c0_i32, %c0_i32_0 : i32, i32
  }
  func.func @transform_4(%arg0: i32) -> (i32, i32) {
    %c0_i32 = arith.constant 0 : i32
    %c0_i32_0 = arith.constant 0 : i32
    %c0_i32_1 = arith.constant 0 : i32
    return %c0_i32, %c0_i32_0 : i32, i32
  }
  func.func @transform_5(%arg0: i32) -> (i32, i32) {
    %c0_i32 = arith.constant 0 : i32
    %c0_i32_0 = arith.constant 0 : i32
    %c0_i32_1 = arith.constant 0 : i32
    return %c0_i32, %c0_i32_0 : i32, i32
  }
  func.func @transform_6(%arg0: i32) -> (i32, i32) {
    %c0_i32 = arith.constant 0 : i32
    %c0_i32_0 = arith.constant 0 : i32
    %c0_i32_1 = arith.constant 0 : i32
    return %c0_i32, %c0_i32_0 : i32, i32
  }
  func.func @transform_7(%arg0: i32) -> (i32, i32, i32, i32) {
    %c0_i32 = arith.constant 0 : i32
    %c0_i32_0 = arith.constant 0 : i32
    %c0_i32_1 = arith.constant 0 : i32
    %c0_i32_2 = arith.constant 0 : i32
    return %arg0, %c0_i32, %c0_i32_0, %c0_i32_1 : i32, i32, i32, i32
  }
}

</mosaic_0001>

<llo_original>
// kernel: sdunet_forward.6
$region0: #{sdunet_forward.6}
  #allocation0 [shape = 'u32[]', space=smem, size = 0x4, offset = 0x4, fixed_abs, tag = 'smem constant byte address 0x4 - core index']
  #allocation1 [shape = 'u32[144,128]{1,0:T(1,128)}', space=vmem, size = 0x12000, scoped, tag = 'internal scratch']
  #allocation2 [shape = 'f32[12,12,128]{2,1,0:T(8,128)}', space=vmem, size = 0x18000, scoped, tag = 'scratch operand']
  %s0 = inlined_call_operand.vmem [shape: f32[2,8,8,128], index: 0, kind: input, shape index: {}]
  %s1 = inlined_call_operand.vmem [shape: f32[1152,128], index: 1, kind: input, shape index: {}]
  %s2 = inlined_call_operand.vmem [shape: f32[1,128], index: 2, kind: input, shape index: {}]
  %s3 = inlined_call_operand.vmem [shape: f32[2,8,8,128], index: 3, kind: output, shape index: {}]
  %s4 = sld [smem:[#allocation0]]
  $region45: #{sdunet_forward.6} parent=0
    _
  %s6 = ssub.s32 1, %s4
  %s7 = scalar_select 0, %s6, %s4
  loop: start=0, step=1, limit=4
  $region2: #{sdunet_forward.6} parent=0 // loop_pre_header
    _
  $region3: #{sdunet_forward.6} parent=0 // loop_header
    %s9 = sphi 0, %s13
    %p10 = scmp.ge.s32.totalorder %s9, 4
    %s19 = sphi 0, %s21
    %s22 = sphi 0, %s19
    %s23 = sphi 0, %s22
    %s39 = sphi 0, %s23
    %s43 = sphi 0, %s43
    %s45 = sphi 0, %s43
    %s46 = sphi 0, %s45
    %s60 = sphi 0, %s46
    %s64 = sphi 0, %s64
    %s66 = sphi 0, %s64
    %s67 = sphi 0, %s66
    %s81 = sphi 0, %s67
    %s87 = sphi 0, %s89
    %s90 = sphi 0, %s87
    %s91 = sphi 0, %s90
    %s107 = sphi 0, %s91
  $region4: #{sdunet_forward.6} parent=0 // loop_header_branch
    %12 = sbr.rel (%p10) target = $region8
  $region5: #{sdunet_forward.6} parent=0 // loop_body
    %s14 = ssub.s32 %s9, 1
    %s15 = ssub.s32 %s9, 2
    %s16 = sadd.s32 %s9, 1
    %s17 = ssub.s32 %s9, %s16
    %p18 = scmp.eq.s32.totalorder %s17, 0
    %s20 = sadd.s32 %s19, 1
    %s21 = scalar_select %p18, %s19, %s20
    %p24 = pneg %p18
    %p25 = scmp.eq.s32.totalorder %s9, 1
    %p26 = por %p24, %p25
    %p27 = scmp.ne.s32.totalorder %s19, %s22
    %p28 = scmp.eq.s32.totalorder %s9, 0
    %p29 = por %p27, %p28
    %p30 = scmp.ne.s32.totalorder %s19, %s22
    %p31 = scmp.eq.s32.totalorder %s14, 1
    %p32 = por %p30, %p31
    %p33 = scmp.ne.s32.totalorder %s22, %s23
    %p34 = scmp.eq.s32.totalorder %s14, 0
    %p35 = por %p33, %p34
    %p36 = scmp.ne.s32.totalorder %s22, %s23
    %p37 = scmp.eq.s32.totalorder %s15, 1
    %p38 = por %p36, %p37
    %p40 = scmp.ne.s32.totalorder %s23, %s39
    %p41 = scmp.eq.s32.totalorder %s15, 0
    %p42 = por %p40, %p41
    %s44 = sadd.s32 %s43, 1
    %p47 = scmp.eq.s32.totalorder %s9, 1
    %p48 = scmp.ne.s32.totalorder %s43, %s45
    %p49 = scmp.eq.s32.totalorder %s9, 0
    %p50 = por %p48, %p49
    %p51 = scmp.ne.s32.totalorder %s43, %s45
    %p52 = scmp.eq.s32.totalorder %s14, 1
    %p53 = por %p51, %p52
    %p54 = scmp.ne.s32.totalorder %s45, %s46
    %p55 = scmp.eq.s32.totalorder %s14, 0
    %p56 = por %p54, %p55
    %p57 = scmp.ne.s32.totalorder %s45, %s46
    %p58 = scmp.eq.s32.totalorder %s15, 1
    %p59 = por %p57, %p58
    %p61 = scmp.ne.s32.totalorder %s46, %s60
    %p62 = scmp.eq.s32.totalorder %s15, 0
    %p63 = por %p61, %p62
    %s65 = sadd.s32 %s64, 1
    %p68 = scmp.eq.s32.totalorder %s9, 1
    %p69 = scmp.ne.s32.totalorder %s64, %s66
    %p70 = scmp.eq.s32.totalorder %s9, 0
    %p71 = por %p69, %p70
    %p72 = scmp.ne.s32.totalorder %s64, %s66
    %p73 = scmp.eq.s32.totalorder %s14, 1
    %p74 = por %p72, %p73
    %p75 = scmp.ne.s32.totalorder %s66, %s67
    %p76 = scmp.eq.s32.totalorder %s14, 0
    %p77 = por %p75, %p76
    %p78 = scmp.ne.s32.totalorder %s66, %s67
    %p79 = scmp.eq.s32.totalorder %s15, 1
    %p80 = por %p78, %p79
    %p82 = scmp.ne.s32.totalorder %s67, %s81
    %p83 = scmp.eq.s32.totalorder %s15, 0
    %p84 = por %p82, %p83
    %s85 = ssub.s32 %s9, %s16
    %p86 = scmp.eq.s32.totalorder %s85, 0
    %s88 = sadd.s32 %s87, 1
    %s89 = scalar_select %p86, %s87, %s88
    %p92 = pneg %p86
    %p93 = scmp.eq.s32.totalorder %s9, 1
    %p94 = por %p92, %p93
    %p95 = scmp.ne.s32.totalorder %s87, %s90
    %p96 = scmp.eq.s32.totalorder %s9, 0
    %p97 = por %p95, %p96
    %p98 = scmp.ne.s32.totalorder %s87, %s90
    %p99 = scmp.eq.s32.totalorder %s14, 1
    %p100 = por %p98, %p99
    %p101 = scmp.ne.s32.totalorder %s90, %s91
    %p102 = scmp.eq.s32.totalorder %s14, 0
    %p103 = por %p101, %p102
    %p104 = scmp.ne.s32.totalorder %s90, %s91
    %p105 = scmp.eq.s32.totalorder %s15, 1
    %p106 = por %p104, %p105
    %p108 = scmp.ne.s32.totalorder %s91, %s107
    %p109 = scmp.eq.s32.totalorder %s15, 0
    %p110 = por %p108, %p109
    %p111 = scmp.le.s32.totalorder 1, %s9
    %p112 = scmp.lt.s32.totalorder %s9, 3
    %p113 = pnand %p111, %p112
    %p114 = pneg %p113
    // Predicated region
    $region9: #{sdunet_forward.6} parent=5 // pred_check
      _
    $region10: #{sdunet_forward.6} parent=5 // pred_check_branch
      %116 = sbr.rel (%p113) target = $region12
    $region11: #{sdunet_forward.6} parent=5 // pred_region
      %s117 = ssub.s32 %s9, 1
      // Predicated region
      $region13: #{sdunet_forward.6} parent=11 // pred_check
        %p118 = pneg %p56
      $region14: #{sdunet_forward.6} parent=11 // pred_check_branch
        %120 = sbr.rel (%p118) target = $region16
      $region15: #{sdunet_forward.6} parent=11 // pred_region
        _
      $region16: #{sdunet_forward.6} parent=11 // pred_fallthru
        _
      // Predicated region
      $region17: #{sdunet_forward.6} parent=11 // pred_check
        %p121 = pneg %p77
      $region18: #{sdunet_forward.6} parent=11 // pred_check_branch
        %123 = sbr.rel (%p121) target = $region20
      $region19: #{sdunet_forward.6} parent=11 // pred_region
        _
      $region20: #{sdunet_forward.6} parent=11 // pred_fallthru
        _
    $region12: #{sdunet_forward.6} parent=5 // pred_fallthru
      _
    %p124 = scmp.lt.s32.totalorder %s9, 2
    // Predicated region
    $region21: #{sdunet_forward.6} parent=5 // pred_check
      %p125 = pneg %p124
    $region22: #{sdunet_forward.6} parent=5 // pred_check_branch
      %127 = sbr.rel (%p125) target = $region24
    $region23: #{sdunet_forward.6} parent=5 // pred_region
      // Predicated region
      $region25: #{sdunet_forward.6} parent=23 // pred_check
        %p128 = pneg %p29
      $region26: #{sdunet_forward.6} parent=23 // pred_check_branch
        %130 = sbr.rel (%p128) target = $region28
      $region27: #{sdunet_forward.6} parent=23 // pred_region
        %p131 = scmp.lt.s32.totalorder %s9, 1
        %s132 = scalar_select %p131, %s9, 1
        %s133 = smul.addr %s132, 8
        %s134 = smul.addr %s133, 8
        %s135 = scalar_lea.vmem %s0, %s134
      $region28: #{sdunet_forward.6} parent=23 // pred_fallthru
        _
    $region24: #{sdunet_forward.6} parent=5 // pred_fallthru
      _
    %p136 = scmp.le.s32.totalorder 1, %s9
    %p137 = scmp.lt.s32.totalorder %s9, 3
    %p138 = pnand %p136, %p137
    %p139 = pneg %p138
    // Predicated region
    $region29: #{sdunet_forward.6} parent=5 // pred_check
      _
    $region30: #{sdunet_forward.6} parent=5 // pred_check_branch
      %141 = sbr.rel (%p138) target = $region32
    $region31: #{sdunet_forward.6} parent=5 // pred_region
      %s142 = ssub.s32 %s9, 1
      %p143 = scmp.lt.s32.totalorder %s14, 1
      %s144 = scalar_select %p143, %s14, 1
      %s145 = smul.addr %s144, 8
      %s146 = smul.addr %s145, 8
      %s147 = scalar_lea.vmem %s0, %s146
      %p148 = pneg %p35
      %p149 = pneg %p32
      %p150 = pneg %p56
      %p151 = pneg %p53
      %p152 = pneg %p77
      %p153 = pneg %p74
      %p154 = pneg %p103
      %p155 = pneg %p100
      %p156 = scmp.lt.s32.totalorder %s14, 1
      %s157 = scalar_select %p156, %s14, 1
      %s158 = smul.addr %s157, 8
      %s159 = smul.addr %s158, 8
      %s160 = scalar_lea.vmem %s3, %s159
      %p161 = scmp.lt.s32.totalorder %s14, 1
      %s162 = scalar_select %p161, %s14, 1
      %s163 = smul.addr %s162, 8
      %s164 = smul.addr %s163, 8
      %s165 = scalar_lea.vmem %s0, %s164
      %p166 = scmp.lt.s32.totalorder %s14, 1
      %s167 = scalar_select %p166, %s14, 1
      %s168 = smul.addr %s167, 8
      %s169 = smul.addr %s168, 8
      %s170 = scalar_lea.vmem %s3, %s169
      %171 = vst [vmem:[#allocation2] sm:$0xff] 0.0
      %172 = vst [vmem:[#allocation2 + $0x8] sm:$0xf] 0.0
      %173 = vst [vmem:[#allocation2 + $0x10] sm:$0xff] 0.0
      %174 = vst [vmem:[#allocation2 + $0x18] sm:$0xf] 0.0
      %175 = vst [vmem:[#allocation2 + $0x20] sm:$0xff] 0.0
      %176 = vst [vmem:[#allocation2 + $0x28] sm:$0xf] 0.0
      %177 = vst [vmem:[#allocation2 + $0x30] sm:$0xff] 0.0
      %178 = vst [vmem:[#allocation2 + $0x38] sm:$0xf] 0.0
      %179 = vst [vmem:[#allocation2 + $0x40] sm:$0xff] 0.0
      %180 = vst [vmem:[#allocation2 + $0x48] sm:$0xf] 0.0
      %181 = vst [vmem:[#allocation2 + $0x50] sm:$0xff] 0.0
      %182 = vst [vmem:[#allocation2 + $0x58] sm:$0xf] 0.0
      %183 = vst [vmem:[#allocation2 + $0x60] sm:$0xff] 0.0
      %184 = vst [vmem:[#allocation2 + $0x68] sm:$0xf] 0.0
      %185 = vst [vmem:[#allocation2 + $0x70] sm:$0xff] 0.0
      %186 = vst [vmem:[#allocation2 + $0x78] sm:$0xf] 0.0
      %187 = vst [vmem:[#allocation2 + $0x80] sm:$0xff] 0.0
      %188 = vst [vmem:[#allocation2 + $0x88] sm:$0xf] 0.0
      %189 = vst [vmem:[#allocation2 + $0x90] sm:$0xff] 0.0
      %190 = vst [vmem:[#allocation2 + $0x98] sm:$0xf] 0.0
      %191 = vst [vmem:[#allocation2 + $0xa0] sm:$0xff] 0.0
      %192 = vst [vmem:[#allocation2 + $0xa8] sm:$0xf] 0.0
      %193 = vst [vmem:[#allocation2 + $0xb0] sm:$0xff] 0.0
      %194 = vst [vmem:[#allocation2 + $0xb8] sm:$0xf] 0.0
      %v195 = vld [vmem:[%s165] sm:$0xff]
      %v196 = vld [vmem:[%s165 + $0x8] sm:$0xff]
      %v197 = vld [vmem:[%s165 + $0x10] sm:$0xff]
      %v198 = vld [vmem:[%s165 + $0x18] sm:$0xff]
      %v199 = vld [vmem:[%s165 + $0x20] sm:$0xff]
      %v200 = vld [vmem:[%s165 + $0x28] sm:$0xff]
      %v201 = vld [vmem:[%s165 + $0x30] sm:$0xff]
      %v202 = vld [vmem:[%s165 + $0x38] sm:$0xff]
      %s203 = scalar_lea.vmem [#allocation2], 32
      %204 = vst [vmem:[%s203 + $0x2] sm:$0xff] %v195
      %205 = vst [vmem:[%s203 + $0x12] sm:$0xff] %v196
      %206 = vst [vmem:[%s203 + $0x22] sm:$0xff] %v197
      %207 = vst [vmem:[%s203 + $0x32] sm:$0xff] %v198
      %208 = vst [vmem:[%s203 + $0x42] sm:$0xff] %v199
      %209 = vst [vmem:[%s203 + $0x52] sm:$0xff] %v200
      %210 = vst [vmem:[%s203 + $0x62] sm:$0xff] %v201
      %211 = vst [vmem:[%s203 + $0x72] sm:$0xff] %v202
      %v212 = vld [vmem:[#allocation2] sm:$0xff]
      %v213 = vld [vmem:[#allocation2 + $0x10] sm:$0xff]
      %v214 = vld [vmem:[#allocation2 + $0x20] sm:$0xff]
      %v215 = vld [vmem:[#allocation2 + $0x30] sm:$0xff]
      %v216 = vld [vmem:[#allocation2 + $0x40] sm:$0xff]
      %v217 = vld [vmem:[#allocation2 + $0x50] sm:$0xff]
      %v218 = vld [vmem:[#allocation2 + $0x60] sm:$0xff]
      %v219 = vld [vmem:[#allocation2 + $0x70] sm:$0xff]
      %v220 = vld [vmem:[#allocation2 + $0x2] sm:$0xff]
      %v221 = vld [vmem:[#allocation2 + $0x12] sm:$0xff]
      %v222 = vld [vmem:[#allocation2 + $0x22] sm:$0xff]
      %v223 = vld [vmem:[#allocation2 + $0x32] sm:$0xff]
      %v224 = vld [vmem:[#allocation2 + $0x42] sm:$0xff]
      %v225 = vld [vmem:[#allocation2 + $0x52] sm:$0xff]
      %v226 = vld [vmem:[#allocation2 + $0x62] sm:$0xff]
      %v227 = vld [vmem:[#allocation2 + $0x72] sm:$0xff]
      %v228 = vld [vmem:[#allocation2 + $0x4] sm:$0xff]
      %v229 = vld [vmem:[#allocation2 + $0x14] sm:$0xff]
      %v230 = vld [vmem:[#allocation2 + $0x24] sm:$0xff]
      %v231 = vld [vmem:[#allocation2 + $0x34] sm:$0xff]
      %v232 = vld [vmem:[#allocation2 + $0x44] sm:$0xff]
      %v233 = vld [vmem:[#allocation2 + $0x54] sm:$0xff]
      %v234 = vld [vmem:[#allocation2 + $0x64] sm:$0xff]
      %v235 = vld [vmem:[#allocation2 + $0x74] sm:$0xff]
      %v236 = vld [vmem:[%s203] sm:$0xff]
      %v237 = vld [vmem:[%s203 + $0x10] sm:$0xff]
      %v238 = vld [vmem:[%s203 + $0x20] sm:$0xff]
      %v239 = vld [vmem:[%s203 + $0x30] sm:$0xff]
      %v240 = vld [vmem:[%s203 + $0x40] sm:$0xff]
      %v241 = vld [vmem:[%s203 + $0x50] sm:$0xff]
      %v242 = vld [vmem:[%s203 + $0x60] sm:$0xff]
      %v243 = vld [vmem:[%s203 + $0x70] sm:$0xff]
      %v244 = vld [vmem:[%s203 + $0x2] sm:$0xff]
      %v245 = vld [vmem:[%s203 + $0x12] sm:$0xff]
      %v246 = vld [vmem:[%s203 + $0x22] sm:$0xff]
      %v247 = vld [vmem:[%s203 + $0x32] sm:$0xff]
      %v248 = vld [vmem:[%s203 + $0x42] sm:$0xff]
      %v249 = vld [vmem:[%s203 + $0x52] sm:$0xff]
      %v250 = vld [vmem:[%s203 + $0x62] sm:$0xff]
      %v251 = vld [vmem:[%s203 + $0x72] sm:$0xff]
      %v252 = vld [vmem:[%s203 + $0x4] sm:$0xff]
      %v253 = vld [vmem:[%s203 + $0x14] sm:$0xff]
      %v254 = vld [vmem:[%s203 + $0x24] sm:$0xff]
      %v255 = vld [vmem:[%s203 + $0x34] sm:$0xff]
      %v256 = vld [vmem:[%s203 + $0x44] sm:$0xff]
      %v257 = vld [vmem:[%s203 + $0x54] sm:$0xff]
      %v258 = vld [vmem:[%s203 + $0x64] sm:$0xff]
      %v259 = vld [vmem:[%s203 + $0x74] sm:$0xff]
      %s260 = scalar_lea.vmem [#allocation2], 64
      %v261 = vld [vmem:[%s260] sm:$0xff]
      %v262 = vld [vmem:[%s260 + $0x10] sm:$0xff]
      %v263 = vld [vmem:[%s260 + $0x20] sm:$0xff]
      %v264 = vld [vmem:[%s260 + $0x30] sm:$0xff]
      %v265 = vld [vmem:[%s260 + $0x40] sm:$0xff]
      %v266 = vld [vmem:[%s260 + $0x50] sm:$0xff]
      %v267 = vld [vmem:[%s260 + $0x60] sm:$0xff]
      %v268 = vld [vmem:[%s260 + $0x70] sm:$0xff]
      %v269 = vld [vmem:[%s260 + $0x2] sm:$0xff]
      %v270 = vld [vmem:[%s260 + $0x12] sm:$0xff]
      %v271 = vld [vmem:[%s260 + $0x22] sm:$0xff]
      %v272 = vld [vmem:[%s260 + $0x32] sm:$0xff]
      %v273 = vld [vmem:[%s260 + $0x42] sm:$0xff]
      %v274 = vld [vmem:[%s260 + $0x52] sm:$0xff]
      %v275 = vld [vmem:[%s260 + $0x62] sm:$0xff]
      %v276 = vld [vmem:[%s260 + $0x72] sm:$0xff]
      %v277 = vld [vmem:[%s260 + $0x4] sm:$0xff]
      %v278 = vld [vmem:[%s260 + $0x14] sm:$0xff]
      %v279 = vld [vmem:[%s260 + $0x24] sm:$0xff]
      %v280 = vld [vmem:[%s260 + $0x34] sm:$0xff]
      %v281 = vld [vmem:[%s260 + $0x44] sm:$0xff]
      %v282 = vld [vmem:[%s260 + $0x54] sm:$0xff]
      %v283 = vld [vmem:[%s260 + $0x64] sm:$0xff]
      %v284 = vld [vmem:[%s260 + $0x74] sm:$0xff]
      %v285 = vld [vmem:[%s1] sm:$0xff]
      %v286 = vld [vmem:[%s1 + $0x8] sm:$0xff]
      %v287 = vld [vmem:[%s1 + $0x10] sm:$0xff]
      %v288 = vld [vmem:[%s1 + $0x18] sm:$0xff]
      %v289 = vld [vmem:[%s1 + $0x20] sm:$0xff]
      %v290 = vld [vmem:[%s1 + $0x28] sm:$0xff]
      %v291 = vld [vmem:[%s1 + $0x30] sm:$0xff]
      %v292 = vld [vmem:[%s1 + $0x38] sm:$0xff]
      %v293 = vld [vmem:[%s1 + $0x40] sm:$0xff]
      %v294 = vld [vmem:[%s1 + $0x48] sm:$0xff]
      %v295 = vld [vmem:[%s1 + $0x50] sm:$0xff]
      %v296 = vld [vmem:[%s1 + $0x58] sm:$0xff]
      %v297 = vld [vmem:[%s1 + $0x60] sm:$0xff]
      %v298 = vld [vmem:[%s1 + $0x68] sm:$0xff]
      %v299 = vld [vmem:[%s1 + $0x70] sm:$0xff]
      %v300 = vld [vmem:[%s1 + $0x78] sm:$0xff]
      %v301 = vld [vmem:[%s1 + $0x80] sm:$0xff]
      %v302 = vld [vmem:[%s1 + $0x88] sm:$0xff]
      %v303 = vld [vmem:[%s1 + $0x90] sm:$0xff]
      %v304 = vld [vmem:[%s1 + $0x98] sm:$0xff]
      %v305 = vld [vmem:[%s1 + $0xa0] sm:$0xff]
      %v306 = vld [vmem:[%s1 + $0xa8] sm:$0xff]
      %v307 = vld [vmem:[%s1 + $0xb0] sm:$0xff]
      %v308 = vld [vmem:[%s1 + $0xb8] sm:$0xff]
      %v309 = vld [vmem:[%s1 + $0xc0] sm:$0xff]
      %v310 = vld [vmem:[%s1 + $0xc8] sm:$0xff]
      %v311 = vld [vmem:[%s1 + $0xd0] sm:$0xff]
      %v312 = vld [vmem:[%s1 + $0xd8] sm:$0xff]
      %v313 = vld [vmem:[%s1 + $0xe0] sm:$0xff]
      %v314 = vld [vmem:[%s1 + $0xe8] sm:$0xff]
      %v315 = vld [vmem:[%s1 + $0xf0] sm:$0xff]
      %v316 = vld [vmem:[%s1 + $0xf8] sm:$0xff]
      %v317 = vld [vmem:[%s1 + $0x100] sm:$0xff]
      %v318 = vld [vmem:[%s1 + $0x108] sm:$0xff]
      %v319 = vld [vmem:[%s1 + $0x110] sm:$0xff]
      %v320 = vld [vmem:[%s1 + $0x118] sm:$0xff]
      %v321 = vld [vmem:[%s1 + $0x120] sm:$0xff]
      %v322 = vld [vmem:[%s1 + $0x128] sm:$0xff]
      %v323 = vld [vmem:[%s1 + $0x130] sm:$0xff]
      %v324 = vld [vmem:[%s1 + $0x138] sm:$0xff]
      %v325 = vld [vmem:[%s1 + $0x140] sm:$0xff]
      %v326 = vld [vmem:[%s1 + $0x148] sm:$0xff]
      %v327 = vld [vmem:[%s1 + $0x150] sm:$0xff]
      %v328 = vld [vmem:[%s1 + $0x158] sm:$0xff]
      %v329 = vld [vmem:[%s1 + $0x160] sm:$0xff]
      %v330 = vld [vmem:[%s1 + $0x168] sm:$0xff]
      %v331 = vld [vmem:[%s1 + $0x170] sm:$0xff]
      %v332 = vld [vmem:[%s1 + $0x178] sm:$0xff]
      %v333 = vld [vmem:[%s1 + $0x180] sm:$0xff]
      %v334 = vld [vmem:[%s1 + $0x188] sm:$0xff]
      %v335 = vld [vmem:[%s1 + $0x190] sm:$0xff]
      %v336 = vld [vmem:[%s1 + $0x198] sm:$0xff]
      %v337 = vld [vmem:[%s1 + $0x1a0] sm:$0xff]
      %v338 = vld [vmem:[%s1 + $0x1a8] sm:$0xff]
      %v339 = vld [vmem:[%s1 + $0x1b0] sm:$0xff]
      %v340 = vld [vmem:[%s1 + $0x1b8] sm:$0xff]
      %v341 = vld [vmem:[%s1 + $0x1c0] sm:$0xff]
      %v342 = vld [vmem:[%s1 + $0x1c8] sm:$0xff]
      %v343 = vld [vmem:[%s1 + $0x1d0] sm:$0xff]
      %v344 = vld [vmem:[%s1 + $0x1d8] sm:$0xff]
      %v345 = vld [vmem:[%s1 + $0x1e0] sm:$0xff]
      %v346 = vld [vmem:[%s1 + $0x1e8] sm:$0xff]
      %v347 = vld [vmem:[%s1 + $0x1f0] sm:$0xff]
      %v348 = vld [vmem:[%s1 + $0x1f8] sm:$0xff]
      %v349 = vld [vmem:[%s1 + $0x200] sm:$0xff]
      %v350 = vld [vmem:[%s1 + $0x208] sm:$0xff]
      %v351 = vld [vmem:[%s1 + $0x210] sm:$0xff]
      %v352 = vld [vmem:[%s1 + $0x218] sm:$0xff]
      %v353 = vld [vmem:[%s1 + $0x220] sm:$0xff]
      %v354 = vld [vmem:[%s1 + $0x228] sm:$0xff]
      %v355 = vld [vmem:[%s1 + $0x230] sm:$0xff]
      %v356 = vld [vmem:[%s1 + $0x238] sm:$0xff]
      %v357 = vld [vmem:[%s1 + $0x240] sm:$0xff]
      %v358 = vld [vmem:[%s1 + $0x248] sm:$0xff]
      %v359 = vld [vmem:[%s1 + $0x250] sm:$0xff]
      %v360 = vld [vmem:[%s1 + $0x258] sm:$0xff]
      %v361 = vld [vmem:[%s1 + $0x260] sm:$0xff]
      %v362 = vld [vmem:[%s1 + $0x268] sm:$0xff]
      %v363 = vld [vmem:[%s1 + $0x270] sm:$0xff]
      %v364 = vld [vmem:[%s1 + $0x278] sm:$0xff]
      %v365 = vld [vmem:[%s1 + $0x280] sm:$0xff]
      %v366 = vld [vmem:[%s1 + $0x288] sm:$0xff]
      %v367 = vld [vmem:[%s1 + $0x290] sm:$0xff]
      %v368 = vld [vmem:[%s1 + $0x298] sm:$0xff]
      %v369 = vld [vmem:[%s1 + $0x2a0] sm:$0xff]
      %v370 = vld [vmem:[%s1 + $0x2a8] sm:$0xff]
      %v371 = vld [vmem:[%s1 + $0x2b0] sm:$0xff]
      %v372 = vld [vmem:[%s1 + $0x2b8] sm:$0xff]
      %v373 = vld [vmem:[%s1 + $0x2c0] sm:$0xff]
      %v374 = vld [vmem:[%s1 + $0x2c8] sm:$0xff]
      %v375 = vld [vmem:[%s1 + $0x2d0] sm:$0xff]
      %v376 = vld [vmem:[%s1 + $0x2d8] sm:$0xff]
      %v377 = vld [vmem:[%s1 + $0x2e0] sm:$0xff]
      %v378 = vld [vmem:[%s1 + $0x2e8] sm:$0xff]
      %v379 = vld [vmem:[%s1 + $0x2f0] sm:$0xff]
      %v380 = vld [vmem:[%s1 + $0x2f8] sm:$0xff]
      %v381 = vld [vmem:[%s1 + $0x300] sm:$0xff]
      %v382 = vld [vmem:[%s1 + $0x308] sm:$0xff]
      %v383 = vld [vmem:[%s1 + $0x310] sm:$0xff]
      %v384 = vld [vmem:[%s1 + $0x318] sm:$0xff]
      %v385 = vld [vmem:[%s1 + $0x320] sm:$0xff]
      %v386 = vld [vmem:[%s1 + $0x328] sm:$0xff]
      %v387 = vld [vmem:[%s1 + $0x330] sm:$0xff]
      %v388 = vld [vmem:[%s1 + $0x338] sm:$0xff]
      %v389 = vld [vmem:[%s1 + $0x340] sm:$0xff]
      %v390 = vld [vmem:[%s1 + $0x348] sm:$0xff]
      %v391 = vld [vmem:[%s1 + $0x350] sm:$0xff]
      %v392 = vld [vmem:[%s1 + $0x358] sm:$0xff]
      %v393 = vld [vmem:[%s1 + $0x360] sm:$0xff]
      %v394 = vld [vmem:[%s1 + $0x368] sm:$0xff]
      %v395 = vld [vmem:[%s1 + $0x370] sm:$0xff]
      %v396 = vld [vmem:[%s1 + $0x378] sm:$0xff]
      %v397 = vld [vmem:[%s1 + $0x380] sm:$0xff]
      %v398 = vld [vmem:[%s1 + $0x388] sm:$0xff]
      %v399 = vld [vmem:[%s1 + $0x390] sm:$0xff]
      %v400 = vld [vmem:[%s1 + $0x398] sm:$0xff]
      %v401 = vld [vmem:[%s1 + $0x3a0] sm:$0xff]
      %v402 = vld [vmem:[%s1 + $0x3a8] sm:$0xff]
      %v403 = vld [vmem:[%s1 + $0x3b0] sm:$0xff]
      %v404 = vld [vmem:[%s1 + $0x3b8] sm:$0xff]
      %v405 = vld [vmem:[%s1 + $0x3c0] sm:$0xff]
      %v406 = vld [vmem:[%s1 + $0x3c8] sm:$0xff]
      %v407 = vld [vmem:[%s1 + $0x3d0] sm:$0xff]
      %v408 = vld [vmem:[%s1 + $0x3d8] sm:$0xff]
      %v409 = vld [vmem:[%s1 + $0x3e0] sm:$0xff]
      %v410 = vld [vmem:[%s1 + $0x3e8] sm:$0xff]
      %v411 = vld [vmem:[%s1 + $0x3f0] sm:$0xff]
      %v412 = vld [vmem:[%s1 + $0x3f8] sm:$0xff]
      %v413 = vld [vmem:[%s1 + $0x400] sm:$0xff]
      %v414 = vld [vmem:[%s1 + $0x408] sm:$0xff]
      %v415 = vld [vmem:[%s1 + $0x410] sm:$0xff]
      %v416 = vld [vmem:[%s1 + $0x418] sm:$0xff]
      %v417 = vld [vmem:[%s1 + $0x420] sm:$0xff]
      %v418 = vld [vmem:[%s1 + $0x428] sm:$0xff]
      %v419 = vld [vmem:[%s1 + $0x430] sm:$0xff]
      %v420 = vld [vmem:[%s1 + $0x438] sm:$0xff]
      %v421 = vld [vmem:[%s1 + $0x440] sm:$0xff]
      %v422 = vld [vmem:[%s1 + $0x448] sm:$0xff]
      %v423 = vld [vmem:[%s1 + $0x450] sm:$0xff]
      %v424 = vld [vmem:[%s1 + $0x458] sm:$0xff]
      %v425 = vld [vmem:[%s1 + $0x460] sm:$0xff]
      %v426 = vld [vmem:[%s1 + $0x468] sm:$0xff]
      %v427 = vld [vmem:[%s1 + $0x470] sm:$0xff]
      %v428 = vld [vmem:[%s1 + $0x478] sm:$0xff]
      %v429 = vld [vmem:[%s2] sm:$0x1]
      %v431 = vlaneseq
      %v432 = vshrl.u32 %v431, 7
      %v433 = vsub.s32 0, %v432
      %v434 = vrot.slane %v429, %v433
      %436 = vmatprep.subr.mxu0 0.0
      %437 = vmatpush1.msra.mxu0 %v285
      %438 = vmatprep.subr.mxu0 0.0
      %439 = vmatpush1.msra.mxu0 %v286
      %440 = vmatprep.subr.mxu0 0.0
      %441 = vmatpush1.msra.mxu0 %v287
      %442 = vmatprep.subr.mxu0 0.0
      %443 = vmatpush1.msra.mxu0 %v288
      %444 = vmatprep.subr.mxu0 0.0
      %445 = vmatpush1.msra.mxu0 %v289
      %446 = vmatprep.subr.mxu0 0.0
      %447 = vmatpush1.msra.mxu0 %v290
      %448 = vmatprep.subr.mxu0 0.0
      %449 = vmatpush1.msra.mxu0 %v291
      %450 = vmatprep.subr.mxu0 0.0
      %451 = vmatpush1.msra.mxu0 %v292
      %452 = vmatprep.subr.mxu0 0.0
      %453 = vmatpush1.msra.mxu0 %v293
      %454 = vmatprep.subr.mxu0 0.0
      %455 = vmatpush1.msra.mxu0 %v294
      %456 = vmatprep.subr.mxu0 0.0
      %457 = vmatpush1.msra.mxu0 %v295
      %458 = vmatprep.subr.mxu0 0.0
      %459 = vmatpush1.msra.mxu0 %v296
      %460 = vmatprep.subr.mxu0 0.0
      %461 = vmatpush1.msra.mxu0 %v297
      %462 = vmatprep.subr.mxu0 0.0
      %463 = vmatpush1.msra.mxu0 %v298
      %464 = vmatprep.subr.mxu0 0.0
      %465 = vmatpush1.msra.mxu0 %v299
      %466 = vmatprep.subr.mxu0 0.0
      %467 = vmatpush1.msra.mxu0 %v300
      %468 = vmatprep.subr.mxu0 0.0
      %469 = vmatpush1.msra.mxu0 %v301
      %470 = vmatprep.subr.mxu0 0.0
      %471 = vmatpush1.msra.mxu0 %v302
      %472 = vmatprep.subr.mxu0 0.0
      %473 = vmatpush1.msra.mxu0 %v303
      %474 = vmatprep.subr.mxu0 0.0
      %475 = vmatpush1.msra.mxu0 %v304
      %476 = vmatprep.subr.mxu0 0.0
      %477 = vmatpush1.msra.mxu0 %v305
      %478 = vmatprep.subr.mxu0 0.0
      %479 = vmatpush1.msra.mxu0 %v306
      %480 = vmatprep.subr.mxu0 0.0
      %481 = vmatpush1.msra.mxu0 %v307
      %482 = vmatprep.subr.mxu0 0.0
      %483 = vmatpush1.msra.mxu0 %v308
      %484 = vmatprep.subr.mxu0 0.0
      %485 = vmatpush1.msra.mxu0 %v309
      %486 = vmatprep.subr.mxu0 0.0
      %487 = vmatpush1.msra.mxu0 %v310
      %488 = vmatprep.subr.mxu0 0.0
      %489 = vmatpush1.msra.mxu0 %v311
      %490 = vmatprep.subr.mxu0 0.0
      %491 = vmatpush1.msra.mxu0 %v312
      %492 = vmatprep.subr.mxu0 0.0
      %493 = vmatpush1.msra.mxu0 %v313
      %494 = vmatprep.subr.mxu0 0.0
      %495 = vmatpush1.msra.mxu0 %v314
      %496 = vmatprep.subr.mxu0 0.0
      %497 = vmatpush1.msra.mxu0 %v315
      %498 = vmatprep.subr.mxu0 0.0
      %499 = vmatpush1.msra.mxu0 %v316
      %500 = vmatprep.mubr.f32.mxu0 %v220
      %501 = vmatmul.mubr.f32.gmra.mrb[0].mxu0 %v212
      %v502 = vpop.f32.mrb[0].mxu0
      %v503 = vadd.f32 %v434, %v502
      %v504 = vpop.f32.mrb[0].mxu0
      %505 = vmatprep.mubr.f32.mxu0 %v221
      %506 = vmatmul.mubr.f32.gmra.mrb[0].mxu0 %v213
      %v507 = vpop.f32.mrb[0].mxu0
      %v508 = vadd.f32 %v434, %v507
      %v509 = vpop.f32.mrb[0].mxu0
      %510 = vmatprep.mubr.f32.mxu0 %v222
      %511 = vmatmul.mubr.f32.gmra.mrb[0].mxu0 %v214
      %v512 = vpop.f32.mrb[0].mxu0
      %v513 = vadd.f32 %v434, %v512
      %v514 = vpop.f32.mrb[0].mxu0
      %515 = vmatprep.mubr.f32.mxu0 %v223
      %516 = vmatmul.mubr.f32.gmra.mrb[0].mxu0 %v215
      %v517 = vpop.f32.mrb[0].mxu0
      %v518 = vadd.f32 %v434, %v517
      %v519 = vpop.f32.mrb[0].mxu0
      %520 = vmatprep.mubr.f32.mxu0 %v224
      %521 = vmatmul.mubr.f32.gmra.mrb[0].mxu0 %v216
      %v522 = vpop.f32.mrb[0].mxu0
      %v523 = vadd.f32 %v434, %v522
      %v524 = vpop.f32.mrb[0].mxu0
      %525 = vmatprep.mubr.f32.mxu0 %v225
      %526 = vmatmul.mubr.f32.gmra.mrb[0].mxu0 %v217
      %v527 = vpop.f32.mrb[0].mxu0
      %v528 = vadd.f32 %v434, %v527
      %v529 = vpop.f32.mrb[0].mxu0
      %530 = vmatprep.mubr.f32.mxu0 %v226
      %531 = vmatmul.mubr.f32.gmra.mrb[0].mxu0 %v218
      %v532 = vpop.f32.mrb[0].mxu0
      %v533 = vadd.f32 %v434, %v532
      %v534 = vpop.f32.mrb[0].mxu0
      %535 = vmatprep.mubr.f32.mxu0 %v227
      %536 = vmatmul.mubr.f32.gmra.mrb[0].mxu0 %v219
      %v537 = vpop.f32.mrb[0].mxu0
      %v538 = vadd.f32 %v434, %v537
      %v539 = vpop.f32.mrb[0].mxu0
      %540 = vdwg.mxu0
      %541 = vmatprep.subr.mxu0 0.0
      %542 = vmatpush1.msra.mxu0 %v317
      %543 = vmatprep.subr.mxu0 0.0
      %544 = vmatpush1.msra.mxu0 %v318
      %545 = vmatprep.subr.mxu0 0.0
      %546 = vmatpush1.msra.mxu0 %v319
      %547 = vmatprep.subr.mxu0 0.0
      %548 = vmatpush1.msra.mxu0 %v320
      %549 = vmatprep.subr.mxu0 0.0
      %550 = vmatpush1.msra.mxu0 %v321
      %551 = vmatprep.subr.mxu0 0.0
      %552 = vmatpush1.msra.mxu0 %v322
      %553 = vmatprep.subr.mxu0 0.0
      %554 = vmatpush1.msra.mxu0 %v323
      %555 = vmatprep.subr.mxu0 0.0
      %556 = vmatpush1.msra.mxu0 %v324
      %557 = vmatprep.subr.mxu0 0.0
      %558 = vmatpush1.msra.mxu0 %v325
      %559 = vmatprep.subr.mxu0 0.0
      %560 = vmatpush1.msra.mxu0 %v326
      %561 = vmatprep.subr.mxu0 0.0
      %562 = vmatpush1.msra.mxu0 %v327
      %563 = vmatprep.subr.mxu0 0.0
      %564 = vmatpush1.msra.mxu0 %v328
      %565 = vmatprep.subr.mxu0 0.0
      %566 = vmatpush1.msra.mxu0 %v329
      %567 = vmatprep.subr.mxu0 0.0
      %568 = vmatpush1.msra.mxu0 %v330
      %569 = vmatprep.subr.mxu0 0.0
      %570 = vmatpush1.msra.mxu0 %v331
      %571 = vmatprep.subr.mxu0 0.0
      %572 = vmatpush1.msra.mxu0 %v332
      %573 = vmatprep.subr.mxu0 0.0
      %574 = vmatpush1.msra.mxu0 %v333
      %575 = vmatprep.subr.mxu0 0.0
      %576 = vmatpush1.msra.mxu0 %v334
      %577 = vmatprep.subr.mxu0 0.0
      %578 = vmatpush1.msra.mxu0 %v335
      %579 = vmatprep.subr.mxu0 0.0
      %580 = vmatpush1.msra.mxu0 %v336
      %581 = vmatprep.subr.mxu0 0.0
      %582 = vmatpush1.msra.mxu0 %v337
      %583 = vmatprep.subr.mxu0 0.0
      %584 = vmatpush1.msra.mxu0 %v338
      %585 = vmatprep.subr.mxu0 0.0
      %586 = vmatpush1.msra.mxu0 %v339
      %587 = vmatprep.subr.mxu0 0.0
      %588 = vmatpush1.msra.mxu0 %v340
      %589 = vmatprep.subr.mxu0 0.0
      %590 = vmatpush1.msra.mxu0 %v341
      %591 = vmatprep.subr.mxu0 0.0
      %592 = vmatpush1.msra.mxu0 %v342
      %593 = vmatprep.subr.mxu0 0.0
      %594 = vmatpush1.msra.mxu0 %v343
      %595 = vmatprep.subr.mxu0 0.0
      %596 = vmatpush1.msra.mxu0 %v344
      %597 = vmatprep.subr.mxu0 0.0
      %598 = vmatpush1.msra.mxu0 %v345
      %599 = vmatprep.subr.mxu0 0.0
      %600 = vmatpush1.msra.mxu0 %v346
      %601 = vmatprep.subr.mxu0 0.0
      %602 = vmatpush1.msra.mxu0 %v347
      %603 = vmatprep.subr.mxu0 0.0
      %604 = vmatpush1.msra.mxu0 %v348
      %605 = vmatprep.mubr.f32.mxu0 %v236
      %606 = vmatmul.mubr.f32.gmra.mrb[0].mxu0 %v228
      %v607 = vpop.f32.mrb[0].mxu0
      %v608 = vadd.f32 %v503, %v607
      %v609 = vpop.f32.mrb[0].mxu0
      %610 = vmatprep.mubr.f32.mxu0 %v237
      %611 = vmatmul.mubr.f32.gmra.mrb[0].mxu0 %v229
      %v612 = vpop.f32.mrb[0].mxu0
      %v613 = vadd.f32 %v508, %v612
      %v614 = vpop.f32.mrb[0].mxu0
      %615 = vmatprep.mubr.f32.mxu0 %v238
      %616 = vmatmul.mubr.f32.gmra.mrb[0].mxu0 %v230
      %v617 = vpop.f32.mrb[0].mxu0
      %v618 = vadd.f32 %v513, %v617
      %v619 = vpop.f32.mrb[0].mxu0
      %620 = vmatprep.mubr.f32.mxu0 %v239
      %621 = vmatmul.mubr.f32.gmra.mrb[0].mxu0 %v231
      %v622 = vpop.f32.mrb[0].mxu0
      %v623 = vadd.f32 %v518, %v622
      %v624 = vpop.f32.mrb[0].mxu0
      %625 = vmatprep.mubr.f32.mxu0 %v240
      %626 = vmatmul.mubr.f32.gmra.mrb[0].mxu0 %v232
      %v627 = vpop.f32.mrb[0].mxu0
      %v628 = vadd.f32 %v523, %v627
      %v629 = vpop.f32.mrb[0].mxu0
      %630 = vmatprep.mubr.f32.mxu0 %v241
      %631 = vmatmul.mubr.f32.gmra.mrb[0].mxu0 %v233
      %v632 = vpop.f32.mrb[0].mxu0
      %v633 = vadd.f32 %v528, %v632
      %v634 = vpop.f32.mrb[0].mxu0
      %635 = vmatprep.mubr.f32.mxu0 %v242
      %636 = vmatmul.mubr.f32.gmra.mrb[0].mxu0 %v234
      %v637 = vpop.f32.mrb[0].mxu0
      %v638 = vadd.f32 %v533, %v637
      %v639 = vpop.f32.mrb[0].mxu0
      %640 = vmatprep.mubr.f32.mxu0 %v243
      %641 = vmatmul.mubr.f32.gmra.mrb[0].mxu0 %v235
      %v642 = vpop.f32.mrb[0].mxu0
      %v643 = vadd.f32 %v538, %v642
      %v644 = vpop.f32.mrb[0].mxu0
      %645 = vdwg.mxu0
      %646 = vmatprep.subr.mxu0 0.0
      %647 = vmatpush1.msra.mxu0 %v349
      %648 = vmatprep.subr.mxu0 0.0
      %649 = vmatpush1.msra.mxu0 %v350
      %650 = vmatprep.subr.mxu0 0.0
      %651 = vmatpush1.msra.mxu0 %v351
      %652 = vmatprep.subr.mxu0 0.0
      %653 = vmatpush1.msra.mxu0 %v352
      %654 = vmatprep.subr.mxu0 0.0
      %655 = vmatpush1.msra.mxu0 %v353
      %656 = vmatprep.subr.mxu0 0.0
      %657 = vmatpush1.msra.mxu0 %v354
      %658 = vmatprep.subr.mxu0 0.0
      %659 = vmatpush1.msra.mxu0 %v355
      %660 = vmatprep.subr.mxu0 0.0
      %661 = vmatpush1.msra.mxu0 %v356
      %662 = vmatprep.subr.mxu0 0.0
      %663 = vmatpush1.msra.mxu0 %v357
      %664 = vmatprep.subr.mxu0 0.0
      %665 = vmatpush1.msra.mxu0 %v358
      %666 = vmatprep.subr.mxu0 0.0
      %667 = vmatpush1.msra.mxu0 %v359
      %668 = vmatprep.subr.mxu0 0.0
      %669 = vmatpush1.msra.mxu0 %v360
      %670 = vmatprep.subr.mxu0 0.0
      %671 = vmatpush1.msra.mxu0 %v361
      %672 = vmatprep.subr.mxu0 0.0
      %673 = vmatpush1.msra.mxu0 %v362
      %674 = vmatprep.subr.mxu0 0.0
      %675 = vmatpush1.msra.mxu0 %v363
      %676 = vmatprep.subr.mxu0 0.0
      %677 = vmatpush1.msra.mxu0 %v364
      %678 = vmatprep.subr.mxu0 0.0
      %679 = vmatpush1.msra.mxu0 %v365
      %680 = vmatprep.subr.mxu0 0.0
      %681 = vmatpush1.msra.mxu0 %v366
      %682 = vmatprep.subr.mxu0 0.0
      %683 = vmatpush1.msra.mxu0 %v367
      %684 = vmatprep.subr.mxu0 0.0
      %685 = vmatpush1.msra.mxu0 %v368
      %686 = vmatprep.subr.mxu0 0.0
      %687 = vmatpush1.msra.mxu0 %v369
      %688 = vmatprep.subr.mxu0 0.0
      %689 = vmatpush1.msra.mxu0 %v370
      %690 = vmatprep.subr.mxu0 0.0
      %691 = vmatpush1.msra.mxu0 %v371
      %692 = vmatprep.subr.mxu0 0.0
      %693 = vmatpush1.msra.mxu0 %v372
      %694 = vmatprep.subr.mxu0 0.0
      %695 = vmatpush1.msra.mxu0 %v373
      %696 = vmatprep.subr.mxu0 0.0
      %697 = vmatpush1.msra.mxu0 %v374
      %698 = vmatprep.subr.mxu0 0.0
      %699 = vmatpush1.msra.mxu0 %v375
      %700 = vmatprep.subr.mxu0 0.0
      %701 = vmatpush1.msra.mxu0 %v376
      %702 = vmatprep.subr.mxu0 0.0
      %703 = vmatpush1.msra.mxu0 %v377
      %704 = vmatprep.subr.mxu0 0.0
      %705 = vmatpush1.msra.mxu0 %v378
      %706 = vmatprep.subr.mxu0 0.0
      %707 = vmatpush1.msra.mxu0 %v379
      %708 = vmatprep.subr.mxu0 0.0
      %709 = vmatpush1.msra.mxu0 %v380
      %710 = vmatprep.mubr.f32.mxu0 %v252
      %711 = vmatmul.mubr.f32.gmra.mrb[0].mxu0 %v244
      %v712 = vpop.f32.mrb[0].mxu0
      %v713 = vadd.f32 %v608, %v712
      %v714 = vpop.f32.mrb[0].mxu0
      %715 = vmatprep.mubr.f32.mxu0 %v253
      %716 = vmatmul.mubr.f32.gmra.mrb[0].mxu0 %v245
      %v717 = vpop.f32.mrb[0].mxu0
      %v718 = vadd.f32 %v613, %v717
      %v719 = vpop.f32.mrb[0].mxu0
      %720 = vmatprep.mubr.f32.mxu0 %v254
      %721 = vmatmul.mubr.f32.gmra.mrb[0].mxu0 %v246
      %v722 = vpop.f32.mrb[0].mxu0
      %v723 = vadd.f32 %v618, %v722
      %v724 = vpop.f32.mrb[0].mxu0
      %725 = vmatprep.mubr.f32.mxu0 %v255
      %726 = vmatmul.mubr.f32.gmra.mrb[0].mxu0 %v247
      %v727 = vpop.f32.mrb[0].mxu0
      %v728 = vadd.f32 %v623, %v727
      %v729 = vpop.f32.mrb[0].mxu0
      %730 = vmatprep.mubr.f32.mxu0 %v256
      %731 = vmatmul.mubr.f32.gmra.mrb[0].mxu0 %v248
      %v732 = vpop.f32.mrb[0].mxu0
      %v733 = vadd.f32 %v628, %v732
      %v734 = vpop.f32.mrb[0].mxu0
      %735 = vmatprep.mubr.f32.mxu0 %v257
      %736 = vmatmul.mubr.f32.gmra.mrb[0].mxu0 %v249
      %v737 = vpop.f32.mrb[0].mxu0
      %v738 = vadd.f32 %v633, %v737
      %v739 = vpop.f32.mrb[0].mxu0
      %740 = vmatprep.mubr.f32.mxu0 %v258
      %741 = vmatmul.mubr.f32.gmra.mrb[0].mxu0 %v250
      %v742 = vpop.f32.mrb[0].mxu0
      %v743 = vadd.f32 %v638, %v742
      %v744 = vpop.f32.mrb[0].mxu0
      %745 = vmatprep.mubr.f32.mxu0 %v259
      %746 = vmatmul.mubr.f32.gmra.mrb[0].mxu0 %v251
      %v747 = vpop.f32.mrb[0].mxu0
      %v748 = vadd.f32 %v643, %v747
      %v749 = vpop.f32.mrb[0].mxu0
      %750 = vdwg.mxu0
      %751 = vmatprep.subr.mxu0 0.0
      %752 = vmatpush1.msra.mxu0 %v381
      %753 = vmatprep.subr.mxu0 0.0
      %754 = vmatpush1.msra.mxu0 %v382
      %755 = vmatprep.subr.mxu0 0.0
      %756 = vmatpush1.msra.mxu0 %v383
      %757 = vmatprep.subr.mxu0 0.0
      %758 = vmatpush1.msra.mxu0 %v384
      %759 = vmatprep.subr.mxu0 0.0
      %760 = vmatpush1.msra.mxu0 %v385
      %761 = vmatprep.subr.mxu0 0.0
      %762 = vmatpush1.msra.mxu0 %v386
      %763 = vmatprep.subr.mxu0 0.0
      %764 = vmatpush1.msra.mxu0 %v387
      %765 = vmatprep.subr.mxu0 0.0
      %766 = vmatpush1.msra.mxu0 %v388
      %767 = vmatprep.subr.mxu0 0.0
      %768 = vmatpush1.msra.mxu0 %v389
      %769 = vmatprep.subr.mxu0 0.0
      %770 = vmatpush1.msra.mxu0 %v390
      %771 = vmatprep.subr.mxu0 0.0
      %772 = vmatpush1.msra.mxu0 %v391
      %773 = vmatprep.subr.mxu0 0.0
      %774 = vmatpush1.msra.mxu0 %v392
      %775 = vmatprep.subr.mxu0 0.0
      %776 = vmatpush1.msra.mxu0 %v393
      %777 = vmatprep.subr.mxu0 0.0
      %778 = vmatpush1.msra.mxu0 %v394
      %779 = vmatprep.subr.mxu0 0.0
      %780 = vmatpush1.msra.mxu0 %v395
      %781 = vmatprep.subr.mxu0 0.0
      %782 = vmatpush1.msra.mxu0 %v396
      %783 = vmatprep.subr.mxu0 0.0
      %784 = vmatpush1.msra.mxu0 %v397
      %785 = vmatprep.subr.mxu0 0.0
      %786 = vmatpush1.msra.mxu0 %v398
      %787 = vmatprep.subr.mxu0 0.0
      %788 = vmatpush1.msra.mxu0 %v399
      %789 = vmatprep.subr.mxu0 0.0
      %790 = vmatpush1.msra.mxu0 %v400
      %791 = vmatprep.subr.mxu0 0.0
      %792 = vmatpush1.msra.mxu0 %v401
      %793 = vmatprep.subr.mxu0 0.0
      %794 = vmatpush1.msra.mxu0 %v402
      %795 = vmatprep.subr.mxu0 0.0
      %796 = vmatpush1.msra.mxu0 %v403
      %797 = vmatprep.subr.mxu0 0.0
      %798 = vmatpush1.msra.mxu0 %v404
      %799 = vmatprep.subr.mxu0 0.0
      %800 = vmatpush1.msra.mxu0 %v405
      %801 = vmatprep.subr.mxu0 0.0
      %802 = vmatpush1.msra.mxu0 %v406
      %803 = vmatprep.subr.mxu0 0.0
      %804 = vmatpush1.msra.mxu0 %v407
      %805 = vmatprep.subr.mxu0 0.0
      %806 = vmatpush1.msra.mxu0 %v408
      %807 = vmatprep.subr.mxu0 0.0
      %808 = vmatpush1.msra.mxu0 %v409
      %809 = vmatprep.subr.mxu0 0.0
      %810 = vmatpush1.msra.mxu0 %v410
      %811 = vmatprep.subr.mxu0 0.0
      %812 = vmatpush1.msra.mxu0 %v411
      %813 = vmatprep.subr.mxu0 0.0
      %814 = vmatpush1.msra.mxu0 %v412
      %815 = vmatprep.mubr.f32.mxu0 %v269
      %816 = vmatmul.mubr.f32.gmra.mrb[0].mxu0 %v261
      %v817 = vpop.f32.mrb[0].mxu0
      %v818 = vadd.f32 %v713, %v817
      %v819 = vpop.f32.mrb[0].mxu0
      %820 = vmatprep.mubr.f32.mxu0 %v270
      %821 = vmatmul.mubr.f32.gmra.mrb[0].mxu0 %v262
      %v822 = vpop.f32.mrb[0].mxu0
      %v823 = vadd.f32 %v718, %v822
      %v824 = vpop.f32.mrb[0].mxu0
      %825 = vmatprep.mubr.f32.mxu0 %v271
      %826 = vmatmul.mubr.f32.gmra.mrb[0].mxu0 %v263
      %v827 = vpop.f32.mrb[0].mxu0
      %v828 = vadd.f32 %v723, %v827
      %v829 = vpop.f32.mrb[0].mxu0
      %830 = vmatprep.mubr.f32.mxu0 %v272
      %831 = vmatmul.mubr.f32.gmra.mrb[0].mxu0 %v264
      %v832 = vpop.f32.mrb[0].mxu0
      %v833 = vadd.f32 %v728, %v832
      %v834 = vpop.f32.mrb[0].mxu0
      %835 = vmatprep.mubr.f32.mxu0 %v273
      %836 = vmatmul.mubr.f32.gmra.mrb[0].mxu0 %v265
      %v837 = vpop.f32.mrb[0].mxu0
      %v838 = vadd.f32 %v733, %v837
      %v839 = vpop.f32.mrb[0].mxu0
      %840 = vmatprep.mubr.f32.mxu0 %v274
      %841 = vmatmul.mubr.f32.gmra.mrb[0].mxu0 %v266
      %v842 = vpop.f32.mrb[0].mxu0
      %v843 = vadd.f32 %v738, %v842
      %v844 = vpop.f32.mrb[0].mxu0
      %845 = vmatprep.mubr.f32.mxu0 %v275
      %846 = vmatmul.mubr.f32.gmra.mrb[0].mxu0 %v267
      %v847 = vpop.f32.mrb[0].mxu0
      %v848 = vadd.f32 %v743, %v847
      %v849 = vpop.f32.mrb[0].mxu0
      %850 = vmatprep.mubr.f32.mxu0 %v276
      %851 = vmatmul.mubr.f32.gmra.mrb[0].mxu0 %v268
      %v852 = vpop.f32.mrb[0].mxu0
      %v853 = vadd.f32 %v748, %v852
      %v854 = vpop.f32.mrb[0].mxu0
      %855 = vdwg.mxu0
      %856 = vmatprep.subr.mxu0 0.0
      %857 = vmatpush1.msra.mxu0 %v413
      %858 = vmatprep.subr.mxu0 0.0
      %859 = vmatpush1.msra.mxu0 %v414
      %860 = vmatprep.subr.mxu0 0.0
      %861 = vmatpush1.msra.mxu0 %v415
      %862 = vmatprep.subr.mxu0 0.0
      %863 = vmatpush1.msra.mxu0 %v416
      %864 = vmatprep.subr.mxu0 0.0
      %865 = vmatpush1.msra.mxu0 %v417
      %866 = vmatprep.subr.mxu0 0.0
      %867 = vmatpush1.msra.mxu0 %v418
      %868 = vmatprep.subr.mxu0 0.0
      %869 = vmatpush1.msra.mxu0 %v419
      %870 = vmatprep.subr.mxu0 0.0
      %871 = vmatpush1.msra.mxu0 %v420
      %872 = vmatprep.subr.mxu0 0.0
      %873 = vmatpush1.msra.mxu0 %v421
      %874 = vmatprep.subr.mxu0 0.0
      %875 = vmatpush1.msra.mxu0 %v422
      %876 = vmatprep.subr.mxu0 0.0
      %877 = vmatpush1.msra.mxu0 %v423
      %878 = vmatprep.subr.mxu0 0.0
      %879 = vmatpush1.msra.mxu0 %v424
      %880 = vmatprep.subr.mxu0 0.0
      %881 = vmatpush1.msra.mxu0 %v425
      %882 = vmatprep.subr.mxu0 0.0
      %883 = vmatpush1.msra.mxu0 %v426
      %884 = vmatprep.subr.mxu0 0.0
      %885 = vmatpush1.msra.mxu0 %v427
      %886 = vmatprep.subr.mxu0 0.0
      %887 = vmatpush1.msra.mxu0 %v428
      %888 = vmatprep.subr.mxu0 0.0
      %889 = vmatpush1.msra.mxu0 0.0
      %890 = vmatprep.subr.mxu0 0.0
      %891 = vmatpush1.msra.mxu0 0.0
      %892 = vmatprep.subr.mxu0 0.0
      %893 = vmatpush1.msra.mxu0 0.0
      %894 = vmatprep.subr.mxu0 0.0
      %895 = vmatpush1.msra.mxu0 0.0
      %896 = vmatprep.subr.mxu0 0.0
      %897 = vmatpush1.msra.mxu0 0.0
      %898 = vmatprep.subr.mxu0 0.0
      %899 = vmatpush1.msra.mxu0 0.0
      %900 = vmatprep.subr.mxu0 0.0
      %901 = vmatpush1.msra.mxu0 0.0
      %902 = vmatprep.subr.mxu0 0.0
      %903 = vmatpush1.msra.mxu0 0.0
      %904 = vmatprep.subr.mxu0 0.0
      %905 = vmatpush1.msra.mxu0 0.0
      %906 = vmatprep.subr.mxu0 0.0
      %907 = vmatpush1.msra.mxu0 0.0
      %908 = vmatprep.subr.mxu0 0.0
      %909 = vmatpush1.msra.mxu0 0.0
      %910 = vmatprep.subr.mxu0 0.0
      %911 = vmatpush1.msra.mxu0 0.0
      %912 = vmatprep.subr.mxu0 0.0
      %913 = vmatpush1.msra.mxu0 0.0
      %914 = vmatprep.subr.mxu0 0.0
      %915 = vmatpush1.msra.mxu0 0.0
      %916 = vmatprep.subr.mxu0 0.0
      %917 = vmatpush1.msra.mxu0 0.0
      %918 = vmatprep.subr.mxu0 0.0
      %919 = vmatpush1.msra.mxu0 0.0
      %920 = vmatprep.mubr.f32.mxu0 0.0
      %921 = vmatmul.mubr.f32.gmra.mrb[0].mxu0 %v277
      %v922 = vpop.f32.mrb[0].mxu0
      %v923 = vadd.f32 %v818, %v922
      %v924 = vpop.f32.mrb[0].mxu0
      %925 = vmatprep.mubr.f32.mxu0 0.0
      %926 = vmatmul.mubr.f32.gmra.mrb[0].mxu0 %v278
      %v927 = vpop.f32.mrb[0].mxu0
      %v928 = vadd.f32 %v823, %v927
      %v929 = vpop.f32.mrb[0].mxu0
      %930 = vmatprep.mubr.f32.mxu0 0.0
      %931 = vmatmul.mubr.f32.gmra.mrb[0].mxu0 %v279
      %v932 = vpop.f32.mrb[0].mxu0
      %v933 = vadd.f32 %v828, %v932
      %v934 = vpop.f32.mrb[0].mxu0
      %935 = vmatprep.mubr.f32.mxu0 0.0
      %936 = vmatmul.mubr.f32.gmra.mrb[0].mxu0 %v280
      %v937 = vpop.f32.mrb[0].mxu0
      %v938 = vadd.f32 %v833, %v937
      %v939 = vpop.f32.mrb[0].mxu0
      %940 = vmatprep.mubr.f32.mxu0 0.0
      %941 = vmatmul.mubr.f32.gmra.mrb[0].mxu0 %v281
      %v942 = vpop.f32.mrb[0].mxu0
      %v943 = vadd.f32 %v838, %v942
      %v944 = vpop.f32.mrb[0].mxu0
      %945 = vmatprep.mubr.f32.mxu0 0.0
      %946 = vmatmul.mubr.f32.gmra.mrb[0].mxu0 %v282
      %v947 = vpop.f32.mrb[0].mxu0
      %v948 = vadd.f32 %v843, %v947
      %v949 = vpop.f32.mrb[0].mxu0
      %950 = vmatprep.mubr.f32.mxu0 0.0
      %951 = vmatmul.mubr.f32.gmra.mrb[0].mxu0 %v283
      %v952 = vpop.f32.mrb[0].mxu0
      %v953 = vadd.f32 %v848, %v952
      %v954 = vpop.f32.mrb[0].mxu0
      %955 = vmatprep.mubr.f32.mxu0 0.0
      %956 = vmatmul.mubr.f32.gmra.mrb[0].mxu0 %v284
      %v957 = vpop.f32.mrb[0].mxu0
      %v958 = vadd.f32 %v853, %v957
      %v959 = vpop.f32.mrb[0].mxu0
      %960 = vdwg.mxu0
      %v961 = vmax.f32 %v923, 0.0
      %v962 = vmax.f32 %v928, 0.0
      %v963 = vmax.f32 %v933, 0.0
      %v964 = vmax.f32 %v938, 0.0
      %v965 = vmax.f32 %v943, 0.0
      %v966 = vmax.f32 %v948, 0.0
      %v967 = vmax.f32 %v953, 0.0
      %v968 = vmax.f32 %v958, 0.0
      %969 = vst [vmem:[%s170] sm:$0xff] %v961
      %970 = vst [vmem:[%s170 + $0x8] sm:$0xff] %v962
      %971 = vst [vmem:[%s170 + $0x10] sm:$0xff] %v963
      %972 = vst [vmem:[%s170 + $0x18] sm:$0xff] %v964
      %973 = vst [vmem:[%s170 + $0x20] sm:$0xff] %v965
      %974 = vst [vmem:[%s170 + $0x28] sm:$0xff] %v966
      %975 = vst [vmem:[%s170 + $0x30] sm:$0xff] %v967
      %976 = vst [vmem:[%s170 + $0x38] sm:$0xff] %v968
      %p977 = scmp.lt.s32.totalorder %s14, 1
      %s978 = scalar_select %p977, %s14, 1
      %s979 = smul.addr %s978, 8
      %s980 = smul.addr %s979, 8
      %s981 = scalar_lea.vmem %s3, %s980
      // Predicated region
      $region33: #{sdunet_forward.6} parent=31 // pred_check
        %p982 = pneg %p100
      $region34: #{sdunet_forward.6} parent=31 // pred_check_branch
        %984 = sbr.rel (%p982) target = $region36
      $region35: #{sdunet_forward.6} parent=31 // pred_region
        _
      $region36: #{sdunet_forward.6} parent=31 // pred_fallthru
        _
    $region32: #{sdunet_forward.6} parent=5 // pred_fallthru
      _
    %p985 = scmp.le.s32.totalorder 2, %s9
    // Predicated region
    $region37: #{sdunet_forward.6} parent=5 // pred_check
      %p986 = pneg %p985
    $region38: #{sdunet_forward.6} parent=5 // pred_check_branch
      %988 = sbr.rel (%p986) target = $region40
    $region39: #{sdunet_forward.6} parent=5 // pred_region
      %s989 = ssub.s32 %s9, 2
      // Predicated region
      $region41: #{sdunet_forward.6} parent=39 // pred_check
        %p990 = pneg %p106
      $region42: #{sdunet_forward.6} parent=39 // pred_check_branch
        %992 = sbr.rel (%p990) target = $region44
      $region43: #{sdunet_forward.6} parent=39 // pred_region
        %p993 = scmp.lt.s32.totalorder %s15, 1
        %s994 = scalar_select %p993, %s15, 1
        %s995 = smul.addr %s994, 8
        %s996 = smul.addr %s995, 8
        %s997 = scalar_lea.vmem %s3, %s996
      $region44: #{sdunet_forward.6} parent=39 // pred_fallthru
        _
    $region40: #{sdunet_forward.6} parent=5 // pred_fallthru
      _
  $region6: #{sdunet_forward.6} parent=0 // loop_footer
    %s13 = sadd.s32 1, %s9
  $region7: #{sdunet_forward.6} parent=0 // loop_footer_branch
    %8 = sbr.rel target = $region3
  $region8: #{sdunet_forward.6} parent=0 // loop_exit
    _

// kernel: sdunet_forward.5
$region0: #{sdunet_forward.5}
  #allocation0 [shape = 'u32[]', space=smem, size = 0x4, offset = 0x4, fixed_abs, tag = 'smem constant byte address 0x4 - core index']
  #allocation1 [shape = 'u32[144,128]{1,0:T(1,128)}', space=vmem, size = 0x12000, scoped, tag = 'internal scratch']
  #allocation2 [shape = 'f32[20,20,4]{2,1,0:T(8,128)}', space=vmem, size = 0x3c000, scoped, tag = 'scratch operand']
  %s0 = inlined_call_operand.vmem [shape: f32[2,16,16,4], index: 0, kind: input, shape index: {}]
  %s1 = inlined_call_operand.vmem [shape: f32[36,128], index: 1, kind: input, shape index: {}]
  %s2 = inlined_call_operand.vmem [shape: f32[1,128], index: 2, kind: input, shape index: {}]
  %s3 = inlined_call_operand.vmem [shape: f32[2,16,16,128], index: 3, kind: output, shape index: {}]
  %s4 = sld [smem:[#allocation0]]
  $region45: #{sdunet_forward.5} parent=0
    _
  %s6 = ssub.s32 1, %s4
  %s7 = scalar_select 0, %s6, %s4
  loop: start=0, step=1, limit=4
  $region2: #{sdunet_forward.5} parent=0 // loop_pre_header
    _
  $region3: #{sdunet_forward.5} parent=0 // loop_header
    %s9 = sphi 0, %s13
    %p10 = scmp.ge.s32.totalorder %s9, 4
    %s19 = sphi 0, %s21
    %s22 = sphi 0, %s19
    %s23 = sphi 0, %s22
    %s39 = sphi 0, %s23
    %s43 = sphi 0, %s43
    %s45 = sphi 0, %s43
    %s46 = sphi 0, %s45
    %s60 = sphi 0, %s46
    %s64 = sphi 0, %s64
    %s66 = sphi 0, %s64
    %s67 = sphi 0, %s66
    %s81 = sphi 0, %s67
    %s87 = sphi 0, %s89
    %s90 = sphi 0, %s87
    %s91 = sphi 0, %s90
    %s107 = sphi 0, %s91
  $region4: #{sdunet_forward.5} parent=0 // loop_header_branch
    %12 = sbr.rel (%p10) target = $region8
  $region5: #{sdunet_forward.5} parent=0 // loop_body
    %s14 = ssub.s32 %s9, 1
    %s15 = ssub.s32 %s9, 2
    %s16 = sadd.s32 %s9, 1
    %s17 = ssub.s32 %s9, %s16
    %p18 = scmp.eq.s32.totalorder %s17, 0
    %s20 = sadd.s32 %s19, 1
    %s21 = scalar_select %p18, %s19, %s20
    %p24 = pneg %p18
    %p25 = scmp.eq.s32.totalorder %s9, 1
    %p26 = por %p24, %p25
    %p27 = scmp.ne.s32.totalorder %s19, %s22
    %p28 = scmp.eq.s32.totalorder %s9, 0
    %p29 = por %p27, %p28
    %p30 = scmp.ne.s32.totalorder %s19, %s22
    %p31 = scmp.eq.s32.totalorder %s14, 1
    %p32 = por %p30, %p31
    %p33 = scmp.ne.s32.totalorder %s22, %s23
    %p34 = scmp.eq.s32.totalorder %s14, 0
    %p35 = por %p33, %p34
    %p36 = scmp.ne.s32.totalorder %s22, %s23
    %p37 = scmp.eq.s32.totalorder %s15, 1
    %p38 = por %p36, %p37
    %p40 = scmp.ne.s32.totalorder %s23, %s39
    %p41 = scmp.eq.s32.totalorder %s15, 0
    %p42 = por %p40, %p41
    %s44 = sadd.s32 %s43, 1
    %p47 = scmp.eq.s32.totalorder %s9, 1
    %p48 = scmp.ne.s32.totalorder %s43, %s45
    %p49 = scmp.eq.s32.totalorder %s9, 0
    %p50 = por %p48, %p49
    %p51 = scmp.ne.s32.totalorder %s43, %s45
    %p52 = scmp.eq.s32.totalorder %s14, 1
    %p53 = por %p51, %p52
    %p54 = scmp.ne.s32.totalorder %s45, %s46
    %p55 = scmp.eq.s32.totalorder %s14, 0
    %p56 = por %p54, %p55
    %p57 = scmp.ne.s32.totalorder %s45, %s46
    %p58 = scmp.eq.s32.totalorder %s15, 1
    %p59 = por %p57, %p58
    %p61 = scmp.ne.s32.totalorder %s46, %s60
    %p62 = scmp.eq.s32.totalorder %s15, 0
    %p63 = por %p61, %p62
    %s65 = sadd.s32 %s64, 1
    %p68 = scmp.eq.s32.totalorder %s9, 1
    %p69 = scmp.ne.s32.totalorder %s64, %s66
    %p70 = scmp.eq.s32.totalorder %s9, 0
    %p71 = por %p69, %p70
    %p72 = scmp.ne.s32.totalorder %s64, %s66
    %p73 = scmp.eq.s32.totalorder %s14, 1
    %p74 = por %p72, %p73
    %p75 = scmp.ne.s32.totalorder %s66, %s67
    %p76 = scmp.eq.s32.totalorder %s14, 0
    %p77 = por %p75, %p76
    %p78 = scmp.ne.s32.totalorder %s66, %s67
    %p79 = scmp.eq.s32.totalorder %s15, 1
    %p80 = por %p78, %p79
    %p82 = scmp.ne.s32.totalorder %s67, %s81
    %p83 = scmp.eq.s32.totalorder %s15, 0
    %p84 = por %p82, %p83
    %s85 = ssub.s32 %s9, %s16
    %p86 = scmp.eq.s32.totalorder %s85, 0
    %s88 = sadd.s32 %s87, 1
    %s89 = scalar_select %p86, %s87, %s88
    %p92 = pneg %p86
    %p93 = scmp.eq.s32.totalorder %s9, 1
    %p94 = por %p92, %p93
    %p95 = scmp.ne.s32.totalorder %s87, %s90
    %p96 = scmp.eq.s32.totalorder %s9, 0
    %p97 = por %p95, %p96
    %p98 = scmp.ne.s32.totalorder %s87, %s90
    %p99 = scmp.eq.s32.totalorder %s14, 1
    %p100 = por %p98, %p99
    %p101 = scmp.ne.s32.totalorder %s90, %s91
    %p102 = scmp.eq.s32.totalorder %s14, 0
    %p103 = por %p101, %p102
    %p104 = scmp.ne.s32.totalorder %s90, %s91
    %p105 = scmp.eq.s32.totalorder %s15, 1
    %p106 = por %p104, %p105
    %p108 = scmp.ne.s32.totalorder %s91, %s107
    %p109 = scmp.eq.s32.totalorder %s15, 0
    %p110 = por %p108, %p109
    %p111 = scmp.le.s32.totalorder 1, %s9
    %p112 = scmp.lt.s32.totalorder %s9, 3
    %p113 = pnand %p111, %p112
    %p114 = pneg %p113
    // Predicated region
    $region9: #{sdunet_forward.5} parent=5 // pred_check
      _
    $region10: #{sdunet_forward.5} parent=5 // pred_check_branch
      %116 = sbr.rel (%p113) target = $region12
    $region11: #{sdunet_forward.5} parent=5 // pred_region
      %s117 = ssub.s32 %s9, 1
      // Predicated region
      $region13: #{sdunet_forward.5} parent=11 // pred_check
        %p118 = pneg %p56
      $region14: #{sdunet_forward.5} parent=11 // pred_check_branch
        %120 = sbr.rel (%p118) target = $region16
      $region15: #{sdunet_forward.5} parent=11 // pred_region
        _
      $region16: #{sdunet_forward.5} parent=11 // pred_fallthru
        _
      // Predicated region
      $region17: #{sdunet_forward.5} parent=11 // pred_check
        %p121 = pneg %p77
      $region18: #{sdunet_forward.5} parent=11 // pred_check_branch
        %123 = sbr.rel (%p121) target = $region20
      $region19: #{sdunet_forward.5} parent=11 // pred_region
        _
      $region20: #{sdunet_forward.5} parent=11 // pred_fallthru
        _
    $region12: #{sdunet_forward.5} parent=5 // pred_fallthru
      _
    %p124 = scmp.lt.s32.totalorder %s9, 2
    // Predicated region
    $region21: #{sdunet_forward.5} parent=5 // pred_check
      %p125 = pneg %p124
    $region22: #{sdunet_forward.5} parent=5 // pred_check_branch
      %127 = sbr.rel (%p125) target = $region24
    $region23: #{sdunet_forward.5} parent=5 // pred_region
      // Predicated region
      $region25: #{sdunet_forward.5} parent=23 // pred_check
        %p128 = pneg %p29
      $region26: #{sdunet_forward.5} parent=23 // pred_check_branch
        %130 = sbr.rel (%p128) target = $region28
      $region27: #{sdunet_forward.5} parent=23 // pred_region
        %p131 = scmp.lt.s32.totalorder %s9, 1
        %s132 = scalar_select %p131, %s9, 1
        %s133 = smul.addr %s132, 32
        %s134 = smul.addr %s133, 8
        %s135 = scalar_lea.vmem %s0, %s134
      $region28: #{sdunet_forward.5} parent=23 // pred_fallthru
        _
    $region24: #{sdunet_forward.5} parent=5 // pred_fallthru
      _
    %p136 = scmp.le.s32.totalorder 1, %s9
    %p137 = scmp.lt.s32.totalorder %s9, 3
    %p138 = pnand %p136, %p137
    %p139 = pneg %p138
    // Predicated region
    $region29: #{sdunet_forward.5} parent=5 // pred_check
      _
    $region30: #{sdunet_forward.5} parent=5 // pred_check_branch
      %141 = sbr.rel (%p138) target = $region32
    $region31: #{sdunet_forward.5} parent=5 // pred_region
      %s142 = ssub.s32 %s9, 1
      %p143 = scmp.lt.s32.totalorder %s14, 1
      %s144 = scalar_select %p143, %s14, 1
      %s145 = smul.addr %s144, 32
      %s146 = smul.addr %s145, 8
      %s147 = scalar_lea.vmem %s0, %s146
      %p148 = pneg %p35
      %p149 = pneg %p32
      %p150 = pneg %p56
      %p151 = pneg %p53
      %p152 = pneg %p77
      %p153 = pneg %p74
      %p154 = pneg %p103
      %p155 = pneg %p100
      %p156 = scmp.lt.s32.totalorder %s14, 1
      %s157 = scalar_select %p156, %s14, 1
      %s158 = smul.addr %s157, 32
      %s159 = smul.addr %s158, 8
      %s160 = scalar_lea.vmem %s3, %s159
      %p161 = scmp.lt.s32.totalorder %s14, 1
      %s162 = scalar_select %p161, %s14, 1
      %s163 = smul.addr %s162, 32
      %s164 = smul.addr %s163, 8
      %s165 = scalar_lea.vmem %s0, %s164
      %p166 = scmp.lt.s32.totalorder %s14, 1
      %s167 = scalar_select %p166, %s14, 1
      %s168 = smul.addr %s167, 32
      %s169 = smul.addr %s168, 8
      %s170 = scalar_lea.vmem %s3, %s169
      %vm171 = vcmask 31744
      %172 = vst.msk [vmem:[#allocation2] sm:$0xff] %vm171, 0.0
      %173 = vst.msk [vmem:[#allocation2 + $0x8] sm:$0xff] %vm171, 0.0
      %vm174 = vcmask 27648
      %175 = vst.msk [vmem:[#allocation2 + $0x10] sm:$0xf] %vm174, 0.0
      %176 = vst.msk [vmem:[#allocation2 + $0x18] sm:$0xff] %vm171, 0.0
      %177 = vst.msk [vmem:[#allocation2 + $0x20] sm:$0xff] %vm171, 0.0
      %178 = vst.msk [vmem:[#allocation2 + $0x28] sm:$0xf] %vm174, 0.0
      %179 = vst.msk [vmem:[#allocation2 + $0x30] sm:$0xff] %vm171, 0.0
      %180 = vst.msk [vmem:[#allocation2 + $0x38] sm:$0xff] %vm171, 0.0
      %181 = vst.msk [vmem:[#allocation2 + $0x40] sm:$0xf] %vm174, 0.0
      %182 = vst.msk [vmem:[#allocation2 + $0x48] sm:$0xff] %vm171, 0.0
      %183 = vst.msk [vmem:[#allocation2 + $0x50] sm:$0xff] %vm171, 0.0
      %184 = vst.msk [vmem:[#allocation2 + $0x58] sm:$0xf] %vm174, 0.0
      %185 = vst.msk [vmem:[#allocation2 + $0x60] sm:$0xff] %vm171, 0.0
      %186 = vst.msk [vmem:[#allocation2 + $0x68] sm:$0xff] %vm171, 0.0
      %187 = vst.msk [vmem:[#allocation2 + $0x70] sm:$0xf] %vm174, 0.0
      %188 = vst.msk [vmem:[#allocation2 + $0x78] sm:$0xff] %vm171, 0.0
      %189 = vst.msk [vmem:[#allocation2 + $0x80] sm:$0xff] %vm171, 0.0
      %190 = vst.msk [vmem:[#allocation2 + $0x88] sm:$0xf] %vm174, 0.0
      %191 = vst.msk [vmem:[#allocation2 + $0x90] sm:$0xff] %vm171, 0.0
      %192 = vst.msk [vmem:[#allocation2 + $0x98] sm:$0xff] %vm171, 0.0
      %193 = vst.msk [vmem:[#allocation2 + $0xa0] sm:$0xf] %vm174, 0.0
      %194 = vst.msk [vmem:[#allocation2 + $0xa8] sm:$0xff] %vm171, 0.0
      %195 = vst.msk [vmem:[#allocation2 + $0xb0] sm:$0xff] %vm171, 0.0
      %196 = vst.msk [vmem:[#allocation2 + $0xb8] sm:$0xf] %vm174, 0.0
      %197 = vst.msk [vmem:[#allocation2 + $0xc0] sm:$0xff] %vm171, 0.0
      %198 = vst.msk [vmem:[#allocation2 + $0xc8] sm:$0xff] %vm171, 0.0
      %199 = vst.msk [vmem:[#allocation2 + $0xd0] sm:$0xf] %vm174, 0.0
      %200 = vst.msk [vmem:[#allocation2 + $0xd8] sm:$0xff] %vm171, 0.0
      %201 = vst.msk [vmem:[#allocation2 + $0xe0] sm:$0xff] %vm171, 0.0
      %202 = vst.msk [vmem:[#allocation2 + $0xe8] sm:$0xf] %vm174, 0.0
      %203 = vst.msk [vmem:[#allocation2 + $0xf0] sm:$0xff] %vm171, 0.0
      %204 = vst.msk [vmem:[#allocation2 + $0xf8] sm:$0xff] %vm171, 0.0
      %205 = vst.msk [vmem:[#allocation2 + $0x100] sm:$0xf] %vm174, 0.0
      %206 = vst.msk [vmem:[#allocation2 + $0x108] sm:$0xff] %vm171, 0.0
      %207 = vst.msk [vmem:[#allocation2 + $0x110] sm:$0xff] %vm171, 0.0
      %208 = vst.msk [vmem:[#allocation2 + $0x118] sm:$0xf] %vm174, 0.0
      %209 = vst.msk [vmem:[#allocation2 + $0x120] sm:$0xff] %vm171, 0.0
      %210 = vst.msk [vmem:[#allocation2 + $0x128] sm:$0xff] %vm171, 0.0
      %211 = vst.msk [vmem:[#allocation2 + $0x130] sm:$0xf] %vm174, 0.0
      %212 = vst.msk [vmem:[#allocation2 + $0x138] sm:$0xff] %vm171, 0.0
      %213 = vst.msk [vmem:[#allocation2 + $0x140] sm:$0xff] %vm171, 0.0
      %214 = vst.msk [vmem:[#allocation2 + $0x148] sm:$0xf] %vm174, 0.0
      %215 = vst.msk [vmem:[#allocation2 + $0x150] sm:$0xff] %vm171, 0.0
      %216 = vst.msk [vmem:[#allocation2 + $0x158] sm:$0xff] %vm171, 0.0
      %217 = vst.msk [vmem:[#allocation2 + $0x160] sm:$0xf] %vm174, 0.0
      %218 = vst.msk [vmem:[#allocation2 + $0x168] sm:$0xff] %vm171, 0.0
      %219 = vst.msk [vmem:[#allocation2 + $0x170] sm:$0xff] %vm171, 0.0
      %220 = vst.msk [vmem:[#allocation2 + $0x178] sm:$0xf] %vm174, 0.0
      %221 = vst.msk [vmem:[#allocation2 + $0x180] sm:$0xff] %vm171, 0.0
      %222 = vst.msk [vmem:[#allocation2 + $0x188] sm:$0xff] %vm171, 0.0
      %223 = vst.msk [vmem:[#allocation2 + $0x190] sm:$0xf] %vm174, 0.0
      %224 = vst.msk [vmem:[#allocation2 + $0x198] sm:$0xff] %vm171, 0.0
      %225 = vst.msk [vmem:[#allocation2 + $0x1a0] sm:$0xff] %vm171, 0.0
      %226 = vst.msk [vmem:[#allocation2 + $0x1a8] sm:$0xf] %vm174, 0.0
      %227 = vst.msk [vmem:[#allocation2 + $0x1b0] sm:$0xff] %vm171, 0.0
      %228 = vst.msk [vmem:[#allocation2 + $0x1b8] sm:$0xff] %vm171, 0.0
      %229 = vst.msk [vmem:[#allocation2 + $0x1c0] sm:$0xf] %vm174, 0.0
      %230 = vst.msk [vmem:[#allocation2 + $0x1c8] sm:$0xff] %vm171, 0.0
      %231 = vst.msk [vmem:[#allocation2 + $0x1d0] sm:$0xff] %vm171, 0.0
      %232 = vst.msk [vmem:[#allocation2 + $0x1d8] sm:$0xf] %vm174, 0.0
      %v233 = vld [vmem:[%s165] sm:$0xff]
      %v234 = vld [vmem:[%s165 + $0x8] sm:$0xff]
      %v235 = vld [vmem:[%s165 + $0x10] sm:$0xff]
      %v236 = vld [vmem:[%s165 + $0x18] sm:$0xff]
      %v237 = vld [vmem:[%s165 + $0x20] sm:$0xff]
      %v238 = vld [vmem:[%s165 + $0x28] sm:$0xff]
      %v239 = vld [vmem:[%s165 + $0x30] sm:$0xff]
      %v240 = vld [vmem:[%s165 + $0x38] sm:$0xff]
      %v241 = vld [vmem:[%s165 + $0x40] sm:$0xff]
      %v242 = vld [vmem:[%s165 + $0x48] sm:$0xff]
      %v243 = vld [vmem:[%s165 + $0x50] sm:$0xff]
      %v244 = vld [vmem:[%s165 + $0x58] sm:$0xff]
      %v245 = vld [vmem:[%s165 + $0x60] sm:$0xff]
      %v246 = vld [vmem:[%s165 + $0x68] sm:$0xff]
      %v247 = vld [vmem:[%s165 + $0x70] sm:$0xff]
      %v248 = vld [vmem:[%s165 + $0x78] sm:$0xff]
      %v249 = vld [vmem:[%s165 + $0x80] sm:$0xff]
      %v250 = vld [vmem:[%s165 + $0x88] sm:$0xff]
      %v251 = vld [vmem:[%s165 + $0x90] sm:$0xff]
      %v252 = vld [vmem:[%s165 + $0x98] sm:$0xff]
      %v253 = vld [vmem:[%s165 + $0xa0] sm:$0xff]
      %v254 = vld [vmem:[%s165 + $0xa8] sm:$0xff]
      %v255 = vld [vmem:[%s165 + $0xb0] sm:$0xff]
      %v256 = vld [vmem:[%s165 + $0xb8] sm:$0xff]
      %v257 = vld [vmem:[%s165 + $0xc0] sm:$0xff]
      %v258 = vld [vmem:[%s165 + $0xc8] sm:$0xff]
      %v259 = vld [vmem:[%s165 + $0xd0] sm:$0xff]
      %v260 = vld [vmem:[%s165 + $0xd8] sm:$0xff]
      %v261 = vld [vmem:[%s165 + $0xe0] sm:$0xff]
      %v262 = vld [vmem:[%s165 + $0xe8] sm:$0xff]
      %v263 = vld [vmem:[%s165 + $0xf0] sm:$0xff]
      %v264 = vld [vmem:[%s165 + $0xf8] sm:$0xff]
      %s265 = scalar_lea.vmem [#allocation2], 48
      %266 = vst.msk [vmem:[%s265 + $0x2] sm:$0xff] %vm171, %v233
      %267 = vst.msk [vmem:[%s265 + $0xa] sm:$0xff] %vm171, %v234
      %268 = vst.msk [vmem:[%s265 + $0x1a] sm:$0xff] %vm171, %v235
      %269 = vst.msk [vmem:[%s265 + $0x22] sm:$0xff] %vm171, %v236
      %270 = vst.msk [vmem:[%s265 + $0x32] sm:$0xff] %vm171, %v237
      %271 = vst.msk [vmem:[%s265 + $0x3a] sm:$0xff] %vm171, %v238
      %272 = vst.msk [vmem:[%s265 + $0x4a] sm:$0xff] %vm171, %v239
      %273 = vst.msk [vmem:[%s265 + $0x52] sm:$0xff] %vm171, %v240
      %274 = vst.msk [vmem:[%s265 + $0x62] sm:$0xff] %vm171, %v241
      %275 = vst.msk [vmem:[%s265 + $0x6a] sm:$0xff] %vm171, %v242
      %276 = vst.msk [vmem:[%s265 + $0x7a] sm:$0xff] %vm171, %v243
      %277 = vst.msk [vmem:[%s265 + $0x82] sm:$0xff] %vm171, %v244
      %278 = vst.msk [vmem:[%s265 + $0x92] sm:$0xff] %vm171, %v245
      %279 = vst.msk [vmem:[%s265 + $0x9a] sm:$0xff] %vm171, %v246
      %280 = vst.msk [vmem:[%s265 + $0xaa] sm:$0xff] %vm171, %v247
      %281 = vst.msk [vmem:[%s265 + $0xb2] sm:$0xff] %vm171, %v248
      %282 = vst.msk [vmem:[%s265 + $0xc2] sm:$0xff] %vm171, %v249
      %283 = vst.msk [vmem:[%s265 + $0xca] sm:$0xff] %vm171, %v250
      %284 = vst.msk [vmem:[%s265 + $0xda] sm:$0xff] %vm171, %v251
      %285 = vst.msk [vmem:[%s265 + $0xe2] sm:$0xff] %vm171, %v252
      %286 = vst.msk [vmem:[%s265 + $0xf2] sm:$0xff] %vm171, %v253
      %287 = vst.msk [vmem:[%s265 + $0xfa] sm:$0xff] %vm171, %v254
      %288 = vst.msk [vmem:[%s265 + $0x10a] sm:$0xff] %vm171, %v255
      %289 = vst.msk [vmem:[%s265 + $0x112] sm:$0xff] %vm171, %v256
      %290 = vst.msk [vmem:[%s265 + $0x122] sm:$0xff] %vm171, %v257
      %291 = vst.msk [vmem:[%s265 + $0x12a] sm:$0xff] %vm171, %v258
      %292 = vst.msk [vmem:[%s265 + $0x13a] sm:$0xff] %vm171, %v259
      %293 = vst.msk [vmem:[%s265 + $0x142] sm:$0xff] %vm171, %v260
      %294 = vst.msk [vmem:[%s265 + $0x152] sm:$0xff] %vm171, %v261
      %295 = vst.msk [vmem:[%s265 + $0x15a] sm:$0xff] %vm171, %v262
      %296 = vst.msk [vmem:[%s265 + $0x16a] sm:$0xff] %vm171, %v263
      %297 = vst.msk [vmem:[%s265 + $0x172] sm:$0xff] %vm171, %v264
      %v298 = vld [vmem:[#allocation2] sm:$0xff]
      %v299 = vld [vmem:[#allocation2 + $0x8] sm:$0xff]
      %v300 = vld [vmem:[#allocation2 + $0x18] sm:$0xff]
      %v301 = vld [vmem:[#allocation2 + $0x20] sm:$0xff]
      %v302 = vld [vmem:[#allocation2 + $0x30] sm:$0xff]
      %v303 = vld [vmem:[#allocation2 + $0x38] sm:$0xff]
      %v304 = vld [vmem:[#allocation2 + $0x48] sm:$0xff]
      %v305 = vld [vmem:[#allocation2 + $0x50] sm:$0xff]
      %v306 = vld [vmem:[#allocation2 + $0x60] sm:$0xff]
      %v307 = vld [vmem:[#allocation2 + $0x68] sm:$0xff]
      %v308 = vld [vmem:[#allocation2 + $0x78] sm:$0xff]
      %v309 = vld [vmem:[#allocation2 + $0x80] sm:$0xff]
      %v310 = vld [vmem:[#allocation2 + $0x90] sm:$0xff]
      %v311 = vld [vmem:[#allocation2 + $0x98] sm:$0xff]
      %v312 = vld [vmem:[#allocation2 + $0xa8] sm:$0xff]
      %v313 = vld [vmem:[#allocation2 + $0xb0] sm:$0xff]
      %v314 = vld [vmem:[#allocation2 + $0xc0] sm:$0xff]
      %v315 = vld [vmem:[#allocation2 + $0xc8] sm:$0xff]
      %v316 = vld [vmem:[#allocation2 + $0xd8] sm:$0xff]
      %v317 = vld [vmem:[#allocation2 + $0xe0] sm:$0xff]
      %v318 = vld [vmem:[#allocation2 + $0xf0] sm:$0xff]
      %v319 = vld [vmem:[#allocation2 + $0xf8] sm:$0xff]
      %v320 = vld [vmem:[#allocation2 + $0x108] sm:$0xff]
      %v321 = vld [vmem:[#allocation2 + $0x110] sm:$0xff]
      %v322 = vld [vmem:[#allocation2 + $0x120] sm:$0xff]
      %v323 = vld [vmem:[#allocation2 + $0x128] sm:$0xff]
      %v324 = vld [vmem:[#allocation2 + $0x138] sm:$0xff]
      %v325 = vld [vmem:[#allocation2 + $0x140] sm:$0xff]
      %v326 = vld [vmem:[#allocation2 + $0x150] sm:$0xff]
      %v327 = vld [vmem:[#allocation2 + $0x158] sm:$0xff]
      %v328 = vld [vmem:[#allocation2 + $0x168] sm:$0xff]
      %v329 = vld [vmem:[#allocation2 + $0x170] sm:$0xff]
      %v330 = vld [vmem:[#allocation2 + $0x2] sm:$0xff]
      %v331 = vld [vmem:[#allocation2 + $0xa] sm:$0xff]
      %v332 = vld [vmem:[#allocation2 + $0x1a] sm:$0xff]
      %v333 = vld [vmem:[#allocation2 + $0x22] sm:$0xff]
      %v334 = vld [vmem:[#allocation2 + $0x32] sm:$0xff]
      %v335 = vld [vmem:[#allocation2 + $0x3a] sm:$0xff]
      %v336 = vld [vmem:[#allocation2 + $0x4a] sm:$0xff]
      %v337 = vld [vmem:[#allocation2 + $0x52] sm:$0xff]
      %v338 = vld [vmem:[#allocation2 + $0x62] sm:$0xff]
      %v339 = vld [vmem:[#allocation2 + $0x6a] sm:$0xff]
      %v340 = vld [vmem:[#allocation2 + $0x7a] sm:$0xff]
      %v341 = vld [vmem:[#allocation2 + $0x82] sm:$0xff]
      %v342 = vld [vmem:[#allocation2 + $0x92] sm:$0xff]
      %v343 = vld [vmem:[#allocation2 + $0x9a] sm:$0xff]
      %v344 = vld [vmem:[#allocation2 + $0xaa] sm:$0xff]
      %v345 = vld [vmem:[#allocation2 + $0xb2] sm:$0xff]
      %v346 = vld [vmem:[#allocation2 + $0xc2] sm:$0xff]
      %v347 = vld [vmem:[#allocation2 + $0xca] sm:$0xff]
      %v348 = vld [vmem:[#allocation2 + $0xda] sm:$0xff]
      %v349 = vld [vmem:[#allocation2 + $0xe2] sm:$0xff]
      %v350 = vld [vmem:[#allocation2 + $0xf2] sm:$0xff]
      %v351 = vld [vmem:[#allocation2 + $0xfa] sm:$0xff]
      %v352 = vld [vmem:[#allocation2 + $0x10a] sm:$0xff]
      %v353 = vld [vmem:[#allocation2 + $0x112] sm:$0xff]
      %v354 = vld [vmem:[#allocation2 + $0x122] sm:$0xff]
      %v355 = vld [vmem:[#allocation2 + $0x12a] sm:$0xff]
      %v356 = vld [vmem:[#allocation2 + $0x13a] sm:$0xff]
      %v357 = vld [vmem:[#allocation2 + $0x142] sm:$0xff]
      %v358 = vld [vmem:[#allocation2 + $0x152] sm:$0xff]
      %v359 = vld [vmem:[#allocation2 + $0x15a] sm:$0xff]
      %v360 = vld [vmem:[#allocation2 + $0x16a] sm:$0xff]
      %v361 = vld [vmem:[#allocation2 + $0x172] sm:$0xff]
      %v362 = vld [vmem:[#allocation2 + $0x4] sm:$0xff]
      %v363 = vld [vmem:[#allocation2 + $0xc] sm:$0xff]
      %v364 = vld [vmem:[#allocation2 + $0x1c] sm:$0xff]
      %v365 = vld [vmem:[#allocation2 + $0x24] sm:$0xff]
      %v366 = vld [vmem:[#allocation2 + $0x34] sm:$0xff]
      %v367 = vld [vmem:[#allocation2 + $0x3c] sm:$0xff]
      %v368 = vld [vmem:[#allocation2 + $0x4c] sm:$0xff]
      %v369 = vld [vmem:[#allocation2 + $0x54] sm:$0xff]
      %v370 = vld [vmem:[#allocation2 + $0x64] sm:$0xff]
      %v371 = vld [vmem:[#allocation2 + $0x6c] sm:$0xff]
      %v372 = vld [vmem:[#allocation2 + $0x7c] sm:$0xff]
      %v373 = vld [vmem:[#allocation2 + $0x84] sm:$0xff]
      %v374 = vld [vmem:[#allocation2 + $0x94] sm:$0xff]
      %v375 = vld [vmem:[#allocation2 + $0x9c] sm:$0xff]
      %v376 = vld [vmem:[#allocation2 + $0xac] sm:$0xff]
      %v377 = vld [vmem:[#allocation2 + $0xb4] sm:$0xff]
      %v378 = vld [vmem:[#allocation2 + $0xc4] sm:$0xff]
      %v379 = vld [vmem:[#allocation2 + $0xcc] sm:$0xff]
      %v380 = vld [vmem:[#allocation2 + $0xdc] sm:$0xff]
      %v381 = vld [vmem:[#allocation2 + $0xe4] sm:$0xff]
      %v382 = vld [vmem:[#allocation2 + $0xf4] sm:$0xff]
      %v383 = vld [vmem:[#allocation2 + $0xfc] sm:$0xff]
      %v384 = vld [vmem:[#allocation2 + $0x10c] sm:$0xff]
      %v385 = vld [vmem:[#allocation2 + $0x114] sm:$0xff]
      %v386 = vld [vmem:[#allocation2 + $0x124] sm:$0xff]
      %v387 = vld [vmem:[#allocation2 + $0x12c] sm:$0xff]
      %v388 = vld [vmem:[#allocation2 + $0x13c] sm:$0xff]
      %v389 = vld [vmem:[#allocation2 + $0x144] sm:$0xff]
      %v390 = vld [vmem:[#allocation2 + $0x154] sm:$0xff]
      %v391 = vld [vmem:[#allocation2 + $0x15c] sm:$0xff]
      %v392 = vld [vmem:[#allocation2 + $0x16c] sm:$0xff]
      %v393 = vld [vmem:[#allocation2 + $0x174] sm:$0xff]
      %v394 = vld [vmem:[%s265] sm:$0xff]
      %v395 = vld [vmem:[%s265 + $0x8] sm:$0xff]
      %v396 = vld [vmem:[%s265 + $0x18] sm:$0xff]
      %v397 = vld [vmem:[%s265 + $0x20] sm:$0xff]
      %v398 = vld [vmem:[%s265 + $0x30] sm:$0xff]
      %v399 = vld [vmem:[%s265 + $0x38] sm:$0xff]
      %v400 = vld [vmem:[%s265 + $0x48] sm:$0xff]
      %v401 = vld [vmem:[%s265 + $0x50] sm:$0xff]
      %v402 = vld [vmem:[%s265 + $0x60] sm:$0xff]
      %v403 = vld [vmem:[%s265 + $0x68] sm:$0xff]
      %v404 = vld [vmem:[%s265 + $0x78] sm:$0xff]
      %v405 = vld [vmem:[%s265 + $0x80] sm:$0xff]
      %v406 = vld [vmem:[%s265 + $0x90] sm:$0xff]
      %v407 = vld [vmem:[%s265 + $0x98] sm:$0xff]
      %v408 = vld [vmem:[%s265 + $0xa8] sm:$0xff]
      %v409 = vld [vmem:[%s265 + $0xb0] sm:$0xff]
      %v410 = vld [vmem:[%s265 + $0xc0] sm:$0xff]
      %v411 = vld [vmem:[%s265 + $0xc8] sm:$0xff]
      %v412 = vld [vmem:[%s265 + $0xd8] sm:$0xff]
      %v413 = vld [vmem:[%s265 + $0xe0] sm:$0xff]
      %v414 = vld [vmem:[%s265 + $0xf0] sm:$0xff]
      %v415 = vld [vmem:[%s265 + $0xf8] sm:$0xff]
      %v416 = vld [vmem:[%s265 + $0x108] sm:$0xff]
      %v417 = vld [vmem:[%s265 + $0x110] sm:$0xff]
      %v418 = vld [vmem:[%s265 + $0x120] sm:$0xff]
      %v419 = vld [vmem:[%s265 + $0x128] sm:$0xff]
      %v420 = vld [vmem:[%s265 + $0x138] sm:$0xff]
      %v421 = vld [vmem:[%s265 + $0x140] sm:$0xff]
      %v422 = vld [vmem:[%s265 + $0x150] sm:$0xff]
      %v423 = vld [vmem:[%s265 + $0x158] sm:$0xff]
      %v424 = vld [vmem:[%s265 + $0x168] sm:$0xff]
      %v425 = vld [vmem:[%s265 + $0x170] sm:$0xff]
      %v426 = vld [vmem:[%s265 + $0x2] sm:$0xff]
      %v427 = vld [vmem:[%s265 + $0xa] sm:$0xff]
      %v428 = vld [vmem:[%s265 + $0x1a] sm:$0xff]
      %v429 = vld [vmem:[%s265 + $0x22] sm:$0xff]
      %v430 = vld [vmem:[%s265 + $0x32] sm:$0xff]
      %v431 = vld [vmem:[%s265 + $0x3a] sm:$0xff]
      %v432 = vld [vmem:[%s265 + $0x4a] sm:$0xff]
      %v433 = vld [vmem:[%s265 + $0x52] sm:$0xff]
      %v434 = vld [vmem:[%s265 + $0x62] sm:$0xff]
      %v435 = vld [vmem:[%s265 + $0x6a] sm:$0xff]
      %v436 = vld [vmem:[%s265 + $0x7a] sm:$0xff]
      %v437 = vld [vmem:[%s265 + $0x82] sm:$0xff]
      %v438 = vld [vmem:[%s265 + $0x92] sm:$0xff]
      %v439 = vld [vmem:[%s265 + $0x9a] sm:$0xff]
      %v440 = vld [vmem:[%s265 + $0xaa] sm:$0xff]
      %v441 = vld [vmem:[%s265 + $0xb2] sm:$0xff]
      %v442 = vld [vmem:[%s265 + $0xc2] sm:$0xff]
      %v443 = vld [vmem:[%s265 + $0xca] sm:$0xff]
      %v444 = vld [vmem:[%s265 + $0xda] sm:$0xff]
      %v445 = vld [vmem:[%s265 + $0xe2] sm:$0xff]
      %v446 = vld [vmem:[%s265 + $0xf2] sm:$0xff]
      %v447 = vld [vmem:[%s265 + $0xfa] sm:$0xff]
      %v448 = vld [vmem:[%s265 + $0x10a] sm:$0xff]
      %v449 = vld [vmem:[%s265 + $0x112] sm:$0xff]
      %v450 = vld [vmem:[%s265 + $0x122] sm:$0xff]
      %v451 = vld [vmem:[%s265 + $0x12a] sm:$0xff]
      %v452 = vld [vmem:[%s265 + $0x13a] sm:$0xff]
      %v453 = vld [vmem:[%s265 + $0x142] sm:$0xff]
      %v454 = vld [vmem:[%s265 + $0x152] sm:$0xff]
      %v455 = vld [vmem:[%s265 + $0x15a] sm:$0xff]
      %v456 = vld [vmem:[%s265 + $0x16a] sm:$0xff]
      %v457 = vld [vmem:[%s265 + $0x172] sm:$0xff]
      %v458 = vld [vmem:[%s265 + $0x4] sm:$0xff]
      %v459 = vld [vmem:[%s265 + $0xc] sm:$0xff]
      %v460 = vld [vmem:[%s265 + $0x1c] sm:$0xff]
      %v461 = vld [vmem:[%s265 + $0x24] sm:$0xff]
      %v462 = vld [vmem:[%s265 + $0x34] sm:$0xff]
      %v463 = vld [vmem:[%s265 + $0x3c] sm:$0xff]
      %v464 = vld [vmem:[%s265 + $0x4c] sm:$0xff]
      %v465 = vld [vmem:[%s265 + $0x54] sm:$0xff]
      %v466 = vld [vmem:[%s265 + $0x64] sm:$0xff]
      %v467 = vld [vmem:[%s265 + $0x6c] sm:$0xff]
      %v468 = vld [vmem:[%s265 + $0x7c] sm:$0xff]
      %v469 = vld [vmem:[%s265 + $0x84] sm:$0xff]
      %v470 = vld [vmem:[%s265 + $0x94] sm:$0xff]
      %v471 = vld [vmem:[%s265 + $0x9c] sm:$0xff]
      %v472 = vld [vmem:[%s265 + $0xac] sm:$0xff]
      %v473 = vld [vmem:[%s265 + $0xb4] sm:$0xff]
      %v474 = vld [vmem:[%s265 + $0xc4] sm:$0xff]
      %v475 = vld [vmem:[%s265 + $0xcc] sm:$0xff]
      %v476 = vld [vmem:[%s265 + $0xdc] sm:$0xff]
      %v477 = vld [vmem:[%s265 + $0xe4] sm:$0xff]
      %v478 = vld [vmem:[%s265 + $0xf4] sm:$0xff]
      %v479 = vld [vmem:[%s265 + $0xfc] sm:$0xff]
      %v480 = vld [vmem:[%s265 + $0x10c] sm:$0xff]
      %v481 = vld [vmem:[%s265 + $0x114] sm:$0xff]
      %v482 = vld [vmem:[%s265 + $0x124] sm:$0xff]
      %v483 = vld [vmem:[%s265 + $0x12c] sm:$0xff]
      %v484 = vld [vmem:[%s265 + $0x13c] sm:$0xff]
      %v485 = vld [vmem:[%s265 + $0x144] sm:$0xff]
      %v486 = vld [vmem:[%s265 + $0x154] sm:$0xff]
      %v487 = vld [vmem:[%s265 + $0x15c] sm:$0xff]
      %v488 = vld [vmem:[%s265 + $0x16c] sm:$0xff]
      %v489 = vld [vmem:[%s265 + $0x174] sm:$0xff]
      %s490 = scalar_lea.vmem [#allocation2], 96
      %v491 = vld [vmem:[%s490] sm:$0xff]
      %v492 = vld [vmem:[%s490 + $0x8] sm:$0xff]
      %v493 = vld [vmem:[%s490 + $0x18] sm:$0xff]
      %v494 = vld [vmem:[%s490 + $0x20] sm:$0xff]
      %v495 = vld [vmem:[%s490 + $0x30] sm:$0xff]
      %v496 = vld [vmem:[%s490 + $0x38] sm:$0xff]
      %v497 = vld [vmem:[%s490 + $0x48] sm:$0xff]
      %v498 = vld [vmem:[%s490 + $0x50] sm:$0xff]
      %v499 = vld [vmem:[%s490 + $0x60] sm:$0xff]
      %v500 = vld [vmem:[%s490 + $0x68] sm:$0xff]
      %v501 = vld [vmem:[%s490 + $0x78] sm:$0xff]
      %v502 = vld [vmem:[%s490 + $0x80] sm:$0xff]
      %v503 = vld [vmem:[%s490 + $0x90] sm:$0xff]
      %v504 = vld [vmem:[%s490 + $0x98] sm:$0xff]
      %v505 = vld [vmem:[%s490 + $0xa8] sm:$0xff]
      %v506 = vld [vmem:[%s490 + $0xb0] sm:$0xff]
      %v507 = vld [vmem:[%s490 + $0xc0] sm:$0xff]
      %v508 = vld [vmem:[%s490 + $0xc8] sm:$0xff]
      %v509 = vld [vmem:[%s490 + $0xd8] sm:$0xff]
      %v510 = vld [vmem:[%s490 + $0xe0] sm:$0xff]
      %v511 = vld [vmem:[%s490 + $0xf0] sm:$0xff]
      %v512 = vld [vmem:[%s490 + $0xf8] sm:$0xff]
      %v513 = vld [vmem:[%s490 + $0x108] sm:$0xff]
      %v514 = vld [vmem:[%s490 + $0x110] sm:$0xff]
      %v515 = vld [vmem:[%s490 + $0x120] sm:$0xff]
      %v516 = vld [vmem:[%s490 + $0x128] sm:$0xff]
      %v517 = vld [vmem:[%s490 + $0x138] sm:$0xff]
      %v518 = vld [vmem:[%s490 + $0x140] sm:$0xff]
      %v519 = vld [vmem:[%s490 + $0x150] sm:$0xff]
      %v520 = vld [vmem:[%s490 + $0x158] sm:$0xff]
      %v521 = vld [vmem:[%s490 + $0x168] sm:$0xff]
      %v522 = vld [vmem:[%s490 + $0x170] sm:$0xff]
      %v523 = vld [vmem:[%s490 + $0x2] sm:$0xff]
      %v524 = vld [vmem:[%s490 + $0xa] sm:$0xff]
      %v525 = vld [vmem:[%s490 + $0x1a] sm:$0xff]
      %v526 = vld [vmem:[%s490 + $0x22] sm:$0xff]
      %v527 = vld [vmem:[%s490 + $0x32] sm:$0xff]
      %v528 = vld [vmem:[%s490 + $0x3a] sm:$0xff]
      %v529 = vld [vmem:[%s490 + $0x4a] sm:$0xff]
      %v530 = vld [vmem:[%s490 + $0x52] sm:$0xff]
      %v531 = vld [vmem:[%s490 + $0x62] sm:$0xff]
      %v532 = vld [vmem:[%s490 + $0x6a] sm:$0xff]
      %v533 = vld [vmem:[%s490 + $0x7a] sm:$0xff]
      %v534 = vld [vmem:[%s490 + $0x82] sm:$0xff]
      %v535 = vld [vmem:[%s490 + $0x92] sm:$0xff]
      %v536 = vld [vmem:[%s490 + $0x9a] sm:$0xff]
      %v537 = vld [vmem:[%s490 + $0xaa] sm:$0xff]
      %v538 = vld [vmem:[%s490 + $0xb2] sm:$0xff]
      %v539 = vld [vmem:[%s490 + $0xc2] sm:$0xff]
      %v540 = vld [vmem:[%s490 + $0xca] sm:$0xff]
      %v541 = vld [vmem:[%s490 + $0xda] sm:$0xff]
      %v542 = vld [vmem:[%s490 + $0xe2] sm:$0xff]
      %v543 = vld [vmem:[%s490 + $0xf2] sm:$0xff]
      %v544 = vld [vmem:[%s490 + $0xfa] sm:$0xff]
      %v545 = vld [vmem:[%s490 + $0x10a] sm:$0xff]
      %v546 = vld [vmem:[%s490 + $0x112] sm:$0xff]
      %v547 = vld [vmem:[%s490 + $0x122] sm:$0xff]
      %v548 = vld [vmem:[%s490 + $0x12a] sm:$0xff]
      %v549 = vld [vmem:[%s490 + $0x13a] sm:$0xff]
      %v550 = vld [vmem:[%s490 + $0x142] sm:$0xff]
      %v551 = vld [vmem:[%s490 + $0x152] sm:$0xff]
      %v552 = vld [vmem:[%s490 + $0x15a] sm:$0xff]
      %v553 = vld [vmem:[%s490 + $0x16a] sm:$0xff]
      %v554 = vld [vmem:[%s490 + $0x172] sm:$0xff]
      %v555 = vld [vmem:[%s490 + $0x4] sm:$0xff]
      %v556 = vld [vmem:[%s490 + $0xc] sm:$0xff]
      %v557 = vld [vmem:[%s490 + $0x1c] sm:$0xff]
      %v558 = vld [vmem:[%s490 + $0x24] sm:$0xff]
      %v559 = vld [vmem:[%s490 + $0x34] sm:$0xff]
      %v560 = vld [vmem:[%s490 + $0x3c] sm:$0xff]
      %v561 = vld [vmem:[%s490 + $0x4c] sm:$0xff]
      %v562 = vld [vmem:[%s490 + $0x54] sm:$0xff]
      %v563 = vld [vmem:[%s490 + $0x64] sm:$0xff]
      %v564 = vld [vmem:[%s490 + $0x6c] sm:$0xff]
      %v565 = vld [vmem:[%s490 + $0x7c] sm:$0xff]
      %v566 = vld [vmem:[%s490 + $0x84] sm:$0xff]
      %v567 = vld [vmem:[%s490 + $0x94] sm:$0xff]
      %v568 = vld [vmem:[%s490 + $0x9c] sm:$0xff]
      %v569 = vld [vmem:[%s490 + $0xac] sm:$0xff]
      %v570 = vld [vmem:[%s490 + $0xb4] sm:$0xff]
      %v571 = vld [vmem:[%s490 + $0xc4] sm:$0xff]
      %v572 = vld [vmem:[%s490 + $0xcc] sm:$0xff]
      %v573 = vld [vmem:[%s490 + $0xdc] sm:$0xff]
      %v574 = vld [vmem:[%s490 + $0xe4] sm:$0xff]
      %v575 = vld [vmem:[%s490 + $0xf4] sm:$0xff]
      %v576 = vld [vmem:[%s490 + $0xfc] sm:$0xff]
      %v577 = vld [vmem:[%s490 + $0x10c] sm:$0xff]
      %v578 = vld [vmem:[%s490 + $0x114] sm:$0xff]
      %v579 = vld [vmem:[%s490 + $0x124] sm:$0xff]
      %v580 = vld [vmem:[%s490 + $0x12c] sm:$0xff]
      %v581 = vld [vmem:[%s490 + $0x13c] sm:$0xff]
      %v582 = vld [vmem:[%s490 + $0x144] sm:$0xff]
      %v583 = vld [vmem:[%s490 + $0x154] sm:$0xff]
      %v584 = vld [vmem:[%s490 + $0x15c] sm:$0xff]
      %v585 = vld [vmem:[%s490 + $0x16c] sm:$0xff]
      %v586 = vld [vmem:[%s490 + $0x174] sm:$0xff]
      %619 = vrot.lane.b32.xlu0 %v330, 4
      %v620 = vpop.permute.xlu0 %619
      %621 = vrot.lane.b32.xlu0 %v331, 4
      %v622 = vpop.permute.xlu0 %621
      %623 = vrot.lane.b32.xlu0 %v332, 4
      %v624 = vpop.permute.xlu0 %623
      %625 = vrot.lane.b32.xlu0 %v333, 4
      %v626 = vpop.permute.xlu0 %625
      %627 = vrot.lane.b32.xlu0 %v334, 4
      %v628 = vpop.permute.xlu0 %627
      %629 = vrot.lane.b32.xlu0 %v335, 4
      %v630 = vpop.permute.xlu0 %629
      %631 = vrot.lane.b32.xlu0 %v336, 4
      %v632 = vpop.permute.xlu0 %631
      %633 = vrot.lane.b32.xlu0 %v337, 4
      %v634 = vpop.permute.xlu0 %633
      %635 = vrot.lane.b32.xlu0 %v338, 4
      %v636 = vpop.permute.xlu0 %635
      %637 = vrot.lane.b32.xlu0 %v339, 4
      %v638 = vpop.permute.xlu0 %637
      %639 = vrot.lane.b32.xlu0 %v340, 4
      %v640 = vpop.permute.xlu0 %639
      %641 = vrot.lane.b32.xlu0 %v341, 4
      %v642 = vpop.permute.xlu0 %641
      %643 = vrot.lane.b32.xlu0 %v342, 4
      %v644 = vpop.permute.xlu0 %643
      %645 = vrot.lane.b32.xlu0 %v343, 4
      %v646 = vpop.permute.xlu0 %645
      %647 = vrot.lane.b32.xlu0 %v344, 4
      %v648 = vpop.permute.xlu0 %647
      %649 = vrot.lane.b32.xlu0 %v345, 4
      %v650 = vpop.permute.xlu0 %649
      %651 = vrot.lane.b32.xlu0 %v346, 4
      %v652 = vpop.permute.xlu0 %651
      %653 = vrot.lane.b32.xlu0 %v347, 4
      %v654 = vpop.permute.xlu0 %653
      %655 = vrot.lane.b32.xlu0 %v348, 4
      %v656 = vpop.permute.xlu0 %655
      %657 = vrot.lane.b32.xlu0 %v349, 4
      %v658 = vpop.permute.xlu0 %657
      %659 = vrot.lane.b32.xlu0 %v350, 4
      %v660 = vpop.permute.xlu0 %659
      %661 = vrot.lane.b32.xlu0 %v351, 4
      %v662 = vpop.permute.xlu0 %661
      %663 = vrot.lane.b32.xlu0 %v352, 4
      %v664 = vpop.permute.xlu0 %663
      %665 = vrot.lane.b32.xlu0 %v353, 4
      %v666 = vpop.permute.xlu0 %665
      %667 = vrot.lane.b32.xlu0 %v354, 4
      %v668 = vpop.permute.xlu0 %667
      %669 = vrot.lane.b32.xlu0 %v355, 4
      %v670 = vpop.permute.xlu0 %669
      %671 = vrot.lane.b32.xlu0 %v356, 4
      %v672 = vpop.permute.xlu0 %671
      %673 = vrot.lane.b32.xlu0 %v357, 4
      %v674 = vpop.permute.xlu0 %673
      %675 = vrot.lane.b32.xlu0 %v358, 4
      %v676 = vpop.permute.xlu0 %675
      %677 = vrot.lane.b32.xlu0 %v359, 4
      %v678 = vpop.permute.xlu0 %677
      %679 = vrot.lane.b32.xlu0 %v360, 4
      %v680 = vpop.permute.xlu0 %679
      %681 = vrot.lane.b32.xlu0 %v361, 4
      %v682 = vpop.permute.xlu0 %681
      %747 = vrot.lane.b32.xlu0 %v362, 8
      %v748 = vpop.permute.xlu0 %747
      %749 = vrot.lane.b32.xlu0 %v363, 8
      %v750 = vpop.permute.xlu0 %749
      %751 = vrot.lane.b32.xlu0 %v364, 8
      %v752 = vpop.permute.xlu0 %751
      %753 = vrot.lane.b32.xlu0 %v365, 8
      %v754 = vpop.permute.xlu0 %753
      %755 = vrot.lane.b32.xlu0 %v366, 8
      %v756 = vpop.permute.xlu0 %755
      %757 = vrot.lane.b32.xlu0 %v367, 8
      %v758 = vpop.permute.xlu0 %757
      %759 = vrot.lane.b32.xlu0 %v368, 8
      %v760 = vpop.permute.xlu0 %759
      %761 = vrot.lane.b32.xlu0 %v369, 8
      %v762 = vpop.permute.xlu0 %761
      %763 = vrot.lane.b32.xlu0 %v370, 8
      %v764 = vpop.permute.xlu0 %763
      %765 = vrot.lane.b32.xlu0 %v371, 8
      %v766 = vpop.permute.xlu0 %765
      %767 = vrot.lane.b32.xlu0 %v372, 8
      %v768 = vpop.permute.xlu0 %767
      %769 = vrot.lane.b32.xlu0 %v373, 8
      %v770 = vpop.permute.xlu0 %769
      %771 = vrot.lane.b32.xlu0 %v374, 8
      %v772 = vpop.permute.xlu0 %771
      %773 = vrot.lane.b32.xlu0 %v375, 8
      %v774 = vpop.permute.xlu0 %773
      %775 = vrot.lane.b32.xlu0 %v376, 8
      %v776 = vpop.permute.xlu0 %775
      %777 = vrot.lane.b32.xlu0 %v377, 8
      %v778 = vpop.permute.xlu0 %777
      %779 = vrot.lane.b32.xlu0 %v378, 8
      %v780 = vpop.permute.xlu0 %779
      %781 = vrot.lane.b32.xlu0 %v379, 8
      %v782 = vpop.permute.xlu0 %781
      %783 = vrot.lane.b32.xlu0 %v380, 8
      %v784 = vpop.permute.xlu0 %783
      %785 = vrot.lane.b32.xlu0 %v381, 8
      %v786 = vpop.permute.xlu0 %785
      %787 = vrot.lane.b32.xlu0 %v382, 8
      %v788 = vpop.permute.xlu0 %787
      %789 = vrot.lane.b32.xlu0 %v383, 8
      %v790 = vpop.permute.xlu0 %789
      %791 = vrot.lane.b32.xlu0 %v384, 8
      %v792 = vpop.permute.xlu0 %791
      %793 = vrot.lane.b32.xlu0 %v385, 8
      %v794 = vpop.permute.xlu0 %793
      %795 = vrot.lane.b32.xlu0 %v386, 8
      %v796 = vpop.permute.xlu0 %795
      %797 = vrot.lane.b32.xlu0 %v387, 8
      %v798 = vpop.permute.xlu0 %797
      %799 = vrot.lane.b32.xlu0 %v388, 8
      %v800 = vpop.permute.xlu0 %799
      %801 = vrot.lane.b32.xlu0 %v389, 8
      %v802 = vpop.permute.xlu0 %801
      %803 = vrot.lane.b32.xlu0 %v390, 8
      %v804 = vpop.permute.xlu0 %803
      %805 = vrot.lane.b32.xlu0 %v391, 8
      %v806 = vpop.permute.xlu0 %805
      %807 = vrot.lane.b32.xlu0 %v392, 8
      %v808 = vpop.permute.xlu0 %807
      %809 = vrot.lane.b32.xlu0 %v393, 8
      %v810 = vpop.permute.xlu0 %809
      %875 = vrot.lane.b32.xlu0 %v394, 12
      %v876 = vpop.permute.xlu0 %875
      %877 = vrot.lane.b32.xlu0 %v395, 12
      %v878 = vpop.permute.xlu0 %877
      %879 = vrot.lane.b32.xlu0 %v396, 12
      %v880 = vpop.permute.xlu0 %879
      %881 = vrot.lane.b32.xlu0 %v397, 12
      %v882 = vpop.permute.xlu0 %881
      %883 = vrot.lane.b32.xlu0 %v398, 12
      %v884 = vpop.permute.xlu0 %883
      %885 = vrot.lane.b32.xlu0 %v399, 12
      %v886 = vpop.permute.xlu0 %885
      %887 = vrot.lane.b32.xlu0 %v400, 12
      %v888 = vpop.permute.xlu0 %887
      %889 = vrot.lane.b32.xlu0 %v401, 12
      %v890 = vpop.permute.xlu0 %889
      %891 = vrot.lane.b32.xlu0 %v402, 12
      %v892 = vpop.permute.xlu0 %891
      %893 = vrot.lane.b32.xlu0 %v403, 12
      %v894 = vpop.permute.xlu0 %893
      %895 = vrot.lane.b32.xlu0 %v404, 12
      %v896 = vpop.permute.xlu0 %895
      %897 = vrot.lane.b32.xlu0 %v405, 12
      %v898 = vpop.permute.xlu0 %897
      %899 = vrot.lane.b32.xlu0 %v406, 12
      %v900 = vpop.permute.xlu0 %899
      %901 = vrot.lane.b32.xlu0 %v407, 12
      %v902 = vpop.permute.xlu0 %901
      %903 = vrot.lane.b32.xlu0 %v408, 12
      %v904 = vpop.permute.xlu0 %903
      %905 = vrot.lane.b32.xlu0 %v409, 12
      %v906 = vpop.permute.xlu0 %905
      %907 = vrot.lane.b32.xlu0 %v410, 12
      %v908 = vpop.permute.xlu0 %907
      %909 = vrot.lane.b32.xlu0 %v411, 12
      %v910 = vpop.permute.xlu0 %909
      %911 = vrot.lane.b32.xlu0 %v412, 12
      %v912 = vpop.permute.xlu0 %911
      %913 = vrot.lane.b32.xlu0 %v413, 12
      %v914 = vpop.permute.xlu0 %913
      %915 = vrot.lane.b32.xlu0 %v414, 12
      %v916 = vpop.permute.xlu0 %915
      %917 = vrot.lane.b32.xlu0 %v415, 12
      %v918 = vpop.permute.xlu0 %917
      %919 = vrot.lane.b32.xlu0 %v416, 12
      %v920 = vpop.permute.xlu0 %919
      %921 = vrot.lane.b32.xlu0 %v417, 12
      %v922 = vpop.permute.xlu0 %921
      %923 = vrot.lane.b32.xlu0 %v418, 12
      %v924 = vpop.permute.xlu0 %923
      %925 = vrot.lane.b32.xlu0 %v419, 12
      %v926 = vpop.permute.xlu0 %925
      %927 = vrot.lane.b32.xlu0 %v420, 12
      %v928 = vpop.permute.xlu0 %927
      %929 = vrot.lane.b32.xlu0 %v421, 12
      %v930 = vpop.permute.xlu0 %929
      %931 = vrot.lane.b32.xlu0 %v422, 12
      %v932 = vpop.permute.xlu0 %931
      %933 = vrot.lane.b32.xlu0 %v423, 12
      %v934 = vpop.permute.xlu0 %933
      %935 = vrot.lane.b32.xlu0 %v424, 12
      %v936 = vpop.permute.xlu0 %935
      %937 = vrot.lane.b32.xlu0 %v425, 12
      %v938 = vpop.permute.xlu0 %937
      %1003 = vrot.lane.b32.xlu0 %v426, 16
      %v1004 = vpop.permute.xlu0 %1003
      %1005 = vrot.lane.b32.xlu0 %v427, 16
      %v1006 = vpop.permute.xlu0 %1005
      %1007 = vrot.lane.b32.xlu0 %v428, 16
      %v1008 = vpop.permute.xlu0 %1007
      %1009 = vrot.lane.b32.xlu0 %v429, 16
      %v1010 = vpop.permute.xlu0 %1009
      %1011 = vrot.lane.b32.xlu0 %v430, 16
      %v1012 = vpop.permute.xlu0 %1011
      %1013 = vrot.lane.b32.xlu0 %v431, 16
      %v1014 = vpop.permute.xlu0 %1013
      %1015 = vrot.lane.b32.xlu0 %v432, 16
      %v1016 = vpop.permute.xlu0 %1015
      %1017 = vrot.lane.b32.xlu0 %v433, 16
      %v1018 = vpop.permute.xlu0 %1017
      %1019 = vrot.lane.b32.xlu0 %v434, 16
      %v1020 = vpop.permute.xlu0 %1019
      %1021 = vrot.lane.b32.xlu0 %v435, 16
      %v1022 = vpop.permute.xlu0 %1021
      %1023 = vrot.lane.b32.xlu0 %v436, 16
      %v1024 = vpop.permute.xlu0 %1023
      %1025 = vrot.lane.b32.xlu0 %v437, 16
      %v1026 = vpop.permute.xlu0 %1025
      %1027 = vrot.lane.b32.xlu0 %v438, 16
      %v1028 = vpop.permute.xlu0 %1027
      %1029 = vrot.lane.b32.xlu0 %v439, 16
      %v1030 = vpop.permute.xlu0 %1029
      %1031 = vrot.lane.b32.xlu0 %v440, 16
      %v1032 = vpop.permute.xlu0 %1031
      %1033 = vrot.lane.b32.xlu0 %v441, 16
      %v1034 = vpop.permute.xlu0 %1033
      %1035 = vrot.lane.b32.xlu0 %v442, 16
      %v1036 = vpop.permute.xlu0 %1035
      %1037 = vrot.lane.b32.xlu0 %v443, 16
      %v1038 = vpop.permute.xlu0 %1037
      %1039 = vrot.lane.b32.xlu0 %v444, 16
      %v1040 = vpop.permute.xlu0 %1039
      %1041 = vrot.lane.b32.xlu0 %v445, 16
      %v1042 = vpop.permute.xlu0 %1041
      %1043 = vrot.lane.b32.xlu0 %v446, 16
      %v1044 = vpop.permute.xlu0 %1043
      %1045 = vrot.lane.b32.xlu0 %v447, 16
      %v1046 = vpop.permute.xlu0 %1045
      %1047 = vrot.lane.b32.xlu0 %v448, 16
      %v1048 = vpop.permute.xlu0 %1047
      %1049 = vrot.lane.b32.xlu0 %v449, 16
      %v1050 = vpop.permute.xlu0 %1049
      %1051 = vrot.lane.b32.xlu0 %v450, 16
      %v1052 = vpop.permute.xlu0 %1051
      %1053 = vrot.lane.b32.xlu0 %v451, 16
      %v1054 = vpop.permute.xlu0 %1053
      %1055 = vrot.lane.b32.xlu0 %v452, 16
      %v1056 = vpop.permute.xlu0 %1055
      %1057 = vrot.lane.b32.xlu0 %v453, 16
      %v1058 = vpop.permute.xlu0 %1057
      %1059 = vrot.lane.b32.xlu0 %v454, 16
      %v1060 = vpop.permute.xlu0 %1059
      %1061 = vrot.lane.b32.xlu0 %v455, 16
      %v1062 = vpop.permute.xlu0 %1061
      %1063 = vrot.lane.b32.xlu0 %v456, 16
      %v1064 = vpop.permute.xlu0 %1063
      %1065 = vrot.lane.b32.xlu0 %v457, 16
      %v1066 = vpop.permute.xlu0 %1065
      %1131 = vrot.lane.b32.xlu0 %v458, 20
      %v1132 = vpop.permute.xlu0 %1131
      %1133 = vrot.lane.b32.xlu0 %v459, 20
      %v1134 = vpop.permute.xlu0 %1133
      %1135 = vrot.lane.b32.xlu0 %v460, 20
      %v1136 = vpop.permute.xlu0 %1135
      %1137 = vrot.lane.b32.xlu0 %v461, 20
      %v1138 = vpop.permute.xlu0 %1137
      %1139 = vrot.lane.b32.xlu0 %v462, 20
      %v1140 = vpop.permute.xlu0 %1139
      %1141 = vrot.lane.b32.xlu0 %v463, 20
      %v1142 = vpop.permute.xlu0 %1141
      %1143 = vrot.lane.b32.xlu0 %v464, 20
      %v1144 = vpop.permute.xlu0 %1143
      %1145 = vrot.lane.b32.xlu0 %v465, 20
      %v1146 = vpop.permute.xlu0 %1145
      %1147 = vrot.lane.b32.xlu0 %v466, 20
      %v1148 = vpop.permute.xlu0 %1147
      %1149 = vrot.lane.b32.xlu0 %v467, 20
      %v1150 = vpop.permute.xlu0 %1149
      %1151 = vrot.lane.b32.xlu0 %v468, 20
      %v1152 = vpop.permute.xlu0 %1151
      %1153 = vrot.lane.b32.xlu0 %v469, 20
      %v1154 = vpop.permute.xlu0 %1153
      %1155 = vrot.lane.b32.xlu0 %v470, 20
      %v1156 = vpop.permute.xlu0 %1155
      %1157 = vrot.lane.b32.xlu0 %v471, 20
      %v1158 = vpop.permute.xlu0 %1157
      %1159 = vrot.lane.b32.xlu0 %v472, 20
      %v1160 = vpop.permute.xlu0 %1159
      %1161 = vrot.lane.b32.xlu0 %v473, 20
      %v1162 = vpop.permute.xlu0 %1161
      %1163 = vrot.lane.b32.xlu0 %v474, 20
      %v1164 = vpop.permute.xlu0 %1163
      %1165 = vrot.lane.b32.xlu0 %v475, 20
      %v1166 = vpop.permute.xlu0 %1165
      %1167 = vrot.lane.b32.xlu0 %v476, 20
      %v1168 = vpop.permute.xlu0 %1167
      %1169 = vrot.lane.b32.xlu0 %v477, 20
      %v1170 = vpop.permute.xlu0 %1169
      %1171 = vrot.lane.b32.xlu0 %v478, 20
      %v1172 = vpop.permute.xlu0 %1171
      %1173 = vrot.lane.b32.xlu0 %v479, 20
      %v1174 = vpop.permute.xlu0 %1173
      %1175 = vrot.lane.b32.xlu0 %v480, 20
      %v1176 = vpop.permute.xlu0 %1175
      %1177 = vrot.lane.b32.xlu0 %v481, 20
      %v1178 = vpop.permute.xlu0 %1177
      %1179 = vrot.lane.b32.xlu0 %v482, 20
      %v1180 = vpop.permute.xlu0 %1179
      %1181 = vrot.lane.b32.xlu0 %v483, 20
      %v1182 = vpop.permute.xlu0 %1181
      %1183 = vrot.lane.b32.xlu0 %v484, 20
      %v1184 = vpop.permute.xlu0 %1183
      %1185 = vrot.lane.b32.xlu0 %v485, 20
      %v1186 = vpop.permute.xlu0 %1185
      %1187 = vrot.lane.b32.xlu0 %v486, 20
      %v1188 = vpop.permute.xlu0 %1187
      %1189 = vrot.lane.b32.xlu0 %v487, 20
      %v1190 = vpop.permute.xlu0 %1189
      %1191 = vrot.lane.b32.xlu0 %v488, 20
      %v1192 = vpop.permute.xlu0 %1191
      %1193 = vrot.lane.b32.xlu0 %v489, 20
      %v1194 = vpop.permute.xlu0 %1193
      %1259 = vrot.lane.b32.xlu0 %v491, 24
      %v1260 = vpop.permute.xlu0 %1259
      %1261 = vrot.lane.b32.xlu0 %v492, 24
      %v1262 = vpop.permute.xlu0 %1261
      %1263 = vrot.lane.b32.xlu0 %v493, 24
      %v1264 = vpop.permute.xlu0 %1263
      %1265 = vrot.lane.b32.xlu0 %v494, 24
      %v1266 = vpop.permute.xlu0 %1265
      %1267 = vrot.lane.b32.xlu0 %v495, 24
      %v1268 = vpop.permute.xlu0 %1267
      %1269 = vrot.lane.b32.xlu0 %v496, 24
      %v1270 = vpop.permute.xlu0 %1269
      %1271 = vrot.lane.b32.xlu0 %v497, 24
      %v1272 = vpop.permute.xlu0 %1271
      %1273 = vrot.lane.b32.xlu0 %v498, 24
      %v1274 = vpop.permute.xlu0 %1273
      %1275 = vrot.lane.b32.xlu0 %v499, 24
      %v1276 = vpop.permute.xlu0 %1275
      %1277 = vrot.lane.b32.xlu0 %v500, 24
      %v1278 = vpop.permute.xlu0 %1277
      %1279 = vrot.lane.b32.xlu0 %v501, 24
      %v1280 = vpop.permute.xlu0 %1279
      %1281 = vrot.lane.b32.xlu0 %v502, 24
      %v1282 = vpop.permute.xlu0 %1281
      %1283 = vrot.lane.b32.xlu0 %v503, 24
      %v1284 = vpop.permute.xlu0 %1283
      %1285 = vrot.lane.b32.xlu0 %v504, 24
      %v1286 = vpop.permute.xlu0 %1285
      %1287 = vrot.lane.b32.xlu0 %v505, 24
      %v1288 = vpop.permute.xlu0 %1287
      %1289 = vrot.lane.b32.xlu0 %v506, 24
      %v1290 = vpop.permute.xlu0 %1289
      %1291 = vrot.lane.b32.xlu0 %v507, 24
      %v1292 = vpop.permute.xlu0 %1291
      %1293 = vrot.lane.b32.xlu0 %v508, 24
      %v1294 = vpop.permute.xlu0 %1293
      %1295 = vrot.lane.b32.xlu0 %v509, 24
      %v1296 = vpop.permute.xlu0 %1295
      %1297 = vrot.lane.b32.xlu0 %v510, 24
      %v1298 = vpop.permute.xlu0 %1297
      %1299 = vrot.lane.b32.xlu0 %v511, 24
      %v1300 = vpop.permute.xlu0 %1299
      %1301 = vrot.lane.b32.xlu0 %v512, 24
      %v1302 = vpop.permute.xlu0 %1301
      %1303 = vrot.lane.b32.xlu0 %v513, 24
      %v1304 = vpop.permute.xlu0 %1303
      %1305 = vrot.lane.b32.xlu0 %v514, 24
      %v1306 = vpop.permute.xlu0 %1305
      %1307 = vrot.lane.b32.xlu0 %v515, 24
      %v1308 = vpop.permute.xlu0 %1307
      %1309 = vrot.lane.b32.xlu0 %v516, 24
      %v1310 = vpop.permute.xlu0 %1309
      %1311 = vrot.lane.b32.xlu0 %v517, 24
      %v1312 = vpop.permute.xlu0 %1311
      %1313 = vrot.lane.b32.xlu0 %v518, 24
      %v1314 = vpop.permute.xlu0 %1313
      %1315 = vrot.lane.b32.xlu0 %v519, 24
      %v1316 = vpop.permute.xlu0 %1315
      %1317 = vrot.lane.b32.xlu0 %v520, 24
      %v1318 = vpop.permute.xlu0 %1317
      %1319 = vrot.lane.b32.xlu0 %v521, 24
      %v1320 = vpop.permute.xlu0 %1319
      %1321 = vrot.lane.b32.xlu0 %v522, 24
      %v1322 = vpop.permute.xlu0 %1321
      %1387 = vrot.lane.b32.xlu0 %v523, 28
      %v1388 = vpop.permute.xlu0 %1387
      %1389 = vrot.lane.b32.xlu0 %v524, 28
      %v1390 = vpop.permute.xlu0 %1389
      %1391 = vrot.lane.b32.xlu0 %v525, 28
      %v1392 = vpop.permute.xlu0 %1391
      %1393 = vrot.lane.b32.xlu0 %v526, 28
      %v1394 = vpop.permute.xlu0 %1393
      %1395 = vrot.lane.b32.xlu0 %v527, 28
      %v1396 = vpop.permute.xlu0 %1395
      %1397 = vrot.lane.b32.xlu0 %v528, 28
      %v1398 = vpop.permute.xlu0 %1397
      %1399 = vrot.lane.b32.xlu0 %v529, 28
      %v1400 = vpop.permute.xlu0 %1399
      %1401 = vrot.lane.b32.xlu0 %v530, 28
      %v1402 = vpop.permute.xlu0 %1401
      %1403 = vrot.lane.b32.xlu0 %v531, 28
      %v1404 = vpop.permute.xlu0 %1403
      %1405 = vrot.lane.b32.xlu0 %v532, 28
      %v1406 = vpop.permute.xlu0 %1405
      %1407 = vrot.lane.b32.xlu0 %v533, 28
      %v1408 = vpop.permute.xlu0 %1407
      %1409 = vrot.lane.b32.xlu0 %v534, 28
      %v1410 = vpop.permute.xlu0 %1409
      %1411 = vrot.lane.b32.xlu0 %v535, 28
      %v1412 = vpop.permute.xlu0 %1411
      %1413 = vrot.lane.b32.xlu0 %v536, 28
      %v1414 = vpop.permute.xlu0 %1413
      %1415 = vrot.lane.b32.xlu0 %v537, 28
      %v1416 = vpop.permute.xlu0 %1415
      %1417 = vrot.lane.b32.xlu0 %v538, 28
      %v1418 = vpop.permute.xlu0 %1417
      %1419 = vrot.lane.b32.xlu0 %v539, 28
      %v1420 = vpop.permute.xlu0 %1419
      %1421 = vrot.lane.b32.xlu0 %v540, 28
      %v1422 = vpop.permute.xlu0 %1421
      %1423 = vrot.lane.b32.xlu0 %v541, 28
      %v1424 = vpop.permute.xlu0 %1423
      %1425 = vrot.lane.b32.xlu0 %v542, 28
      %v1426 = vpop.permute.xlu0 %1425
      %1427 = vrot.lane.b32.xlu0 %v543, 28
      %v1428 = vpop.permute.xlu0 %1427
      %1429 = vrot.lane.b32.xlu0 %v544, 28
      %v1430 = vpop.permute.xlu0 %1429
      %1431 = vrot.lane.b32.xlu0 %v545, 28
      %v1432 = vpop.permute.xlu0 %1431
      %1433 = vrot.lane.b32.xlu0 %v546, 28
      %v1434 = vpop.permute.xlu0 %1433
      %1435 = vrot.lane.b32.xlu0 %v547, 28
      %v1436 = vpop.permute.xlu0 %1435
      %1437 = vrot.lane.b32.xlu0 %v548, 28
      %v1438 = vpop.permute.xlu0 %1437
      %1439 = vrot.lane.b32.xlu0 %v549, 28
      %v1440 = vpop.permute.xlu0 %1439
      %1441 = vrot.lane.b32.xlu0 %v550, 28
      %v1442 = vpop.permute.xlu0 %1441
      %1443 = vrot.lane.b32.xlu0 %v551, 28
      %v1444 = vpop.permute.xlu0 %1443
      %1445 = vrot.lane.b32.xlu0 %v552, 28
      %v1446 = vpop.permute.xlu0 %1445
      %1447 = vrot.lane.b32.xlu0 %v553, 28
      %v1448 = vpop.permute.xlu0 %1447
      %1449 = vrot.lane.b32.xlu0 %v554, 28
      %v1450 = vpop.permute.xlu0 %1449
      %1515 = vrot.lane.b32.xlu0 %v555, 32
      %v1516 = vpop.permute.xlu0 %1515
      %1517 = vrot.lane.b32.xlu0 %v556, 32
      %v1518 = vpop.permute.xlu0 %1517
      %1519 = vrot.lane.b32.xlu0 %v557, 32
      %v1520 = vpop.permute.xlu0 %1519
      %1521 = vrot.lane.b32.xlu0 %v558, 32
      %v1522 = vpop.permute.xlu0 %1521
      %1523 = vrot.lane.b32.xlu0 %v559, 32
      %v1524 = vpop.permute.xlu0 %1523
      %1525 = vrot.lane.b32.xlu0 %v560, 32
      %v1526 = vpop.permute.xlu0 %1525
      %1527 = vrot.lane.b32.xlu0 %v561, 32
      %v1528 = vpop.permute.xlu0 %1527
      %1529 = vrot.lane.b32.xlu0 %v562, 32
      %v1530 = vpop.permute.xlu0 %1529
      %1531 = vrot.lane.b32.xlu0 %v563, 32
      %v1532 = vpop.permute.xlu0 %1531
      %1533 = vrot.lane.b32.xlu0 %v564, 32
      %v1534 = vpop.permute.xlu0 %1533
      %1535 = vrot.lane.b32.xlu0 %v565, 32
      %v1536 = vpop.permute.xlu0 %1535
      %1537 = vrot.lane.b32.xlu0 %v566, 32
      %v1538 = vpop.permute.xlu0 %1537
      %1539 = vrot.lane.b32.xlu0 %v567, 32
      %v1540 = vpop.permute.xlu0 %1539
      %1541 = vrot.lane.b32.xlu0 %v568, 32
      %v1542 = vpop.permute.xlu0 %1541
      %1543 = vrot.lane.b32.xlu0 %v569, 32
      %v1544 = vpop.permute.xlu0 %1543
      %1545 = vrot.lane.b32.xlu0 %v570, 32
      %v1546 = vpop.permute.xlu0 %1545
      %1547 = vrot.lane.b32.xlu0 %v571, 32
      %v1548 = vpop.permute.xlu0 %1547
      %1549 = vrot.lane.b32.xlu0 %v572, 32
      %v1550 = vpop.permute.xlu0 %1549
      %1551 = vrot.lane.b32.xlu0 %v573, 32
      %v1552 = vpop.permute.xlu0 %1551
      %1553 = vrot.lane.b32.xlu0 %v574, 32
      %v1554 = vpop.permute.xlu0 %1553
      %1555 = vrot.lane.b32.xlu0 %v575, 32
      %v1556 = vpop.permute.xlu0 %1555
      %1557 = vrot.lane.b32.xlu0 %v576, 32
      %v1558 = vpop.permute.xlu0 %1557
      %1559 = vrot.lane.b32.xlu0 %v577, 32
      %v1560 = vpop.permute.xlu0 %1559
      %1561 = vrot.lane.b32.xlu0 %v578, 32
      %v1562 = vpop.permute.xlu0 %1561
      %1563 = vrot.lane.b32.xlu0 %v579, 32
      %v1564 = vpop.permute.xlu0 %1563
      %1565 = vrot.lane.b32.xlu0 %v580, 32
      %v1566 = vpop.permute.xlu0 %1565
      %1567 = vrot.lane.b32.xlu0 %v581, 32
      %v1568 = vpop.permute.xlu0 %1567
      %1569 = vrot.lane.b32.xlu0 %v582, 32
      %v1570 = vpop.permute.xlu0 %1569
      %1571 = vrot.lane.b32.xlu0 %v583, 32
      %v1572 = vpop.permute.xlu0 %1571
      %1573 = vrot.lane.b32.xlu0 %v584, 32
      %v1574 = vpop.permute.xlu0 %1573
      %1575 = vrot.lane.b32.xlu0 %v585, 32
      %v1576 = vpop.permute.xlu0 %1575
      %1577 = vrot.lane.b32.xlu0 %v586, 32
      %v1578 = vpop.permute.xlu0 %1577
      %v1611 = vsel %vm171, %v298, %v620
      %v1612 = vsel %vm171, %v299, %v622
      %v1613 = vsel %vm171, %v300, %v624
      %v1614 = vsel %vm171, %v301, %v626
      %v1615 = vsel %vm171, %v302, %v628
      %v1616 = vsel %vm171, %v303, %v630
      %v1617 = vsel %vm171, %v304, %v632
      %v1618 = vsel %vm171, %v305, %v634
      %v1619 = vsel %vm171, %v306, %v636
      %v1620 = vsel %vm171, %v307, %v638
      %v1621 = vsel %vm171, %v308, %v640
      %v1622 = vsel %vm171, %v309, %v642
      %v1623 = vsel %vm171, %v310, %v644
      %v1624 = vsel %vm171, %v311, %v646
      %v1625 = vsel %vm171, %v312, %v648
      %v1626 = vsel %vm171, %v313, %v650
      %v1627 = vsel %vm171, %v314, %v652
      %v1628 = vsel %vm171, %v315, %v654
      %v1629 = vsel %vm171, %v316, %v656
      %v1630 = vsel %vm171, %v317, %v658
      %v1631 = vsel %vm171, %v318, %v660
      %v1632 = vsel %vm171, %v319, %v662
      %v1633 = vsel %vm171, %v320, %v664
      %v1634 = vsel %vm171, %v321, %v666
      %v1635 = vsel %vm171, %v322, %v668
      %v1636 = vsel %vm171, %v323, %v670
      %v1637 = vsel %vm171, %v324, %v672
      %v1638 = vsel %vm171, %v325, %v674
      %v1639 = vsel %vm171, %v326, %v676
      %v1640 = vsel %vm171, %v327, %v678
      %v1641 = vsel %vm171, %v328, %v680
      %v1642 = vsel %vm171, %v329, %v682
      %vm1643 = vcmask 64512
      %v1644 = vsel %vm1643, %v1611, %v748
      %v1645 = vsel %vm1643, %v1612, %v750
      %v1646 = vsel %vm1643, %v1613, %v752
      %v1647 = vsel %vm1643, %v1614, %v754
      %v1648 = vsel %vm1643, %v1615, %v756
      %v1649 = vsel %vm1643, %v1616, %v758
      %v1650 = vsel %vm1643, %v1617, %v760
      %v1651 = vsel %vm1643, %v1618, %v762
      %v1652 = vsel %vm1643, %v1619, %v764
      %v1653 = vsel %vm1643, %v1620, %v766
      %v1654 = vsel %vm1643, %v1621, %v768
      %v1655 = vsel %vm1643, %v1622, %v770
      %v1656 = vsel %vm1643, %v1623, %v772
      %v1657 = vsel %vm1643, %v1624, %v774
      %v1658 = vsel %vm1643, %v1625, %v776
      %v1659 = vsel %vm1643, %v1626, %v778
      %v1660 = vsel %vm1643, %v1627, %v780
      %v1661 = vsel %vm1643, %v1628, %v782
      %v1662 = vsel %vm1643, %v1629, %v784
      %v1663 = vsel %vm1643, %v1630, %v786
      %v1664 = vsel %vm1643, %v1631, %v788
      %v1665 = vsel %vm1643, %v1632, %v790
      %v1666 = vsel %vm1643, %v1633, %v792
      %v1667 = vsel %vm1643, %v1634, %v794
      %v1668 = vsel %vm1643, %v1635, %v796
      %v1669 = vsel %vm1643, %v1636, %v798
      %v1670 = vsel %vm1643, %v1637, %v800
      %v1671 = vsel %vm1643, %v1638, %v802
      %v1672 = vsel %vm1643, %v1639, %v804
      %v1673 = vsel %vm1643, %v1640, %v806
      %v1674 = vsel %vm1643, %v1641, %v808
      %v1675 = vsel %vm1643, %v1642, %v810
      %vm1676 = vcmask 97280
      %v1677 = vsel %vm1676, %v1644, %v876
      %v1678 = vsel %vm1676, %v1645, %v878
      %v1679 = vsel %vm1676, %v1646, %v880
      %v1680 = vsel %vm1676, %v1647, %v882
      %v1681 = vsel %vm1676, %v1648, %v884
      %v1682 = vsel %vm1676, %v1649, %v886
      %v1683 = vsel %vm1676, %v1650, %v888
      %v1684 = vsel %vm1676, %v1651, %v890
      %v1685 = vsel %vm1676, %v1652, %v892
      %v1686 = vsel %vm1676, %v1653, %v894
      %v1687 = vsel %vm1676, %v1654, %v896
      %v1688 = vsel %vm1676, %v1655, %v898
      %v1689 = vsel %vm1676, %v1656, %v900
      %v1690 = vsel %vm1676, %v1657, %v902
      %v1691 = vsel %vm1676, %v1658, %v904
      %v1692 = vsel %vm1676, %v1659, %v906
      %v1693 = vsel %vm1676, %v1660, %v908
      %v1694 = vsel %vm1676, %v1661, %v910
      %v1695 = vsel %vm1676, %v1662, %v912
      %v1696 = vsel %vm1676, %v1663, %v914
      %v1697 = vsel %vm1676, %v1664, %v916
      %v1698 = vsel %vm1676, %v1665, %v918
      %v1699 = vsel %vm1676, %v1666, %v920
      %v1700 = vsel %vm1676, %v1667, %v922
      %v1701 = vsel %vm1676, %v1668, %v924
      %v1702 = vsel %vm1676, %v1669, %v926
      %v1703 = vsel %vm1676, %v1670, %v928
      %v1704 = vsel %vm1676, %v1671, %v930
      %v1705 = vsel %vm1676, %v1672, %v932
      %v1706 = vsel %vm1676, %v1673, %v934
      %v1707 = vsel %vm1676, %v1674, %v936
      %v1708 = vsel %vm1676, %v1675, %v938
      %vm1709 = vcmask 130048
      %v1710 = vsel %vm1709, %v1677, %v1004
      %v1711 = vsel %vm1709, %v1678, %v1006
      %v1712 = vsel %vm1709, %v1679, %v1008
      %v1713 = vsel %vm1709, %v1680, %v1010
      %v1714 = vsel %vm1709, %v1681, %v1012
      %v1715 = vsel %vm1709, %v1682, %v1014
      %v1716 = vsel %vm1709, %v1683, %v1016
      %v1717 = vsel %vm1709, %v1684, %v1018
      %v1718 = vsel %vm1709, %v1685, %v1020
      %v1719 = vsel %vm1709, %v1686, %v1022
      %v1720 = vsel %vm1709, %v1687, %v1024
      %v1721 = vsel %vm1709, %v1688, %v1026
      %v1722 = vsel %vm1709, %v1689, %v1028
      %v1723 = vsel %vm1709, %v1690, %v1030
      %v1724 = vsel %vm1709, %v1691, %v1032
      %v1725 = vsel %vm1709, %v1692, %v1034
      %v1726 = vsel %vm1709, %v1693, %v1036
      %v1727 = vsel %vm1709, %v1694, %v1038
      %v1728 = vsel %vm1709, %v1695, %v1040
      %v1729 = vsel %vm1709, %v1696, %v1042
      %v1730 = vsel %vm1709, %v1697, %v1044
      %v1731 = vsel %vm1709, %v1698, %v1046
      %v1732 = vsel %vm1709, %v1699, %v1048
      %v1733 = vsel %vm1709, %v1700, %v1050
      %v1734 = vsel %vm1709, %v1701, %v1052
      %v1735 = vsel %vm1709, %v1702, %v1054
      %v1736 = vsel %vm1709, %v1703, %v1056
      %v1737 = vsel %vm1709, %v1704, %v1058
      %v1738 = vsel %vm1709, %v1705, %v1060
      %v1739 = vsel %vm1709, %v1706, %v1062
      %v1740 = vsel %vm1709, %v1707, %v1064
      %v1741 = vsel %vm1709, %v1708, %v1066
      %vm1742 = vcmask 162816
      %v1743 = vsel %vm1742, %v1710, %v1132
      %v1744 = vsel %vm1742, %v1711, %v1134
      %v1745 = vsel %vm1742, %v1712, %v1136
      %v1746 = vsel %vm1742, %v1713, %v1138
      %v1747 = vsel %vm1742, %v1714, %v1140
      %v1748 = vsel %vm1742, %v1715, %v1142
      %v1749 = vsel %vm1742, %v1716, %v1144
      %v1750 = vsel %vm1742, %v1717, %v1146
      %v1751 = vsel %vm1742, %v1718, %v1148
      %v1752 = vsel %vm1742, %v1719, %v1150
      %v1753 = vsel %vm1742, %v1720, %v1152
      %v1754 = vsel %vm1742, %v1721, %v1154
      %v1755 = vsel %vm1742, %v1722, %v1156
      %v1756 = vsel %vm1742, %v1723, %v1158
      %v1757 = vsel %vm1742, %v1724, %v1160
      %v1758 = vsel %vm1742, %v1725, %v1162
      %v1759 = vsel %vm1742, %v1726, %v1164
      %v1760 = vsel %vm1742, %v1727, %v1166
      %v1761 = vsel %vm1742, %v1728, %v1168
      %v1762 = vsel %vm1742, %v1729, %v1170
      %v1763 = vsel %vm1742, %v1730, %v1172
      %v1764 = vsel %vm1742, %v1731, %v1174
      %v1765 = vsel %vm1742, %v1732, %v1176
      %v1766 = vsel %vm1742, %v1733, %v1178
      %v1767 = vsel %vm1742, %v1734, %v1180
      %v1768 = vsel %vm1742, %v1735, %v1182
      %v1769 = vsel %vm1742, %v1736, %v1184
      %v1770 = vsel %vm1742, %v1737, %v1186
      %v1771 = vsel %vm1742, %v1738, %v1188
      %v1772 = vsel %vm1742, %v1739, %v1190
      %v1773 = vsel %vm1742, %v1740, %v1192
      %v1774 = vsel %vm1742, %v1741, %v1194
      %vm1775 = vcmask 195584
      %v1776 = vsel %vm1775, %v1743, %v1260
      %v1777 = vsel %vm1775, %v1744, %v1262
      %v1778 = vsel %vm1775, %v1745, %v1264
      %v1779 = vsel %vm1775, %v1746, %v1266
      %v1780 = vsel %vm1775, %v1747, %v1268
      %v1781 = vsel %vm1775, %v1748, %v1270
      %v1782 = vsel %vm1775, %v1749, %v1272
      %v1783 = vsel %vm1775, %v1750, %v1274
      %v1784 = vsel %vm1775, %v1751, %v1276
      %v1785 = vsel %vm1775, %v1752, %v1278
      %v1786 = vsel %vm1775, %v1753, %v1280
      %v1787 = vsel %vm1775, %v1754, %v1282
      %v1788 = vsel %vm1775, %v1755, %v1284
      %v1789 = vsel %vm1775, %v1756, %v1286
      %v1790 = vsel %vm1775, %v1757, %v1288
      %v1791 = vsel %vm1775, %v1758, %v1290
      %v1792 = vsel %vm1775, %v1759, %v1292
      %v1793 = vsel %vm1775, %v1760, %v1294
      %v1794 = vsel %vm1775, %v1761, %v1296
      %v1795 = vsel %vm1775, %v1762, %v1298
      %v1796 = vsel %vm1775, %v1763, %v1300
      %v1797 = vsel %vm1775, %v1764, %v1302
      %v1798 = vsel %vm1775, %v1765, %v1304
      %v1799 = vsel %vm1775, %v1766, %v1306
      %v1800 = vsel %vm1775, %v1767, %v1308
      %v1801 = vsel %vm1775, %v1768, %v1310
      %v1802 = vsel %vm1775, %v1769, %v1312
      %v1803 = vsel %vm1775, %v1770, %v1314
      %v1804 = vsel %vm1775, %v1771, %v1316
      %v1805 = vsel %vm1775, %v1772, %v1318
      %v1806 = vsel %vm1775, %v1773, %v1320
      %v1807 = vsel %vm1775, %v1774, %v1322
      %vm1808 = vcmask 228352
      %v1809 = vsel %vm1808, %v1776, %v1388
      %v1810 = vsel %vm1808, %v1777, %v1390
      %v1811 = vsel %vm1808, %v1778, %v1392
      %v1812 = vsel %vm1808, %v1779, %v1394
      %v1813 = vsel %vm1808, %v1780, %v1396
      %v1814 = vsel %vm1808, %v1781, %v1398
      %v1815 = vsel %vm1808, %v1782, %v1400
      %v1816 = vsel %vm1808, %v1783, %v1402
      %v1817 = vsel %vm1808, %v1784, %v1404
      %v1818 = vsel %vm1808, %v1785, %v1406
      %v1819 = vsel %vm1808, %v1786, %v1408
      %v1820 = vsel %vm1808, %v1787, %v1410
      %v1821 = vsel %vm1808, %v1788, %v1412
      %v1822 = vsel %vm1808, %v1789, %v1414
      %v1823 = vsel %vm1808, %v1790, %v1416
      %v1824 = vsel %vm1808, %v1791, %v1418
      %v1825 = vsel %vm1808, %v1792, %v1420
      %v1826 = vsel %vm1808, %v1793, %v1422
      %v1827 = vsel %vm1808, %v1794, %v1424
      %v1828 = vsel %vm1808, %v1795, %v1426
      %v1829 = vsel %vm1808, %v1796, %v1428
      %v1830 = vsel %vm1808, %v1797, %v1430
      %v1831 = vsel %vm1808, %v1798, %v1432
      %v1832 = vsel %vm1808, %v1799, %v1434
      %v1833 = vsel %vm1808, %v1800, %v1436
      %v1834 = vsel %vm1808, %v1801, %v1438
      %v1835 = vsel %vm1808, %v1802, %v1440
      %v1836 = vsel %vm1808, %v1803, %v1442
      %v1837 = vsel %vm1808, %v1804, %v1444
      %v1838 = vsel %vm1808, %v1805, %v1446
      %v1839 = vsel %vm1808, %v1806, %v1448
      %v1840 = vsel %vm1808, %v1807, %v1450
      %vm1841 = vcmask 261120
      %v1842 = vsel %vm1841, %v1809, %v1516
      %v1843 = vsel %vm1841, %v1810, %v1518
      %v1844 = vsel %vm1841, %v1811, %v1520
      %v1845 = vsel %vm1841, %v1812, %v1522
      %v1846 = vsel %vm1841, %v1813, %v1524
      %v1847 = vsel %vm1841, %v1814, %v1526
      %v1848 = vsel %vm1841, %v1815, %v1528
      %v1849 = vsel %vm1841, %v1816, %v1530
      %v1850 = vsel %vm1841, %v1817, %v1532
      %v1851 = vsel %vm1841, %v1818, %v1534
      %v1852 = vsel %vm1841, %v1819, %v1536
      %v1853 = vsel %vm1841, %v1820, %v1538
      %v1854 = vsel %vm1841, %v1821, %v1540
      %v1855 = vsel %vm1841, %v1822, %v1542
      %v1856 = vsel %vm1841, %v1823, %v1544
      %v1857 = vsel %vm1841, %v1824, %v1546
      %v1858 = vsel %vm1841, %v1825, %v1548
      %v1859 = vsel %vm1841, %v1826, %v1550
      %v1860 = vsel %vm1841, %v1827, %v1552
      %v1861 = vsel %vm1841, %v1828, %v1554
      %v1862 = vsel %vm1841, %v1829, %v1556
      %v1863 = vsel %vm1841, %v1830, %v1558
      %v1864 = vsel %vm1841, %v1831, %v1560
      %v1865 = vsel %vm1841, %v1832, %v1562
      %v1866 = vsel %vm1841, %v1833, %v1564
      %v1867 = vsel %vm1841, %v1834, %v1566
      %v1868 = vsel %vm1841, %v1835, %v1568
      %v1869 = vsel %vm1841, %v1836, %v1570
      %v1870 = vsel %vm1841, %v1837, %v1572
      %v1871 = vsel %vm1841, %v1838, %v1574
      %v1872 = vsel %vm1841, %v1839, %v1576
      %v1873 = vsel %vm1841, %v1840, %v1578
      %v1874 = vld [vmem:[%s1] sm:$0xff]
      %v1875 = vld [vmem:[%s1 + $0x8] sm:$0xff]
      %v1876 = vld [vmem:[%s1 + $0x10] sm:$0xff]
      %v1877 = vld [vmem:[%s1 + $0x18] sm:$0xff]
      %v1878 = vld [vmem:[%s1 + $0x20] sm:$0xf]
      %v1879 = vld [vmem:[%s2] sm:$0x1]
      %v1881 = vlaneseq
      %v1882 = vshrl.u32 %v1881, 7
      %v1883 = vsub.s32 0, %v1882
      %v1884 = vrot.slane %v1879, %v1883
      %vm1886 = vcmask 293888
      %v1888 = vsel %vm1886, %v1842, 0
      %v1891 = vsel %vm1886, %v1843, 0
      %v1894 = vsel %vm1886, %v1844, 0
      %v1897 = vsel %vm1886, %v1845, 0
      %v1900 = vsel %vm1886, %v1846, 0
      %v1903 = vsel %vm1886, %v1847, 0
      %v1906 = vsel %vm1886, %v1848, 0
      %v1909 = vsel %vm1886, %v1849, 0
      %v1912 = vsel %vm1886, %v1850, 0
      %v1915 = vsel %vm1886, %v1851, 0
      %v1918 = vsel %vm1886, %v1852, 0
      %v1921 = vsel %vm1886, %v1853, 0
      %v1924 = vsel %vm1886, %v1854, 0
      %v1927 = vsel %vm1886, %v1855, 0
      %v1930 = vsel %vm1886, %v1856, 0
      %v1933 = vsel %vm1886, %v1857, 0
      %v1936 = vsel %vm1886, %v1858, 0
      %v1939 = vsel %vm1886, %v1859, 0
      %v1942 = vsel %vm1886, %v1860, 0
      %v1945 = vsel %vm1886, %v1861, 0
      %v1948 = vsel %vm1886, %v1862, 0
      %v1951 = vsel %vm1886, %v1863, 0
      %v1954 = vsel %vm1886, %v1864, 0
      %v1957 = vsel %vm1886, %v1865, 0
      %v1960 = vsel %vm1886, %v1866, 0
      %v1963 = vsel %vm1886, %v1867, 0
      %v1966 = vsel %vm1886, %v1868, 0
      %v1969 = vsel %vm1886, %v1869, 0
      %v1972 = vsel %vm1886, %v1870, 0
      %v1975 = vsel %vm1886, %v1871, 0
      %v1978 = vsel %vm1886, %v1872, 0
      %v1981 = vsel %vm1886, %v1873, 0
      %vm1983 = vcmask 1043456
      %v1985 = vsel %vm1983, %v1878, 0
      %1987 = vmatprep.subr.mxu0 0.0
      %1988 = vmatpush1.msra.mxu0 %v1874
      %1989 = vmatprep.subr.mxu0 0.0
      %1990 = vmatpush1.msra.mxu0 %v1875
      %1991 = vmatprep.subr.mxu0 0.0
      %1992 = vmatpush1.msra.mxu0 %v1876
      %1993 = vmatprep.subr.mxu0 0.0
      %1994 = vmatpush1.msra.mxu0 %v1877
      %1995 = vmatprep.subr.mxu0 0.0
      %1996 = vmatpush1.msra.mxu0 %v1985
      %1997 = vmatprep.subr.mxu0 0.0
      %1998 = vmatpush1.msra.mxu0 0.0
      %1999 = vmatprep.subr.mxu0 0.0
      %2000 = vmatpush1.msra.mxu0 0.0
      %2001 = vmatprep.subr.mxu0 0.0
      %2002 = vmatpush1.msra.mxu0 0.0
      %2003 = vmatprep.subr.mxu0 0.0
      %2004 = vmatpush1.msra.mxu0 0.0
      %2005 = vmatprep.subr.mxu0 0.0
      %2006 = vmatpush1.msra.mxu0 0.0
      %2007 = vmatprep.subr.mxu0 0.0
      %2008 = vmatpush1.msra.mxu0 0.0
      %2009 = vmatprep.subr.mxu0 0.0
      %2010 = vmatpush1.msra.mxu0 0.0
      %2011 = vmatprep.subr.mxu0 0.0
      %2012 = vmatpush1.msra.mxu0 0.0
      %2013 = vmatprep.subr.mxu0 0.0
      %2014 = vmatpush1.msra.mxu0 0.0
      %2015 = vmatprep.subr.mxu0 0.0
      %2016 = vmatpush1.msra.mxu0 0.0
      %2017 = vmatprep.subr.mxu0 0.0
      %2018 = vmatpush1.msra.mxu0 0.0
      %2019 = vmatprep.subr.mxu0 0.0
      %2020 = vmatpush1.msra.mxu0 0.0
      %2021 = vmatprep.subr.mxu0 0.0
      %2022 = vmatpush1.msra.mxu0 0.0
      %2023 = vmatprep.subr.mxu0 0.0
      %2024 = vmatpush1.msra.mxu0 0.0
      %2025 = vmatprep.subr.mxu0 0.0
      %2026 = vmatpush1.msra.mxu0 0.0
      %2027 = vmatprep.subr.mxu0 0.0
      %2028 = vmatpush1.msra.mxu0 0.0
      %2029 = vmatprep.subr.mxu0 0.0
      %2030 = vmatpush1.msra.mxu0 0.0
      %2031 = vmatprep.subr.mxu0 0.0
      %2032 = vmatpush1.msra.mxu0 0.0
      %2033 = vmatprep.subr.mxu0 0.0
      %2034 = vmatpush1.msra.mxu0 0.0
      %2035 = vmatprep.subr.mxu0 0.0
      %2036 = vmatpush1.msra.mxu0 0.0
      %2037 = vmatprep.subr.mxu0 0.0
      %2038 = vmatpush1.msra.mxu0 0.0
      %2039 = vmatprep.subr.mxu0 0.0
      %2040 = vmatpush1.msra.mxu0 0.0
      %2041 = vmatprep.subr.mxu0 0.0
      %2042 = vmatpush1.msra.mxu0 0.0
      %2043 = vmatprep.subr.mxu0 0.0
      %2044 = vmatpush1.msra.mxu0 0.0
      %2045 = vmatprep.subr.mxu0 0.0
      %2046 = vmatpush1.msra.mxu0 0.0
      %2047 = vmatprep.subr.mxu0 0.0
      %2048 = vmatpush1.msra.mxu0 0.0
      %2049 = vmatprep.subr.mxu0 0.0
      %2050 = vmatpush1.msra.mxu0 0.0
      %2051 = vmatprep.mubr.f32.mxu0 0.0
      %2052 = vmatmul.mubr.f32.gmra.mrb[0].mxu0 %v1888
      %v2053 = vpop.f32.mrb[0].mxu0
      %v2054 = vadd.f32 %v1884, %v2053
      %v2055 = vpop.f32.mrb[0].mxu0
      %2056 = vmatprep.mubr.f32.mxu0 0.0
      %2057 = vmatmul.mubr.f32.gmra.mrb[0].mxu0 %v1891
      %v2058 = vpop.f32.mrb[0].mxu0
      %v2059 = vadd.f32 %v1884, %v2058
      %v2060 = vpop.f32.mrb[0].mxu0
      %2061 = vmatprep.mubr.f32.mxu0 0.0
      %2062 = vmatmul.mubr.f32.gmra.mrb[0].mxu0 %v1894
      %v2063 = vpop.f32.mrb[0].mxu0
      %v2064 = vadd.f32 %v1884, %v2063
      %v2065 = vpop.f32.mrb[0].mxu0
      %2066 = vmatprep.mubr.f32.mxu0 0.0
      %2067 = vmatmul.mubr.f32.gmra.mrb[0].mxu0 %v1897
      %v2068 = vpop.f32.mrb[0].mxu0
      %v2069 = vadd.f32 %v1884, %v2068
      %v2070 = vpop.f32.mrb[0].mxu0
      %2071 = vmatprep.mubr.f32.mxu0 0.0
      %2072 = vmatmul.mubr.f32.gmra.mrb[0].mxu0 %v1900
      %v2073 = vpop.f32.mrb[0].mxu0
      %v2074 = vadd.f32 %v1884, %v2073
      %v2075 = vpop.f32.mrb[0].mxu0
      %2076 = vmatprep.mubr.f32.mxu0 0.0
      %2077 = vmatmul.mubr.f32.gmra.mrb[0].mxu0 %v1903
      %v2078 = vpop.f32.mrb[0].mxu0
      %v2079 = vadd.f32 %v1884, %v2078
      %v2080 = vpop.f32.mrb[0].mxu0
      %2081 = vmatprep.mubr.f32.mxu0 0.0
      %2082 = vmatmul.mubr.f32.gmra.mrb[0].mxu0 %v1906
      %v2083 = vpop.f32.mrb[0].mxu0
      %v2084 = vadd.f32 %v1884, %v2083
      %v2085 = vpop.f32.mrb[0].mxu0
      %2086 = vmatprep.mubr.f32.mxu0 0.0
      %2087 = vmatmul.mubr.f32.gmra.mrb[0].mxu0 %v1909
      %v2088 = vpop.f32.mrb[0].mxu0
      %v2089 = vadd.f32 %v1884, %v2088
      %v2090 = vpop.f32.mrb[0].mxu0
      %2091 = vmatprep.mubr.f32.mxu0 0.0
      %2092 = vmatmul.mubr.f32.gmra.mrb[0].mxu0 %v1912
      %v2093 = vpop.f32.mrb[0].mxu0
      %v2094 = vadd.f32 %v1884, %v2093
      %v2095 = vpop.f32.mrb[0].mxu0
      %2096 = vmatprep.mubr.f32.mxu0 0.0
      %2097 = vmatmul.mubr.f32.gmra.mrb[0].mxu0 %v1915
      %v2098 = vpop.f32.mrb[0].mxu0
      %v2099 = vadd.f32 %v1884, %v2098
      %v2100 = vpop.f32.mrb[0].mxu0
      %2101 = vmatprep.mubr.f32.mxu0 0.0
      %2102 = vmatmul.mubr.f32.gmra.mrb[0].mxu0 %v1918
      %v2103 = vpop.f32.mrb[0].mxu0
      %v2104 = vadd.f32 %v1884, %v2103
      %v2105 = vpop.f32.mrb[0].mxu0
      %2106 = vmatprep.mubr.f32.mxu0 0.0
      %2107 = vmatmul.mubr.f32.gmra.mrb[0].mxu0 %v1921
      %v2108 = vpop.f32.mrb[0].mxu0
      %v2109 = vadd.f32 %v1884, %v2108
      %v2110 = vpop.f32.mrb[0].mxu0
      %2111 = vmatprep.mubr.f32.mxu0 0.0
      %2112 = vmatmul.mubr.f32.gmra.mrb[0].mxu0 %v1924
      %v2113 = vpop.f32.mrb[0].mxu0
      %v2114 = vadd.f32 %v1884, %v2113
      %v2115 = vpop.f32.mrb[0].mxu0
      %2116 = vmatprep.mubr.f32.mxu0 0.0
      %2117 = vmatmul.mubr.f32.gmra.mrb[0].mxu0 %v1927
      %v2118 = vpop.f32.mrb[0].mxu0
      %v2119 = vadd.f32 %v1884, %v2118
      %v2120 = vpop.f32.mrb[0].mxu0
      %2121 = vmatprep.mubr.f32.mxu0 0.0
      %2122 = vmatmul.mubr.f32.gmra.mrb[0].mxu0 %v1930
      %v2123 = vpop.f32.mrb[0].mxu0
      %v2124 = vadd.f32 %v1884, %v2123
      %v2125 = vpop.f32.mrb[0].mxu0
      %2126 = vmatprep.mubr.f32.mxu0 0.0
      %2127 = vmatmul.mubr.f32.gmra.mrb[0].mxu0 %v1933
      %v2128 = vpop.f32.mrb[0].mxu0
      %v2129 = vadd.f32 %v1884, %v2128
      %v2130 = vpop.f32.mrb[0].mxu0
      %2131 = vmatprep.mubr.f32.mxu0 0.0
      %2132 = vmatmul.mubr.f32.gmra.mrb[0].mxu0 %v1936
      %v2133 = vpop.f32.mrb[0].mxu0
      %v2134 = vadd.f32 %v1884, %v2133
      %v2135 = vpop.f32.mrb[0].mxu0
      %2136 = vmatprep.mubr.f32.mxu0 0.0
      %2137 = vmatmul.mubr.f32.gmra.mrb[0].mxu0 %v1939
      %v2138 = vpop.f32.mrb[0].mxu0
      %v2139 = vadd.f32 %v1884, %v2138
      %v2140 = vpop.f32.mrb[0].mxu0
      %2141 = vmatprep.mubr.f32.mxu0 0.0
      %2142 = vmatmul.mubr.f32.gmra.mrb[0].mxu0 %v1942
      %v2143 = vpop.f32.mrb[0].mxu0
      %v2144 = vadd.f32 %v1884, %v2143
      %v2145 = vpop.f32.mrb[0].mxu0
      %2146 = vmatprep.mubr.f32.mxu0 0.0
      %2147 = vmatmul.mubr.f32.gmra.mrb[0].mxu0 %v1945
      %v2148 = vpop.f32.mrb[0].mxu0
      %v2149 = vadd.f32 %v1884, %v2148
      %v2150 = vpop.f32.mrb[0].mxu0
      %2151 = vmatprep.mubr.f32.mxu0 0.0
      %2152 = vmatmul.mubr.f32.gmra.mrb[0].mxu0 %v1948
      %v2153 = vpop.f32.mrb[0].mxu0
      %v2154 = vadd.f32 %v1884, %v2153
      %v2155 = vpop.f32.mrb[0].mxu0
      %2156 = vmatprep.mubr.f32.mxu0 0.0
      %2157 = vmatmul.mubr.f32.gmra.mrb[0].mxu0 %v1951
      %v2158 = vpop.f32.mrb[0].mxu0
      %v2159 = vadd.f32 %v1884, %v2158
      %v2160 = vpop.f32.mrb[0].mxu0
      %2161 = vmatprep.mubr.f32.mxu0 0.0
      %2162 = vmatmul.mubr.f32.gmra.mrb[0].mxu0 %v1954
      %v2163 = vpop.f32.mrb[0].mxu0
      %v2164 = vadd.f32 %v1884, %v2163
      %v2165 = vpop.f32.mrb[0].mxu0
      %2166 = vmatprep.mubr.f32.mxu0 0.0
      %2167 = vmatmul.mubr.f32.gmra.mrb[0].mxu0 %v1957
      %v2168 = vpop.f32.mrb[0].mxu0
      %v2169 = vadd.f32 %v1884, %v2168
      %v2170 = vpop.f32.mrb[0].mxu0
      %2171 = vmatprep.mubr.f32.mxu0 0.0
      %2172 = vmatmul.mubr.f32.gmra.mrb[0].mxu0 %v1960
      %v2173 = vpop.f32.mrb[0].mxu0
      %v2174 = vadd.f32 %v1884, %v2173
      %v2175 = vpop.f32.mrb[0].mxu0
      %2176 = vmatprep.mubr.f32.mxu0 0.0
      %2177 = vmatmul.mubr.f32.gmra.mrb[0].mxu0 %v1963
      %v2178 = vpop.f32.mrb[0].mxu0
      %v2179 = vadd.f32 %v1884, %v2178
      %v2180 = vpop.f32.mrb[0].mxu0
      %2181 = vmatprep.mubr.f32.mxu0 0.0
      %2182 = vmatmul.mubr.f32.gmra.mrb[0].mxu0 %v1966
      %v2183 = vpop.f32.mrb[0].mxu0
      %v2184 = vadd.f32 %v1884, %v2183
      %v2185 = vpop.f32.mrb[0].mxu0
      %2186 = vmatprep.mubr.f32.mxu0 0.0
      %2187 = vmatmul.mubr.f32.gmra.mrb[0].mxu0 %v1969
      %v2188 = vpop.f32.mrb[0].mxu0
      %v2189 = vadd.f32 %v1884, %v2188
      %v2190 = vpop.f32.mrb[0].mxu0
      %2191 = vmatprep.mubr.f32.mxu0 0.0
      %2192 = vmatmul.mubr.f32.gmra.mrb[0].mxu0 %v1972
      %v2193 = vpop.f32.mrb[0].mxu0
      %v2194 = vadd.f32 %v1884, %v2193
      %v2195 = vpop.f32.mrb[0].mxu0
      %2196 = vmatprep.mubr.f32.mxu0 0.0
      %2197 = vmatmul.mubr.f32.gmra.mrb[0].mxu0 %v1975
      %v2198 = vpop.f32.mrb[0].mxu0
      %v2199 = vadd.f32 %v1884, %v2198
      %v2200 = vpop.f32.mrb[0].mxu0
      %2201 = vmatprep.mubr.f32.mxu0 0.0
      %2202 = vmatmul.mubr.f32.gmra.mrb[0].mxu0 %v1978
      %v2203 = vpop.f32.mrb[0].mxu0
      %v2204 = vadd.f32 %v1884, %v2203
      %v2205 = vpop.f32.mrb[0].mxu0
      %2206 = vmatprep.mubr.f32.mxu0 0.0
      %2207 = vmatmul.mubr.f32.gmra.mrb[0].mxu0 %v1981
      %v2208 = vpop.f32.mrb[0].mxu0
      %v2209 = vadd.f32 %v1884, %v2208
      %v2210 = vpop.f32.mrb[0].mxu0
      %2211 = vdwg.mxu0
      %v2212 = vmax.f32 %v2054, 0.0
      %v2213 = vmax.f32 %v2059, 0.0
      %v2214 = vmax.f32 %v2064, 0.0
      %v2215 = vmax.f32 %v2069, 0.0
      %v2216 = vmax.f32 %v2074, 0.0
      %v2217 = vmax.f32 %v2079, 0.0
      %v2218 = vmax.f32 %v2084, 0.0
      %v2219 = vmax.f32 %v2089, 0.0
      %v2220 = vmax.f32 %v2094, 0.0
      %v2221 = vmax.f32 %v2099, 0.0
      %v2222 = vmax.f32 %v2104, 0.0
      %v2223 = vmax.f32 %v2109, 0.0
      %v2224 = vmax.f32 %v2114, 0.0
      %v2225 = vmax.f32 %v2119, 0.0
      %v2226 = vmax.f32 %v2124, 0.0
      %v2227 = vmax.f32 %v2129, 0.0
      %v2228 = vmax.f32 %v2134, 0.0
      %v2229 = vmax.f32 %v2139, 0.0
      %v2230 = vmax.f32 %v2144, 0.0
      %v2231 = vmax.f32 %v2149, 0.0
      %v2232 = vmax.f32 %v2154, 0.0
      %v2233 = vmax.f32 %v2159, 0.0
      %v2234 = vmax.f32 %v2164, 0.0
      %v2235 = vmax.f32 %v2169, 0.0
      %v2236 = vmax.f32 %v2174, 0.0
      %v2237 = vmax.f32 %v2179, 0.0
      %v2238 = vmax.f32 %v2184, 0.0
      %v2239 = vmax.f32 %v2189, 0.0
      %v2240 = vmax.f32 %v2194, 0.0
      %v2241 = vmax.f32 %v2199, 0.0
      %v2242 = vmax.f32 %v2204, 0.0
      %v2243 = vmax.f32 %v2209, 0.0
      %2244 = vst [vmem:[%s170] sm:$0xff] %v2212
      %2245 = vst [vmem:[%s170 + $0x8] sm:$0xff] %v2213
      %2246 = vst [vmem:[%s170 + $0x10] sm:$0xff] %v2214
      %2247 = vst [vmem:[%s170 + $0x18] sm:$0xff] %v2215
      %2248 = vst [vmem:[%s170 + $0x20] sm:$0xff] %v2216
      %2249 = vst [vmem:[%s170 + $0x28] sm:$0xff] %v2217
      %2250 = vst [vmem:[%s170 + $0x30] sm:$0xff] %v2218
      %2251 = vst [vmem:[%s170 + $0x38] sm:$0xff] %v2219
      %2252 = vst [vmem:[%s170 + $0x40] sm:$0xff] %v2220
      %2253 = vst [vmem:[%s170 + $0x48] sm:$0xff] %v2221
      %2254 = vst [vmem:[%s170 + $0x50] sm:$0xff] %v2222
      %2255 = vst [vmem:[%s170 + $0x58] sm:$0xff] %v2223
      %2256 = vst [vmem:[%s170 + $0x60] sm:$0xff] %v2224
      %2257 = vst [vmem:[%s170 + $0x68] sm:$0xff] %v2225
      %2258 = vst [vmem:[%s170 + $0x70] sm:$0xff] %v2226
      %2259 = vst [vmem:[%s170 + $0x78] sm:$0xff] %v2227
      %2260 = vst [vmem:[%s170 + $0x80] sm:$0xff] %v2228
      %2261 = vst [vmem:[%s170 + $0x88] sm:$0xff] %v2229
      %2262 = vst [vmem:[%s170 + $0x90] sm:$0xff] %v2230
      %2263 = vst [vmem:[%s170 + $0x98] sm:$0xff] %v2231
      %2264 = vst [vmem:[%s170 + $0xa0] sm:$0xff] %v2232
      %2265 = vst [vmem:[%s170 + $0xa8] sm:$0xff] %v2233
      %2266 = vst [vmem:[%s170 + $0xb0] sm:$0xff] %v2234
      %2267 = vst [vmem:[%s170 + $0xb8] sm:$0xff] %v2235
      %2268 = vst [vmem:[%s170 + $0xc0] sm:$0xff] %v2236
      %2269 = vst [vmem:[%s170 + $0xc8] sm:$0xff] %v2237
      %2270 = vst [vmem:[%s170 + $0xd0] sm:$0xff] %v2238
      %2271 = vst [vmem:[%s170 + $0xd8] sm:$0xff] %v2239
      %2272 = vst [vmem:[%s170 + $0xe0] sm:$0xff] %v2240
      %2273 = vst [vmem:[%s170 + $0xe8] sm:$0xff] %v2241
      %2274 = vst [vmem:[%s170 + $0xf0] sm:$0xff] %v2242
      %2275 = vst [vmem:[%s170 + $0xf8] sm:$0xff] %v2243
      %p2276 = scmp.lt.s32.totalorder %s14, 1
      %s2277 = scalar_select %p2276, %s14, 1
      %s2278 = smul.addr %s2277, 32
      %s2279 = smul.addr %s2278, 8
      %s2280 = scalar_lea.vmem %s3, %s2279
      // Predicated region
      $region33: #{sdunet_forward.5} parent=31 // pred_check
        %p2281 = pneg %p100
      $region34: #{sdunet_forward.5} parent=31 // pred_check_branch
        %2283 = sbr.rel (%p2281) target = $region36
      $region35: #{sdunet_forward.5} parent=31 // pred_region
        _
      $region36: #{sdunet_forward.5} parent=31 // pred_fallthru
        _
    $region32: #{sdunet_forward.5} parent=5 // pred_fallthru
      _
    %p2284 = scmp.le.s32.totalorder 2, %s9
    // Predicated region
    $region37: #{sdunet_forward.5} parent=5 // pred_check
      %p2285 = pneg %p2284
    $region38: #{sdunet_forward.5} parent=5 // pred_check_branch
      %2287 = sbr.rel (%p2285) target = $region40
    $region39: #{sdunet_forward.5} parent=5 // pred_region
      %s2288 = ssub.s32 %s9, 2
      // Predicated region
      $region41: #{sdunet_forward.5} parent=39 // pred_check
        %p2289 = pneg %p106
      $region42: #{sdunet_forward.5} parent=39 // pred_check_branch
        %2291 = sbr.rel (%p2289) target = $region44
      $region43: #{sdunet_forward.5} parent=39 // pred_region
        %p2292 = scmp.lt.s32.totalorder %s15, 1
        %s2293 = scalar_select %p2292, %s15, 1
        %s2294 = smul.addr %s2293, 32
        %s2295 = smul.addr %s2294, 8
        %s2296 = scalar_lea.vmem %s3, %s2295
      $region44: #{sdunet_forward.5} parent=39 // pred_fallthru
        _
    $region40: #{sdunet_forward.5} parent=5 // pred_fallthru
      _
  $region6: #{sdunet_forward.5} parent=0 // loop_footer
    %s13 = sadd.s32 1, %s9
  $region7: #{sdunet_forward.5} parent=0 // loop_footer_branch
    %8 = sbr.rel target = $region3
  $region8: #{sdunet_forward.5} parent=0 // loop_exit
    _

// kernel: sdunet_forward.7
$region0: #{sdunet_forward.7}
  #allocation0 [shape = 'u32[]', space=smem, size = 0x4, offset = 0x4, fixed_abs, tag = 'smem constant byte address 0x4 - core index']
  #allocation1 [shape = 'u32[144,128]{1,0:T(1,128)}', space=vmem, size = 0x12000, scoped, tag = 'internal scratch']
  #allocation2 [shape = 'f32[8,8,128]{2,1,0:T(8,128)}', space=vmem, size = 0x8000, scoped, tag = 'scratch operand']
  %s0 = inlined_call_operand.vmem [shape: f32[2,4,4,128], index: 0, kind: input, shape index: {}]
  %s1 = inlined_call_operand.vmem [shape: f32[1152,128], index: 1, kind: input, shape index: {}]
  %s2 = inlined_call_operand.vmem [shape: f32[1,128], index: 2, kind: input, shape index: {}]
  %s3 = inlined_call_operand.vmem [shape: f32[2,4,4,128], index: 3, kind: output, shape index: {}]
  %s4 = sld [smem:[#allocation0]]
  $region45: #{sdunet_forward.7} parent=0
    _
  %s6 = ssub.s32 1, %s4
  %s7 = scalar_select 0, %s6, %s4
  loop: start=0, step=1, limit=4
  $region2: #{sdunet_forward.7} parent=0 // loop_pre_header
    _
  $region3: #{sdunet_forward.7} parent=0 // loop_header
    %s9 = sphi 0, %s13
    %p10 = scmp.ge.s32.totalorder %s9, 4
    %s19 = sphi 0, %s21
    %s22 = sphi 0, %s19
    %s23 = sphi 0, %s22
    %s39 = sphi 0, %s23
    %s43 = sphi 0, %s43
    %s45 = sphi 0, %s43
    %s46 = sphi 0, %s45
    %s60 = sphi 0, %s46
    %s64 = sphi 0, %s64
    %s66 = sphi 0, %s64
    %s67 = sphi 0, %s66
    %s81 = sphi 0, %s67
    %s87 = sphi 0, %s89
    %s90 = sphi 0, %s87
    %s91 = sphi 0, %s90
    %s107 = sphi 0, %s91
  $region4: #{sdunet_forward.7} parent=0 // loop_header_branch
    %12 = sbr.rel (%p10) target = $region8
  $region5: #{sdunet_forward.7} parent=0 // loop_body
    %s14 = ssub.s32 %s9, 1
    %s15 = ssub.s32 %s9, 2
    %s16 = sadd.s32 %s9, 1
    %s17 = ssub.s32 %s9, %s16
    %p18 = scmp.eq.s32.totalorder %s17, 0
    %s20 = sadd.s32 %s19, 1
    %s21 = scalar_select %p18, %s19, %s20
    %p24 = pneg %p18
    %p25 = scmp.eq.s32.totalorder %s9, 1
    %p26 = por %p24, %p25
    %p27 = scmp.ne.s32.totalorder %s19, %s22
    %p28 = scmp.eq.s32.totalorder %s9, 0
    %p29 = por %p27, %p28
    %p30 = scmp.ne.s32.totalorder %s19, %s22
    %p31 = scmp.eq.s32.totalorder %s14, 1
    %p32 = por %p30, %p31
    %p33 = scmp.ne.s32.totalorder %s22, %s23
    %p34 = scmp.eq.s32.totalorder %s14, 0
    %p35 = por %p33, %p34
    %p36 = scmp.ne.s32.totalorder %s22, %s23
    %p37 = scmp.eq.s32.totalorder %s15, 1
    %p38 = por %p36, %p37
    %p40 = scmp.ne.s32.totalorder %s23, %s39
    %p41 = scmp.eq.s32.totalorder %s15, 0
    %p42 = por %p40, %p41
    %s44 = sadd.s32 %s43, 1
    %p47 = scmp.eq.s32.totalorder %s9, 1
    %p48 = scmp.ne.s32.totalorder %s43, %s45
    %p49 = scmp.eq.s32.totalorder %s9, 0
    %p50 = por %p48, %p49
    %p51 = scmp.ne.s32.totalorder %s43, %s45
    %p52 = scmp.eq.s32.totalorder %s14, 1
    %p53 = por %p51, %p52
    %p54 = scmp.ne.s32.totalorder %s45, %s46
    %p55 = scmp.eq.s32.totalorder %s14, 0
    %p56 = por %p54, %p55
    %p57 = scmp.ne.s32.totalorder %s45, %s46
    %p58 = scmp.eq.s32.totalorder %s15, 1
    %p59 = por %p57, %p58
    %p61 = scmp.ne.s32.totalorder %s46, %s60
    %p62 = scmp.eq.s32.totalorder %s15, 0
    %p63 = por %p61, %p62
    %s65 = sadd.s32 %s64, 1
    %p68 = scmp.eq.s32.totalorder %s9, 1
    %p69 = scmp.ne.s32.totalorder %s64, %s66
    %p70 = scmp.eq.s32.totalorder %s9, 0
    %p71 = por %p69, %p70
    %p72 = scmp.ne.s32.totalorder %s64, %s66
    %p73 = scmp.eq.s32.totalorder %s14, 1
    %p74 = por %p72, %p73
    %p75 = scmp.ne.s32.totalorder %s66, %s67
    %p76 = scmp.eq.s32.totalorder %s14, 0
    %p77 = por %p75, %p76
    %p78 = scmp.ne.s32.totalorder %s66, %s67
    %p79 = scmp.eq.s32.totalorder %s15, 1
    %p80 = por %p78, %p79
    %p82 = scmp.ne.s32.totalorder %s67, %s81
    %p83 = scmp.eq.s32.totalorder %s15, 0
    %p84 = por %p82, %p83
    %s85 = ssub.s32 %s9, %s16
    %p86 = scmp.eq.s32.totalorder %s85, 0
    %s88 = sadd.s32 %s87, 1
    %s89 = scalar_select %p86, %s87, %s88
    %p92 = pneg %p86
    %p93 = scmp.eq.s32.totalorder %s9, 1
    %p94 = por %p92, %p93
    %p95 = scmp.ne.s32.totalorder %s87, %s90
    %p96 = scmp.eq.s32.totalorder %s9, 0
    %p97 = por %p95, %p96
    %p98 = scmp.ne.s32.totalorder %s87, %s90
    %p99 = scmp.eq.s32.totalorder %s14, 1
    %p100 = por %p98, %p99
    %p101 = scmp.ne.s32.totalorder %s90, %s91
    %p102 = scmp.eq.s32.totalorder %s14, 0
    %p103 = por %p101, %p102
    %p104 = scmp.ne.s32.totalorder %s90, %s91
    %p105 = scmp.eq.s32.totalorder %s15, 1
    %p106 = por %p104, %p105
    %p108 = scmp.ne.s32.totalorder %s91, %s107
    %p109 = scmp.eq.s32.totalorder %s15, 0
    %p110 = por %p108, %p109
    %p111 = scmp.le.s32.totalorder 1, %s9
    %p112 = scmp.lt.s32.totalorder %s9, 3
    %p113 = pnand %p111, %p112
    %p114 = pneg %p113
    // Predicated region
    $region9: #{sdunet_forward.7} parent=5 // pred_check
      _
    $region10: #{sdunet_forward.7} parent=5 // pred_check_branch
      %116 = sbr.rel (%p113) target = $region12
    $region11: #{sdunet_forward.7} parent=5 // pred_region
      %s117 = ssub.s32 %s9, 1
      // Predicated region
      $region13: #{sdunet_forward.7} parent=11 // pred_check
        %p118 = pneg %p56
      $region14: #{sdunet_forward.7} parent=11 // pred_check_branch
        %120 = sbr.rel (%p118) target = $region16
      $region15: #{sdunet_forward.7} parent=11 // pred_region
        _
      $region16: #{sdunet_forward.7} parent=11 // pred_fallthru
        _
      // Predicated region
      $region17: #{sdunet_forward.7} parent=11 // pred_check
        %p121 = pneg %p77
      $region18: #{sdunet_forward.7} parent=11 // pred_check_branch
        %123 = sbr.rel (%p121) target = $region20
      $region19: #{sdunet_forward.7} parent=11 // pred_region
        _
      $region20: #{sdunet_forward.7} parent=11 // pred_fallthru
        _
    $region12: #{sdunet_forward.7} parent=5 // pred_fallthru
      _
    %p124 = scmp.lt.s32.totalorder %s9, 2
    // Predicated region
    $region21: #{sdunet_forward.7} parent=5 // pred_check
      %p125 = pneg %p124
    $region22: #{sdunet_forward.7} parent=5 // pred_check_branch
      %127 = sbr.rel (%p125) target = $region24
    $region23: #{sdunet_forward.7} parent=5 // pred_region
      // Predicated region
      $region25: #{sdunet_forward.7} parent=23 // pred_check
        %p128 = pneg %p29
      $region26: #{sdunet_forward.7} parent=23 // pred_check_branch
        %130 = sbr.rel (%p128) target = $region28
      $region27: #{sdunet_forward.7} parent=23 // pred_region
        %p131 = scmp.lt.s32.totalorder %s9, 1
        %s132 = scalar_select %p131, %s9, 1
        %s133 = smul.addr %s132, 4
        %s134 = smul.addr %s133, 4
        %s135 = scalar_lea.vmem %s0, %s134
      $region28: #{sdunet_forward.7} parent=23 // pred_fallthru
        _
    $region24: #{sdunet_forward.7} parent=5 // pred_fallthru
      _
    %p136 = scmp.le.s32.totalorder 1, %s9
    %p137 = scmp.lt.s32.totalorder %s9, 3
    %p138 = pnand %p136, %p137
    %p139 = pneg %p138
    // Predicated region
    $region29: #{sdunet_forward.7} parent=5 // pred_check
      _
    $region30: #{sdunet_forward.7} parent=5 // pred_check_branch
      %141 = sbr.rel (%p138) target = $region32
    $region31: #{sdunet_forward.7} parent=5 // pred_region
      %s142 = ssub.s32 %s9, 1
      %p143 = scmp.lt.s32.totalorder %s14, 1
      %s144 = scalar_select %p143, %s14, 1
      %s145 = smul.addr %s144, 4
      %s146 = smul.addr %s145, 4
      %s147 = scalar_lea.vmem %s0, %s146
      %p148 = pneg %p35
      %p149 = pneg %p32
      %p150 = pneg %p56
      %p151 = pneg %p53
      %p152 = pneg %p77
      %p153 = pneg %p74
      %p154 = pneg %p103
      %p155 = pneg %p100
      %p156 = scmp.lt.s32.totalorder %s14, 1
      %s157 = scalar_select %p156, %s14, 1
      %s158 = smul.addr %s157, 4
      %s159 = smul.addr %s158, 4
      %s160 = scalar_lea.vmem %s3, %s159
      %p161 = scmp.lt.s32.totalorder %s14, 1
      %s162 = scalar_select %p161, %s14, 1
      %s163 = smul.addr %s162, 4
      %s164 = smul.addr %s163, 4
      %s165 = scalar_lea.vmem %s0, %s164
      %p166 = scmp.lt.s32.totalorder %s14, 1
      %s167 = scalar_select %p166, %s14, 1
      %s168 = smul.addr %s167, 4
      %s169 = smul.addr %s168, 4
      %s170 = scalar_lea.vmem %s3, %s169
      %171 = vst [vmem:[#allocation2] sm:$0xff] 0.0
      %172 = vst [vmem:[#allocation2 + $0x8] sm:$0xff] 0.0
      %173 = vst [vmem:[#allocation2 + $0x10] sm:$0xff] 0.0
      %174 = vst [vmem:[#allocation2 + $0x18] sm:$0xff] 0.0
      %175 = vst [vmem:[#allocation2 + $0x20] sm:$0xff] 0.0
      %176 = vst [vmem:[#allocation2 + $0x28] sm:$0xff] 0.0
      %177 = vst [vmem:[#allocation2 + $0x30] sm:$0xff] 0.0
      %178 = vst [vmem:[#allocation2 + $0x38] sm:$0xff] 0.0
      %v179 = vld [vmem:[%s165] sm:$0xf]
      %v180 = vld [vmem:[%s165 + $0x4] sm:$0xf]
      %v181 = vld [vmem:[%s165 + $0x8] sm:$0xf]
      %v182 = vld [vmem:[%s165 + $0xc] sm:$0xf]
      %s183 = scalar_lea.vmem [#allocation2], 16
      %184 = vst [vmem:[%s183 + $0x2] sm:$0xf] %v179
      %185 = vst [vmem:[%s183 + $0xa] sm:$0xf] %v180
      %186 = vst [vmem:[%s183 + $0x12] sm:$0xf] %v181
      %187 = vst [vmem:[%s183 + $0x1a] sm:$0xf] %v182
      %v188 = vld [vmem:[#allocation2] sm:$0xf]
      %v189 = vld [vmem:[#allocation2 + $0x8] sm:$0xf]
      %v190 = vld [vmem:[#allocation2 + $0x10] sm:$0xf]
      %v191 = vld [vmem:[#allocation2 + $0x18] sm:$0xf]
      %v192 = vld [vmem:[#allocation2 + $0x2] sm:$0xf]
      %v193 = vld [vmem:[#allocation2 + $0xa] sm:$0xf]
      %v194 = vld [vmem:[#allocation2 + $0x12] sm:$0xf]
      %v195 = vld [vmem:[#allocation2 + $0x1a] sm:$0xf]
      %v196 = vld [vmem:[#allocation2 + $0x4] sm:$0xf]
      %v197 = vld [vmem:[#allocation2 + $0xc] sm:$0xf]
      %v198 = vld [vmem:[#allocation2 + $0x14] sm:$0xf]
      %v199 = vld [vmem:[#allocation2 + $0x1c] sm:$0xf]
      %v200 = vld [vmem:[%s183] sm:$0xf]
      %v201 = vld [vmem:[%s183 + $0x8] sm:$0xf]
      %v202 = vld [vmem:[%s183 + $0x10] sm:$0xf]
      %v203 = vld [vmem:[%s183 + $0x18] sm:$0xf]
      %v204 = vld [vmem:[%s183 + $0x2] sm:$0xf]
      %v205 = vld [vmem:[%s183 + $0xa] sm:$0xf]
      %v206 = vld [vmem:[%s183 + $0x12] sm:$0xf]
      %v207 = vld [vmem:[%s183 + $0x1a] sm:$0xf]
      %v208 = vld [vmem:[%s183 + $0x4] sm:$0xf]
      %v209 = vld [vmem:[%s183 + $0xc] sm:$0xf]
      %v210 = vld [vmem:[%s183 + $0x14] sm:$0xf]
      %v211 = vld [vmem:[%s183 + $0x1c] sm:$0xf]
      %s212 = scalar_lea.vmem [#allocation2], 32
      %v213 = vld [vmem:[%s212] sm:$0xf]
      %v214 = vld [vmem:[%s212 + $0x8] sm:$0xf]
      %v215 = vld [vmem:[%s212 + $0x10] sm:$0xf]
      %v216 = vld [vmem:[%s212 + $0x18] sm:$0xf]
      %v217 = vld [vmem:[%s212 + $0x2] sm:$0xf]
      %v218 = vld [vmem:[%s212 + $0xa] sm:$0xf]
      %v219 = vld [vmem:[%s212 + $0x12] sm:$0xf]
      %v220 = vld [vmem:[%s212 + $0x1a] sm:$0xf]
      %v221 = vld [vmem:[%s212 + $0x4] sm:$0xf]
      %v222 = vld [vmem:[%s212 + $0xc] sm:$0xf]
      %v223 = vld [vmem:[%s212 + $0x14] sm:$0xf]
      %v224 = vld [vmem:[%s212 + $0x1c] sm:$0xf]
      %v261 = vcombine.low %v188, %v192
      %v262 = vcombine.low %v196, %v200
      %v263 = vcombine.low %v204, %v208
      %v264 = vcombine.low %v213, %v217
      %v265 = vcombine.low %v189, %v193
      %v266 = vcombine.low %v197, %v201
      %v267 = vcombine.low %v205, %v209
      %v268 = vcombine.low %v214, %v218
      %v269 = vcombine.low %v190, %v194
      %v270 = vcombine.low %v198, %v202
      %v271 = vcombine.low %v206, %v210
      %v272 = vcombine.low %v215, %v219
      %v273 = vcombine.low %v191, %v195
      %v274 = vcombine.low %v199, %v203
      %v275 = vcombine.low %v207, %v211
      %v276 = vcombine.low %v216, %v220
      %v277 = vld [vmem:[%s1] sm:$0xff]
      %v278 = vld [vmem:[%s1 + $0x8] sm:$0xff]
      %v279 = vld [vmem:[%s1 + $0x10] sm:$0xff]
      %v280 = vld [vmem:[%s1 + $0x18] sm:$0xff]
      %v281 = vld [vmem:[%s1 + $0x20] sm:$0xff]
      %v282 = vld [vmem:[%s1 + $0x28] sm:$0xff]
      %v283 = vld [vmem:[%s1 + $0x30] sm:$0xff]
      %v284 = vld [vmem:[%s1 + $0x38] sm:$0xff]
      %v285 = vld [vmem:[%s1 + $0x40] sm:$0xff]
      %v286 = vld [vmem:[%s1 + $0x48] sm:$0xff]
      %v287 = vld [vmem:[%s1 + $0x50] sm:$0xff]
      %v288 = vld [vmem:[%s1 + $0x58] sm:$0xff]
      %v289 = vld [vmem:[%s1 + $0x60] sm:$0xff]
      %v290 = vld [vmem:[%s1 + $0x68] sm:$0xff]
      %v291 = vld [vmem:[%s1 + $0x70] sm:$0xff]
      %v292 = vld [vmem:[%s1 + $0x78] sm:$0xff]
      %v293 = vld [vmem:[%s1 + $0x80] sm:$0xff]
      %v294 = vld [vmem:[%s1 + $0x88] sm:$0xff]
      %v295 = vld [vmem:[%s1 + $0x90] sm:$0xff]
      %v296 = vld [vmem:[%s1 + $0x98] sm:$0xff]
      %v297 = vld [vmem:[%s1 + $0xa0] sm:$0xff]
      %v298 = vld [vmem:[%s1 + $0xa8] sm:$0xff]
      %v299 = vld [vmem:[%s1 + $0xb0] sm:$0xff]
      %v300 = vld [vmem:[%s1 + $0xb8] sm:$0xff]
      %v301 = vld [vmem:[%s1 + $0xc0] sm:$0xff]
      %v302 = vld [vmem:[%s1 + $0xc8] sm:$0xff]
      %v303 = vld [vmem:[%s1 + $0xd0] sm:$0xff]
      %v304 = vld [vmem:[%s1 + $0xd8] sm:$0xff]
      %v305 = vld [vmem:[%s1 + $0xe0] sm:$0xff]
      %v306 = vld [vmem:[%s1 + $0xe8] sm:$0xff]
      %v307 = vld [vmem:[%s1 + $0xf0] sm:$0xff]
      %v308 = vld [vmem:[%s1 + $0xf8] sm:$0xff]
      %v309 = vld [vmem:[%s1 + $0x100] sm:$0xff]
      %v310 = vld [vmem:[%s1 + $0x108] sm:$0xff]
      %v311 = vld [vmem:[%s1 + $0x110] sm:$0xff]
      %v312 = vld [vmem:[%s1 + $0x118] sm:$0xff]
      %v313 = vld [vmem:[%s1 + $0x120] sm:$0xff]
      %v314 = vld [vmem:[%s1 + $0x128] sm:$0xff]
      %v315 = vld [vmem:[%s1 + $0x130] sm:$0xff]
      %v316 = vld [vmem:[%s1 + $0x138] sm:$0xff]
      %v317 = vld [vmem:[%s1 + $0x140] sm:$0xff]
      %v318 = vld [vmem:[%s1 + $0x148] sm:$0xff]
      %v319 = vld [vmem:[%s1 + $0x150] sm:$0xff]
      %v320 = vld [vmem:[%s1 + $0x158] sm:$0xff]
      %v321 = vld [vmem:[%s1 + $0x160] sm:$0xff]
      %v322 = vld [vmem:[%s1 + $0x168] sm:$0xff]
      %v323 = vld [vmem:[%s1 + $0x170] sm:$0xff]
      %v324 = vld [vmem:[%s1 + $0x178] sm:$0xff]
      %v325 = vld [vmem:[%s1 + $0x180] sm:$0xff]
      %v326 = vld [vmem:[%s1 + $0x188] sm:$0xff]
      %v327 = vld [vmem:[%s1 + $0x190] sm:$0xff]
      %v328 = vld [vmem:[%s1 + $0x198] sm:$0xff]
      %v329 = vld [vmem:[%s1 + $0x1a0] sm:$0xff]
      %v330 = vld [vmem:[%s1 + $0x1a8] sm:$0xff]
      %v331 = vld [vmem:[%s1 + $0x1b0] sm:$0xff]
      %v332 = vld [vmem:[%s1 + $0x1b8] sm:$0xff]
      %v333 = vld [vmem:[%s1 + $0x1c0] sm:$0xff]
      %v334 = vld [vmem:[%s1 + $0x1c8] sm:$0xff]
      %v335 = vld [vmem:[%s1 + $0x1d0] sm:$0xff]
      %v336 = vld [vmem:[%s1 + $0x1d8] sm:$0xff]
      %v337 = vld [vmem:[%s1 + $0x1e0] sm:$0xff]
      %v338 = vld [vmem:[%s1 + $0x1e8] sm:$0xff]
      %v339 = vld [vmem:[%s1 + $0x1f0] sm:$0xff]
      %v340 = vld [vmem:[%s1 + $0x1f8] sm:$0xff]
      %v341 = vld [vmem:[%s1 + $0x200] sm:$0xff]
      %v342 = vld [vmem:[%s1 + $0x208] sm:$0xff]
      %v343 = vld [vmem:[%s1 + $0x210] sm:$0xff]
      %v344 = vld [vmem:[%s1 + $0x218] sm:$0xff]
      %v345 = vld [vmem:[%s1 + $0x220] sm:$0xff]
      %v346 = vld [vmem:[%s1 + $0x228] sm:$0xff]
      %v347 = vld [vmem:[%s1 + $0x230] sm:$0xff]
      %v348 = vld [vmem:[%s1 + $0x238] sm:$0xff]
      %v349 = vld [vmem:[%s1 + $0x240] sm:$0xff]
      %v350 = vld [vmem:[%s1 + $0x248] sm:$0xff]
      %v351 = vld [vmem:[%s1 + $0x250] sm:$0xff]
      %v352 = vld [vmem:[%s1 + $0x258] sm:$0xff]
      %v353 = vld [vmem:[%s1 + $0x260] sm:$0xff]
      %v354 = vld [vmem:[%s1 + $0x268] sm:$0xff]
      %v355 = vld [vmem:[%s1 + $0x270] sm:$0xff]
      %v356 = vld [vmem:[%s1 + $0x278] sm:$0xff]
      %v357 = vld [vmem:[%s1 + $0x280] sm:$0xff]
      %v358 = vld [vmem:[%s1 + $0x288] sm:$0xff]
      %v359 = vld [vmem:[%s1 + $0x290] sm:$0xff]
      %v360 = vld [vmem:[%s1 + $0x298] sm:$0xff]
      %v361 = vld [vmem:[%s1 + $0x2a0] sm:$0xff]
      %v362 = vld [vmem:[%s1 + $0x2a8] sm:$0xff]
      %v363 = vld [vmem:[%s1 + $0x2b0] sm:$0xff]
      %v364 = vld [vmem:[%s1 + $0x2b8] sm:$0xff]
      %v365 = vld [vmem:[%s1 + $0x2c0] sm:$0xff]
      %v366 = vld [vmem:[%s1 + $0x2c8] sm:$0xff]
      %v367 = vld [vmem:[%s1 + $0x2d0] sm:$0xff]
      %v368 = vld [vmem:[%s1 + $0x2d8] sm:$0xff]
      %v369 = vld [vmem:[%s1 + $0x2e0] sm:$0xff]
      %v370 = vld [vmem:[%s1 + $0x2e8] sm:$0xff]
      %v371 = vld [vmem:[%s1 + $0x2f0] sm:$0xff]
      %v372 = vld [vmem:[%s1 + $0x2f8] sm:$0xff]
      %v373 = vld [vmem:[%s1 + $0x300] sm:$0xff]
      %v374 = vld [vmem:[%s1 + $0x308] sm:$0xff]
      %v375 = vld [vmem:[%s1 + $0x310] sm:$0xff]
      %v376 = vld [vmem:[%s1 + $0x318] sm:$0xff]
      %v377 = vld [vmem:[%s1 + $0x320] sm:$0xff]
      %v378 = vld [vmem:[%s1 + $0x328] sm:$0xff]
      %v379 = vld [vmem:[%s1 + $0x330] sm:$0xff]
      %v380 = vld [vmem:[%s1 + $0x338] sm:$0xff]
      %v381 = vld [vmem:[%s1 + $0x340] sm:$0xff]
      %v382 = vld [vmem:[%s1 + $0x348] sm:$0xff]
      %v383 = vld [vmem:[%s1 + $0x350] sm:$0xff]
      %v384 = vld [vmem:[%s1 + $0x358] sm:$0xff]
      %v385 = vld [vmem:[%s1 + $0x360] sm:$0xff]
      %v386 = vld [vmem:[%s1 + $0x368] sm:$0xff]
      %v387 = vld [vmem:[%s1 + $0x370] sm:$0xff]
      %v388 = vld [vmem:[%s1 + $0x378] sm:$0xff]
      %v389 = vld [vmem:[%s1 + $0x380] sm:$0xff]
      %v390 = vld [vmem:[%s1 + $0x388] sm:$0xff]
      %v391 = vld [vmem:[%s1 + $0x390] sm:$0xff]
      %v392 = vld [vmem:[%s1 + $0x398] sm:$0xff]
      %v393 = vld [vmem:[%s1 + $0x3a0] sm:$0xff]
      %v394 = vld [vmem:[%s1 + $0x3a8] sm:$0xff]
      %v395 = vld [vmem:[%s1 + $0x3b0] sm:$0xff]
      %v396 = vld [vmem:[%s1 + $0x3b8] sm:$0xff]
      %v397 = vld [vmem:[%s1 + $0x3c0] sm:$0xff]
      %v398 = vld [vmem:[%s1 + $0x3c8] sm:$0xff]
      %v399 = vld [vmem:[%s1 + $0x3d0] sm:$0xff]
      %v400 = vld [vmem:[%s1 + $0x3d8] sm:$0xff]
      %v401 = vld [vmem:[%s1 + $0x3e0] sm:$0xff]
      %v402 = vld [vmem:[%s1 + $0x3e8] sm:$0xff]
      %v403 = vld [vmem:[%s1 + $0x3f0] sm:$0xff]
      %v404 = vld [vmem:[%s1 + $0x3f8] sm:$0xff]
      %v405 = vld [vmem:[%s1 + $0x400] sm:$0xff]
      %v406 = vld [vmem:[%s1 + $0x408] sm:$0xff]
      %v407 = vld [vmem:[%s1 + $0x410] sm:$0xff]
      %v408 = vld [vmem:[%s1 + $0x418] sm:$0xff]
      %v409 = vld [vmem:[%s1 + $0x420] sm:$0xff]
      %v410 = vld [vmem:[%s1 + $0x428] sm:$0xff]
      %v411 = vld [vmem:[%s1 + $0x430] sm:$0xff]
      %v412 = vld [vmem:[%s1 + $0x438] sm:$0xff]
      %v413 = vld [vmem:[%s1 + $0x440] sm:$0xff]
      %v414 = vld [vmem:[%s1 + $0x448] sm:$0xff]
      %v415 = vld [vmem:[%s1 + $0x450] sm:$0xff]
      %v416 = vld [vmem:[%s1 + $0x458] sm:$0xff]
      %v417 = vld [vmem:[%s1 + $0x460] sm:$0xff]
      %v418 = vld [vmem:[%s1 + $0x468] sm:$0xff]
      %v419 = vld [vmem:[%s1 + $0x470] sm:$0xff]
      %v420 = vld [vmem:[%s1 + $0x478] sm:$0xff]
      %v421 = vld [vmem:[%s2] sm:$0x1]
      %v423 = vlaneseq
      %v424 = vshrl.u32 %v423, 7
      %v425 = vsub.s32 0, %v424
      %v426 = vrot.slane %v421, %v425
      %v428 = vcombine.low %v261, %v265
      %v429 = vcombine.high %v261, %v265
      %v430 = vcombine.low %v262, %v266
      %v431 = vcombine.high %v262, %v266
      %v432 = vcombine.low %v263, %v267
      %v433 = vcombine.high %v263, %v267
      %v434 = vcombine.low %v264, %v268
      %v435 = vcombine.high %v264, %v268
      %v436 = vcombine.low %v221, %v222
      %v437 = vcombine.low %v269, %v273
      %v438 = vcombine.high %v269, %v273
      %v439 = vcombine.low %v270, %v274
      %v440 = vcombine.high %v270, %v274
      %v441 = vcombine.low %v271, %v275
      %v442 = vcombine.high %v271, %v275
      %v443 = vcombine.low %v272, %v276
      %v444 = vcombine.high %v272, %v276
      %v445 = vcombine.low %v223, %v224
      %464 = vmatprep.subr.mxu0 0.0
      %465 = vmatpush1.msra.mxu0 %v277
      %466 = vmatprep.subr.mxu0 0.0
      %467 = vmatpush1.msra.mxu0 %v278
      %468 = vmatprep.subr.mxu0 0.0
      %469 = vmatpush1.msra.mxu0 %v279
      %470 = vmatprep.subr.mxu0 0.0
      %471 = vmatpush1.msra.mxu0 %v280
      %472 = vmatprep.subr.mxu0 0.0
      %473 = vmatpush1.msra.mxu0 %v281
      %474 = vmatprep.subr.mxu0 0.0
      %475 = vmatpush1.msra.mxu0 %v282
      %476 = vmatprep.subr.mxu0 0.0
      %477 = vmatpush1.msra.mxu0 %v283
      %478 = vmatprep.subr.mxu0 0.0
      %479 = vmatpush1.msra.mxu0 %v284
      %480 = vmatprep.subr.mxu0 0.0
      %481 = vmatpush1.msra.mxu0 %v285
      %482 = vmatprep.subr.mxu0 0.0
      %483 = vmatpush1.msra.mxu0 %v286
      %484 = vmatprep.subr.mxu0 0.0
      %485 = vmatpush1.msra.mxu0 %v287
      %486 = vmatprep.subr.mxu0 0.0
      %487 = vmatpush1.msra.mxu0 %v288
      %488 = vmatprep.subr.mxu0 0.0
      %489 = vmatpush1.msra.mxu0 %v289
      %490 = vmatprep.subr.mxu0 0.0
      %491 = vmatpush1.msra.mxu0 %v290
      %492 = vmatprep.subr.mxu0 0.0
      %493 = vmatpush1.msra.mxu0 %v291
      %494 = vmatprep.subr.mxu0 0.0
      %495 = vmatpush1.msra.mxu0 %v292
      %496 = vmatprep.subr.mxu0 0.0
      %497 = vmatpush1.msra.mxu0 %v293
      %498 = vmatprep.subr.mxu0 0.0
      %499 = vmatpush1.msra.mxu0 %v294
      %500 = vmatprep.subr.mxu0 0.0
      %501 = vmatpush1.msra.mxu0 %v295
      %502 = vmatprep.subr.mxu0 0.0
      %503 = vmatpush1.msra.mxu0 %v296
      %504 = vmatprep.subr.mxu0 0.0
      %505 = vmatpush1.msra.mxu0 %v297
      %506 = vmatprep.subr.mxu0 0.0
      %507 = vmatpush1.msra.mxu0 %v298
      %508 = vmatprep.subr.mxu0 0.0
      %509 = vmatpush1.msra.mxu0 %v299
      %510 = vmatprep.subr.mxu0 0.0
      %511 = vmatpush1.msra.mxu0 %v300
      %512 = vmatprep.subr.mxu0 0.0
      %513 = vmatpush1.msra.mxu0 %v301
      %514 = vmatprep.subr.mxu0 0.0
      %515 = vmatpush1.msra.mxu0 %v302
      %516 = vmatprep.subr.mxu0 0.0
      %517 = vmatpush1.msra.mxu0 %v303
      %518 = vmatprep.subr.mxu0 0.0
      %519 = vmatpush1.msra.mxu0 %v304
      %520 = vmatprep.subr.mxu0 0.0
      %521 = vmatpush1.msra.mxu0 %v305
      %522 = vmatprep.subr.mxu0 0.0
      %523 = vmatpush1.msra.mxu0 %v306
      %524 = vmatprep.subr.mxu0 0.0
      %525 = vmatpush1.msra.mxu0 %v307
      %526 = vmatprep.subr.mxu0 0.0
      %527 = vmatpush1.msra.mxu0 %v308
      %528 = vmatprep.mubr.f32.mxu0 %v429
      %529 = vmatmul.mubr.f32.gmra.mrb[0].mxu0 %v428
      %v530 = vpop.f32.mrb[0].mxu0
      %v531 = vadd.f32 %v426, %v530
      %v532 = vpop.f32.mrb[0].mxu0
      %533 = vmatprep.mubr.f32.mxu0 %v438
      %534 = vmatmul.mubr.f32.gmra.mrb[0].mxu0 %v437
      %v535 = vpop.f32.mrb[0].mxu0
      %v536 = vadd.f32 %v426, %v535
      %v537 = vpop.f32.mrb[0].mxu0
      %538 = vdwg.mxu0
      %539 = vmatprep.subr.mxu0 0.0
      %540 = vmatpush1.msra.mxu0 %v309
      %541 = vmatprep.subr.mxu0 0.0
      %542 = vmatpush1.msra.mxu0 %v310
      %543 = vmatprep.subr.mxu0 0.0
      %544 = vmatpush1.msra.mxu0 %v311
      %545 = vmatprep.subr.mxu0 0.0
      %546 = vmatpush1.msra.mxu0 %v312
      %547 = vmatprep.subr.mxu0 0.0
      %548 = vmatpush1.msra.mxu0 %v313
      %549 = vmatprep.subr.mxu0 0.0
      %550 = vmatpush1.msra.mxu0 %v314
      %551 = vmatprep.subr.mxu0 0.0
      %552 = vmatpush1.msra.mxu0 %v315
      %553 = vmatprep.subr.mxu0 0.0
      %554 = vmatpush1.msra.mxu0 %v316
      %555 = vmatprep.subr.mxu0 0.0
      %556 = vmatpush1.msra.mxu0 %v317
      %557 = vmatprep.subr.mxu0 0.0
      %558 = vmatpush1.msra.mxu0 %v318
      %559 = vmatprep.subr.mxu0 0.0
      %560 = vmatpush1.msra.mxu0 %v319
      %561 = vmatprep.subr.mxu0 0.0
      %562 = vmatpush1.msra.mxu0 %v320
      %563 = vmatprep.subr.mxu0 0.0
      %564 = vmatpush1.msra.mxu0 %v321
      %565 = vmatprep.subr.mxu0 0.0
      %566 = vmatpush1.msra.mxu0 %v322
      %567 = vmatprep.subr.mxu0 0.0
      %568 = vmatpush1.msra.mxu0 %v323
      %569 = vmatprep.subr.mxu0 0.0
      %570 = vmatpush1.msra.mxu0 %v324
      %571 = vmatprep.subr.mxu0 0.0
      %572 = vmatpush1.msra.mxu0 %v325
      %573 = vmatprep.subr.mxu0 0.0
      %574 = vmatpush1.msra.mxu0 %v326
      %575 = vmatprep.subr.mxu0 0.0
      %576 = vmatpush1.msra.mxu0 %v327
      %577 = vmatprep.subr.mxu0 0.0
      %578 = vmatpush1.msra.mxu0 %v328
      %579 = vmatprep.subr.mxu0 0.0
      %580 = vmatpush1.msra.mxu0 %v329
      %581 = vmatprep.subr.mxu0 0.0
      %582 = vmatpush1.msra.mxu0 %v330
      %583 = vmatprep.subr.mxu0 0.0
      %584 = vmatpush1.msra.mxu0 %v331
      %585 = vmatprep.subr.mxu0 0.0
      %586 = vmatpush1.msra.mxu0 %v332
      %587 = vmatprep.subr.mxu0 0.0
      %588 = vmatpush1.msra.mxu0 %v333
      %589 = vmatprep.subr.mxu0 0.0
      %590 = vmatpush1.msra.mxu0 %v334
      %591 = vmatprep.subr.mxu0 0.0
      %592 = vmatpush1.msra.mxu0 %v335
      %593 = vmatprep.subr.mxu0 0.0
      %594 = vmatpush1.msra.mxu0 %v336
      %595 = vmatprep.subr.mxu0 0.0
      %596 = vmatpush1.msra.mxu0 %v337
      %597 = vmatprep.subr.mxu0 0.0
      %598 = vmatpush1.msra.mxu0 %v338
      %599 = vmatprep.subr.mxu0 0.0
      %600 = vmatpush1.msra.mxu0 %v339
      %601 = vmatprep.subr.mxu0 0.0
      %602 = vmatpush1.msra.mxu0 %v340
      %603 = vmatprep.mubr.f32.mxu0 %v431
      %604 = vmatmul.mubr.f32.gmra.mrb[0].mxu0 %v430
      %v605 = vpop.f32.mrb[0].mxu0
      %v606 = vadd.f32 %v531, %v605
      %v607 = vpop.f32.mrb[0].mxu0
      %608 = vmatprep.mubr.f32.mxu0 %v440
      %609 = vmatmul.mubr.f32.gmra.mrb[0].mxu0 %v439
      %v610 = vpop.f32.mrb[0].mxu0
      %v611 = vadd.f32 %v536, %v610
      %v612 = vpop.f32.mrb[0].mxu0
      %613 = vdwg.mxu0
      %614 = vmatprep.subr.mxu0 0.0
      %615 = vmatpush1.msra.mxu0 %v341
      %616 = vmatprep.subr.mxu0 0.0
      %617 = vmatpush1.msra.mxu0 %v342
      %618 = vmatprep.subr.mxu0 0.0
      %619 = vmatpush1.msra.mxu0 %v343
      %620 = vmatprep.subr.mxu0 0.0
      %621 = vmatpush1.msra.mxu0 %v344
      %622 = vmatprep.subr.mxu0 0.0
      %623 = vmatpush1.msra.mxu0 %v345
      %624 = vmatprep.subr.mxu0 0.0
      %625 = vmatpush1.msra.mxu0 %v346
      %626 = vmatprep.subr.mxu0 0.0
      %627 = vmatpush1.msra.mxu0 %v347
      %628 = vmatprep.subr.mxu0 0.0
      %629 = vmatpush1.msra.mxu0 %v348
      %630 = vmatprep.subr.mxu0 0.0
      %631 = vmatpush1.msra.mxu0 %v349
      %632 = vmatprep.subr.mxu0 0.0
      %633 = vmatpush1.msra.mxu0 %v350
      %634 = vmatprep.subr.mxu0 0.0
      %635 = vmatpush1.msra.mxu0 %v351
      %636 = vmatprep.subr.mxu0 0.0
      %637 = vmatpush1.msra.mxu0 %v352
      %638 = vmatprep.subr.mxu0 0.0
      %639 = vmatpush1.msra.mxu0 %v353
      %640 = vmatprep.subr.mxu0 0.0
      %641 = vmatpush1.msra.mxu0 %v354
      %642 = vmatprep.subr.mxu0 0.0
      %643 = vmatpush1.msra.mxu0 %v355
      %644 = vmatprep.subr.mxu0 0.0
      %645 = vmatpush1.msra.mxu0 %v356
      %646 = vmatprep.subr.mxu0 0.0
      %647 = vmatpush1.msra.mxu0 %v357
      %648 = vmatprep.subr.mxu0 0.0
      %649 = vmatpush1.msra.mxu0 %v358
      %650 = vmatprep.subr.mxu0 0.0
      %651 = vmatpush1.msra.mxu0 %v359
      %652 = vmatprep.subr.mxu0 0.0
      %653 = vmatpush1.msra.mxu0 %v360
      %654 = vmatprep.subr.mxu0 0.0
      %655 = vmatpush1.msra.mxu0 %v361
      %656 = vmatprep.subr.mxu0 0.0
      %657 = vmatpush1.msra.mxu0 %v362
      %658 = vmatprep.subr.mxu0 0.0
      %659 = vmatpush1.msra.mxu0 %v363
      %660 = vmatprep.subr.mxu0 0.0
      %661 = vmatpush1.msra.mxu0 %v364
      %662 = vmatprep.subr.mxu0 0.0
      %663 = vmatpush1.msra.mxu0 %v365
      %664 = vmatprep.subr.mxu0 0.0
      %665 = vmatpush1.msra.mxu0 %v366
      %666 = vmatprep.subr.mxu0 0.0
      %667 = vmatpush1.msra.mxu0 %v367
      %668 = vmatprep.subr.mxu0 0.0
      %669 = vmatpush1.msra.mxu0 %v368
      %670 = vmatprep.subr.mxu0 0.0
      %671 = vmatpush1.msra.mxu0 %v369
      %672 = vmatprep.subr.mxu0 0.0
      %673 = vmatpush1.msra.mxu0 %v370
      %674 = vmatprep.subr.mxu0 0.0
      %675 = vmatpush1.msra.mxu0 %v371
      %676 = vmatprep.subr.mxu0 0.0
      %677 = vmatpush1.msra.mxu0 %v372
      %678 = vmatprep.mubr.f32.mxu0 %v433
      %679 = vmatmul.mubr.f32.gmra.mrb[0].mxu0 %v432
      %v680 = vpop.f32.mrb[0].mxu0
      %v681 = vadd.f32 %v606, %v680
      %v682 = vpop.f32.mrb[0].mxu0
      %683 = vmatprep.mubr.f32.mxu0 %v442
      %684 = vmatmul.mubr.f32.gmra.mrb[0].mxu0 %v441
      %v685 = vpop.f32.mrb[0].mxu0
      %v686 = vadd.f32 %v611, %v685
      %v687 = vpop.f32.mrb[0].mxu0
      %688 = vdwg.mxu0
      %689 = vmatprep.subr.mxu0 0.0
      %690 = vmatpush1.msra.mxu0 %v373
      %691 = vmatprep.subr.mxu0 0.0
      %692 = vmatpush1.msra.mxu0 %v374
      %693 = vmatprep.subr.mxu0 0.0
      %694 = vmatpush1.msra.mxu0 %v375
      %695 = vmatprep.subr.mxu0 0.0
      %696 = vmatpush1.msra.mxu0 %v376
      %697 = vmatprep.subr.mxu0 0.0
      %698 = vmatpush1.msra.mxu0 %v377
      %699 = vmatprep.subr.mxu0 0.0
      %700 = vmatpush1.msra.mxu0 %v378
      %701 = vmatprep.subr.mxu0 0.0
      %702 = vmatpush1.msra.mxu0 %v379
      %703 = vmatprep.subr.mxu0 0.0
      %704 = vmatpush1.msra.mxu0 %v380
      %705 = vmatprep.subr.mxu0 0.0
      %706 = vmatpush1.msra.mxu0 %v381
      %707 = vmatprep.subr.mxu0 0.0
      %708 = vmatpush1.msra.mxu0 %v382
      %709 = vmatprep.subr.mxu0 0.0
      %710 = vmatpush1.msra.mxu0 %v383
      %711 = vmatprep.subr.mxu0 0.0
      %712 = vmatpush1.msra.mxu0 %v384
      %713 = vmatprep.subr.mxu0 0.0
      %714 = vmatpush1.msra.mxu0 %v385
      %715 = vmatprep.subr.mxu0 0.0
      %716 = vmatpush1.msra.mxu0 %v386
      %717 = vmatprep.subr.mxu0 0.0
      %718 = vmatpush1.msra.mxu0 %v387
      %719 = vmatprep.subr.mxu0 0.0
      %720 = vmatpush1.msra.mxu0 %v388
      %721 = vmatprep.subr.mxu0 0.0
      %722 = vmatpush1.msra.mxu0 %v389
      %723 = vmatprep.subr.mxu0 0.0
      %724 = vmatpush1.msra.mxu0 %v390
      %725 = vmatprep.subr.mxu0 0.0
      %726 = vmatpush1.msra.mxu0 %v391
      %727 = vmatprep.subr.mxu0 0.0
      %728 = vmatpush1.msra.mxu0 %v392
      %729 = vmatprep.subr.mxu0 0.0
      %730 = vmatpush1.msra.mxu0 %v393
      %731 = vmatprep.subr.mxu0 0.0
      %732 = vmatpush1.msra.mxu0 %v394
      %733 = vmatprep.subr.mxu0 0.0
      %734 = vmatpush1.msra.mxu0 %v395
      %735 = vmatprep.subr.mxu0 0.0
      %736 = vmatpush1.msra.mxu0 %v396
      %737 = vmatprep.subr.mxu0 0.0
      %738 = vmatpush1.msra.mxu0 %v397
      %739 = vmatprep.subr.mxu0 0.0
      %740 = vmatpush1.msra.mxu0 %v398
      %741 = vmatprep.subr.mxu0 0.0
      %742 = vmatpush1.msra.mxu0 %v399
      %743 = vmatprep.subr.mxu0 0.0
      %744 = vmatpush1.msra.mxu0 %v400
      %745 = vmatprep.subr.mxu0 0.0
      %746 = vmatpush1.msra.mxu0 %v401
      %747 = vmatprep.subr.mxu0 0.0
      %748 = vmatpush1.msra.mxu0 %v402
      %749 = vmatprep.subr.mxu0 0.0
      %750 = vmatpush1.msra.mxu0 %v403
      %751 = vmatprep.subr.mxu0 0.0
      %752 = vmatpush1.msra.mxu0 %v404
      %753 = vmatprep.mubr.f32.mxu0 %v435
      %754 = vmatmul.mubr.f32.gmra.mrb[0].mxu0 %v434
      %v755 = vpop.f32.mrb[0].mxu0
      %v756 = vadd.f32 %v681, %v755
      %v757 = vpop.f32.mrb[0].mxu0
      %758 = vmatprep.mubr.f32.mxu0 %v444
      %759 = vmatmul.mubr.f32.gmra.mrb[0].mxu0 %v443
      %v760 = vpop.f32.mrb[0].mxu0
      %v761 = vadd.f32 %v686, %v760
      %v762 = vpop.f32.mrb[0].mxu0
      %763 = vdwg.mxu0
      %764 = vmatprep.subr.mxu0 0.0
      %765 = vmatpush1.msra.mxu0 %v405
      %766 = vmatprep.subr.mxu0 0.0
      %767 = vmatpush1.msra.mxu0 %v406
      %768 = vmatprep.subr.mxu0 0.0
      %769 = vmatpush1.msra.mxu0 %v407
      %770 = vmatprep.subr.mxu0 0.0
      %771 = vmatpush1.msra.mxu0 %v408
      %772 = vmatprep.subr.mxu0 0.0
      %773 = vmatpush1.msra.mxu0 %v409
      %774 = vmatprep.subr.mxu0 0.0
      %775 = vmatpush1.msra.mxu0 %v410
      %776 = vmatprep.subr.mxu0 0.0
      %777 = vmatpush1.msra.mxu0 %v411
      %778 = vmatprep.subr.mxu0 0.0
      %779 = vmatpush1.msra.mxu0 %v412
      %780 = vmatprep.subr.mxu0 0.0
      %781 = vmatpush1.msra.mxu0 %v413
      %782 = vmatprep.subr.mxu0 0.0
      %783 = vmatpush1.msra.mxu0 %v414
      %784 = vmatprep.subr.mxu0 0.0
      %785 = vmatpush1.msra.mxu0 %v415
      %786 = vmatprep.subr.mxu0 0.0
      %787 = vmatpush1.msra.mxu0 %v416
      %788 = vmatprep.subr.mxu0 0.0
      %789 = vmatpush1.msra.mxu0 %v417
      %790 = vmatprep.subr.mxu0 0.0
      %791 = vmatpush1.msra.mxu0 %v418
      %792 = vmatprep.subr.mxu0 0.0
      %793 = vmatpush1.msra.mxu0 %v419
      %794 = vmatprep.subr.mxu0 0.0
      %795 = vmatpush1.msra.mxu0 %v420
      %796 = vmatprep.subr.mxu0 0.0
      %797 = vmatpush1.msra.mxu0 0.0
      %798 = vmatprep.subr.mxu0 0.0
      %799 = vmatpush1.msra.mxu0 0.0
      %800 = vmatprep.subr.mxu0 0.0
      %801 = vmatpush1.msra.mxu0 0.0
      %802 = vmatprep.subr.mxu0 0.0
      %803 = vmatpush1.msra.mxu0 0.0
      %804 = vmatprep.subr.mxu0 0.0
      %805 = vmatpush1.msra.mxu0 0.0
      %806 = vmatprep.subr.mxu0 0.0
      %807 = vmatpush1.msra.mxu0 0.0
      %808 = vmatprep.subr.mxu0 0.0
      %809 = vmatpush1.msra.mxu0 0.0
      %810 = vmatprep.subr.mxu0 0.0
      %811 = vmatpush1.msra.mxu0 0.0
      %812 = vmatprep.subr.mxu0 0.0
      %813 = vmatpush1.msra.mxu0 0.0
      %814 = vmatprep.subr.mxu0 0.0
      %815 = vmatpush1.msra.mxu0 0.0
      %816 = vmatprep.subr.mxu0 0.0
      %817 = vmatpush1.msra.mxu0 0.0
      %818 = vmatprep.subr.mxu0 0.0
      %819 = vmatpush1.msra.mxu0 0.0
      %820 = vmatprep.subr.mxu0 0.0
      %821 = vmatpush1.msra.mxu0 0.0
      %822 = vmatprep.subr.mxu0 0.0
      %823 = vmatpush1.msra.mxu0 0.0
      %824 = vmatprep.subr.mxu0 0.0
      %825 = vmatpush1.msra.mxu0 0.0
      %826 = vmatprep.subr.mxu0 0.0
      %827 = vmatpush1.msra.mxu0 0.0
      %828 = vmatprep.mubr.f32.mxu0 0.0
      %829 = vmatmul.mubr.f32.gmra.mrb[0].mxu0 %v436
      %v830 = vpop.f32.mrb[0].mxu0
      %v831 = vadd.f32 %v756, %v830
      %v832 = vpop.f32.mrb[0].mxu0
      %833 = vmatprep.mubr.f32.mxu0 0.0
      %834 = vmatmul.mubr.f32.gmra.mrb[0].mxu0 %v445
      %v835 = vpop.f32.mrb[0].mxu0
      %v836 = vadd.f32 %v761, %v835
      %v837 = vpop.f32.mrb[0].mxu0
      %838 = vdwg.mxu0
      %v839 = vmax.f32 %v831, 0.0
      %v840 = vmax.f32 %v836, 0.0
      %v843 = vcombine.high %v839, %v839
      %v844 = vcombine.high %v840, %v840
      %847 = vst [vmem:[%s170] sm:$0xf] %v839
      %848 = vst [vmem:[%s170 + $0x4] sm:$0xf] %v843
      %849 = vst [vmem:[%s170 + $0x8] sm:$0xf] %v840
      %850 = vst [vmem:[%s170 + $0xc] sm:$0xf] %v844
      %p851 = scmp.lt.s32.totalorder %s14, 1
      %s852 = scalar_select %p851, %s14, 1
      %s853 = smul.addr %s852, 4
      %s854 = smul.addr %s853, 4
      %s855 = scalar_lea.vmem %s3, %s854
      // Predicated region
      $region33: #{sdunet_forward.7} parent=31 // pred_check
        %p856 = pneg %p100
      $region34: #{sdunet_forward.7} parent=31 // pred_check_branch
        %858 = sbr.rel (%p856) target = $region36
      $region35: #{sdunet_forward.7} parent=31 // pred_region
        _
      $region36: #{sdunet_forward.7} parent=31 // pred_fallthru
        _
    $region32: #{sdunet_forward.7} parent=5 // pred_fallthru
      _
    %p859 = scmp.le.s32.totalorder 2, %s9
    // Predicated region
    $region37: #{sdunet_forward.7} parent=5 // pred_check
      %p860 = pneg %p859
    $region38: #{sdunet_forward.7} parent=5 // pred_check_branch
      %862 = sbr.rel (%p860) target = $region40
    $region39: #{sdunet_forward.7} parent=5 // pred_region
      %s863 = ssub.s32 %s9, 2
      // Predicated region
      $region41: #{sdunet_forward.7} parent=39 // pred_check
        %p864 = pneg %p106
      $region42: #{sdunet_forward.7} parent=39 // pred_check_branch
        %866 = sbr.rel (%p864) target = $region44
      $region43: #{sdunet_forward.7} parent=39 // pred_region
        %p867 = scmp.lt.s32.totalorder %s15, 1
        %s868 = scalar_select %p867, %s15, 1
        %s869 = smul.addr %s868, 4
        %s870 = smul.addr %s869, 4
        %s871 = scalar_lea.vmem %s3, %s870
      $region44: #{sdunet_forward.7} parent=39 // pred_fallthru
        _
    $region40: #{sdunet_forward.7} parent=5 // pred_fallthru
      _
  $region6: #{sdunet_forward.7} parent=0 // loop_footer
    %s13 = sadd.s32 1, %s9
  $region7: #{sdunet_forward.7} parent=0 // loop_footer_branch
    %8 = sbr.rel target = $region3
  $region8: #{sdunet_forward.7} parent=0 // loop_exit
    _

// kernel: sdunet_forward.8
$region0: #{sdunet_forward.8}
  #allocation0 [shape = 'u32[]', space=smem, size = 0x4, offset = 0x4, fixed_abs, tag = 'smem constant byte address 0x4 - core index']
  #allocation1 [shape = 'u32[144,128]{1,0:T(1,128)}', space=vmem, size = 0x12000, scoped, tag = 'internal scratch']
  #allocation2 [shape = 'f32[12,12,128]{2,1,0:T(8,128)}', space=vmem, size = 0x18000, scoped, tag = 'scratch operand']
  #allocation3 [shape = 'f32[12,12,128]{2,1,0:T(8,128)}', space=vmem, size = 0x18000, scoped, tag = 'scratch operand']
  %s0 = inlined_call_operand.vmem [shape: f32[2,8,8,128], index: 0, kind: input, shape index: {}]
  %s1 = inlined_call_operand.vmem [shape: f32[2,8,8,128], index: 1, kind: input, shape index: {}]
  %s2 = inlined_call_operand.vmem [shape: f32[1152,128], index: 2, kind: input, shape index: {}]
  %s3 = inlined_call_operand.vmem [shape: f32[1152,128], index: 3, kind: input, shape index: {}]
  %s4 = inlined_call_operand.vmem [shape: f32[1,128], index: 4, kind: input, shape index: {}]
  %s5 = inlined_call_operand.vmem [shape: f32[2,8,8,128], index: 5, kind: output, shape index: {}]
  %s6 = sld [smem:[#allocation0]]
  $region53: #{sdunet_forward.8} parent=0
    _
  %s8 = ssub.s32 1, %s6
  %s9 = scalar_select 0, %s8, %s6
  loop: start=0, step=1, limit=4
  $region2: #{sdunet_forward.8} parent=0 // loop_pre_header
    _
  $region3: #{sdunet_forward.8} parent=0 // loop_header
    %s11 = sphi 0, %s15
    %p12 = scmp.ge.s32.totalorder %s11, 4
    %s21 = sphi 0, %s23
    %s24 = sphi 0, %s21
    %s25 = sphi 0, %s24
    %s41 = sphi 0, %s25
    %s47 = sphi 0, %s49
    %s50 = sphi 0, %s47
    %s51 = sphi 0, %s50
    %s67 = sphi 0, %s51
    %s71 = sphi 0, %s71
    %s73 = sphi 0, %s71
    %s74 = sphi 0, %s73
    %s88 = sphi 0, %s74
    %s92 = sphi 0, %s92
    %s94 = sphi 0, %s92
    %s95 = sphi 0, %s94
    %s109 = sphi 0, %s95
    %s113 = sphi 0, %s113
    %s115 = sphi 0, %s113
    %s116 = sphi 0, %s115
    %s130 = sphi 0, %s116
    %s136 = sphi 0, %s138
    %s139 = sphi 0, %s136
    %s140 = sphi 0, %s139
    %s156 = sphi 0, %s140
  $region4: #{sdunet_forward.8} parent=0 // loop_header_branch
    %14 = sbr.rel (%p12) target = $region8
  $region5: #{sdunet_forward.8} parent=0 // loop_body
    %s16 = ssub.s32 %s11, 1
    %s17 = ssub.s32 %s11, 2
    %s18 = sadd.s32 %s11, 1
    %s19 = ssub.s32 %s11, %s18
    %p20 = scmp.eq.s32.totalorder %s19, 0
    %s22 = sadd.s32 %s21, 1
    %s23 = scalar_select %p20, %s21, %s22
    %p26 = pneg %p20
    %p27 = scmp.eq.s32.totalorder %s11, 1
    %p28 = por %p26, %p27
    %p29 = scmp.ne.s32.totalorder %s21, %s24
    %p30 = scmp.eq.s32.totalorder %s11, 0
    %p31 = por %p29, %p30
    %p32 = scmp.ne.s32.totalorder %s21, %s24
    %p33 = scmp.eq.s32.totalorder %s16, 1
    %p34 = por %p32, %p33
    %p35 = scmp.ne.s32.totalorder %s24, %s25
    %p36 = scmp.eq.s32.totalorder %s16, 0
    %p37 = por %p35, %p36
    %p38 = scmp.ne.s32.totalorder %s24, %s25
    %p39 = scmp.eq.s32.totalorder %s17, 1
    %p40 = por %p38, %p39
    %p42 = scmp.ne.s32.totalorder %s25, %s41
    %p43 = scmp.eq.s32.totalorder %s17, 0
    %p44 = por %p42, %p43
    %s45 = ssub.s32 %s11, %s18
    %p46 = scmp.eq.s32.totalorder %s45, 0
    %s48 = sadd.s32 %s47, 1
    %s49 = scalar_select %p46, %s47, %s48
    %p52 = pneg %p46
    %p53 = scmp.eq.s32.totalorder %s11, 1
    %p54 = por %p52, %p53
    %p55 = scmp.ne.s32.totalorder %s47, %s50
    %p56 = scmp.eq.s32.totalorder %s11, 0
    %p57 = por %p55, %p56
    %p58 = scmp.ne.s32.totalorder %s47, %s50
    %p59 = scmp.eq.s32.totalorder %s16, 1
    %p60 = por %p58, %p59
    %p61 = scmp.ne.s32.totalorder %s50, %s51
    %p62 = scmp.eq.s32.totalorder %s16, 0
    %p63 = por %p61, %p62
    %p64 = scmp.ne.s32.totalorder %s50, %s51
    %p65 = scmp.eq.s32.totalorder %s17, 1
    %p66 = por %p64, %p65
    %p68 = scmp.ne.s32.totalorder %s51, %s67
    %p69 = scmp.eq.s32.totalorder %s17, 0
    %p70 = por %p68, %p69
    %s72 = sadd.s32 %s71, 1
    %p75 = scmp.eq.s32.totalorder %s11, 1
    %p76 = scmp.ne.s32.totalorder %s71, %s73
    %p77 = scmp.eq.s32.totalorder %s11, 0
    %p78 = por %p76, %p77
    %p79 = scmp.ne.s32.totalorder %s71, %s73
    %p80 = scmp.eq.s32.totalorder %s16, 1
    %p81 = por %p79, %p80
    %p82 = scmp.ne.s32.totalorder %s73, %s74
    %p83 = scmp.eq.s32.totalorder %s16, 0
    %p84 = por %p82, %p83
    %p85 = scmp.ne.s32.totalorder %s73, %s74
    %p86 = scmp.eq.s32.totalorder %s17, 1
    %p87 = por %p85, %p86
    %p89 = scmp.ne.s32.totalorder %s74, %s88
    %p90 = scmp.eq.s32.totalorder %s17, 0
    %p91 = por %p89, %p90
    %s93 = sadd.s32 %s92, 1
    %p96 = scmp.eq.s32.totalorder %s11, 1
    %p97 = scmp.ne.s32.totalorder %s92, %s94
    %p98 = scmp.eq.s32.totalorder %s11, 0
    %p99 = por %p97, %p98
    %p100 = scmp.ne.s32.totalorder %s92, %s94
    %p101 = scmp.eq.s32.totalorder %s16, 1
    %p102 = por %p100, %p101
    %p103 = scmp.ne.s32.totalorder %s94, %s95
    %p104 = scmp.eq.s32.totalorder %s16, 0
    %p105 = por %p103, %p104
    %p106 = scmp.ne.s32.totalorder %s94, %s95
    %p107 = scmp.eq.s32.totalorder %s17, 1
    %p108 = por %p106, %p107
    %p110 = scmp.ne.s32.totalorder %s95, %s109
    %p111 = scmp.eq.s32.totalorder %s17, 0
    %p112 = por %p110, %p111
    %s114 = sadd.s32 %s113, 1
    %p117 = scmp.eq.s32.totalorder %s11, 1
    %p118 = scmp.ne.s32.totalorder %s113, %s115
    %p119 = scmp.eq.s32.totalorder %s11, 0
    %p120 = por %p118, %p119
    %p121 = scmp.ne.s32.totalorder %s113, %s115
    %p122 = scmp.eq.s32.totalorder %s16, 1
    %p123 = por %p121, %p122
    %p124 = scmp.ne.s32.totalorder %s115, %s116
    %p125 = scmp.eq.s32.totalorder %s16, 0
    %p126 = por %p124, %p125
    %p127 = scmp.ne.s32.totalorder %s115, %s116
    %p128 = scmp.eq.s32.totalorder %s17, 1
    %p129 = por %p127, %p128
    %p131 = scmp.ne.s32.totalorder %s116, %s130
    %p132 = scmp.eq.s32.totalorder %s17, 0
    %p133 = por %p131, %p132
    %s134 = ssub.s32 %s11, %s18
    %p135 = scmp.eq.s32.totalorder %s134, 0
    %s137 = sadd.s32 %s136, 1
    %s138 = scalar_select %p135, %s136, %s137
    %p141 = pneg %p135
    %p142 = scmp.eq.s32.totalorder %s11, 1
    %p143 = por %p141, %p142
    %p144 = scmp.ne.s32.totalorder %s136, %s139
    %p145 = scmp.eq.s32.totalorder %s11, 0
    %p146 = por %p144, %p145
    %p147 = scmp.ne.s32.totalorder %s136, %s139
    %p148 = scmp.eq.s32.totalorder %s16, 1
    %p149 = por %p147, %p148
    %p150 = scmp.ne.s32.totalorder %s139, %s140
    %p151 = scmp.eq.s32.totalorder %s16, 0
    %p152 = por %p150, %p151
    %p153 = scmp.ne.s32.totalorder %s139, %s140
    %p154 = scmp.eq.s32.totalorder %s17, 1
    %p155 = por %p153, %p154
    %p157 = scmp.ne.s32.totalorder %s140, %s156
    %p158 = scmp.eq.s32.totalorder %s17, 0
    %p159 = por %p157, %p158
    %p160 = scmp.le.s32.totalorder 1, %s11
    %p161 = scmp.lt.s32.totalorder %s11, 3
    %p162 = pnand %p160, %p161
    %p163 = pneg %p162
    // Predicated region
    $region9: #{sdunet_forward.8} parent=5 // pred_check
      _
    $region10: #{sdunet_forward.8} parent=5 // pred_check_branch
      %165 = sbr.rel (%p162) target = $region12
    $region11: #{sdunet_forward.8} parent=5 // pred_region
      %s166 = ssub.s32 %s11, 1
      // Predicated region
      $region13: #{sdunet_forward.8} parent=11 // pred_check
        %p167 = pneg %p84
      $region14: #{sdunet_forward.8} parent=11 // pred_check_branch
        %169 = sbr.rel (%p167) target = $region16
      $region15: #{sdunet_forward.8} parent=11 // pred_region
        _
      $region16: #{sdunet_forward.8} parent=11 // pred_fallthru
        _
      // Predicated region
      $region17: #{sdunet_forward.8} parent=11 // pred_check
        %p170 = pneg %p105
      $region18: #{sdunet_forward.8} parent=11 // pred_check_branch
        %172 = sbr.rel (%p170) target = $region20
      $region19: #{sdunet_forward.8} parent=11 // pred_region
        _
      $region20: #{sdunet_forward.8} parent=11 // pred_fallthru
        _
      // Predicated region
      $region21: #{sdunet_forward.8} parent=11 // pred_check
        %p173 = pneg %p126
      $region22: #{sdunet_forward.8} parent=11 // pred_check_branch
        %175 = sbr.rel (%p173) target = $region24
      $region23: #{sdunet_forward.8} parent=11 // pred_region
        _
      $region24: #{sdunet_forward.8} parent=11 // pred_fallthru
        _
    $region12: #{sdunet_forward.8} parent=5 // pred_fallthru
      _
    %p176 = scmp.lt.s32.totalorder %s11, 2
    // Predicated region
    $region25: #{sdunet_forward.8} parent=5 // pred_check
      %p177 = pneg %p176
    $region26: #{sdunet_forward.8} parent=5 // pred_check_branch
      %179 = sbr.rel (%p177) target = $region28
    $region27: #{sdunet_forward.8} parent=5 // pred_region
      // Predicated region
      $region29: #{sdunet_forward.8} parent=27 // pred_check
        %p180 = pneg %p31
      $region30: #{sdunet_forward.8} parent=27 // pred_check_branch
        %182 = sbr.rel (%p180) target = $region32
      $region31: #{sdunet_forward.8} parent=27 // pred_region
        %p183 = scmp.lt.s32.totalorder %s11, 1
        %s184 = scalar_select %p183, %s11, 1
        %s185 = smul.addr %s184, 8
        %s186 = smul.addr %s185, 8
        %s187 = scalar_lea.vmem %s0, %s186
      $region32: #{sdunet_forward.8} parent=27 // pred_fallthru
        _
      // Predicated region
      $region33: #{sdunet_forward.8} parent=27 // pred_check
        %p188 = pneg %p57
      $region34: #{sdunet_forward.8} parent=27 // pred_check_branch
        %190 = sbr.rel (%p188) target = $region36
      $region35: #{sdunet_forward.8} parent=27 // pred_region
        %p191 = scmp.lt.s32.totalorder %s11, 1
        %s192 = scalar_select %p191, %s11, 1
        %s193 = smul.addr %s192, 8
        %s194 = smul.addr %s193, 8
        %s195 = scalar_lea.vmem %s1, %s194
      $region36: #{sdunet_forward.8} parent=27 // pred_fallthru
        _
    $region28: #{sdunet_forward.8} parent=5 // pred_fallthru
      _
    %p196 = scmp.le.s32.totalorder 1, %s11
    %p197 = scmp.lt.s32.totalorder %s11, 3
    %p198 = pnand %p196, %p197
    %p199 = pneg %p198
    // Predicated region
    $region37: #{sdunet_forward.8} parent=5 // pred_check
      _
    $region38: #{sdunet_forward.8} parent=5 // pred_check_branch
      %201 = sbr.rel (%p198) target = $region40
    $region39: #{sdunet_forward.8} parent=5 // pred_region
      %s202 = ssub.s32 %s11, 1
      %p203 = scmp.lt.s32.totalorder %s16, 1
      %s204 = scalar_select %p203, %s16, 1
      %s205 = smul.addr %s204, 8
      %s206 = smul.addr %s205, 8
      %s207 = scalar_lea.vmem %s0, %s206
      %p208 = pneg %p37
      %p209 = pneg %p34
      %p210 = scmp.lt.s32.totalorder %s16, 1
      %s211 = scalar_select %p210, %s16, 1
      %s212 = smul.addr %s211, 8
      %s213 = smul.addr %s212, 8
      %s214 = scalar_lea.vmem %s1, %s213
      %p215 = pneg %p63
      %p216 = pneg %p60
      %p217 = pneg %p84
      %p218 = pneg %p81
      %p219 = pneg %p105
      %p220 = pneg %p102
      %p221 = pneg %p126
      %p222 = pneg %p123
      %p223 = pneg %p152
      %p224 = pneg %p149
      %p225 = scmp.lt.s32.totalorder %s16, 1
      %s226 = scalar_select %p225, %s16, 1
      %s227 = smul.addr %s226, 8
      %s228 = smul.addr %s227, 8
      %s229 = scalar_lea.vmem %s5, %s228
      %p230 = scmp.lt.s32.totalorder %s16, 1
      %s231 = scalar_select %p230, %s16, 1
      %s232 = smul.addr %s231, 8
      %s233 = smul.addr %s232, 8
      %s234 = scalar_lea.vmem %s0, %s233
      %p235 = scmp.lt.s32.totalorder %s16, 1
      %s236 = scalar_select %p235, %s16, 1
      %s237 = smul.addr %s236, 8
      %s238 = smul.addr %s237, 8
      %s239 = scalar_lea.vmem %s1, %s238
      %p240 = scmp.lt.s32.totalorder %s16, 1
      %s241 = scalar_select %p240, %s16, 1
      %s242 = smul.addr %s241, 8
      %s243 = smul.addr %s242, 8
      %s244 = scalar_lea.vmem %s5, %s243
      %245 = vst [vmem:[#allocation2] sm:$0xff] 0.0
      %246 = vst [vmem:[#allocation2 + $0x8] sm:$0xf] 0.0
      %247 = vst [vmem:[#allocation2 + $0x10] sm:$0xff] 0.0
      %248 = vst [vmem:[#allocation2 + $0x18] sm:$0xf] 0.0
      %249 = vst [vmem:[#allocation2 + $0x20] sm:$0xff] 0.0
      %250 = vst [vmem:[#allocation2 + $0x28] sm:$0xf] 0.0
      %251 = vst [vmem:[#allocation2 + $0x30] sm:$0xff] 0.0
      %252 = vst [vmem:[#allocation2 + $0x38] sm:$0xf] 0.0
      %253 = vst [vmem:[#allocation2 + $0x40] sm:$0xff] 0.0
      %254 = vst [vmem:[#allocation2 + $0x48] sm:$0xf] 0.0
      %255 = vst [vmem:[#allocation2 + $0x50] sm:$0xff] 0.0
      %256 = vst [vmem:[#allocation2 + $0x58] sm:$0xf] 0.0
      %257 = vst [vmem:[#allocation2 + $0x60] sm:$0xff] 0.0
      %258 = vst [vmem:[#allocation2 + $0x68] sm:$0xf] 0.0
      %259 = vst [vmem:[#allocation2 + $0x70] sm:$0xff] 0.0
      %260 = vst [vmem:[#allocation2 + $0x78] sm:$0xf] 0.0
      %261 = vst [vmem:[#allocation2 + $0x80] sm:$0xff] 0.0
      %262 = vst [vmem:[#allocation2 + $0x88] sm:$0xf] 0.0
      %263 = vst [vmem:[#allocation2 + $0x90] sm:$0xff] 0.0
      %264 = vst [vmem:[#allocation2 + $0x98] sm:$0xf] 0.0
      %265 = vst [vmem:[#allocation2 + $0xa0] sm:$0xff] 0.0
      %266 = vst [vmem:[#allocation2 + $0xa8] sm:$0xf] 0.0
      %267 = vst [vmem:[#allocation2 + $0xb0] sm:$0xff] 0.0
      %268 = vst [vmem:[#allocation2 + $0xb8] sm:$0xf] 0.0
      %269 = vst [vmem:[#allocation3] sm:$0xff] 0.0
      %270 = vst [vmem:[#allocation3 + $0x8] sm:$0xf] 0.0
      %271 = vst [vmem:[#allocation3 + $0x10] sm:$0xff] 0.0
      %272 = vst [vmem:[#allocation3 + $0x18] sm:$0xf] 0.0
      %273 = vst [vmem:[#allocation3 + $0x20] sm:$0xff] 0.0
      %274 = vst [vmem:[#allocation3 + $0x28] sm:$0xf] 0.0
      %275 = vst [vmem:[#allocation3 + $0x30] sm:$0xff] 0.0
      %276 = vst [vmem:[#allocation3 + $0x38] sm:$0xf] 0.0
      %277 = vst [vmem:[#allocation3 + $0x40] sm:$0xff] 0.0
      %278 = vst [vmem:[#allocation3 + $0x48] sm:$0xf] 0.0
      %279 = vst [vmem:[#allocation3 + $0x50] sm:$0xff] 0.0
      %280 = vst [vmem:[#allocation3 + $0x58] sm:$0xf] 0.0
      %281 = vst [vmem:[#allocation3 + $0x60] sm:$0xff] 0.0
      %282 = vst [vmem:[#allocation3 + $0x68] sm:$0xf] 0.0
      %283 = vst [vmem:[#allocation3 + $0x70] sm:$0xff] 0.0
      %284 = vst [vmem:[#allocation3 + $0x78] sm:$0xf] 0.0
      %285 = vst [vmem:[#allocation3 + $0x80] sm:$0xff] 0.0
      %286 = vst [vmem:[#allocation3 + $0x88] sm:$0xf] 0.0
      %287 = vst [vmem:[#allocation3 + $0x90] sm:$0xff] 0.0
      %288 = vst [vmem:[#allocation3 + $0x98] sm:$0xf] 0.0
      %289 = vst [vmem:[#allocation3 + $0xa0] sm:$0xff] 0.0
      %290 = vst [vmem:[#allocation3 + $0xa8] sm:$0xf] 0.0
      %291 = vst [vmem:[#allocation3 + $0xb0] sm:$0xff] 0.0
      %292 = vst [vmem:[#allocation3 + $0xb8] sm:$0xf] 0.0
      %v293 = vld [vmem:[%s234] sm:$0xff]
      %v294 = vld [vmem:[%s234 + $0x8] sm:$0xff]
      %v295 = vld [vmem:[%s234 + $0x10] sm:$0xff]
      %v296 = vld [vmem:[%s234 + $0x18] sm:$0xff]
      %v297 = vld [vmem:[%s234 + $0x20] sm:$0xff]
      %v298 = vld [vmem:[%s234 + $0x28] sm:$0xff]
      %v299 = vld [vmem:[%s234 + $0x30] sm:$0xff]
      %v300 = vld [vmem:[%s234 + $0x38] sm:$0xff]
      %s301 = scalar_lea.vmem [#allocation2], 32
      %302 = vst [vmem:[%s301 + $0x2] sm:$0xff] %v293
      %303 = vst [vmem:[%s301 + $0x12] sm:$0xff] %v294
      %304 = vst [vmem:[%s301 + $0x22] sm:$0xff] %v295
      %305 = vst [vmem:[%s301 + $0x32] sm:$0xff] %v296
      %306 = vst [vmem:[%s301 + $0x42] sm:$0xff] %v297
      %307 = vst [vmem:[%s301 + $0x52] sm:$0xff] %v298
      %308 = vst [vmem:[%s301 + $0x62] sm:$0xff] %v299
      %309 = vst [vmem:[%s301 + $0x72] sm:$0xff] %v300
      %v310 = vld [vmem:[%s239] sm:$0xff]
      %v311 = vld [vmem:[%s239 + $0x8] sm:$0xff]
      %v312 = vld [vmem:[%s239 + $0x10] sm:$0xff]
      %v313 = vld [vmem:[%s239 + $0x18] sm:$0xff]
      %v314 = vld [vmem:[%s239 + $0x20] sm:$0xff]
      %v315 = vld [vmem:[%s239 + $0x28] sm:$0xff]
      %v316 = vld [vmem:[%s239 + $0x30] sm:$0xff]
      %v317 = vld [vmem:[%s239 + $0x38] sm:$0xff]
      %s318 = scalar_lea.vmem [#allocation3], 32
      %319 = vst [vmem:[%s318 + $0x2] sm:$0xff] %v310
      %320 = vst [vmem:[%s318 + $0x12] sm:$0xff] %v311
      %321 = vst [vmem:[%s318 + $0x22] sm:$0xff] %v312
      %322 = vst [vmem:[%s318 + $0x32] sm:$0xff] %v313
      %323 = vst [vmem:[%s318 + $0x42] sm:$0xff] %v314
      %324 = vst [vmem:[%s318 + $0x52] sm:$0xff] %v315
      %325 = vst [vmem:[%s318 + $0x62] sm:$0xff] %v316
      %326 = vst [vmem:[%s318 + $0x72] sm:$0xff] %v317
      %v327 = vld [vmem:[#allocation2] sm:$0xff]
      %v328 = vld [vmem:[#allocation2 + $0x10] sm:$0xff]
      %v329 = vld [vmem:[#allocation2 + $0x20] sm:$0xff]
      %v330 = vld [vmem:[#allocation2 + $0x30] sm:$0xff]
      %v331 = vld [vmem:[#allocation2 + $0x40] sm:$0xff]
      %v332 = vld [vmem:[#allocation2 + $0x50] sm:$0xff]
      %v333 = vld [vmem:[#allocation2 + $0x60] sm:$0xff]
      %v334 = vld [vmem:[#allocation2 + $0x70] sm:$0xff]
      %v335 = vld [vmem:[#allocation2 + $0x2] sm:$0xff]
      %v336 = vld [vmem:[#allocation2 + $0x12] sm:$0xff]
      %v337 = vld [vmem:[#allocation2 + $0x22] sm:$0xff]
      %v338 = vld [vmem:[#allocation2 + $0x32] sm:$0xff]
      %v339 = vld [vmem:[#allocation2 + $0x42] sm:$0xff]
      %v340 = vld [vmem:[#allocation2 + $0x52] sm:$0xff]
      %v341 = vld [vmem:[#allocation2 + $0x62] sm:$0xff]
      %v342 = vld [vmem:[#allocation2 + $0x72] sm:$0xff]
      %v343 = vld [vmem:[#allocation2 + $0x4] sm:$0xff]
      %v344 = vld [vmem:[#allocation2 + $0x14] sm:$0xff]
      %v345 = vld [vmem:[#allocation2 + $0x24] sm:$0xff]
      %v346 = vld [vmem:[#allocation2 + $0x34] sm:$0xff]
      %v347 = vld [vmem:[#allocation2 + $0x44] sm:$0xff]
      %v348 = vld [vmem:[#allocation2 + $0x54] sm:$0xff]
      %v349 = vld [vmem:[#allocation2 + $0x64] sm:$0xff]
      %v350 = vld [vmem:[#allocation2 + $0x74] sm:$0xff]
      %v351 = vld [vmem:[%s301] sm:$0xff]
      %v352 = vld [vmem:[%s301 + $0x10] sm:$0xff]
      %v353 = vld [vmem:[%s301 + $0x20] sm:$0xff]
      %v354 = vld [vmem:[%s301 + $0x30] sm:$0xff]
      %v355 = vld [vmem:[%s301 + $0x40] sm:$0xff]
      %v356 = vld [vmem:[%s301 + $0x50] sm:$0xff]
      %v357 = vld [vmem:[%s301 + $0x60] sm:$0xff]
      %v358 = vld [vmem:[%s301 + $0x70] sm:$0xff]
      %v359 = vld [vmem:[%s301 + $0x2] sm:$0xff]
      %v360 = vld [vmem:[%s301 + $0x12] sm:$0xff]
      %v361 = vld [vmem:[%s301 + $0x22] sm:$0xff]
      %v362 = vld [vmem:[%s301 + $0x32] sm:$0xff]
      %v363 = vld [vmem:[%s301 + $0x42] sm:$0xff]
      %v364 = vld [vmem:[%s301 + $0x52] sm:$0xff]
      %v365 = vld [vmem:[%s301 + $0x62] sm:$0xff]
      %v366 = vld [vmem:[%s301 + $0x72] sm:$0xff]
      %v367 = vld [vmem:[%s301 + $0x4] sm:$0xff]
      %v368 = vld [vmem:[%s301 + $0x14] sm:$0xff]
      %v369 = vld [vmem:[%s301 + $0x24] sm:$0xff]
      %v370 = vld [vmem:[%s301 + $0x34] sm:$0xff]
      %v371 = vld [vmem:[%s301 + $0x44] sm:$0xff]
      %v372 = vld [vmem:[%s301 + $0x54] sm:$0xff]
      %v373 = vld [vmem:[%s301 + $0x64] sm:$0xff]
      %v374 = vld [vmem:[%s301 + $0x74] sm:$0xff]
      %s375 = scalar_lea.vmem [#allocation2], 64
      %v376 = vld [vmem:[%s375] sm:$0xff]
      %v377 = vld [vmem:[%s375 + $0x10] sm:$0xff]
      %v378 = vld [vmem:[%s375 + $0x20] sm:$0xff]
      %v379 = vld [vmem:[%s375 + $0x30] sm:$0xff]
      %v380 = vld [vmem:[%s375 + $0x40] sm:$0xff]
      %v381 = vld [vmem:[%s375 + $0x50] sm:$0xff]
      %v382 = vld [vmem:[%s375 + $0x60] sm:$0xff]
      %v383 = vld [vmem:[%s375 + $0x70] sm:$0xff]
      %v384 = vld [vmem:[%s375 + $0x2] sm:$0xff]
      %v385 = vld [vmem:[%s375 + $0x12] sm:$0xff]
      %v386 = vld [vmem:[%s375 + $0x22] sm:$0xff]
      %v387 = vld [vmem:[%s375 + $0x32] sm:$0xff]
      %v388 = vld [vmem:[%s375 + $0x42] sm:$0xff]
      %v389 = vld [vmem:[%s375 + $0x52] sm:$0xff]
      %v390 = vld [vmem:[%s375 + $0x62] sm:$0xff]
      %v391 = vld [vmem:[%s375 + $0x72] sm:$0xff]
      %v392 = vld [vmem:[%s375 + $0x4] sm:$0xff]
      %v393 = vld [vmem:[%s375 + $0x14] sm:$0xff]
      %v394 = vld [vmem:[%s375 + $0x24] sm:$0xff]
      %v395 = vld [vmem:[%s375 + $0x34] sm:$0xff]
      %v396 = vld [vmem:[%s375 + $0x44] sm:$0xff]
      %v397 = vld [vmem:[%s375 + $0x54] sm:$0xff]
      %v398 = vld [vmem:[%s375 + $0x64] sm:$0xff]
      %v399 = vld [vmem:[%s375 + $0x74] sm:$0xff]
      %v400 = vld [vmem:[%s2] sm:$0xff]
      %v401 = vld [vmem:[%s2 + $0x8] sm:$0xff]
      %v402 = vld [vmem:[%s2 + $0x10] sm:$0xff]
      %v403 = vld [vmem:[%s2 + $0x18] sm:$0xff]
      %v404 = vld [vmem:[%s2 + $0x20] sm:$0xff]
      %v405 = vld [vmem:[%s2 + $0x28] sm:$0xff]
      %v406 = vld [vmem:[%s2 + $0x30] sm:$0xff]
      %v407 = vld [vmem:[%s2 + $0x38] sm:$0xff]
      %v408 = vld [vmem:[%s2 + $0x40] sm:$0xff]
      %v409 = vld [vmem:[%s2 + $0x48] sm:$0xff]
      %v410 = vld [vmem:[%s2 + $0x50] sm:$0xff]
      %v411 = vld [vmem:[%s2 + $0x58] sm:$0xff]
      %v412 = vld [vmem:[%s2 + $0x60] sm:$0xff]
      %v413 = vld [vmem:[%s2 + $0x68] sm:$0xff]
      %v414 = vld [vmem:[%s2 + $0x70] sm:$0xff]
      %v415 = vld [vmem:[%s2 + $0x78] sm:$0xff]
      %v416 = vld [vmem:[%s2 + $0x80] sm:$0xff]
      %v417 = vld [vmem:[%s2 + $0x88] sm:$0xff]
      %v418 = vld [vmem:[%s2 + $0x90] sm:$0xff]
      %v419 = vld [vmem:[%s2 + $0x98] sm:$0xff]
      %v420 = vld [vmem:[%s2 + $0xa0] sm:$0xff]
      %v421 = vld [vmem:[%s2 + $0xa8] sm:$0xff]
      %v422 = vld [vmem:[%s2 + $0xb0] sm:$0xff]
      %v423 = vld [vmem:[%s2 + $0xb8] sm:$0xff]
      %v424 = vld [vmem:[%s2 + $0xc0] sm:$0xff]
      %v425 = vld [vmem:[%s2 + $0xc8] sm:$0xff]
      %v426 = vld [vmem:[%s2 + $0xd0] sm:$0xff]
      %v427 = vld [vmem:[%s2 + $0xd8] sm:$0xff]
      %v428 = vld [vmem:[%s2 + $0xe0] sm:$0xff]
      %v429 = vld [vmem:[%s2 + $0xe8] sm:$0xff]
      %v430 = vld [vmem:[%s2 + $0xf0] sm:$0xff]
      %v431 = vld [vmem:[%s2 + $0xf8] sm:$0xff]
      %v432 = vld [vmem:[%s2 + $0x100] sm:$0xff]
      %v433 = vld [vmem:[%s2 + $0x108] sm:$0xff]
      %v434 = vld [vmem:[%s2 + $0x110] sm:$0xff]
      %v435 = vld [vmem:[%s2 + $0x118] sm:$0xff]
      %v436 = vld [vmem:[%s2 + $0x120] sm:$0xff]
      %v437 = vld [vmem:[%s2 + $0x128] sm:$0xff]
      %v438 = vld [vmem:[%s2 + $0x130] sm:$0xff]
      %v439 = vld [vmem:[%s2 + $0x138] sm:$0xff]
      %v440 = vld [vmem:[%s2 + $0x140] sm:$0xff]
      %v441 = vld [vmem:[%s2 + $0x148] sm:$0xff]
      %v442 = vld [vmem:[%s2 + $0x150] sm:$0xff]
      %v443 = vld [vmem:[%s2 + $0x158] sm:$0xff]
      %v444 = vld [vmem:[%s2 + $0x160] sm:$0xff]
      %v445 = vld [vmem:[%s2 + $0x168] sm:$0xff]
      %v446 = vld [vmem:[%s2 + $0x170] sm:$0xff]
      %v447 = vld [vmem:[%s2 + $0x178] sm:$0xff]
      %v448 = vld [vmem:[%s2 + $0x180] sm:$0xff]
      %v449 = vld [vmem:[%s2 + $0x188] sm:$0xff]
      %v450 = vld [vmem:[%s2 + $0x190] sm:$0xff]
      %v451 = vld [vmem:[%s2 + $0x198] sm:$0xff]
      %v452 = vld [vmem:[%s2 + $0x1a0] sm:$0xff]
      %v453 = vld [vmem:[%s2 + $0x1a8] sm:$0xff]
      %v454 = vld [vmem:[%s2 + $0x1b0] sm:$0xff]
      %v455 = vld [vmem:[%s2 + $0x1b8] sm:$0xff]
      %v456 = vld [vmem:[%s2 + $0x1c0] sm:$0xff]
      %v457 = vld [vmem:[%s2 + $0x1c8] sm:$0xff]
      %v458 = vld [vmem:[%s2 + $0x1d0] sm:$0xff]
      %v459 = vld [vmem:[%s2 + $0x1d8] sm:$0xff]
      %v460 = vld [vmem:[%s2 + $0x1e0] sm:$0xff]
      %v461 = vld [vmem:[%s2 + $0x1e8] sm:$0xff]
      %v462 = vld [vmem:[%s2 + $0x1f0] sm:$0xff]
      %v463 = vld [vmem:[%s2 + $0x1f8] sm:$0xff]
      %v464 = vld [vmem:[%s2 + $0x200] sm:$0xff]
      %v465 = vld [vmem:[%s2 + $0x208] sm:$0xff]
      %v466 = vld [vmem:[%s2 + $0x210] sm:$0xff]
      %v467 = vld [vmem:[%s2 + $0x218] sm:$0xff]
      %v468 = vld [vmem:[%s2 + $0x220] sm:$0xff]
      %v469 = vld [vmem:[%s2 + $0x228] sm:$0xff]
      %v470 = vld [vmem:[%s2 + $0x230] sm:$0xff]
      %v471 = vld [vmem:[%s2 + $0x238] sm:$0xff]
      %v472 = vld [vmem:[%s2 + $0x240] sm:$0xff]
      %v473 = vld [vmem:[%s2 + $0x248] sm:$0xff]
      %v474 = vld [vmem:[%s2 + $0x250] sm:$0xff]
      %v475 = vld [vmem:[%s2 + $0x258] sm:$0xff]
      %v476 = vld [vmem:[%s2 + $0x260] sm:$0xff]
      %v477 = vld [vmem:[%s2 + $0x268] sm:$0xff]
      %v478 = vld [vmem:[%s2 + $0x270] sm:$0xff]
      %v479 = vld [vmem:[%s2 + $0x278] sm:$0xff]
      %v480 = vld [vmem:[%s2 + $0x280] sm:$0xff]
      %v481 = vld [vmem:[%s2 + $0x288] sm:$0xff]
      %v482 = vld [vmem:[%s2 + $0x290] sm:$0xff]
      %v483 = vld [vmem:[%s2 + $0x298] sm:$0xff]
      %v484 = vld [vmem:[%s2 + $0x2a0] sm:$0xff]
      %v485 = vld [vmem:[%s2 + $0x2a8] sm:$0xff]
      %v486 = vld [vmem:[%s2 + $0x2b0] sm:$0xff]
      %v487 = vld [vmem:[%s2 + $0x2b8] sm:$0xff]
      %v488 = vld [vmem:[%s2 + $0x2c0] sm:$0xff]
      %v489 = vld [vmem:[%s2 + $0x2c8] sm:$0xff]
      %v490 = vld [vmem:[%s2 + $0x2d0] sm:$0xff]
      %v491 = vld [vmem:[%s2 + $0x2d8] sm:$0xff]
      %v492 = vld [vmem:[%s2 + $0x2e0] sm:$0xff]
      %v493 = vld [vmem:[%s2 + $0x2e8] sm:$0xff]
      %v494 = vld [vmem:[%s2 + $0x2f0] sm:$0xff]
      %v495 = vld [vmem:[%s2 + $0x2f8] sm:$0xff]
      %v496 = vld [vmem:[%s2 + $0x300] sm:$0xff]
      %v497 = vld [vmem:[%s2 + $0x308] sm:$0xff]
      %v498 = vld [vmem:[%s2 + $0x310] sm:$0xff]
      %v499 = vld [vmem:[%s2 + $0x318] sm:$0xff]
      %v500 = vld [vmem:[%s2 + $0x320] sm:$0xff]
      %v501 = vld [vmem:[%s2 + $0x328] sm:$0xff]
      %v502 = vld [vmem:[%s2 + $0x330] sm:$0xff]
      %v503 = vld [vmem:[%s2 + $0x338] sm:$0xff]
      %v504 = vld [vmem:[%s2 + $0x340] sm:$0xff]
      %v505 = vld [vmem:[%s2 + $0x348] sm:$0xff]
      %v506 = vld [vmem:[%s2 + $0x350] sm:$0xff]
      %v507 = vld [vmem:[%s2 + $0x358] sm:$0xff]
      %v508 = vld [vmem:[%s2 + $0x360] sm:$0xff]
      %v509 = vld [vmem:[%s2 + $0x368] sm:$0xff]
      %v510 = vld [vmem:[%s2 + $0x370] sm:$0xff]
      %v511 = vld [vmem:[%s2 + $0x378] sm:$0xff]
      %v512 = vld [vmem:[%s2 + $0x380] sm:$0xff]
      %v513 = vld [vmem:[%s2 + $0x388] sm:$0xff]
      %v514 = vld [vmem:[%s2 + $0x390] sm:$0xff]
      %v515 = vld [vmem:[%s2 + $0x398] sm:$0xff]
      %v516 = vld [vmem:[%s2 + $0x3a0] sm:$0xff]
      %v517 = vld [vmem:[%s2 + $0x3a8] sm:$0xff]
      %v518 = vld [vmem:[%s2 + $0x3b0] sm:$0xff]
      %v519 = vld [vmem:[%s2 + $0x3b8] sm:$0xff]
      %v520 = vld [vmem:[%s2 + $0x3c0] sm:$0xff]
      %v521 = vld [vmem:[%s2 + $0x3c8] sm:$0xff]
      %v522 = vld [vmem:[%s2 + $0x3d0] sm:$0xff]
      %v523 = vld [vmem:[%s2 + $0x3d8] sm:$0xff]
      %v524 = vld [vmem:[%s2 + $0x3e0] sm:$0xff]
      %v525 = vld [vmem:[%s2 + $0x3e8] sm:$0xff]
      %v526 = vld [vmem:[%s2 + $0x3f0] sm:$0xff]
      %v527 = vld [vmem:[%s2 + $0x3f8] sm:$0xff]
      %v528 = vld [vmem:[%s2 + $0x400] sm:$0xff]
      %v529 = vld [vmem:[%s2 + $0x408] sm:$0xff]
      %v530 = vld [vmem:[%s2 + $0x410] sm:$0xff]
      %v531 = vld [vmem:[%s2 + $0x418] sm:$0xff]
      %v532 = vld [vmem:[%s2 + $0x420] sm:$0xff]
      %v533 = vld [vmem:[%s2 + $0x428] sm:$0xff]
      %v534 = vld [vmem:[%s2 + $0x430] sm:$0xff]
      %v535 = vld [vmem:[%s2 + $0x438] sm:$0xff]
      %v536 = vld [vmem:[%s2 + $0x440] sm:$0xff]
      %v537 = vld [vmem:[%s2 + $0x448] sm:$0xff]
      %v538 = vld [vmem:[%s2 + $0x450] sm:$0xff]
      %v539 = vld [vmem:[%s2 + $0x458] sm:$0xff]
      %v540 = vld [vmem:[%s2 + $0x460] sm:$0xff]
      %v541 = vld [vmem:[%s2 + $0x468] sm:$0xff]
      %v542 = vld [vmem:[%s2 + $0x470] sm:$0xff]
      %v543 = vld [vmem:[%s2 + $0x478] sm:$0xff]
      %v544 = vld [vmem:[#allocation3] sm:$0xff]
      %v545 = vld [vmem:[#allocation3 + $0x10] sm:$0xff]
      %v546 = vld [vmem:[#allocation3 + $0x20] sm:$0xff]
      %v547 = vld [vmem:[#allocation3 + $0x30] sm:$0xff]
      %v548 = vld [vmem:[#allocation3 + $0x40] sm:$0xff]
      %v549 = vld [vmem:[#allocation3 + $0x50] sm:$0xff]
      %v550 = vld [vmem:[#allocation3 + $0x60] sm:$0xff]
      %v551 = vld [vmem:[#allocation3 + $0x70] sm:$0xff]
      %v552 = vld [vmem:[#allocation3 + $0x2] sm:$0xff]
      %v553 = vld [vmem:[#allocation3 + $0x12] sm:$0xff]
      %v554 = vld [vmem:[#allocation3 + $0x22] sm:$0xff]
      %v555 = vld [vmem:[#allocation3 + $0x32] sm:$0xff]
      %v556 = vld [vmem:[#allocation3 + $0x42] sm:$0xff]
      %v557 = vld [vmem:[#allocation3 + $0x52] sm:$0xff]
      %v558 = vld [vmem:[#allocation3 + $0x62] sm:$0xff]
      %v559 = vld [vmem:[#allocation3 + $0x72] sm:$0xff]
      %v560 = vld [vmem:[#allocation3 + $0x4] sm:$0xff]
      %v561 = vld [vmem:[#allocation3 + $0x14] sm:$0xff]
      %v562 = vld [vmem:[#allocation3 + $0x24] sm:$0xff]
      %v563 = vld [vmem:[#allocation3 + $0x34] sm:$0xff]
      %v564 = vld [vmem:[#allocation3 + $0x44] sm:$0xff]
      %v565 = vld [vmem:[#allocation3 + $0x54] sm:$0xff]
      %v566 = vld [vmem:[#allocation3 + $0x64] sm:$0xff]
      %v567 = vld [vmem:[#allocation3 + $0x74] sm:$0xff]
      %v568 = vld [vmem:[%s318] sm:$0xff]
      %v569 = vld [vmem:[%s318 + $0x10] sm:$0xff]
      %v570 = vld [vmem:[%s318 + $0x20] sm:$0xff]
      %v571 = vld [vmem:[%s318 + $0x30] sm:$0xff]
      %v572 = vld [vmem:[%s318 + $0x40] sm:$0xff]
      %v573 = vld [vmem:[%s318 + $0x50] sm:$0xff]
      %v574 = vld [vmem:[%s318 + $0x60] sm:$0xff]
      %v575 = vld [vmem:[%s318 + $0x70] sm:$0xff]
      %v576 = vld [vmem:[%s318 + $0x2] sm:$0xff]
      %v577 = vld [vmem:[%s318 + $0x12] sm:$0xff]
      %v578 = vld [vmem:[%s318 + $0x22] sm:$0xff]
      %v579 = vld [vmem:[%s318 + $0x32] sm:$0xff]
      %v580 = vld [vmem:[%s318 + $0x42] sm:$0xff]
      %v581 = vld [vmem:[%s318 + $0x52] sm:$0xff]
      %v582 = vld [vmem:[%s318 + $0x62] sm:$0xff]
      %v583 = vld [vmem:[%s318 + $0x72] sm:$0xff]
      %v584 = vld [vmem:[%s318 + $0x4] sm:$0xff]
      %v585 = vld [vmem:[%s318 + $0x14] sm:$0xff]
      %v586 = vld [vmem:[%s318 + $0x24] sm:$0xff]
      %v587 = vld [vmem:[%s318 + $0x34] sm:$0xff]
      %v588 = vld [vmem:[%s318 + $0x44] sm:$0xff]
      %v589 = vld [vmem:[%s318 + $0x54] sm:$0xff]
      %v590 = vld [vmem:[%s318 + $0x64] sm:$0xff]
      %v591 = vld [vmem:[%s318 + $0x74] sm:$0xff]
      %s592 = scalar_lea.vmem [#allocation3], 64
      %v593 = vld [vmem:[%s592] sm:$0xff]
      %v594 = vld [vmem:[%s592 + $0x10] sm:$0xff]
      %v595 = vld [vmem:[%s592 + $0x20] sm:$0xff]
      %v596 = vld [vmem:[%s592 + $0x30] sm:$0xff]
      %v597 = vld [vmem:[%s592 + $0x40] sm:$0xff]
      %v598 = vld [vmem:[%s592 + $0x50] sm:$0xff]
      %v599 = vld [vmem:[%s592 + $0x60] sm:$0xff]
      %v600 = vld [vmem:[%s592 + $0x70] sm:$0xff]
      %v601 = vld [vmem:[%s592 + $0x2] sm:$0xff]
      %v602 = vld [vmem:[%s592 + $0x12] sm:$0xff]
      %v603 = vld [vmem:[%s592 + $0x22] sm:$0xff]
      %v604 = vld [vmem:[%s592 + $0x32] sm:$0xff]
      %v605 = vld [vmem:[%s592 + $0x42] sm:$0xff]
      %v606 = vld [vmem:[%s592 + $0x52] sm:$0xff]
      %v607 = vld [vmem:[%s592 + $0x62] sm:$0xff]
      %v608 = vld [vmem:[%s592 + $0x72] sm:$0xff]
      %v609 = vld [vmem:[%s592 + $0x4] sm:$0xff]
      %v610 = vld [vmem:[%s592 + $0x14] sm:$0xff]
      %v611 = vld [vmem:[%s592 + $0x24] sm:$0xff]
      %v612 = vld [vmem:[%s592 + $0x34] sm:$0xff]
      %v613 = vld [vmem:[%s592 + $0x44] sm:$0xff]
      %v614 = vld [vmem:[%s592 + $0x54] sm:$0xff]
      %v615 = vld [vmem:[%s592 + $0x64] sm:$0xff]
      %v616 = vld [vmem:[%s592 + $0x74] sm:$0xff]
      %v617 = vld [vmem:[%s3] sm:$0xff]
      %v618 = vld [vmem:[%s3 + $0x8] sm:$0xff]
      %v619 = vld [vmem:[%s3 + $0x10] sm:$0xff]
      %v620 = vld [vmem:[%s3 + $0x18] sm:$0xff]
      %v621 = vld [vmem:[%s3 + $0x20] sm:$0xff]
      %v622 = vld [vmem:[%s3 + $0x28] sm:$0xff]
      %v623 = vld [vmem:[%s3 + $0x30] sm:$0xff]
      %v624 = vld [vmem:[%s3 + $0x38] sm:$0xff]
      %v625 = vld [vmem:[%s3 + $0x40] sm:$0xff]
      %v626 = vld [vmem:[%s3 + $0x48] sm:$0xff]
      %v627 = vld [vmem:[%s3 + $0x50] sm:$0xff]
      %v628 = vld [vmem:[%s3 + $0x58] sm:$0xff]
      %v629 = vld [vmem:[%s3 + $0x60] sm:$0xff]
      %v630 = vld [vmem:[%s3 + $0x68] sm:$0xff]
      %v631 = vld [vmem:[%s3 + $0x70] sm:$0xff]
      %v632 = vld [vmem:[%s3 + $0x78] sm:$0xff]
      %v633 = vld [vmem:[%s3 + $0x80] sm:$0xff]
      %v634 = vld [vmem:[%s3 + $0x88] sm:$0xff]
      %v635 = vld [vmem:[%s3 + $0x90] sm:$0xff]
      %v636 = vld [vmem:[%s3 + $0x98] sm:$0xff]
      %v637 = vld [vmem:[%s3 + $0xa0] sm:$0xff]
      %v638 = vld [vmem:[%s3 + $0xa8] sm:$0xff]
      %v639 = vld [vmem:[%s3 + $0xb0] sm:$0xff]
      %v640 = vld [vmem:[%s3 + $0xb8] sm:$0xff]
      %v641 = vld [vmem:[%s3 + $0xc0] sm:$0xff]
      %v642 = vld [vmem:[%s3 + $0xc8] sm:$0xff]
      %v643 = vld [vmem:[%s3 + $0xd0] sm:$0xff]
      %v644 = vld [vmem:[%s3 + $0xd8] sm:$0xff]
      %v645 = vld [vmem:[%s3 + $0xe0] sm:$0xff]
      %v646 = vld [vmem:[%s3 + $0xe8] sm:$0xff]
      %v647 = vld [vmem:[%s3 + $0xf0] sm:$0xff]
      %v648 = vld [vmem:[%s3 + $0xf8] sm:$0xff]
      %v649 = vld [vmem:[%s3 + $0x100] sm:$0xff]
      %v650 = vld [vmem:[%s3 + $0x108] sm:$0xff]
      %v651 = vld [vmem:[%s3 + $0x110] sm:$0xff]
      %v652 = vld [vmem:[%s3 + $0x118] sm:$0xff]
      %v653 = vld [vmem:[%s3 + $0x120] sm:$0xff]
      %v654 = vld [vmem:[%s3 + $0x128] sm:$0xff]
      %v655 = vld [vmem:[%s3 + $0x130] sm:$0xff]
      %v656 = vld [vmem:[%s3 + $0x138] sm:$0xff]
      %v657 = vld [vmem:[%s3 + $0x140] sm:$0xff]
      %v658 = vld [vmem:[%s3 + $0x148] sm:$0xff]
      %v659 = vld [vmem:[%s3 + $0x150] sm:$0xff]
      %v660 = vld [vmem:[%s3 + $0x158] sm:$0xff]
      %v661 = vld [vmem:[%s3 + $0x160] sm:$0xff]
      %v662 = vld [vmem:[%s3 + $0x168] sm:$0xff]
      %v663 = vld [vmem:[%s3 + $0x170] sm:$0xff]
      %v664 = vld [vmem:[%s3 + $0x178] sm:$0xff]
      %v665 = vld [vmem:[%s3 + $0x180] sm:$0xff]
      %v666 = vld [vmem:[%s3 + $0x188] sm:$0xff]
      %v667 = vld [vmem:[%s3 + $0x190] sm:$0xff]
      %v668 = vld [vmem:[%s3 + $0x198] sm:$0xff]
      %v669 = vld [vmem:[%s3 + $0x1a0] sm:$0xff]
      %v670 = vld [vmem:[%s3 + $0x1a8] sm:$0xff]
      %v671 = vld [vmem:[%s3 + $0x1b0] sm:$0xff]
      %v672 = vld [vmem:[%s3 + $0x1b8] sm:$0xff]
      %v673 = vld [vmem:[%s3 + $0x1c0] sm:$0xff]
      %v674 = vld [vmem:[%s3 + $0x1c8] sm:$0xff]
      %v675 = vld [vmem:[%s3 + $0x1d0] sm:$0xff]
      %v676 = vld [vmem:[%s3 + $0x1d8] sm:$0xff]
      %v677 = vld [vmem:[%s3 + $0x1e0] sm:$0xff]
      %v678 = vld [vmem:[%s3 + $0x1e8] sm:$0xff]
      %v679 = vld [vmem:[%s3 + $0x1f0] sm:$0xff]
      %v680 = vld [vmem:[%s3 + $0x1f8] sm:$0xff]
      %v681 = vld [vmem:[%s3 + $0x200] sm:$0xff]
      %v682 = vld [vmem:[%s3 + $0x208] sm:$0xff]
      %v683 = vld [vmem:[%s3 + $0x210] sm:$0xff]
      %v684 = vld [vmem:[%s3 + $0x218] sm:$0xff]
      %v685 = vld [vmem:[%s3 + $0x220] sm:$0xff]
      %v686 = vld [vmem:[%s3 + $0x228] sm:$0xff]
      %v687 = vld [vmem:[%s3 + $0x230] sm:$0xff]
      %v688 = vld [vmem:[%s3 + $0x238] sm:$0xff]
      %v689 = vld [vmem:[%s3 + $0x240] sm:$0xff]
      %v690 = vld [vmem:[%s3 + $0x248] sm:$0xff]
      %v691 = vld [vmem:[%s3 + $0x250] sm:$0xff]
      %v692 = vld [vmem:[%s3 + $0x258] sm:$0xff]
      %v693 = vld [vmem:[%s3 + $0x260] sm:$0xff]
      %v694 = vld [vmem:[%s3 + $0x268] sm:$0xff]
      %v695 = vld [vmem:[%s3 + $0x270] sm:$0xff]
      %v696 = vld [vmem:[%s3 + $0x278] sm:$0xff]
      %v697 = vld [vmem:[%s3 + $0x280] sm:$0xff]
      %v698 = vld [vmem:[%s3 + $0x288] sm:$0xff]
      %v699 = vld [vmem:[%s3 + $0x290] sm:$0xff]
      %v700 = vld [vmem:[%s3 + $0x298] sm:$0xff]
      %v701 = vld [vmem:[%s3 + $0x2a0] sm:$0xff]
      %v702 = vld [vmem:[%s3 + $0x2a8] sm:$0xff]
      %v703 = vld [vmem:[%s3 + $0x2b0] sm:$0xff]
      %v704 = vld [vmem:[%s3 + $0x2b8] sm:$0xff]
      %v705 = vld [vmem:[%s3 + $0x2c0] sm:$0xff]
      %v706 = vld [vmem:[%s3 + $0x2c8] sm:$0xff]
      %v707 = vld [vmem:[%s3 + $0x2d0] sm:$0xff]
      %v708 = vld [vmem:[%s3 + $0x2d8] sm:$0xff]
      %v709 = vld [vmem:[%s3 + $0x2e0] sm:$0xff]
      %v710 = vld [vmem:[%s3 + $0x2e8] sm:$0xff]
      %v711 = vld [vmem:[%s3 + $0x2f0] sm:$0xff]
      %v712 = vld [vmem:[%s3 + $0x2f8] sm:$0xff]
      %v713 = vld [vmem:[%s3 + $0x300] sm:$0xff]
      %v714 = vld [vmem:[%s3 + $0x308] sm:$0xff]
      %v715 = vld [vmem:[%s3 + $0x310] sm:$0xff]
      %v716 = vld [vmem:[%s3 + $0x318] sm:$0xff]
      %v717 = vld [vmem:[%s3 + $0x320] sm:$0xff]
      %v718 = vld [vmem:[%s3 + $0x328] sm:$0xff]
      %v719 = vld [vmem:[%s3 + $0x330] sm:$0xff]
      %v720 = vld [vmem:[%s3 + $0x338] sm:$0xff]
      %v721 = vld [vmem:[%s3 + $0x340] sm:$0xff]
      %v722 = vld [vmem:[%s3 + $0x348] sm:$0xff]
      %v723 = vld [vmem:[%s3 + $0x350] sm:$0xff]
      %v724 = vld [vmem:[%s3 + $0x358] sm:$0xff]
      %v725 = vld [vmem:[%s3 + $0x360] sm:$0xff]
      %v726 = vld [vmem:[%s3 + $0x368] sm:$0xff]
      %v727 = vld [vmem:[%s3 + $0x370] sm:$0xff]
      %v728 = vld [vmem:[%s3 + $0x378] sm:$0xff]
      %v729 = vld [vmem:[%s3 + $0x380] sm:$0xff]
      %v730 = vld [vmem:[%s3 + $0x388] sm:$0xff]
      %v731 = vld [vmem:[%s3 + $0x390] sm:$0xff]
      %v732 = vld [vmem:[%s3 + $0x398] sm:$0xff]
      %v733 = vld [vmem:[%s3 + $0x3a0] sm:$0xff]
      %v734 = vld [vmem:[%s3 + $0x3a8] sm:$0xff]
      %v735 = vld [vmem:[%s3 + $0x3b0] sm:$0xff]
      %v736 = vld [vmem:[%s3 + $0x3b8] sm:$0xff]
      %v737 = vld [vmem:[%s3 + $0x3c0] sm:$0xff]
      %v738 = vld [vmem:[%s3 + $0x3c8] sm:$0xff]
      %v739 = vld [vmem:[%s3 + $0x3d0] sm:$0xff]
      %v740 = vld [vmem:[%s3 + $0x3d8] sm:$0xff]
      %v741 = vld [vmem:[%s3 + $0x3e0] sm:$0xff]
      %v742 = vld [vmem:[%s3 + $0x3e8] sm:$0xff]
      %v743 = vld [vmem:[%s3 + $0x3f0] sm:$0xff]
      %v744 = vld [vmem:[%s3 + $0x3f8] sm:$0xff]
      %v745 = vld [vmem:[%s3 + $0x400] sm:$0xff]
      %v746 = vld [vmem:[%s3 + $0x408] sm:$0xff]
      %v747 = vld [vmem:[%s3 + $0x410] sm:$0xff]
      %v748 = vld [vmem:[%s3 + $0x418] sm:$0xff]
      %v749 = vld [vmem:[%s3 + $0x420] sm:$0xff]
      %v750 = vld [vmem:[%s3 + $0x428] sm:$0xff]
      %v751 = vld [vmem:[%s3 + $0x430] sm:$0xff]
      %v752 = vld [vmem:[%s3 + $0x438] sm:$0xff]
      %v753 = vld [vmem:[%s3 + $0x440] sm:$0xff]
      %v754 = vld [vmem:[%s3 + $0x448] sm:$0xff]
      %v755 = vld [vmem:[%s3 + $0x450] sm:$0xff]
      %v756 = vld [vmem:[%s3 + $0x458] sm:$0xff]
      %v757 = vld [vmem:[%s3 + $0x460] sm:$0xff]
      %v758 = vld [vmem:[%s3 + $0x468] sm:$0xff]
      %v759 = vld [vmem:[%s3 + $0x470] sm:$0xff]
      %v760 = vld [vmem:[%s3 + $0x478] sm:$0xff]
      %761 = vmatprep.subr.mxu0 0.0
      %762 = vmatpush1.msra.mxu0 %v617
      %763 = vmatprep.subr.mxu0 0.0
      %764 = vmatpush1.msra.mxu0 %v618
      %765 = vmatprep.subr.mxu0 0.0
      %766 = vmatpush1.msra.mxu0 %v619
      %767 = vmatprep.subr.mxu0 0.0
      %768 = vmatpush1.msra.mxu0 %v620
      %769 = vmatprep.subr.mxu0 0.0
      %770 = vmatpush1.msra.mxu0 %v621
      %771 = vmatprep.subr.mxu0 0.0
      %772 = vmatpush1.msra.mxu0 %v622
      %773 = vmatprep.subr.mxu0 0.0
      %774 = vmatpush1.msra.mxu0 %v623
      %775 = vmatprep.subr.mxu0 0.0
      %776 = vmatpush1.msra.mxu0 %v624
      %777 = vmatprep.subr.mxu0 0.0
      %778 = vmatpush1.msra.mxu0 %v625
      %779 = vmatprep.subr.mxu0 0.0
      %780 = vmatpush1.msra.mxu0 %v626
      %781 = vmatprep.subr.mxu0 0.0
      %782 = vmatpush1.msra.mxu0 %v627
      %783 = vmatprep.subr.mxu0 0.0
      %784 = vmatpush1.msra.mxu0 %v628
      %785 = vmatprep.subr.mxu0 0.0
      %786 = vmatpush1.msra.mxu0 %v629
      %787 = vmatprep.subr.mxu0 0.0
      %788 = vmatpush1.msra.mxu0 %v630
      %789 = vmatprep.subr.mxu0 0.0
      %790 = vmatpush1.msra.mxu0 %v631
      %791 = vmatprep.subr.mxu0 0.0
      %792 = vmatpush1.msra.mxu0 %v632
      %793 = vmatprep.subr.mxu0 0.0
      %794 = vmatpush1.msra.mxu0 %v633
      %795 = vmatprep.subr.mxu0 0.0
      %796 = vmatpush1.msra.mxu0 %v634
      %797 = vmatprep.subr.mxu0 0.0
      %798 = vmatpush1.msra.mxu0 %v635
      %799 = vmatprep.subr.mxu0 0.0
      %800 = vmatpush1.msra.mxu0 %v636
      %801 = vmatprep.subr.mxu0 0.0
      %802 = vmatpush1.msra.mxu0 %v637
      %803 = vmatprep.subr.mxu0 0.0
      %804 = vmatpush1.msra.mxu0 %v638
      %805 = vmatprep.subr.mxu0 0.0
      %806 = vmatpush1.msra.mxu0 %v639
      %807 = vmatprep.subr.mxu0 0.0
      %808 = vmatpush1.msra.mxu0 %v640
      %809 = vmatprep.subr.mxu0 0.0
      %810 = vmatpush1.msra.mxu0 %v641
      %811 = vmatprep.subr.mxu0 0.0
      %812 = vmatpush1.msra.mxu0 %v642
      %813 = vmatprep.subr.mxu0 0.0
      %814 = vmatpush1.msra.mxu0 %v643
      %815 = vmatprep.subr.mxu0 0.0
      %816 = vmatpush1.msra.mxu0 %v644
      %817 = vmatprep.subr.mxu0 0.0
      %818 = vmatpush1.msra.mxu0 %v645
      %819 = vmatprep.subr.mxu0 0.0
      %820 = vmatpush1.msra.mxu0 %v646
      %821 = vmatprep.subr.mxu0 0.0
      %822 = vmatpush1.msra.mxu0 %v647
      %823 = vmatprep.subr.mxu0 0.0
      %824 = vmatpush1.msra.mxu0 %v648
      %825 = vmatprep.mubr.f32.mxu0 %v552
      %826 = vmatmul.mubr.f32.gmra.mrb[0].mxu0 %v544
      %v827 = vpop.f32.mrb[0].mxu0
      %v828 = vadd.f32 0.0, %v827
      %v829 = vpop.f32.mrb[0].mxu0
      %830 = vmatprep.mubr.f32.mxu0 %v553
      %831 = vmatmul.mubr.f32.gmra.mrb[0].mxu0 %v545
      %v832 = vpop.f32.mrb[0].mxu0
      %v833 = vadd.f32 0.0, %v832
      %v834 = vpop.f32.mrb[0].mxu0
      %835 = vmatprep.mubr.f32.mxu0 %v554
      %836 = vmatmul.mubr.f32.gmra.mrb[0].mxu0 %v546
      %v837 = vpop.f32.mrb[0].mxu0
      %v838 = vadd.f32 0.0, %v837
      %v839 = vpop.f32.mrb[0].mxu0
      %840 = vmatprep.mubr.f32.mxu0 %v555
      %841 = vmatmul.mubr.f32.gmra.mrb[0].mxu0 %v547
      %v842 = vpop.f32.mrb[0].mxu0
      %v843 = vadd.f32 0.0, %v842
      %v844 = vpop.f32.mrb[0].mxu0
      %845 = vmatprep.mubr.f32.mxu0 %v556
      %846 = vmatmul.mubr.f32.gmra.mrb[0].mxu0 %v548
      %v847 = vpop.f32.mrb[0].mxu0
      %v848 = vadd.f32 0.0, %v847
      %v849 = vpop.f32.mrb[0].mxu0
      %850 = vmatprep.mubr.f32.mxu0 %v557
      %851 = vmatmul.mubr.f32.gmra.mrb[0].mxu0 %v549
      %v852 = vpop.f32.mrb[0].mxu0
      %v853 = vadd.f32 0.0, %v852
      %v854 = vpop.f32.mrb[0].mxu0
      %855 = vmatprep.mubr.f32.mxu0 %v558
      %856 = vmatmul.mubr.f32.gmra.mrb[0].mxu0 %v550
      %v857 = vpop.f32.mrb[0].mxu0
      %v858 = vadd.f32 0.0, %v857
      %v859 = vpop.f32.mrb[0].mxu0
      %860 = vmatprep.mubr.f32.mxu0 %v559
      %861 = vmatmul.mubr.f32.gmra.mrb[0].mxu0 %v551
      %v862 = vpop.f32.mrb[0].mxu0
      %v863 = vadd.f32 0.0, %v862
      %v864 = vpop.f32.mrb[0].mxu0
      %865 = vdwg.mxu0
      %866 = vmatprep.subr.mxu0 0.0
      %867 = vmatpush1.msra.mxu0 %v649
      %868 = vmatprep.subr.mxu0 0.0
      %869 = vmatpush1.msra.mxu0 %v650
      %870 = vmatprep.subr.mxu0 0.0
      %871 = vmatpush1.msra.mxu0 %v651
      %872 = vmatprep.subr.mxu0 0.0
      %873 = vmatpush1.msra.mxu0 %v652
      %874 = vmatprep.subr.mxu0 0.0
      %875 = vmatpush1.msra.mxu0 %v653
      %876 = vmatprep.subr.mxu0 0.0
      %877 = vmatpush1.msra.mxu0 %v654
      %878 = vmatprep.subr.mxu0 0.0
      %879 = vmatpush1.msra.mxu0 %v655
      %880 = vmatprep.subr.mxu0 0.0
      %881 = vmatpush1.msra.mxu0 %v656
      %882 = vmatprep.subr.mxu0 0.0
      %883 = vmatpush1.msra.mxu0 %v657
      %884 = vmatprep.subr.mxu0 0.0
      %885 = vmatpush1.msra.mxu0 %v658
      %886 = vmatprep.subr.mxu0 0.0
      %887 = vmatpush1.msra.mxu0 %v659
      %888 = vmatprep.subr.mxu0 0.0
      %889 = vmatpush1.msra.mxu0 %v660
      %890 = vmatprep.subr.mxu0 0.0
      %891 = vmatpush1.msra.mxu0 %v661
      %892 = vmatprep.subr.mxu0 0.0
      %893 = vmatpush1.msra.mxu0 %v662
      %894 = vmatprep.subr.mxu0 0.0
      %895 = vmatpush1.msra.mxu0 %v663
      %896 = vmatprep.subr.mxu0 0.0
      %897 = vmatpush1.msra.mxu0 %v664
      %898 = vmatprep.subr.mxu0 0.0
      %899 = vmatpush1.msra.mxu0 %v665
      %900 = vmatprep.subr.mxu0 0.0
      %901 = vmatpush1.msra.mxu0 %v666
      %902 = vmatprep.subr.mxu0 0.0
      %903 = vmatpush1.msra.mxu0 %v667
      %904 = vmatprep.subr.mxu0 0.0
      %905 = vmatpush1.msra.mxu0 %v668
      %906 = vmatprep.subr.mxu0 0.0
      %907 = vmatpush1.msra.mxu0 %v669
      %908 = vmatprep.subr.mxu0 0.0
      %909 = vmatpush1.msra.mxu0 %v670
      %910 = vmatprep.subr.mxu0 0.0
      %911 = vmatpush1.msra.mxu0 %v671
      %912 = vmatprep.subr.mxu0 0.0
      %913 = vmatpush1.msra.mxu0 %v672
      %914 = vmatprep.subr.mxu0 0.0
      %915 = vmatpush1.msra.mxu0 %v673
      %916 = vmatprep.subr.mxu0 0.0
      %917 = vmatpush1.msra.mxu0 %v674
      %918 = vmatprep.subr.mxu0 0.0
      %919 = vmatpush1.msra.mxu0 %v675
      %920 = vmatprep.subr.mxu0 0.0
      %921 = vmatpush1.msra.mxu0 %v676
      %922 = vmatprep.subr.mxu0 0.0
      %923 = vmatpush1.msra.mxu0 %v677
      %924 = vmatprep.subr.mxu0 0.0
      %925 = vmatpush1.msra.mxu0 %v678
      %926 = vmatprep.subr.mxu0 0.0
      %927 = vmatpush1.msra.mxu0 %v679
      %928 = vmatprep.subr.mxu0 0.0
      %929 = vmatpush1.msra.mxu0 %v680
      %930 = vmatprep.mubr.f32.mxu0 %v568
      %931 = vmatmul.mubr.f32.gmra.mrb[0].mxu0 %v560
      %v932 = vpop.f32.mrb[0].mxu0
      %v933 = vadd.f32 %v828, %v932
      %v934 = vpop.f32.mrb[0].mxu0
      %935 = vmatprep.mubr.f32.mxu0 %v569
      %936 = vmatmul.mubr.f32.gmra.mrb[0].mxu0 %v561
      %v937 = vpop.f32.mrb[0].mxu0
      %v938 = vadd.f32 %v833, %v937
      %v939 = vpop.f32.mrb[0].mxu0
      %940 = vmatprep.mubr.f32.mxu0 %v570
      %941 = vmatmul.mubr.f32.gmra.mrb[0].mxu0 %v562
      %v942 = vpop.f32.mrb[0].mxu0
      %v943 = vadd.f32 %v838, %v942
      %v944 = vpop.f32.mrb[0].mxu0
      %945 = vmatprep.mubr.f32.mxu0 %v571
      %946 = vmatmul.mubr.f32.gmra.mrb[0].mxu0 %v563
      %v947 = vpop.f32.mrb[0].mxu0
      %v948 = vadd.f32 %v843, %v947
      %v949 = vpop.f32.mrb[0].mxu0
      %950 = vmatprep.mubr.f32.mxu0 %v572
      %951 = vmatmul.mubr.f32.gmra.mrb[0].mxu0 %v564
      %v952 = vpop.f32.mrb[0].mxu0
      %v953 = vadd.f32 %v848, %v952
      %v954 = vpop.f32.mrb[0].mxu0
      %955 = vmatprep.mubr.f32.mxu0 %v573
      %956 = vmatmul.mubr.f32.gmra.mrb[0].mxu0 %v565
      %v957 = vpop.f32.mrb[0].mxu0
      %v958 = vadd.f32 %v853, %v957
      %v959 = vpop.f32.mrb[0].mxu0
      %960 = vmatprep.mubr.f32.mxu0 %v574
      %961 = vmatmul.mubr.f32.gmra.mrb[0].mxu0 %v566
      %v962 = vpop.f32.mrb[0].mxu0
      %v963 = vadd.f32 %v858, %v962
      %v964 = vpop.f32.mrb[0].mxu0
      %965 = vmatprep.mubr.f32.mxu0 %v575
      %966 = vmatmul.mubr.f32.gmra.mrb[0].mxu0 %v567
      %v967 = vpop.f32.mrb[0].mxu0
      %v968 = vadd.f32 %v863, %v967
      %v969 = vpop.f32.mrb[0].mxu0
      %970 = vdwg.mxu0
      %971 = vmatprep.subr.mxu0 0.0
      %972 = vmatpush1.msra.mxu0 %v681
      %973 = vmatprep.subr.mxu0 0.0
      %974 = vmatpush1.msra.mxu0 %v682
      %975 = vmatprep.subr.mxu0 0.0
      %976 = vmatpush1.msra.mxu0 %v683
      %977 = vmatprep.subr.mxu0 0.0
      %978 = vmatpush1.msra.mxu0 %v684
      %979 = vmatprep.subr.mxu0 0.0
      %980 = vmatpush1.msra.mxu0 %v685
      %981 = vmatprep.subr.mxu0 0.0
      %982 = vmatpush1.msra.mxu0 %v686
      %983 = vmatprep.subr.mxu0 0.0
      %984 = vmatpush1.msra.mxu0 %v687
      %985 = vmatprep.subr.mxu0 0.0
      %986 = vmatpush1.msra.mxu0 %v688
      %987 = vmatprep.subr.mxu0 0.0
      %988 = vmatpush1.msra.mxu0 %v689
      %989 = vmatprep.subr.mxu0 0.0
      %990 = vmatpush1.msra.mxu0 %v690
      %991 = vmatprep.subr.mxu0 0.0
      %992 = vmatpush1.msra.mxu0 %v691
      %993 = vmatprep.subr.mxu0 0.0
      %994 = vmatpush1.msra.mxu0 %v692
      %995 = vmatprep.subr.mxu0 0.0
      %996 = vmatpush1.msra.mxu0 %v693
      %997 = vmatprep.subr.mxu0 0.0
      %998 = vmatpush1.msra.mxu0 %v694
      %999 = vmatprep.subr.mxu0 0.0
      %1000 = vmatpush1.msra.mxu0 %v695
      %1001 = vmatprep.subr.mxu0 0.0
      %1002 = vmatpush1.msra.mxu0 %v696
      %1003 = vmatprep.subr.mxu0 0.0
      %1004 = vmatpush1.msra.mxu0 %v697
      %1005 = vmatprep.subr.mxu0 0.0
      %1006 = vmatpush1.msra.mxu0 %v698
      %1007 = vmatprep.subr.mxu0 0.0
      %1008 = vmatpush1.msra.mxu0 %v699
      %1009 = vmatprep.subr.mxu0 0.0
      %1010 = vmatpush1.msra.mxu0 %v700
      %1011 = vmatprep.subr.mxu0 0.0
      %1012 = vmatpush1.msra.mxu0 %v701
      %1013 = vmatprep.subr.mxu0 0.0
      %1014 = vmatpush1.msra.mxu0 %v702
      %1015 = vmatprep.subr.mxu0 0.0
      %1016 = vmatpush1.msra.mxu0 %v703
      %1017 = vmatprep.subr.mxu0 0.0
      %1018 = vmatpush1.msra.mxu0 %v704
      %1019 = vmatprep.subr.mxu0 0.0
      %1020 = vmatpush1.msra.mxu0 %v705
      %1021 = vmatprep.subr.mxu0 0.0
      %1022 = vmatpush1.msra.mxu0 %v706
      %1023 = vmatprep.subr.mxu0 0.0
      %1024 = vmatpush1.msra.mxu0 %v707
      %1025 = vmatprep.subr.mxu0 0.0
      %1026 = vmatpush1.msra.mxu0 %v708
      %1027 = vmatprep.subr.mxu0 0.0
      %1028 = vmatpush1.msra.mxu0 %v709
      %1029 = vmatprep.subr.mxu0 0.0
      %1030 = vmatpush1.msra.mxu0 %v710
      %1031 = vmatprep.subr.mxu0 0.0
      %1032 = vmatpush1.msra.mxu0 %v711
      %1033 = vmatprep.subr.mxu0 0.0
      %1034 = vmatpush1.msra.mxu0 %v712
      %1035 = vmatprep.mubr.f32.mxu0 %v584
      %1036 = vmatmul.mubr.f32.gmra.mrb[0].mxu0 %v576
      %v1037 = vpop.f32.mrb[0].mxu0
      %v1038 = vadd.f32 %v933, %v1037
      %v1039 = vpop.f32.mrb[0].mxu0
      %1040 = vmatprep.mubr.f32.mxu0 %v585
      %1041 = vmatmul.mubr.f32.gmra.mrb[0].mxu0 %v577
      %v1042 = vpop.f32.mrb[0].mxu0
      %v1043 = vadd.f32 %v938, %v1042
      %v1044 = vpop.f32.mrb[0].mxu0
      %1045 = vmatprep.mubr.f32.mxu0 %v586
      %1046 = vmatmul.mubr.f32.gmra.mrb[0].mxu0 %v578
      %v1047 = vpop.f32.mrb[0].mxu0
      %v1048 = vadd.f32 %v943, %v1047
      %v1049 = vpop.f32.mrb[0].mxu0
      %1050 = vmatprep.mubr.f32.mxu0 %v587
      %1051 = vmatmul.mubr.f32.gmra.mrb[0].mxu0 %v579
      %v1052 = vpop.f32.mrb[0].mxu0
      %v1053 = vadd.f32 %v948, %v1052
      %v1054 = vpop.f32.mrb[0].mxu0
      %1055 = vmatprep.mubr.f32.mxu0 %v588
      %1056 = vmatmul.mubr.f32.gmra.mrb[0].mxu0 %v580
      %v1057 = vpop.f32.mrb[0].mxu0
      %v1058 = vadd.f32 %v953, %v1057
      %v1059 = vpop.f32.mrb[0].mxu0
      %1060 = vmatprep.mubr.f32.mxu0 %v589
      %1061 = vmatmul.mubr.f32.gmra.mrb[0].mxu0 %v581
      %v1062 = vpop.f32.mrb[0].mxu0
      %v1063 = vadd.f32 %v958, %v1062
      %v1064 = vpop.f32.mrb[0].mxu0
      %1065 = vmatprep.mubr.f32.mxu0 %v590
      %1066 = vmatmul.mubr.f32.gmra.mrb[0].mxu0 %v582
      %v1067 = vpop.f32.mrb[0].mxu0
      %v1068 = vadd.f32 %v963, %v1067
      %v1069 = vpop.f32.mrb[0].mxu0
      %1070 = vmatprep.mubr.f32.mxu0 %v591
      %1071 = vmatmul.mubr.f32.gmra.mrb[0].mxu0 %v583
      %v1072 = vpop.f32.mrb[0].mxu0
      %v1073 = vadd.f32 %v968, %v1072
      %v1074 = vpop.f32.mrb[0].mxu0
      %1075 = vdwg.mxu0
      %1076 = vmatprep.subr.mxu0 0.0
      %1077 = vmatpush1.msra.mxu0 %v713
      %1078 = vmatprep.subr.mxu0 0.0
      %1079 = vmatpush1.msra.mxu0 %v714
      %1080 = vmatprep.subr.mxu0 0.0
      %1081 = vmatpush1.msra.mxu0 %v715
      %1082 = vmatprep.subr.mxu0 0.0
      %1083 = vmatpush1.msra.mxu0 %v716
      %1084 = vmatprep.subr.mxu0 0.0
      %1085 = vmatpush1.msra.mxu0 %v717
      %1086 = vmatprep.subr.mxu0 0.0
      %1087 = vmatpush1.msra.mxu0 %v718
      %1088 = vmatprep.subr.mxu0 0.0
      %1089 = vmatpush1.msra.mxu0 %v719
      %1090 = vmatprep.subr.mxu0 0.0
      %1091 = vmatpush1.msra.mxu0 %v720
      %1092 = vmatprep.subr.mxu0 0.0
      %1093 = vmatpush1.msra.mxu0 %v721
      %1094 = vmatprep.subr.mxu0 0.0
      %1095 = vmatpush1.msra.mxu0 %v722
      %1096 = vmatprep.subr.mxu0 0.0
      %1097 = vmatpush1.msra.mxu0 %v723
      %1098 = vmatprep.subr.mxu0 0.0
      %1099 = vmatpush1.msra.mxu0 %v724
      %1100 = vmatprep.subr.mxu0 0.0
      %1101 = vmatpush1.msra.mxu0 %v725
      %1102 = vmatprep.subr.mxu0 0.0
      %1103 = vmatpush1.msra.mxu0 %v726
      %1104 = vmatprep.subr.mxu0 0.0
      %1105 = vmatpush1.msra.mxu0 %v727
      %1106 = vmatprep.subr.mxu0 0.0
      %1107 = vmatpush1.msra.mxu0 %v728
      %1108 = vmatprep.subr.mxu0 0.0
      %1109 = vmatpush1.msra.mxu0 %v729
      %1110 = vmatprep.subr.mxu0 0.0
      %1111 = vmatpush1.msra.mxu0 %v730
      %1112 = vmatprep.subr.mxu0 0.0
      %1113 = vmatpush1.msra.mxu0 %v731
      %1114 = vmatprep.subr.mxu0 0.0
      %1115 = vmatpush1.msra.mxu0 %v732
      %1116 = vmatprep.subr.mxu0 0.0
      %1117 = vmatpush1.msra.mxu0 %v733
      %1118 = vmatprep.subr.mxu0 0.0
      %1119 = vmatpush1.msra.mxu0 %v734
      %1120 = vmatprep.subr.mxu0 0.0
      %1121 = vmatpush1.msra.mxu0 %v735
      %1122 = vmatprep.subr.mxu0 0.0
      %1123 = vmatpush1.msra.mxu0 %v736
      %1124 = vmatprep.subr.mxu0 0.0
      %1125 = vmatpush1.msra.mxu0 %v737
      %1126 = vmatprep.subr.mxu0 0.0
      %1127 = vmatpush1.msra.mxu0 %v738
      %1128 = vmatprep.subr.mxu0 0.0
      %1129 = vmatpush1.msra.mxu0 %v739
      %1130 = vmatprep.subr.mxu0 0.0
      %1131 = vmatpush1.msra.mxu0 %v740
      %1132 = vmatprep.subr.mxu0 0.0
      %1133 = vmatpush1.msra.mxu0 %v741
      %1134 = vmatprep.subr.mxu0 0.0
      %1135 = vmatpush1.msra.mxu0 %v742
      %1136 = vmatprep.subr.mxu0 0.0
      %1137 = vmatpush1.msra.mxu0 %v743
      %1138 = vmatprep.subr.mxu0 0.0
      %1139 = vmatpush1.msra.mxu0 %v744
      %1140 = vmatprep.mubr.f32.mxu0 %v601
      %1141 = vmatmul.mubr.f32.gmra.mrb[0].mxu0 %v593
      %v1142 = vpop.f32.mrb[0].mxu0
      %v1143 = vadd.f32 %v1038, %v1142
      %v1144 = vpop.f32.mrb[0].mxu0
      %1145 = vmatprep.mubr.f32.mxu0 %v602
      %1146 = vmatmul.mubr.f32.gmra.mrb[0].mxu0 %v594
      %v1147 = vpop.f32.mrb[0].mxu0
      %v1148 = vadd.f32 %v1043, %v1147
      %v1149 = vpop.f32.mrb[0].mxu0
      %1150 = vmatprep.mubr.f32.mxu0 %v603
      %1151 = vmatmul.mubr.f32.gmra.mrb[0].mxu0 %v595
      %v1152 = vpop.f32.mrb[0].mxu0
      %v1153 = vadd.f32 %v1048, %v1152
      %v1154 = vpop.f32.mrb[0].mxu0
      %1155 = vmatprep.mubr.f32.mxu0 %v604
      %1156 = vmatmul.mubr.f32.gmra.mrb[0].mxu0 %v596
      %v1157 = vpop.f32.mrb[0].mxu0
      %v1158 = vadd.f32 %v1053, %v1157
      %v1159 = vpop.f32.mrb[0].mxu0
      %1160 = vmatprep.mubr.f32.mxu0 %v605
      %1161 = vmatmul.mubr.f32.gmra.mrb[0].mxu0 %v597
      %v1162 = vpop.f32.mrb[0].mxu0
      %v1163 = vadd.f32 %v1058, %v1162
      %v1164 = vpop.f32.mrb[0].mxu0
      %1165 = vmatprep.mubr.f32.mxu0 %v606
      %1166 = vmatmul.mubr.f32.gmra.mrb[0].mxu0 %v598
      %v1167 = vpop.f32.mrb[0].mxu0
      %v1168 = vadd.f32 %v1063, %v1167
      %v1169 = vpop.f32.mrb[0].mxu0
      %1170 = vmatprep.mubr.f32.mxu0 %v607
      %1171 = vmatmul.mubr.f32.gmra.mrb[0].mxu0 %v599
      %v1172 = vpop.f32.mrb[0].mxu0
      %v1173 = vadd.f32 %v1068, %v1172
      %v1174 = vpop.f32.mrb[0].mxu0
      %1175 = vmatprep.mubr.f32.mxu0 %v608
      %1176 = vmatmul.mubr.f32.gmra.mrb[0].mxu0 %v600
      %v1177 = vpop.f32.mrb[0].mxu0
      %v1178 = vadd.f32 %v1073, %v1177
      %v1179 = vpop.f32.mrb[0].mxu0
      %1180 = vdwg.mxu0
      %1181 = vmatprep.subr.mxu0 0.0
      %1182 = vmatpush1.msra.mxu0 %v745
      %1183 = vmatprep.subr.mxu0 0.0
      %1184 = vmatpush1.msra.mxu0 %v746
      %1185 = vmatprep.subr.mxu0 0.0
      %1186 = vmatpush1.msra.mxu0 %v747
      %1187 = vmatprep.subr.mxu0 0.0
      %1188 = vmatpush1.msra.mxu0 %v748
      %1189 = vmatprep.subr.mxu0 0.0
      %1190 = vmatpush1.msra.mxu0 %v749
      %1191 = vmatprep.subr.mxu0 0.0
      %1192 = vmatpush1.msra.mxu0 %v750
      %1193 = vmatprep.subr.mxu0 0.0
      %1194 = vmatpush1.msra.mxu0 %v751
      %1195 = vmatprep.subr.mxu0 0.0
      %1196 = vmatpush1.msra.mxu0 %v752
      %1197 = vmatprep.subr.mxu0 0.0
      %1198 = vmatpush1.msra.mxu0 %v753
      %1199 = vmatprep.subr.mxu0 0.0
      %1200 = vmatpush1.msra.mxu0 %v754
      %1201 = vmatprep.subr.mxu0 0.0
      %1202 = vmatpush1.msra.mxu0 %v755
      %1203 = vmatprep.subr.mxu0 0.0
      %1204 = vmatpush1.msra.mxu0 %v756
      %1205 = vmatprep.subr.mxu0 0.0
      %1206 = vmatpush1.msra.mxu0 %v757
      %1207 = vmatprep.subr.mxu0 0.0
      %1208 = vmatpush1.msra.mxu0 %v758
      %1209 = vmatprep.subr.mxu0 0.0
      %1210 = vmatpush1.msra.mxu0 %v759
      %1211 = vmatprep.subr.mxu0 0.0
      %1212 = vmatpush1.msra.mxu0 %v760
      %1213 = vmatprep.subr.mxu0 0.0
      %1214 = vmatpush1.msra.mxu0 0.0
      %1215 = vmatprep.subr.mxu0 0.0
      %1216 = vmatpush1.msra.mxu0 0.0
      %1217 = vmatprep.subr.mxu0 0.0
      %1218 = vmatpush1.msra.mxu0 0.0
      %1219 = vmatprep.subr.mxu0 0.0
      %1220 = vmatpush1.msra.mxu0 0.0
      %1221 = vmatprep.subr.mxu0 0.0
      %1222 = vmatpush1.msra.mxu0 0.0
      %1223 = vmatprep.subr.mxu0 0.0
      %1224 = vmatpush1.msra.mxu0 0.0
      %1225 = vmatprep.subr.mxu0 0.0
      %1226 = vmatpush1.msra.mxu0 0.0
      %1227 = vmatprep.subr.mxu0 0.0
      %1228 = vmatpush1.msra.mxu0 0.0
      %1229 = vmatprep.subr.mxu0 0.0
      %1230 = vmatpush1.msra.mxu0 0.0
      %1231 = vmatprep.subr.mxu0 0.0
      %1232 = vmatpush1.msra.mxu0 0.0
      %1233 = vmatprep.subr.mxu0 0.0
      %1234 = vmatpush1.msra.mxu0 0.0
      %1235 = vmatprep.subr.mxu0 0.0
      %1236 = vmatpush1.msra.mxu0 0.0
      %1237 = vmatprep.subr.mxu0 0.0
      %1238 = vmatpush1.msra.mxu0 0.0
      %1239 = vmatprep.subr.mxu0 0.0
      %1240 = vmatpush1.msra.mxu0 0.0
      %1241 = vmatprep.subr.mxu0 0.0
      %1242 = vmatpush1.msra.mxu0 0.0
      %1243 = vmatprep.subr.mxu0 0.0
      %1244 = vmatpush1.msra.mxu0 0.0
      %1245 = vmatprep.mubr.f32.mxu0 0.0
      %1246 = vmatmul.mubr.f32.gmra.mrb[0].mxu0 %v609
      %v1247 = vpop.f32.mrb[0].mxu0
      %v1248 = vadd.f32 %v1143, %v1247
      %v1249 = vpop.f32.mrb[0].mxu0
      %1250 = vmatprep.mubr.f32.mxu0 0.0
      %1251 = vmatmul.mubr.f32.gmra.mrb[0].mxu0 %v610
      %v1252 = vpop.f32.mrb[0].mxu0
      %v1253 = vadd.f32 %v1148, %v1252
      %v1254 = vpop.f32.mrb[0].mxu0
      %1255 = vmatprep.mubr.f32.mxu0 0.0
      %1256 = vmatmul.mubr.f32.gmra.mrb[0].mxu0 %v611
      %v1257 = vpop.f32.mrb[0].mxu0
      %v1258 = vadd.f32 %v1153, %v1257
      %v1259 = vpop.f32.mrb[0].mxu0
      %1260 = vmatprep.mubr.f32.mxu0 0.0
      %1261 = vmatmul.mubr.f32.gmra.mrb[0].mxu0 %v612
      %v1262 = vpop.f32.mrb[0].mxu0
      %v1263 = vadd.f32 %v1158, %v1262
      %v1264 = vpop.f32.mrb[0].mxu0
      %1265 = vmatprep.mubr.f32.mxu0 0.0
      %1266 = vmatmul.mubr.f32.gmra.mrb[0].mxu0 %v613
      %v1267 = vpop.f32.mrb[0].mxu0
      %v1268 = vadd.f32 %v1163, %v1267
      %v1269 = vpop.f32.mrb[0].mxu0
      %1270 = vmatprep.mubr.f32.mxu0 0.0
      %1271 = vmatmul.mubr.f32.gmra.mrb[0].mxu0 %v614
      %v1272 = vpop.f32.mrb[0].mxu0
      %v1273 = vadd.f32 %v1168, %v1272
      %v1274 = vpop.f32.mrb[0].mxu0
      %1275 = vmatprep.mubr.f32.mxu0 0.0
      %1276 = vmatmul.mubr.f32.gmra.mrb[0].mxu0 %v615
      %v1277 = vpop.f32.mrb[0].mxu0
      %v1278 = vadd.f32 %v1173, %v1277
      %v1279 = vpop.f32.mrb[0].mxu0
      %1280 = vmatprep.mubr.f32.mxu0 0.0
      %1281 = vmatmul.mubr.f32.gmra.mrb[0].mxu0 %v616
      %v1282 = vpop.f32.mrb[0].mxu0
      %v1283 = vadd.f32 %v1178, %v1282
      %v1284 = vpop.f32.mrb[0].mxu0
      %1285 = vdwg.mxu0
      %1286 = vmatprep.subr.mxu0 0.0
      %1287 = vmatpush1.msra.mxu0 %v400
      %1288 = vmatprep.subr.mxu0 0.0
      %1289 = vmatpush1.msra.mxu0 %v401
      %1290 = vmatprep.subr.mxu0 0.0
      %1291 = vmatpush1.msra.mxu0 %v402
      %1292 = vmatprep.subr.mxu0 0.0
      %1293 = vmatpush1.msra.mxu0 %v403
      %1294 = vmatprep.subr.mxu0 0.0
      %1295 = vmatpush1.msra.mxu0 %v404
      %1296 = vmatprep.subr.mxu0 0.0
      %1297 = vmatpush1.msra.mxu0 %v405
      %1298 = vmatprep.subr.mxu0 0.0
      %1299 = vmatpush1.msra.mxu0 %v406
      %1300 = vmatprep.subr.mxu0 0.0
      %1301 = vmatpush1.msra.mxu0 %v407
      %1302 = vmatprep.subr.mxu0 0.0
      %1303 = vmatpush1.msra.mxu0 %v408
      %1304 = vmatprep.subr.mxu0 0.0
      %1305 = vmatpush1.msra.mxu0 %v409
      %1306 = vmatprep.subr.mxu0 0.0
      %1307 = vmatpush1.msra.mxu0 %v410
      %1308 = vmatprep.subr.mxu0 0.0
      %1309 = vmatpush1.msra.mxu0 %v411
      %1310 = vmatprep.subr.mxu0 0.0
      %1311 = vmatpush1.msra.mxu0 %v412
      %1312 = vmatprep.subr.mxu0 0.0
      %1313 = vmatpush1.msra.mxu0 %v413
      %1314 = vmatprep.subr.mxu0 0.0
      %1315 = vmatpush1.msra.mxu0 %v414
      %1316 = vmatprep.subr.mxu0 0.0
      %1317 = vmatpush1.msra.mxu0 %v415
      %1318 = vmatprep.subr.mxu0 0.0
      %1319 = vmatpush1.msra.mxu0 %v416
      %1320 = vmatprep.subr.mxu0 0.0
      %1321 = vmatpush1.msra.mxu0 %v417
      %1322 = vmatprep.subr.mxu0 0.0
      %1323 = vmatpush1.msra.mxu0 %v418
      %1324 = vmatprep.subr.mxu0 0.0
      %1325 = vmatpush1.msra.mxu0 %v419
      %1326 = vmatprep.subr.mxu0 0.0
      %1327 = vmatpush1.msra.mxu0 %v420
      %1328 = vmatprep.subr.mxu0 0.0
      %1329 = vmatpush1.msra.mxu0 %v421
      %1330 = vmatprep.subr.mxu0 0.0
      %1331 = vmatpush1.msra.mxu0 %v422
      %1332 = vmatprep.subr.mxu0 0.0
      %1333 = vmatpush1.msra.mxu0 %v423
      %1334 = vmatprep.subr.mxu0 0.0
      %1335 = vmatpush1.msra.mxu0 %v424
      %1336 = vmatprep.subr.mxu0 0.0
      %1337 = vmatpush1.msra.mxu0 %v425
      %1338 = vmatprep.subr.mxu0 0.0
      %1339 = vmatpush1.msra.mxu0 %v426
      %1340 = vmatprep.subr.mxu0 0.0
      %1341 = vmatpush1.msra.mxu0 %v427
      %1342 = vmatprep.subr.mxu0 0.0
      %1343 = vmatpush1.msra.mxu0 %v428
      %1344 = vmatprep.subr.mxu0 0.0
      %1345 = vmatpush1.msra.mxu0 %v429
      %1346 = vmatprep.subr.mxu0 0.0
      %1347 = vmatpush1.msra.mxu0 %v430
      %1348 = vmatprep.subr.mxu0 0.0
      %1349 = vmatpush1.msra.mxu0 %v431
      %1350 = vmatprep.mubr.f32.mxu0 %v335
      %1351 = vmatmul.mubr.f32.gmra.mrb[0].mxu0 %v327
      %v1352 = vpop.f32.mrb[0].mxu0
      %v1353 = vadd.f32 %v1248, %v1352
      %v1354 = vpop.f32.mrb[0].mxu0
      %1355 = vmatprep.mubr.f32.mxu0 %v336
      %1356 = vmatmul.mubr.f32.gmra.mrb[0].mxu0 %v328
      %v1357 = vpop.f32.mrb[0].mxu0
      %v1358 = vadd.f32 %v1253, %v1357
      %v1359 = vpop.f32.mrb[0].mxu0
      %1360 = vmatprep.mubr.f32.mxu0 %v337
      %1361 = vmatmul.mubr.f32.gmra.mrb[0].mxu0 %v329
      %v1362 = vpop.f32.mrb[0].mxu0
      %v1363 = vadd.f32 %v1258, %v1362
      %v1364 = vpop.f32.mrb[0].mxu0
      %1365 = vmatprep.mubr.f32.mxu0 %v338
      %1366 = vmatmul.mubr.f32.gmra.mrb[0].mxu0 %v330
      %v1367 = vpop.f32.mrb[0].mxu0
      %v1368 = vadd.f32 %v1263, %v1367
      %v1369 = vpop.f32.mrb[0].mxu0
      %1370 = vmatprep.mubr.f32.mxu0 %v339
      %1371 = vmatmul.mubr.f32.gmra.mrb[0].mxu0 %v331
      %v1372 = vpop.f32.mrb[0].mxu0
      %v1373 = vadd.f32 %v1268, %v1372
      %v1374 = vpop.f32.mrb[0].mxu0
      %1375 = vmatprep.mubr.f32.mxu0 %v340
      %1376 = vmatmul.mubr.f32.gmra.mrb[0].mxu0 %v332
      %v1377 = vpop.f32.mrb[0].mxu0
      %v1378 = vadd.f32 %v1273, %v1377
      %v1379 = vpop.f32.mrb[0].mxu0
      %1380 = vmatprep.mubr.f32.mxu0 %v341
      %1381 = vmatmul.mubr.f32.gmra.mrb[0].mxu0 %v333
      %v1382 = vpop.f32.mrb[0].mxu0
      %v1383 = vadd.f32 %v1278, %v1382
      %v1384 = vpop.f32.mrb[0].mxu0
      %1385 = vmatprep.mubr.f32.mxu0 %v342
      %1386 = vmatmul.mubr.f32.gmra.mrb[0].mxu0 %v334
      %v1387 = vpop.f32.mrb[0].mxu0
      %v1388 = vadd.f32 %v1283, %v1387
      %v1389 = vpop.f32.mrb[0].mxu0
      %1390 = vdwg.mxu0
      %1391 = vmatprep.subr.mxu0 0.0
      %1392 = vmatpush1.msra.mxu0 %v432
      %1393 = vmatprep.subr.mxu0 0.0
      %1394 = vmatpush1.msra.mxu0 %v433
      %1395 = vmatprep.subr.mxu0 0.0
      %1396 = vmatpush1.msra.mxu0 %v434
      %1397 = vmatprep.subr.mxu0 0.0
      %1398 = vmatpush1.msra.mxu0 %v435
      %1399 = vmatprep.subr.mxu0 0.0
      %1400 = vmatpush1.msra.mxu0 %v436
      %1401 = vmatprep.subr.mxu0 0.0
      %1402 = vmatpush1.msra.mxu0 %v437
      %1403 = vmatprep.subr.mxu0 0.0
      %1404 = vmatpush1.msra.mxu0 %v438
      %1405 = vmatprep.subr.mxu0 0.0
      %1406 = vmatpush1.msra.mxu0 %v439
      %1407 = vmatprep.subr.mxu0 0.0
      %1408 = vmatpush1.msra.mxu0 %v440
      %1409 = vmatprep.subr.mxu0 0.0
      %1410 = vmatpush1.msra.mxu0 %v441
      %1411 = vmatprep.subr.mxu0 0.0
      %1412 = vmatpush1.msra.mxu0 %v442
      %1413 = vmatprep.subr.mxu0 0.0
      %1414 = vmatpush1.msra.mxu0 %v443
      %1415 = vmatprep.subr.mxu0 0.0
      %1416 = vmatpush1.msra.mxu0 %v444
      %1417 = vmatprep.subr.mxu0 0.0
      %1418 = vmatpush1.msra.mxu0 %v445
      %1419 = vmatprep.subr.mxu0 0.0
      %1420 = vmatpush1.msra.mxu0 %v446
      %1421 = vmatprep.subr.mxu0 0.0
      %1422 = vmatpush1.msra.mxu0 %v447
      %1423 = vmatprep.subr.mxu0 0.0
      %1424 = vmatpush1.msra.mxu0 %v448
      %1425 = vmatprep.subr.mxu0 0.0
      %1426 = vmatpush1.msra.mxu0 %v449
      %1427 = vmatprep.subr.mxu0 0.0
      %1428 = vmatpush1.msra.mxu0 %v450
      %1429 = vmatprep.subr.mxu0 0.0
      %1430 = vmatpush1.msra.mxu0 %v451
      %1431 = vmatprep.subr.mxu0 0.0
      %1432 = vmatpush1.msra.mxu0 %v452
      %1433 = vmatprep.subr.mxu0 0.0
      %1434 = vmatpush1.msra.mxu0 %v453
      %1435 = vmatprep.subr.mxu0 0.0
      %1436 = vmatpush1.msra.mxu0 %v454
      %1437 = vmatprep.subr.mxu0 0.0
      %1438 = vmatpush1.msra.mxu0 %v455
      %1439 = vmatprep.subr.mxu0 0.0
      %1440 = vmatpush1.msra.mxu0 %v456
      %1441 = vmatprep.subr.mxu0 0.0
      %1442 = vmatpush1.msra.mxu0 %v457
      %1443 = vmatprep.subr.mxu0 0.0
      %1444 = vmatpush1.msra.mxu0 %v458
      %1445 = vmatprep.subr.mxu0 0.0
      %1446 = vmatpush1.msra.mxu0 %v459
      %1447 = vmatprep.subr.mxu0 0.0
      %1448 = vmatpush1.msra.mxu0 %v460
      %1449 = vmatprep.subr.mxu0 0.0
      %1450 = vmatpush1.msra.mxu0 %v461
      %1451 = vmatprep.subr.mxu0 0.0
      %1452 = vmatpush1.msra.mxu0 %v462
      %1453 = vmatprep.subr.mxu0 0.0
      %1454 = vmatpush1.msra.mxu0 %v463
      %1455 = vmatprep.mubr.f32.mxu0 %v351
      %1456 = vmatmul.mubr.f32.gmra.mrb[0].mxu0 %v343
      %v1457 = vpop.f32.mrb[0].mxu0
      %v1458 = vadd.f32 %v1353, %v1457
      %v1459 = vpop.f32.mrb[0].mxu0
      %1460 = vmatprep.mubr.f32.mxu0 %v352
      %1461 = vmatmul.mubr.f32.gmra.mrb[0].mxu0 %v344
      %v1462 = vpop.f32.mrb[0].mxu0
      %v1463 = vadd.f32 %v1358, %v1462
      %v1464 = vpop.f32.mrb[0].mxu0
      %1465 = vmatprep.mubr.f32.mxu0 %v353
      %1466 = vmatmul.mubr.f32.gmra.mrb[0].mxu0 %v345
      %v1467 = vpop.f32.mrb[0].mxu0
      %v1468 = vadd.f32 %v1363, %v1467
      %v1469 = vpop.f32.mrb[0].mxu0
      %1470 = vmatprep.mubr.f32.mxu0 %v354
      %1471 = vmatmul.mubr.f32.gmra.mrb[0].mxu0 %v346
      %v1472 = vpop.f32.mrb[0].mxu0
      %v1473 = vadd.f32 %v1368, %v1472
      %v1474 = vpop.f32.mrb[0].mxu0
      %1475 = vmatprep.mubr.f32.mxu0 %v355
      %1476 = vmatmul.mubr.f32.gmra.mrb[0].mxu0 %v347
      %v1477 = vpop.f32.mrb[0].mxu0
      %v1478 = vadd.f32 %v1373, %v1477
      %v1479 = vpop.f32.mrb[0].mxu0
      %1480 = vmatprep.mubr.f32.mxu0 %v356
      %1481 = vmatmul.mubr.f32.gmra.mrb[0].mxu0 %v348
      %v1482 = vpop.f32.mrb[0].mxu0
      %v1483 = vadd.f32 %v1378, %v1482
      %v1484 = vpop.f32.mrb[0].mxu0
      %1485 = vmatprep.mubr.f32.mxu0 %v357
      %1486 = vmatmul.mubr.f32.gmra.mrb[0].mxu0 %v349
      %v1487 = vpop.f32.mrb[0].mxu0
      %v1488 = vadd.f32 %v1383, %v1487
      %v1489 = vpop.f32.mrb[0].mxu0
      %1490 = vmatprep.mubr.f32.mxu0 %v358
      %1491 = vmatmul.mubr.f32.gmra.mrb[0].mxu0 %v350
      %v1492 = vpop.f32.mrb[0].mxu0
      %v1493 = vadd.f32 %v1388, %v1492
      %v1494 = vpop.f32.mrb[0].mxu0
      %1495 = vdwg.mxu0
      %1496 = vmatprep.subr.mxu0 0.0
      %1497 = vmatpush1.msra.mxu0 %v464
      %1498 = vmatprep.subr.mxu0 0.0
      %1499 = vmatpush1.msra.mxu0 %v465
      %1500 = vmatprep.subr.mxu0 0.0
      %1501 = vmatpush1.msra.mxu0 %v466
      %1502 = vmatprep.subr.mxu0 0.0
      %1503 = vmatpush1.msra.mxu0 %v467
      %1504 = vmatprep.subr.mxu0 0.0
      %1505 = vmatpush1.msra.mxu0 %v468
      %1506 = vmatprep.subr.mxu0 0.0
      %1507 = vmatpush1.msra.mxu0 %v469
      %1508 = vmatprep.subr.mxu0 0.0
      %1509 = vmatpush1.msra.mxu0 %v470
      %1510 = vmatprep.subr.mxu0 0.0
      %1511 = vmatpush1.msra.mxu0 %v471
      %1512 = vmatprep.subr.mxu0 0.0
      %1513 = vmatpush1.msra.mxu0 %v472
      %1514 = vmatprep.subr.mxu0 0.0
      %1515 = vmatpush1.msra.mxu0 %v473
      %1516 = vmatprep.subr.mxu0 0.0
      %1517 = vmatpush1.msra.mxu0 %v474
      %1518 = vmatprep.subr.mxu0 0.0
      %1519 = vmatpush1.msra.mxu0 %v475
      %1520 = vmatprep.subr.mxu0 0.0
      %1521 = vmatpush1.msra.mxu0 %v476
      %1522 = vmatprep.subr.mxu0 0.0
      %1523 = vmatpush1.msra.mxu0 %v477
      %1524 = vmatprep.subr.mxu0 0.0
      %1525 = vmatpush1.msra.mxu0 %v478
      %1526 = vmatprep.subr.mxu0 0.0
      %1527 = vmatpush1.msra.mxu0 %v479
      %1528 = vmatprep.subr.mxu0 0.0
      %1529 = vmatpush1.msra.mxu0 %v480
      %1530 = vmatprep.subr.mxu0 0.0
      %1531 = vmatpush1.msra.mxu0 %v481
      %1532 = vmatprep.subr.mxu0 0.0
      %1533 = vmatpush1.msra.mxu0 %v482
      %1534 = vmatprep.subr.mxu0 0.0
      %1535 = vmatpush1.msra.mxu0 %v483
      %1536 = vmatprep.subr.mxu0 0.0
      %1537 = vmatpush1.msra.mxu0 %v484
      %1538 = vmatprep.subr.mxu0 0.0
      %1539 = vmatpush1.msra.mxu0 %v485
      %1540 = vmatprep.subr.mxu0 0.0
      %1541 = vmatpush1.msra.mxu0 %v486
      %1542 = vmatprep.subr.mxu0 0.0
      %1543 = vmatpush1.msra.mxu0 %v487
      %1544 = vmatprep.subr.mxu0 0.0
      %1545 = vmatpush1.msra.mxu0 %v488
      %1546 = vmatprep.subr.mxu0 0.0
      %1547 = vmatpush1.msra.mxu0 %v489
      %1548 = vmatprep.subr.mxu0 0.0
      %1549 = vmatpush1.msra.mxu0 %v490
      %1550 = vmatprep.subr.mxu0 0.0
      %1551 = vmatpush1.msra.mxu0 %v491
      %1552 = vmatprep.subr.mxu0 0.0
      %1553 = vmatpush1.msra.mxu0 %v492
      %1554 = vmatprep.subr.mxu0 0.0
      %1555 = vmatpush1.msra.mxu0 %v493
      %1556 = vmatprep.subr.mxu0 0.0
      %1557 = vmatpush1.msra.mxu0 %v494
      %1558 = vmatprep.subr.mxu0 0.0
      %1559 = vmatpush1.msra.mxu0 %v495
      %1560 = vmatprep.mubr.f32.mxu0 %v367
      %1561 = vmatmul.mubr.f32.gmra.mrb[0].mxu0 %v359
      %v1562 = vpop.f32.mrb[0].mxu0
      %v1563 = vadd.f32 %v1458, %v1562
      %v1564 = vpop.f32.mrb[0].mxu0
      %1565 = vmatprep.mubr.f32.mxu0 %v368
      %1566 = vmatmul.mubr.f32.gmra.mrb[0].mxu0 %v360
      %v1567 = vpop.f32.mrb[0].mxu0
      %v1568 = vadd.f32 %v1463, %v1567
      %v1569 = vpop.f32.mrb[0].mxu0
      %1570 = vmatprep.mubr.f32.mxu0 %v369
      %1571 = vmatmul.mubr.f32.gmra.mrb[0].mxu0 %v361
      %v1572 = vpop.f32.mrb[0].mxu0
      %v1573 = vadd.f32 %v1468, %v1572
      %v1574 = vpop.f32.mrb[0].mxu0
      %1575 = vmatprep.mubr.f32.mxu0 %v370
      %1576 = vmatmul.mubr.f32.gmra.mrb[0].mxu0 %v362
      %v1577 = vpop.f32.mrb[0].mxu0
      %v1578 = vadd.f32 %v1473, %v1577
      %v1579 = vpop.f32.mrb[0].mxu0
      %1580 = vmatprep.mubr.f32.mxu0 %v371
      %1581 = vmatmul.mubr.f32.gmra.mrb[0].mxu0 %v363
      %v1582 = vpop.f32.mrb[0].mxu0
      %v1583 = vadd.f32 %v1478, %v1582
      %v1584 = vpop.f32.mrb[0].mxu0
      %1585 = vmatprep.mubr.f32.mxu0 %v372
      %1586 = vmatmul.mubr.f32.gmra.mrb[0].mxu0 %v364
      %v1587 = vpop.f32.mrb[0].mxu0
      %v1588 = vadd.f32 %v1483, %v1587
      %v1589 = vpop.f32.mrb[0].mxu0
      %1590 = vmatprep.mubr.f32.mxu0 %v373
      %1591 = vmatmul.mubr.f32.gmra.mrb[0].mxu0 %v365
      %v1592 = vpop.f32.mrb[0].mxu0
      %v1593 = vadd.f32 %v1488, %v1592
      %v1594 = vpop.f32.mrb[0].mxu0
      %1595 = vmatprep.mubr.f32.mxu0 %v374
      %1596 = vmatmul.mubr.f32.gmra.mrb[0].mxu0 %v366
      %v1597 = vpop.f32.mrb[0].mxu0
      %v1598 = vadd.f32 %v1493, %v1597
      %v1599 = vpop.f32.mrb[0].mxu0
      %1600 = vdwg.mxu0
      %1601 = vmatprep.subr.mxu0 0.0
      %1602 = vmatpush1.msra.mxu0 %v496
      %1603 = vmatprep.subr.mxu0 0.0
      %1604 = vmatpush1.msra.mxu0 %v497
      %1605 = vmatprep.subr.mxu0 0.0
      %1606 = vmatpush1.msra.mxu0 %v498
      %1607 = vmatprep.subr.mxu0 0.0
      %1608 = vmatpush1.msra.mxu0 %v499
      %1609 = vmatprep.subr.mxu0 0.0
      %1610 = vmatpush1.msra.mxu0 %v500
      %1611 = vmatprep.subr.mxu0 0.0
      %1612 = vmatpush1.msra.mxu0 %v501
      %1613 = vmatprep.subr.mxu0 0.0
      %1614 = vmatpush1.msra.mxu0 %v502
      %1615 = vmatprep.subr.mxu0 0.0
      %1616 = vmatpush1.msra.mxu0 %v503
      %1617 = vmatprep.subr.mxu0 0.0
      %1618 = vmatpush1.msra.mxu0 %v504
      %1619 = vmatprep.subr.mxu0 0.0
      %1620 = vmatpush1.msra.mxu0 %v505
      %1621 = vmatprep.subr.mxu0 0.0
      %1622 = vmatpush1.msra.mxu0 %v506
      %1623 = vmatprep.subr.mxu0 0.0
      %1624 = vmatpush1.msra.mxu0 %v507
      %1625 = vmatprep.subr.mxu0 0.0
      %1626 = vmatpush1.msra.mxu0 %v508
      %1627 = vmatprep.subr.mxu0 0.0
      %1628 = vmatpush1.msra.mxu0 %v509
      %1629 = vmatprep.subr.mxu0 0.0
      %1630 = vmatpush1.msra.mxu0 %v510
      %1631 = vmatprep.subr.mxu0 0.0
      %1632 = vmatpush1.msra.mxu0 %v511
      %1633 = vmatprep.subr.mxu0 0.0
      %1634 = vmatpush1.msra.mxu0 %v512
      %1635 = vmatprep.subr.mxu0 0.0
      %1636 = vmatpush1.msra.mxu0 %v513
      %1637 = vmatprep.subr.mxu0 0.0
      %1638 = vmatpush1.msra.mxu0 %v514
      %1639 = vmatprep.subr.mxu0 0.0
      %1640 = vmatpush1.msra.mxu0 %v515
      %1641 = vmatprep.subr.mxu0 0.0
      %1642 = vmatpush1.msra.mxu0 %v516
      %1643 = vmatprep.subr.mxu0 0.0
      %1644 = vmatpush1.msra.mxu0 %v517
      %1645 = vmatprep.subr.mxu0 0.0
      %1646 = vmatpush1.msra.mxu0 %v518
      %1647 = vmatprep.subr.mxu0 0.0
      %1648 = vmatpush1.msra.mxu0 %v519
      %1649 = vmatprep.subr.mxu0 0.0
      %1650 = vmatpush1.msra.mxu0 %v520
      %1651 = vmatprep.subr.mxu0 0.0
      %1652 = vmatpush1.msra.mxu0 %v521
      %1653 = vmatprep.subr.mxu0 0.0
      %1654 = vmatpush1.msra.mxu0 %v522
      %1655 = vmatprep.subr.mxu0 0.0
      %1656 = vmatpush1.msra.mxu0 %v523
      %1657 = vmatprep.subr.mxu0 0.0
      %1658 = vmatpush1.msra.mxu0 %v524
      %1659 = vmatprep.subr.mxu0 0.0
      %1660 = vmatpush1.msra.mxu0 %v525
      %1661 = vmatprep.subr.mxu0 0.0
      %1662 = vmatpush1.msra.mxu0 %v526
      %1663 = vmatprep.subr.mxu0 0.0
      %1664 = vmatpush1.msra.mxu0 %v527
      %1665 = vmatprep.mubr.f32.mxu0 %v384
      %1666 = vmatmul.mubr.f32.gmra.mrb[0].mxu0 %v376
      %v1667 = vpop.f32.mrb[0].mxu0
      %v1668 = vadd.f32 %v1563, %v1667
      %v1669 = vpop.f32.mrb[0].mxu0
      %1670 = vmatprep.mubr.f32.mxu0 %v385
      %1671 = vmatmul.mubr.f32.gmra.mrb[0].mxu0 %v377
      %v1672 = vpop.f32.mrb[0].mxu0
      %v1673 = vadd.f32 %v1568, %v1672
      %v1674 = vpop.f32.mrb[0].mxu0
      %1675 = vmatprep.mubr.f32.mxu0 %v386
      %1676 = vmatmul.mubr.f32.gmra.mrb[0].mxu0 %v378
      %v1677 = vpop.f32.mrb[0].mxu0
      %v1678 = vadd.f32 %v1573, %v1677
      %v1679 = vpop.f32.mrb[0].mxu0
      %1680 = vmatprep.mubr.f32.mxu0 %v387
      %1681 = vmatmul.mubr.f32.gmra.mrb[0].mxu0 %v379
      %v1682 = vpop.f32.mrb[0].mxu0
      %v1683 = vadd.f32 %v1578, %v1682
      %v1684 = vpop.f32.mrb[0].mxu0
      %1685 = vmatprep.mubr.f32.mxu0 %v388
      %1686 = vmatmul.mubr.f32.gmra.mrb[0].mxu0 %v380
      %v1687 = vpop.f32.mrb[0].mxu0
      %v1688 = vadd.f32 %v1583, %v1687
      %v1689 = vpop.f32.mrb[0].mxu0
      %1690 = vmatprep.mubr.f32.mxu0 %v389
      %1691 = vmatmul.mubr.f32.gmra.mrb[0].mxu0 %v381
      %v1692 = vpop.f32.mrb[0].mxu0
      %v1693 = vadd.f32 %v1588, %v1692
      %v1694 = vpop.f32.mrb[0].mxu0
      %1695 = vmatprep.mubr.f32.mxu0 %v390
      %1696 = vmatmul.mubr.f32.gmra.mrb[0].mxu0 %v382
      %v1697 = vpop.f32.mrb[0].mxu0
      %v1698 = vadd.f32 %v1593, %v1697
      %v1699 = vpop.f32.mrb[0].mxu0
      %1700 = vmatprep.mubr.f32.mxu0 %v391
      %1701 = vmatmul.mubr.f32.gmra.mrb[0].mxu0 %v383
      %v1702 = vpop.f32.mrb[0].mxu0
      %v1703 = vadd.f32 %v1598, %v1702
      %v1704 = vpop.f32.mrb[0].mxu0
      %1705 = vdwg.mxu0
      %1706 = vmatprep.subr.mxu0 0.0
      %1707 = vmatpush1.msra.mxu0 %v528
      %1708 = vmatprep.subr.mxu0 0.0
      %1709 = vmatpush1.msra.mxu0 %v529
      %1710 = vmatprep.subr.mxu0 0.0
      %1711 = vmatpush1.msra.mxu0 %v530
      %1712 = vmatprep.subr.mxu0 0.0
      %1713 = vmatpush1.msra.mxu0 %v531
      %1714 = vmatprep.subr.mxu0 0.0
      %1715 = vmatpush1.msra.mxu0 %v532
      %1716 = vmatprep.subr.mxu0 0.0
      %1717 = vmatpush1.msra.mxu0 %v533
      %1718 = vmatprep.subr.mxu0 0.0
      %1719 = vmatpush1.msra.mxu0 %v534
      %1720 = vmatprep.subr.mxu0 0.0
      %1721 = vmatpush1.msra.mxu0 %v535
      %1722 = vmatprep.subr.mxu0 0.0
      %1723 = vmatpush1.msra.mxu0 %v536
      %1724 = vmatprep.subr.mxu0 0.0
      %1725 = vmatpush1.msra.mxu0 %v537
      %1726 = vmatprep.subr.mxu0 0.0
      %1727 = vmatpush1.msra.mxu0 %v538
      %1728 = vmatprep.subr.mxu0 0.0
      %1729 = vmatpush1.msra.mxu0 %v539
      %1730 = vmatprep.subr.mxu0 0.0
      %1731 = vmatpush1.msra.mxu0 %v540
      %1732 = vmatprep.subr.mxu0 0.0
      %1733 = vmatpush1.msra.mxu0 %v541
      %1734 = vmatprep.subr.mxu0 0.0
      %1735 = vmatpush1.msra.mxu0 %v542
      %1736 = vmatprep.subr.mxu0 0.0
      %1737 = vmatpush1.msra.mxu0 %v543
      %1738 = vmatprep.subr.mxu0 0.0
      %1739 = vmatpush1.msra.mxu0 0.0
      %1740 = vmatprep.subr.mxu0 0.0
      %1741 = vmatpush1.msra.mxu0 0.0
      %1742 = vmatprep.subr.mxu0 0.0
      %1743 = vmatpush1.msra.mxu0 0.0
      %1744 = vmatprep.subr.mxu0 0.0
      %1745 = vmatpush1.msra.mxu0 0.0
      %1746 = vmatprep.subr.mxu0 0.0
      %1747 = vmatpush1.msra.mxu0 0.0
      %1748 = vmatprep.subr.mxu0 0.0
      %1749 = vmatpush1.msra.mxu0 0.0
      %1750 = vmatprep.subr.mxu0 0.0
      %1751 = vmatpush1.msra.mxu0 0.0
      %1752 = vmatprep.subr.mxu0 0.0
      %1753 = vmatpush1.msra.mxu0 0.0
      %1754 = vmatprep.subr.mxu0 0.0
      %1755 = vmatpush1.msra.mxu0 0.0
      %1756 = vmatprep.subr.mxu0 0.0
      %1757 = vmatpush1.msra.mxu0 0.0
      %1758 = vmatprep.subr.mxu0 0.0
      %1759 = vmatpush1.msra.mxu0 0.0
      %1760 = vmatprep.subr.mxu0 0.0
      %1761 = vmatpush1.msra.mxu0 0.0
      %1762 = vmatprep.subr.mxu0 0.0
      %1763 = vmatpush1.msra.mxu0 0.0
      %1764 = vmatprep.subr.mxu0 0.0
      %1765 = vmatpush1.msra.mxu0 0.0
      %1766 = vmatprep.subr.mxu0 0.0
      %1767 = vmatpush1.msra.mxu0 0.0
      %1768 = vmatprep.subr.mxu0 0.0
      %1769 = vmatpush1.msra.mxu0 0.0
      %1770 = vmatprep.mubr.f32.mxu0 0.0
      %1771 = vmatmul.mubr.f32.gmra.mrb[0].mxu0 %v392
      %v1772 = vpop.f32.mrb[0].mxu0
      %v1773 = vadd.f32 %v1668, %v1772
      %v1774 = vpop.f32.mrb[0].mxu0
      %1775 = vmatprep.mubr.f32.mxu0 0.0
      %1776 = vmatmul.mubr.f32.gmra.mrb[0].mxu0 %v393
      %v1777 = vpop.f32.mrb[0].mxu0
      %v1778 = vadd.f32 %v1673, %v1777
      %v1779 = vpop.f32.mrb[0].mxu0
      %1780 = vmatprep.mubr.f32.mxu0 0.0
      %1781 = vmatmul.mubr.f32.gmra.mrb[0].mxu0 %v394
      %v1782 = vpop.f32.mrb[0].mxu0
      %v1783 = vadd.f32 %v1678, %v1782
      %v1784 = vpop.f32.mrb[0].mxu0
      %1785 = vmatprep.mubr.f32.mxu0 0.0
      %1786 = vmatmul.mubr.f32.gmra.mrb[0].mxu0 %v395
      %v1787 = vpop.f32.mrb[0].mxu0
      %v1788 = vadd.f32 %v1683, %v1787
      %v1789 = vpop.f32.mrb[0].mxu0
      %1790 = vmatprep.mubr.f32.mxu0 0.0
      %1791 = vmatmul.mubr.f32.gmra.mrb[0].mxu0 %v396
      %v1792 = vpop.f32.mrb[0].mxu0
      %v1793 = vadd.f32 %v1688, %v1792
      %v1794 = vpop.f32.mrb[0].mxu0
      %1795 = vmatprep.mubr.f32.mxu0 0.0
      %1796 = vmatmul.mubr.f32.gmra.mrb[0].mxu0 %v397
      %v1797 = vpop.f32.mrb[0].mxu0
      %v1798 = vadd.f32 %v1693, %v1797
      %v1799 = vpop.f32.mrb[0].mxu0
      %1800 = vmatprep.mubr.f32.mxu0 0.0
      %1801 = vmatmul.mubr.f32.gmra.mrb[0].mxu0 %v398
      %v1802 = vpop.f32.mrb[0].mxu0
      %v1803 = vadd.f32 %v1698, %v1802
      %v1804 = vpop.f32.mrb[0].mxu0
      %1805 = vmatprep.mubr.f32.mxu0 0.0
      %1806 = vmatmul.mubr.f32.gmra.mrb[0].mxu0 %v399
      %v1807 = vpop.f32.mrb[0].mxu0
      %v1808 = vadd.f32 %v1703, %v1807
      %v1809 = vpop.f32.mrb[0].mxu0
      %1810 = vdwg.mxu0
      %v1811 = vld [vmem:[%s4] sm:$0x1]
      %v1813 = vlaneseq
      %v1814 = vshrl.u32 %v1813, 7
      %v1815 = vsub.s32 0, %v1814
      %v1816 = vrot.slane %v1811, %v1815
      %v1818 = vadd.f32 %v1773, %v1816
      %v1819 = vadd.f32 %v1778, %v1816
      %v1820 = vadd.f32 %v1783, %v1816
      %v1821 = vadd.f32 %v1788, %v1816
      %v1822 = vadd.f32 %v1793, %v1816
      %v1823 = vadd.f32 %v1798, %v1816
      %v1824 = vadd.f32 %v1803, %v1816
      %v1825 = vadd.f32 %v1808, %v1816
      %v1826 = vmax.f32 %v1818, 0.0
      %v1827 = vmax.f32 %v1819, 0.0
      %v1828 = vmax.f32 %v1820, 0.0
      %v1829 = vmax.f32 %v1821, 0.0
      %v1830 = vmax.f32 %v1822, 0.0
      %v1831 = vmax.f32 %v1823, 0.0
      %v1832 = vmax.f32 %v1824, 0.0
      %v1833 = vmax.f32 %v1825, 0.0
      %1834 = vst [vmem:[%s244] sm:$0xff] %v1826
      %1835 = vst [vmem:[%s244 + $0x8] sm:$0xff] %v1827
      %1836 = vst [vmem:[%s244 + $0x10] sm:$0xff] %v1828
      %1837 = vst [vmem:[%s244 + $0x18] sm:$0xff] %v1829
      %1838 = vst [vmem:[%s244 + $0x20] sm:$0xff] %v1830
      %1839 = vst [vmem:[%s244 + $0x28] sm:$0xff] %v1831
      %1840 = vst [vmem:[%s244 + $0x30] sm:$0xff] %v1832
      %1841 = vst [vmem:[%s244 + $0x38] sm:$0xff] %v1833
      %p1842 = scmp.lt.s32.totalorder %s16, 1
      %s1843 = scalar_select %p1842, %s16, 1
      %s1844 = smul.addr %s1843, 8
      %s1845 = smul.addr %s1844, 8
      %s1846 = scalar_lea.vmem %s5, %s1845
      // Predicated region
      $region41: #{sdunet_forward.8} parent=39 // pred_check
        %p1847 = pneg %p149
      $region42: #{sdunet_forward.8} parent=39 // pred_check_branch
        %1849 = sbr.rel (%p1847) target = $region44
      $region43: #{sdunet_forward.8} parent=39 // pred_region
        _
      $region44: #{sdunet_forward.8} parent=39 // pred_fallthru
        _
    $region40: #{sdunet_forward.8} parent=5 // pred_fallthru
      _
    %p1850 = scmp.le.s32.totalorder 2, %s11
    // Predicated region
    $region45: #{sdunet_forward.8} parent=5 // pred_check
      %p1851 = pneg %p1850
    $region46: #{sdunet_forward.8} parent=5 // pred_check_branch
      %1853 = sbr.rel (%p1851) target = $region48
    $region47: #{sdunet_forward.8} parent=5 // pred_region
      %s1854 = ssub.s32 %s11, 2
      // Predicated region
      $region49: #{sdunet_forward.8} parent=47 // pred_check
        %p1855 = pneg %p155
      $region50: #{sdunet_forward.8} parent=47 // pred_check_branch
        %1857 = sbr.rel (%p1855) target = $region52
      $region51: #{sdunet_forward.8} parent=47 // pred_region
        %p1858 = scmp.lt.s32.totalorder %s17, 1
        %s1859 = scalar_select %p1858, %s17, 1
        %s1860 = smul.addr %s1859, 8
        %s1861 = smul.addr %s1860, 8
        %s1862 = scalar_lea.vmem %s5, %s1861
      $region52: #{sdunet_forward.8} parent=47 // pred_fallthru
        _
    $region48: #{sdunet_forward.8} parent=5 // pred_fallthru
      _
  $region6: #{sdunet_forward.8} parent=0 // loop_footer
    %s15 = sadd.s32 1, %s11
  $region7: #{sdunet_forward.8} parent=0 // loop_footer_branch
    %10 = sbr.rel target = $region3
  $region8: #{sdunet_forward.8} parent=0 // loop_exit
    _

// kernel: sdunet_forward.9
$region0: #{sdunet_forward.9}
  #allocation0 [shape = 'u32[]', space=smem, size = 0x4, offset = 0x4, fixed_abs, tag = 'smem constant byte address 0x4 - core index']
  #allocation1 [shape = 'u32[144,128]{1,0:T(1,128)}', space=vmem, size = 0x12000, scoped, tag = 'internal scratch']
  #allocation2 [shape = 'f32[20,20,128]{2,1,0:T(8,128)}', space=vmem, size = 0x3c000, scoped, tag = 'scratch operand']
  #allocation3 [shape = 'f32[20,20,128]{2,1,0:T(8,128)}', space=vmem, size = 0x3c000, scoped, tag = 'scratch operand']
  %s0 = inlined_call_operand.vmem [shape: f32[2,16,16,128], index: 0, kind: input, shape index: {}]
  %s1 = inlined_call_operand.vmem [shape: f32[2,16,16,128], index: 1, kind: input, shape index: {}]
  %s2 = inlined_call_operand.vmem [shape: f32[1152,128], index: 2, kind: input, shape index: {}]
  %s3 = inlined_call_operand.vmem [shape: f32[1152,128], index: 3, kind: input, shape index: {}]
  %s4 = inlined_call_operand.vmem [shape: f32[1,128], index: 4, kind: input, shape index: {}]
  %s5 = inlined_call_operand.vmem [shape: f32[128,128], index: 5, kind: input, shape index: {}]
  %s6 = inlined_call_operand.vmem [shape: f32[1,128], index: 6, kind: input, shape index: {}]
  %s7 = inlined_call_operand.vmem [shape: f32[2,16,16,128], index: 7, kind: output, shape index: {}]
  %s8 = sld [smem:[#allocation0]]
  $region61: #{sdunet_forward.9} parent=0
    _
  %s10 = ssub.s32 1, %s8
  %s11 = scalar_select 0, %s10, %s8
  loop: start=0, step=1, limit=4
  $region2: #{sdunet_forward.9} parent=0 // loop_pre_header
    _
  $region3: #{sdunet_forward.9} parent=0 // loop_header
    %s13 = sphi 0, %s17
    %p14 = scmp.ge.s32.totalorder %s13, 4
    %s23 = sphi 0, %s25
    %s26 = sphi 0, %s23
    %s27 = sphi 0, %s26
    %s43 = sphi 0, %s27
    %s49 = sphi 0, %s51
    %s52 = sphi 0, %s49
    %s53 = sphi 0, %s52
    %s69 = sphi 0, %s53
    %s73 = sphi 0, %s73
    %s75 = sphi 0, %s73
    %s76 = sphi 0, %s75
    %s90 = sphi 0, %s76
    %s94 = sphi 0, %s94
    %s96 = sphi 0, %s94
    %s97 = sphi 0, %s96
    %s111 = sphi 0, %s97
    %s115 = sphi 0, %s115
    %s117 = sphi 0, %s115
    %s118 = sphi 0, %s117
    %s132 = sphi 0, %s118
    %s136 = sphi 0, %s136
    %s138 = sphi 0, %s136
    %s139 = sphi 0, %s138
    %s153 = sphi 0, %s139
    %s157 = sphi 0, %s157
    %s159 = sphi 0, %s157
    %s160 = sphi 0, %s159
    %s174 = sphi 0, %s160
    %s180 = sphi 0, %s182
    %s183 = sphi 0, %s180
    %s184 = sphi 0, %s183
    %s200 = sphi 0, %s184
  $region4: #{sdunet_forward.9} parent=0 // loop_header_branch
    %16 = sbr.rel (%p14) target = $region8
  $region5: #{sdunet_forward.9} parent=0 // loop_body
    %s18 = ssub.s32 %s13, 1
    %s19 = ssub.s32 %s13, 2
    %s20 = sadd.s32 %s13, 1
    %s21 = ssub.s32 %s13, %s20
    %p22 = scmp.eq.s32.totalorder %s21, 0
    %s24 = sadd.s32 %s23, 1
    %s25 = scalar_select %p22, %s23, %s24
    %p28 = pneg %p22
    %p29 = scmp.eq.s32.totalorder %s13, 1
    %p30 = por %p28, %p29
    %p31 = scmp.ne.s32.totalorder %s23, %s26
    %p32 = scmp.eq.s32.totalorder %s13, 0
    %p33 = por %p31, %p32
    %p34 = scmp.ne.s32.totalorder %s23, %s26
    %p35 = scmp.eq.s32.totalorder %s18, 1
    %p36 = por %p34, %p35
    %p37 = scmp.ne.s32.totalorder %s26, %s27
    %p38 = scmp.eq.s32.totalorder %s18, 0
    %p39 = por %p37, %p38
    %p40 = scmp.ne.s32.totalorder %s26, %s27
    %p41 = scmp.eq.s32.totalorder %s19, 1
    %p42 = por %p40, %p41
    %p44 = scmp.ne.s32.totalorder %s27, %s43
    %p45 = scmp.eq.s32.totalorder %s19, 0
    %p46 = por %p44, %p45
    %s47 = ssub.s32 %s13, %s20
    %p48 = scmp.eq.s32.totalorder %s47, 0
    %s50 = sadd.s32 %s49, 1
    %s51 = scalar_select %p48, %s49, %s50
    %p54 = pneg %p48
    %p55 = scmp.eq.s32.totalorder %s13, 1
    %p56 = por %p54, %p55
    %p57 = scmp.ne.s32.totalorder %s49, %s52
    %p58 = scmp.eq.s32.totalorder %s13, 0
    %p59 = por %p57, %p58
    %p60 = scmp.ne.s32.totalorder %s49, %s52
    %p61 = scmp.eq.s32.totalorder %s18, 1
    %p62 = por %p60, %p61
    %p63 = scmp.ne.s32.totalorder %s52, %s53
    %p64 = scmp.eq.s32.totalorder %s18, 0
    %p65 = por %p63, %p64
    %p66 = scmp.ne.s32.totalorder %s52, %s53
    %p67 = scmp.eq.s32.totalorder %s19, 1
    %p68 = por %p66, %p67
    %p70 = scmp.ne.s32.totalorder %s53, %s69
    %p71 = scmp.eq.s32.totalorder %s19, 0
    %p72 = por %p70, %p71
    %s74 = sadd.s32 %s73, 1
    %p77 = scmp.eq.s32.totalorder %s13, 1
    %p78 = scmp.ne.s32.totalorder %s73, %s75
    %p79 = scmp.eq.s32.totalorder %s13, 0
    %p80 = por %p78, %p79
    %p81 = scmp.ne.s32.totalorder %s73, %s75
    %p82 = scmp.eq.s32.totalorder %s18, 1
    %p83 = por %p81, %p82
    %p84 = scmp.ne.s32.totalorder %s75, %s76
    %p85 = scmp.eq.s32.totalorder %s18, 0
    %p86 = por %p84, %p85
    %p87 = scmp.ne.s32.totalorder %s75, %s76
    %p88 = scmp.eq.s32.totalorder %s19, 1
    %p89 = por %p87, %p88
    %p91 = scmp.ne.s32.totalorder %s76, %s90
    %p92 = scmp.eq.s32.totalorder %s19, 0
    %p93 = por %p91, %p92
    %s95 = sadd.s32 %s94, 1
    %p98 = scmp.eq.s32.totalorder %s13, 1
    %p99 = scmp.ne.s32.totalorder %s94, %s96
    %p100 = scmp.eq.s32.totalorder %s13, 0
    %p101 = por %p99, %p100
    %p102 = scmp.ne.s32.totalorder %s94, %s96
    %p103 = scmp.eq.s32.totalorder %s18, 1
    %p104 = por %p102, %p103
    %p105 = scmp.ne.s32.totalorder %s96, %s97
    %p106 = scmp.eq.s32.totalorder %s18, 0
    %p107 = por %p105, %p106
    %p108 = scmp.ne.s32.totalorder %s96, %s97
    %p109 = scmp.eq.s32.totalorder %s19, 1
    %p110 = por %p108, %p109
    %p112 = scmp.ne.s32.totalorder %s97, %s111
    %p113 = scmp.eq.s32.totalorder %s19, 0
    %p114 = por %p112, %p113
    %s116 = sadd.s32 %s115, 1
    %p119 = scmp.eq.s32.totalorder %s13, 1
    %p120 = scmp.ne.s32.totalorder %s115, %s117
    %p121 = scmp.eq.s32.totalorder %s13, 0
    %p122 = por %p120, %p121
    %p123 = scmp.ne.s32.totalorder %s115, %s117
    %p124 = scmp.eq.s32.totalorder %s18, 1
    %p125 = por %p123, %p124
    %p126 = scmp.ne.s32.totalorder %s117, %s118
    %p127 = scmp.eq.s32.totalorder %s18, 0
    %p128 = por %p126, %p127
    %p129 = scmp.ne.s32.totalorder %s117, %s118
    %p130 = scmp.eq.s32.totalorder %s19, 1
    %p131 = por %p129, %p130
    %p133 = scmp.ne.s32.totalorder %s118, %s132
    %p134 = scmp.eq.s32.totalorder %s19, 0
    %p135 = por %p133, %p134
    %s137 = sadd.s32 %s136, 1
    %p140 = scmp.eq.s32.totalorder %s13, 1
    %p141 = scmp.ne.s32.totalorder %s136, %s138
    %p142 = scmp.eq.s32.totalorder %s13, 0
    %p143 = por %p141, %p142
    %p144 = scmp.ne.s32.totalorder %s136, %s138
    %p145 = scmp.eq.s32.totalorder %s18, 1
    %p146 = por %p144, %p145
    %p147 = scmp.ne.s32.totalorder %s138, %s139
    %p148 = scmp.eq.s32.totalorder %s18, 0
    %p149 = por %p147, %p148
    %p150 = scmp.ne.s32.totalorder %s138, %s139
    %p151 = scmp.eq.s32.totalorder %s19, 1
    %p152 = por %p150, %p151
    %p154 = scmp.ne.s32.totalorder %s139, %s153
    %p155 = scmp.eq.s32.totalorder %s19, 0
    %p156 = por %p154, %p155
    %s158 = sadd.s32 %s157, 1
    %p161 = scmp.eq.s32.totalorder %s13, 1
    %p162 = scmp.ne.s32.totalorder %s157, %s159
    %p163 = scmp.eq.s32.totalorder %s13, 0
    %p164 = por %p162, %p163
    %p165 = scmp.ne.s32.totalorder %s157, %s159
    %p166 = scmp.eq.s32.totalorder %s18, 1
    %p167 = por %p165, %p166
    %p168 = scmp.ne.s32.totalorder %s159, %s160
    %p169 = scmp.eq.s32.totalorder %s18, 0
    %p170 = por %p168, %p169
    %p171 = scmp.ne.s32.totalorder %s159, %s160
    %p172 = scmp.eq.s32.totalorder %s19, 1
    %p173 = por %p171, %p172
    %p175 = scmp.ne.s32.totalorder %s160, %s174
    %p176 = scmp.eq.s32.totalorder %s19, 0
    %p177 = por %p175, %p176
    %s178 = ssub.s32 %s13, %s20
    %p179 = scmp.eq.s32.totalorder %s178, 0
    %s181 = sadd.s32 %s180, 1
    %s182 = scalar_select %p179, %s180, %s181
    %p185 = pneg %p179
    %p186 = scmp.eq.s32.totalorder %s13, 1
    %p187 = por %p185, %p186
    %p188 = scmp.ne.s32.totalorder %s180, %s183
    %p189 = scmp.eq.s32.totalorder %s13, 0
    %p190 = por %p188, %p189
    %p191 = scmp.ne.s32.totalorder %s180, %s183
    %p192 = scmp.eq.s32.totalorder %s18, 1
    %p193 = por %p191, %p192
    %p194 = scmp.ne.s32.totalorder %s183, %s184
    %p195 = scmp.eq.s32.totalorder %s18, 0
    %p196 = por %p194, %p195
    %p197 = scmp.ne.s32.totalorder %s183, %s184
    %p198 = scmp.eq.s32.totalorder %s19, 1
    %p199 = por %p197, %p198
    %p201 = scmp.ne.s32.totalorder %s184, %s200
    %p202 = scmp.eq.s32.totalorder %s19, 0
    %p203 = por %p201, %p202
    %p204 = scmp.le.s32.totalorder 1, %s13
    %p205 = scmp.lt.s32.totalorder %s13, 3
    %p206 = pnand %p204, %p205
    %p207 = pneg %p206
    // Predicated region
    $region9: #{sdunet_forward.9} parent=5 // pred_check
      _
    $region10: #{sdunet_forward.9} parent=5 // pred_check_branch
      %209 = sbr.rel (%p206) target = $region12
    $region11: #{sdunet_forward.9} parent=5 // pred_region
      %s210 = ssub.s32 %s13, 1
      // Predicated region
      $region13: #{sdunet_forward.9} parent=11 // pred_check
        %p211 = pneg %p86
      $region14: #{sdunet_forward.9} parent=11 // pred_check_branch
        %213 = sbr.rel (%p211) target = $region16
      $region15: #{sdunet_forward.9} parent=11 // pred_region
        _
      $region16: #{sdunet_forward.9} parent=11 // pred_fallthru
        _
      // Predicated region
      $region17: #{sdunet_forward.9} parent=11 // pred_check
        %p214 = pneg %p107
      $region18: #{sdunet_forward.9} parent=11 // pred_check_branch
        %216 = sbr.rel (%p214) target = $region20
      $region19: #{sdunet_forward.9} parent=11 // pred_region
        _
      $region20: #{sdunet_forward.9} parent=11 // pred_fallthru
        _
      // Predicated region
      $region21: #{sdunet_forward.9} parent=11 // pred_check
        %p217 = pneg %p128
      $region22: #{sdunet_forward.9} parent=11 // pred_check_branch
        %219 = sbr.rel (%p217) target = $region24
      $region23: #{sdunet_forward.9} parent=11 // pred_region
        _
      $region24: #{sdunet_forward.9} parent=11 // pred_fallthru
        _
      // Predicated region
      $region25: #{sdunet_forward.9} parent=11 // pred_check
        %p220 = pneg %p149
      $region26: #{sdunet_forward.9} parent=11 // pred_check_branch
        %222 = sbr.rel (%p220) target = $region28
      $region27: #{sdunet_forward.9} parent=11 // pred_region
        _
      $region28: #{sdunet_forward.9} parent=11 // pred_fallthru
        _
      // Predicated region
      $region29: #{sdunet_forward.9} parent=11 // pred_check
        %p223 = pneg %p170
      $region30: #{sdunet_forward.9} parent=11 // pred_check_branch
        %225 = sbr.rel (%p223) target = $region32
      $region31: #{sdunet_forward.9} parent=11 // pred_region
        _
      $region32: #{sdunet_forward.9} parent=11 // pred_fallthru
        _
    $region12: #{sdunet_forward.9} parent=5 // pred_fallthru
      _
    %p226 = scmp.lt.s32.totalorder %s13, 2
    // Predicated region
    $region33: #{sdunet_forward.9} parent=5 // pred_check
      %p227 = pneg %p226
    $region34: #{sdunet_forward.9} parent=5 // pred_check_branch
      %229 = sbr.rel (%p227) target = $region36
    $region35: #{sdunet_forward.9} parent=5 // pred_region
      // Predicated region
      $region37: #{sdunet_forward.9} parent=35 // pred_check
        %p230 = pneg %p33
      $region38: #{sdunet_forward.9} parent=35 // pred_check_branch
        %232 = sbr.rel (%p230) target = $region40
      $region39: #{sdunet_forward.9} parent=35 // pred_region
        %p233 = scmp.lt.s32.totalorder %s13, 1
        %s234 = scalar_select %p233, %s13, 1
        %s235 = smul.addr %s234, 32
        %s236 = smul.addr %s235, 8
        %s237 = scalar_lea.vmem %s0, %s236
      $region40: #{sdunet_forward.9} parent=35 // pred_fallthru
        _
      // Predicated region
      $region41: #{sdunet_forward.9} parent=35 // pred_check
        %p238 = pneg %p59
      $region42: #{sdunet_forward.9} parent=35 // pred_check_branch
        %240 = sbr.rel (%p238) target = $region44
      $region43: #{sdunet_forward.9} parent=35 // pred_region
        %p241 = scmp.lt.s32.totalorder %s13, 1
        %s242 = scalar_select %p241, %s13, 1
        %s243 = smul.addr %s242, 32
        %s244 = smul.addr %s243, 8
        %s245 = scalar_lea.vmem %s1, %s244
      $region44: #{sdunet_forward.9} parent=35 // pred_fallthru
        _
    $region36: #{sdunet_forward.9} parent=5 // pred_fallthru
      _
    %p246 = scmp.le.s32.totalorder 1, %s13
    %p247 = scmp.lt.s32.totalorder %s13, 3
    %p248 = pnand %p246, %p247
    %p249 = pneg %p248
    // Predicated region
    $region45: #{sdunet_forward.9} parent=5 // pred_check
      _
    $region46: #{sdunet_forward.9} parent=5 // pred_check_branch
      %251 = sbr.rel (%p248) target = $region48
    $region47: #{sdunet_forward.9} parent=5 // pred_region
      %s252 = ssub.s32 %s13, 1
      %p253 = scmp.lt.s32.totalorder %s18, 1
      %s254 = scalar_select %p253, %s18, 1
      %s255 = smul.addr %s254, 32
      %s256 = smul.addr %s255, 8
      %s257 = scalar_lea.vmem %s0, %s256
      %p258 = pneg %p39
      %p259 = pneg %p36
      %p260 = scmp.lt.s32.totalorder %s18, 1
      %s261 = scalar_select %p260, %s18, 1
      %s262 = smul.addr %s261, 32
      %s263 = smul.addr %s262, 8
      %s264 = scalar_lea.vmem %s1, %s263
      %p265 = pneg %p65
      %p266 = pneg %p62
      %p267 = pneg %p86
      %p268 = pneg %p83
      %p269 = pneg %p107
      %p270 = pneg %p104
      %p271 = pneg %p128
      %p272 = pneg %p125
      %p273 = pneg %p149
      %p274 = pneg %p146
      %p275 = pneg %p170
      %p276 = pneg %p167
      %p277 = pneg %p196
      %p278 = pneg %p193
      %p279 = scmp.lt.s32.totalorder %s18, 1
      %s280 = scalar_select %p279, %s18, 1
      %s281 = smul.addr %s280, 32
      %s282 = smul.addr %s281, 8
      %s283 = scalar_lea.vmem %s7, %s282
      %p284 = scmp.lt.s32.totalorder %s18, 1
      %s285 = scalar_select %p284, %s18, 1
      %s286 = smul.addr %s285, 32
      %s287 = smul.addr %s286, 8
      %s288 = scalar_lea.vmem %s0, %s287
      %p289 = scmp.lt.s32.totalorder %s18, 1
      %s290 = scalar_select %p289, %s18, 1
      %s291 = smul.addr %s290, 32
      %s292 = smul.addr %s291, 8
      %s293 = scalar_lea.vmem %s1, %s292
      %p294 = scmp.lt.s32.totalorder %s18, 1
      %s295 = scalar_select %p294, %s18, 1
      %s296 = smul.addr %s295, 32
      %s297 = smul.addr %s296, 8
      %s298 = scalar_lea.vmem %s7, %s297
      %299 = vst [vmem:[#allocation2] sm:$0xff] 0.0
      %300 = vst [vmem:[#allocation2 + $0x8] sm:$0xff] 0.0
      %301 = vst [vmem:[#allocation2 + $0x10] sm:$0xf] 0.0
      %302 = vst [vmem:[#allocation2 + $0x18] sm:$0xff] 0.0
      %303 = vst [vmem:[#allocation2 + $0x20] sm:$0xff] 0.0
      %304 = vst [vmem:[#allocation2 + $0x28] sm:$0xf] 0.0
      %305 = vst [vmem:[#allocation2 + $0x30] sm:$0xff] 0.0
      %306 = vst [vmem:[#allocation2 + $0x38] sm:$0xff] 0.0
      %307 = vst [vmem:[#allocation2 + $0x40] sm:$0xf] 0.0
      %308 = vst [vmem:[#allocation2 + $0x48] sm:$0xff] 0.0
      %309 = vst [vmem:[#allocation2 + $0x50] sm:$0xff] 0.0
      %310 = vst [vmem:[#allocation2 + $0x58] sm:$0xf] 0.0
      %311 = vst [vmem:[#allocation2 + $0x60] sm:$0xff] 0.0
      %312 = vst [vmem:[#allocation2 + $0x68] sm:$0xff] 0.0
      %313 = vst [vmem:[#allocation2 + $0x70] sm:$0xf] 0.0
      %314 = vst [vmem:[#allocation2 + $0x78] sm:$0xff] 0.0
      %315 = vst [vmem:[#allocation2 + $0x80] sm:$0xff] 0.0
      %316 = vst [vmem:[#allocation2 + $0x88] sm:$0xf] 0.0
      %317 = vst [vmem:[#allocation2 + $0x90] sm:$0xff] 0.0
      %318 = vst [vmem:[#allocation2 + $0x98] sm:$0xff] 0.0
      %319 = vst [vmem:[#allocation2 + $0xa0] sm:$0xf] 0.0
      %320 = vst [vmem:[#allocation2 + $0xa8] sm:$0xff] 0.0
      %321 = vst [vmem:[#allocation2 + $0xb0] sm:$0xff] 0.0
      %322 = vst [vmem:[#allocation2 + $0xb8] sm:$0xf] 0.0
      %323 = vst [vmem:[#allocation2 + $0xc0] sm:$0xff] 0.0
      %324 = vst [vmem:[#allocation2 + $0xc8] sm:$0xff] 0.0
      %325 = vst [vmem:[#allocation2 + $0xd0] sm:$0xf] 0.0
      %326 = vst [vmem:[#allocation2 + $0xd8] sm:$0xff] 0.0
      %327 = vst [vmem:[#allocation2 + $0xe0] sm:$0xff] 0.0
      %328 = vst [vmem:[#allocation2 + $0xe8] sm:$0xf] 0.0
      %329 = vst [vmem:[#allocation2 + $0xf0] sm:$0xff] 0.0
      %330 = vst [vmem:[#allocation2 + $0xf8] sm:$0xff] 0.0
      %331 = vst [vmem:[#allocation2 + $0x100] sm:$0xf] 0.0
      %332 = vst [vmem:[#allocation2 + $0x108] sm:$0xff] 0.0
      %333 = vst [vmem:[#allocation2 + $0x110] sm:$0xff] 0.0
      %334 = vst [vmem:[#allocation2 + $0x118] sm:$0xf] 0.0
      %335 = vst [vmem:[#allocation2 + $0x120] sm:$0xff] 0.0
      %336 = vst [vmem:[#allocation2 + $0x128] sm:$0xff] 0.0
      %337 = vst [vmem:[#allocation2 + $0x130] sm:$0xf] 0.0
      %338 = vst [vmem:[#allocation2 + $0x138] sm:$0xff] 0.0
      %339 = vst [vmem:[#allocation2 + $0x140] sm:$0xff] 0.0
      %340 = vst [vmem:[#allocation2 + $0x148] sm:$0xf] 0.0
      %341 = vst [vmem:[#allocation2 + $0x150] sm:$0xff] 0.0
      %342 = vst [vmem:[#allocation2 + $0x158] sm:$0xff] 0.0
      %343 = vst [vmem:[#allocation2 + $0x160] sm:$0xf] 0.0
      %344 = vst [vmem:[#allocation2 + $0x168] sm:$0xff] 0.0
      %345 = vst [vmem:[#allocation2 + $0x170] sm:$0xff] 0.0
      %346 = vst [vmem:[#allocation2 + $0x178] sm:$0xf] 0.0
      %347 = vst [vmem:[#allocation2 + $0x180] sm:$0xff] 0.0
      %348 = vst [vmem:[#allocation2 + $0x188] sm:$0xff] 0.0
      %349 = vst [vmem:[#allocation2 + $0x190] sm:$0xf] 0.0
      %350 = vst [vmem:[#allocation2 + $0x198] sm:$0xff] 0.0
      %351 = vst [vmem:[#allocation2 + $0x1a0] sm:$0xff] 0.0
      %352 = vst [vmem:[#allocation2 + $0x1a8] sm:$0xf] 0.0
      %353 = vst [vmem:[#allocation2 + $0x1b0] sm:$0xff] 0.0
      %354 = vst [vmem:[#allocation2 + $0x1b8] sm:$0xff] 0.0
      %355 = vst [vmem:[#allocation2 + $0x1c0] sm:$0xf] 0.0
      %356 = vst [vmem:[#allocation2 + $0x1c8] sm:$0xff] 0.0
      %357 = vst [vmem:[#allocation2 + $0x1d0] sm:$0xff] 0.0
      %358 = vst [vmem:[#allocation2 + $0x1d8] sm:$0xf] 0.0
      %359 = vst [vmem:[#allocation3] sm:$0xff] 0.0
      %360 = vst [vmem:[#allocation3 + $0x8] sm:$0xff] 0.0
      %361 = vst [vmem:[#allocation3 + $0x10] sm:$0xf] 0.0
      %362 = vst [vmem:[#allocation3 + $0x18] sm:$0xff] 0.0
      %363 = vst [vmem:[#allocation3 + $0x20] sm:$0xff] 0.0
      %364 = vst [vmem:[#allocation3 + $0x28] sm:$0xf] 0.0
      %365 = vst [vmem:[#allocation3 + $0x30] sm:$0xff] 0.0
      %366 = vst [vmem:[#allocation3 + $0x38] sm:$0xff] 0.0
      %367 = vst [vmem:[#allocation3 + $0x40] sm:$0xf] 0.0
      %368 = vst [vmem:[#allocation3 + $0x48] sm:$0xff] 0.0
      %369 = vst [vmem:[#allocation3 + $0x50] sm:$0xff] 0.0
      %370 = vst [vmem:[#allocation3 + $0x58] sm:$0xf] 0.0
      %371 = vst [vmem:[#allocation3 + $0x60] sm:$0xff] 0.0
      %372 = vst [vmem:[#allocation3 + $0x68] sm:$0xff] 0.0
      %373 = vst [vmem:[#allocation3 + $0x70] sm:$0xf] 0.0
      %374 = vst [vmem:[#allocation3 + $0x78] sm:$0xff] 0.0
      %375 = vst [vmem:[#allocation3 + $0x80] sm:$0xff] 0.0
      %376 = vst [vmem:[#allocation3 + $0x88] sm:$0xf] 0.0
      %377 = vst [vmem:[#allocation3 + $0x90] sm:$0xff] 0.0
      %378 = vst [vmem:[#allocation3 + $0x98] sm:$0xff] 0.0
      %379 = vst [vmem:[#allocation3 + $0xa0] sm:$0xf] 0.0
      %380 = vst [vmem:[#allocation3 + $0xa8] sm:$0xff] 0.0
      %381 = vst [vmem:[#allocation3 + $0xb0] sm:$0xff] 0.0
      %382 = vst [vmem:[#allocation3 + $0xb8] sm:$0xf] 0.0
      %383 = vst [vmem:[#allocation3 + $0xc0] sm:$0xff] 0.0
      %384 = vst [vmem:[#allocation3 + $0xc8] sm:$0xff] 0.0
      %385 = vst [vmem:[#allocation3 + $0xd0] sm:$0xf] 0.0
      %386 = vst [vmem:[#allocation3 + $0xd8] sm:$0xff] 0.0
      %387 = vst [vmem:[#allocation3 + $0xe0] sm:$0xff] 0.0
      %388 = vst [vmem:[#allocation3 + $0xe8] sm:$0xf] 0.0
      %389 = vst [vmem:[#allocation3 + $0xf0] sm:$0xff] 0.0
      %390 = vst [vmem:[#allocation3 + $0xf8] sm:$0xff] 0.0
      %391 = vst [vmem:[#allocation3 + $0x100] sm:$0xf] 0.0
      %392 = vst [vmem:[#allocation3 + $0x108] sm:$0xff] 0.0
      %393 = vst [vmem:[#allocation3 + $0x110] sm:$0xff] 0.0
      %394 = vst [vmem:[#allocation3 + $0x118] sm:$0xf] 0.0
      %395 = vst [vmem:[#allocation3 + $0x120] sm:$0xff] 0.0
      %396 = vst [vmem:[#allocation3 + $0x128] sm:$0xff] 0.0
      %397 = vst [vmem:[#allocation3 + $0x130] sm:$0xf] 0.0
      %398 = vst [vmem:[#allocation3 + $0x138] sm:$0xff] 0.0
      %399 = vst [vmem:[#allocation3 + $0x140] sm:$0xff] 0.0
      %400 = vst [vmem:[#allocation3 + $0x148] sm:$0xf] 0.0
      %401 = vst [vmem:[#allocation3 + $0x150] sm:$0xff] 0.0
      %402 = vst [vmem:[#allocation3 + $0x158] sm:$0xff] 0.0
      %403 = vst [vmem:[#allocation3 + $0x160] sm:$0xf] 0.0
      %404 = vst [vmem:[#allocation3 + $0x168] sm:$0xff] 0.0
      %405 = vst [vmem:[#allocation3 + $0x170] sm:$0xff] 0.0
      %406 = vst [vmem:[#allocation3 + $0x178] sm:$0xf] 0.0
      %407 = vst [vmem:[#allocation3 + $0x180] sm:$0xff] 0.0
      %408 = vst [vmem:[#allocation3 + $0x188] sm:$0xff] 0.0
      %409 = vst [vmem:[#allocation3 + $0x190] sm:$0xf] 0.0
      %410 = vst [vmem:[#allocation3 + $0x198] sm:$0xff] 0.0
      %411 = vst [vmem:[#allocation3 + $0x1a0] sm:$0xff] 0.0
      %412 = vst [vmem:[#allocation3 + $0x1a8] sm:$0xf] 0.0
      %413 = vst [vmem:[#allocation3 + $0x1b0] sm:$0xff] 0.0
      %414 = vst [vmem:[#allocation3 + $0x1b8] sm:$0xff] 0.0
      %415 = vst [vmem:[#allocation3 + $0x1c0] sm:$0xf] 0.0
      %416 = vst [vmem:[#allocation3 + $0x1c8] sm:$0xff] 0.0
      %417 = vst [vmem:[#allocation3 + $0x1d0] sm:$0xff] 0.0
      %418 = vst [vmem:[#allocation3 + $0x1d8] sm:$0xf] 0.0
      %v419 = vld [vmem:[%s288] sm:$0xff]
      %v420 = vld [vmem:[%s288 + $0x8] sm:$0xff]
      %v421 = vld [vmem:[%s288 + $0x10] sm:$0xff]
      %v422 = vld [vmem:[%s288 + $0x18] sm:$0xff]
      %v423 = vld [vmem:[%s288 + $0x20] sm:$0xff]
      %v424 = vld [vmem:[%s288 + $0x28] sm:$0xff]
      %v425 = vld [vmem:[%s288 + $0x30] sm:$0xff]
      %v426 = vld [vmem:[%s288 + $0x38] sm:$0xff]
      %v427 = vld [vmem:[%s288 + $0x40] sm:$0xff]
      %v428 = vld [vmem:[%s288 + $0x48] sm:$0xff]
      %v429 = vld [vmem:[%s288 + $0x50] sm:$0xff]
      %v430 = vld [vmem:[%s288 + $0x58] sm:$0xff]
      %v431 = vld [vmem:[%s288 + $0x60] sm:$0xff]
      %v432 = vld [vmem:[%s288 + $0x68] sm:$0xff]
      %v433 = vld [vmem:[%s288 + $0x70] sm:$0xff]
      %v434 = vld [vmem:[%s288 + $0x78] sm:$0xff]
      %v435 = vld [vmem:[%s288 + $0x80] sm:$0xff]
      %v436 = vld [vmem:[%s288 + $0x88] sm:$0xff]
      %v437 = vld [vmem:[%s288 + $0x90] sm:$0xff]
      %v438 = vld [vmem:[%s288 + $0x98] sm:$0xff]
      %v439 = vld [vmem:[%s288 + $0xa0] sm:$0xff]
      %v440 = vld [vmem:[%s288 + $0xa8] sm:$0xff]
      %v441 = vld [vmem:[%s288 + $0xb0] sm:$0xff]
      %v442 = vld [vmem:[%s288 + $0xb8] sm:$0xff]
      %v443 = vld [vmem:[%s288 + $0xc0] sm:$0xff]
      %v444 = vld [vmem:[%s288 + $0xc8] sm:$0xff]
      %v445 = vld [vmem:[%s288 + $0xd0] sm:$0xff]
      %v446 = vld [vmem:[%s288 + $0xd8] sm:$0xff]
      %v447 = vld [vmem:[%s288 + $0xe0] sm:$0xff]
      %v448 = vld [vmem:[%s288 + $0xe8] sm:$0xff]
      %v449 = vld [vmem:[%s288 + $0xf0] sm:$0xff]
      %v450 = vld [vmem:[%s288 + $0xf8] sm:$0xff]
      %s451 = scalar_lea.vmem [#allocation2], 48
      %452 = vst [vmem:[%s451 + $0x2] sm:$0xff] %v419
      %453 = vst [vmem:[%s451 + $0xa] sm:$0xff] %v420
      %454 = vst [vmem:[%s451 + $0x1a] sm:$0xff] %v421
      %455 = vst [vmem:[%s451 + $0x22] sm:$0xff] %v422
      %456 = vst [vmem:[%s451 + $0x32] sm:$0xff] %v423
      %457 = vst [vmem:[%s451 + $0x3a] sm:$0xff] %v424
      %458 = vst [vmem:[%s451 + $0x4a] sm:$0xff] %v425
      %459 = vst [vmem:[%s451 + $0x52] sm:$0xff] %v426
      %460 = vst [vmem:[%s451 + $0x62] sm:$0xff] %v427
      %461 = vst [vmem:[%s451 + $0x6a] sm:$0xff] %v428
      %462 = vst [vmem:[%s451 + $0x7a] sm:$0xff] %v429
      %463 = vst [vmem:[%s451 + $0x82] sm:$0xff] %v430
      %464 = vst [vmem:[%s451 + $0x92] sm:$0xff] %v431
      %465 = vst [vmem:[%s451 + $0x9a] sm:$0xff] %v432
      %466 = vst [vmem:[%s451 + $0xaa] sm:$0xff] %v433
      %467 = vst [vmem:[%s451 + $0xb2] sm:$0xff] %v434
      %468 = vst [vmem:[%s451 + $0xc2] sm:$0xff] %v435
      %469 = vst [vmem:[%s451 + $0xca] sm:$0xff] %v436
      %470 = vst [vmem:[%s451 + $0xda] sm:$0xff] %v437
      %471 = vst [vmem:[%s451 + $0xe2] sm:$0xff] %v438
      %472 = vst [vmem:[%s451 + $0xf2] sm:$0xff] %v439
      %473 = vst [vmem:[%s451 + $0xfa] sm:$0xff] %v440
      %474 = vst [vmem:[%s451 + $0x10a] sm:$0xff] %v441
      %475 = vst [vmem:[%s451 + $0x112] sm:$0xff] %v442
      %476 = vst [vmem:[%s451 + $0x122] sm:$0xff] %v443
      %477 = vst [vmem:[%s451 + $0x12a] sm:$0xff] %v444
      %478 = vst [vmem:[%s451 + $0x13a] sm:$0xff] %v445
      %479 = vst [vmem:[%s451 + $0x142] sm:$0xff] %v446
      %480 = vst [vmem:[%s451 + $0x152] sm:$0xff] %v447
      %481 = vst [vmem:[%s451 + $0x15a] sm:$0xff] %v448
      %482 = vst [vmem:[%s451 + $0x16a] sm:$0xff] %v449
      %483 = vst [vmem:[%s451 + $0x172] sm:$0xff] %v450
      %v484 = vld [vmem:[%s293] sm:$0xff]
      %v485 = vld [vmem:[%s293 + $0x8] sm:$0xff]
      %v486 = vld [vmem:[%s293 + $0x10] sm:$0xff]
      %v487 = vld [vmem:[%s293 + $0x18] sm:$0xff]
      %v488 = vld [vmem:[%s293 + $0x20] sm:$0xff]
      %v489 = vld [vmem:[%s293 + $0x28] sm:$0xff]
      %v490 = vld [vmem:[%s293 + $0x30] sm:$0xff]
      %v491 = vld [vmem:[%s293 + $0x38] sm:$0xff]
      %v492 = vld [vmem:[%s293 + $0x40] sm:$0xff]
      %v493 = vld [vmem:[%s293 + $0x48] sm:$0xff]
      %v494 = vld [vmem:[%s293 + $0x50] sm:$0xff]
      %v495 = vld [vmem:[%s293 + $0x58] sm:$0xff]
      %v496 = vld [vmem:[%s293 + $0x60] sm:$0xff]
      %v497 = vld [vmem:[%s293 + $0x68] sm:$0xff]
      %v498 = vld [vmem:[%s293 + $0x70] sm:$0xff]
      %v499 = vld [vmem:[%s293 + $0x78] sm:$0xff]
      %v500 = vld [vmem:[%s293 + $0x80] sm:$0xff]
      %v501 = vld [vmem:[%s293 + $0x88] sm:$0xff]
      %v502 = vld [vmem:[%s293 + $0x90] sm:$0xff]
      %v503 = vld [vmem:[%s293 + $0x98] sm:$0xff]
      %v504 = vld [vmem:[%s293 + $0xa0] sm:$0xff]
      %v505 = vld [vmem:[%s293 + $0xa8] sm:$0xff]
      %v506 = vld [vmem:[%s293 + $0xb0] sm:$0xff]
      %v507 = vld [vmem:[%s293 + $0xb8] sm:$0xff]
      %v508 = vld [vmem:[%s293 + $0xc0] sm:$0xff]
      %v509 = vld [vmem:[%s293 + $0xc8] sm:$0xff]
      %v510 = vld [vmem:[%s293 + $0xd0] sm:$0xff]
      %v511 = vld [vmem:[%s293 + $0xd8] sm:$0xff]
      %v512 = vld [vmem:[%s293 + $0xe0] sm:$0xff]
      %v513 = vld [vmem:[%s293 + $0xe8] sm:$0xff]
      %v514 = vld [vmem:[%s293 + $0xf0] sm:$0xff]
      %v515 = vld [vmem:[%s293 + $0xf8] sm:$0xff]
      %s516 = scalar_lea.vmem [#allocation3], 48
      %517 = vst [vmem:[%s516 + $0x2] sm:$0xff] %v484
      %518 = vst [vmem:[%s516 + $0xa] sm:$0xff] %v485
      %519 = vst [vmem:[%s516 + $0x1a] sm:$0xff] %v486
      %520 = vst [vmem:[%s516 + $0x22] sm:$0xff] %v487
      %521 = vst [vmem:[%s516 + $0x32] sm:$0xff] %v488
      %522 = vst [vmem:[%s516 + $0x3a] sm:$0xff] %v489
      %523 = vst [vmem:[%s516 + $0x4a] sm:$0xff] %v490
      %524 = vst [vmem:[%s516 + $0x52] sm:$0xff] %v491
      %525 = vst [vmem:[%s516 + $0x62] sm:$0xff] %v492
      %526 = vst [vmem:[%s516 + $0x6a] sm:$0xff] %v493
      %527 = vst [vmem:[%s516 + $0x7a] sm:$0xff] %v494
      %528 = vst [vmem:[%s516 + $0x82] sm:$0xff] %v495
      %529 = vst [vmem:[%s516 + $0x92] sm:$0xff] %v496
      %530 = vst [vmem:[%s516 + $0x9a] sm:$0xff] %v497
      %531 = vst [vmem:[%s516 + $0xaa] sm:$0xff] %v498
      %532 = vst [vmem:[%s516 + $0xb2] sm:$0xff] %v499
      %533 = vst [vmem:[%s516 + $0xc2] sm:$0xff] %v500
      %534 = vst [vmem:[%s516 + $0xca] sm:$0xff] %v501
      %535 = vst [vmem:[%s516 + $0xda] sm:$0xff] %v502
      %536 = vst [vmem:[%s516 + $0xe2] sm:$0xff] %v503
      %537 = vst [vmem:[%s516 + $0xf2] sm:$0xff] %v504
      %538 = vst [vmem:[%s516 + $0xfa] sm:$0xff] %v505
      %539 = vst [vmem:[%s516 + $0x10a] sm:$0xff] %v506
      %540 = vst [vmem:[%s516 + $0x112] sm:$0xff] %v507
      %541 = vst [vmem:[%s516 + $0x122] sm:$0xff] %v508
      %542 = vst [vmem:[%s516 + $0x12a] sm:$0xff] %v509
      %543 = vst [vmem:[%s516 + $0x13a] sm:$0xff] %v510
      %544 = vst [vmem:[%s516 + $0x142] sm:$0xff] %v511
      %545 = vst [vmem:[%s516 + $0x152] sm:$0xff] %v512
      %546 = vst [vmem:[%s516 + $0x15a] sm:$0xff] %v513
      %547 = vst [vmem:[%s516 + $0x16a] sm:$0xff] %v514
      %548 = vst [vmem:[%s516 + $0x172] sm:$0xff] %v515
      %v549 = vld [vmem:[#allocation2] sm:$0xff]
      %v550 = vld [vmem:[#allocation2 + $0x8] sm:$0xff]
      %v551 = vld [vmem:[#allocation2 + $0x18] sm:$0xff]
      %v552 = vld [vmem:[#allocation2 + $0x20] sm:$0xff]
      %v553 = vld [vmem:[#allocation2 + $0x30] sm:$0xff]
      %v554 = vld [vmem:[#allocation2 + $0x38] sm:$0xff]
      %v555 = vld [vmem:[#allocation2 + $0x48] sm:$0xff]
      %v556 = vld [vmem:[#allocation2 + $0x50] sm:$0xff]
      %v557 = vld [vmem:[#allocation2 + $0x60] sm:$0xff]
      %v558 = vld [vmem:[#allocation2 + $0x68] sm:$0xff]
      %v559 = vld [vmem:[#allocation2 + $0x78] sm:$0xff]
      %v560 = vld [vmem:[#allocation2 + $0x80] sm:$0xff]
      %v561 = vld [vmem:[#allocation2 + $0x90] sm:$0xff]
      %v562 = vld [vmem:[#allocation2 + $0x98] sm:$0xff]
      %v563 = vld [vmem:[#allocation2 + $0xa8] sm:$0xff]
      %v564 = vld [vmem:[#allocation2 + $0xb0] sm:$0xff]
      %v565 = vld [vmem:[#allocation2 + $0xc0] sm:$0xff]
      %v566 = vld [vmem:[#allocation2 + $0xc8] sm:$0xff]
      %v567 = vld [vmem:[#allocation2 + $0xd8] sm:$0xff]
      %v568 = vld [vmem:[#allocation2 + $0xe0] sm:$0xff]
      %v569 = vld [vmem:[#allocation2 + $0xf0] sm:$0xff]
      %v570 = vld [vmem:[#allocation2 + $0xf8] sm:$0xff]
      %v571 = vld [vmem:[#allocation2 + $0x108] sm:$0xff]
      %v572 = vld [vmem:[#allocation2 + $0x110] sm:$0xff]
      %v573 = vld [vmem:[#allocation2 + $0x120] sm:$0xff]
      %v574 = vld [vmem:[#allocation2 + $0x128] sm:$0xff]
      %v575 = vld [vmem:[#allocation2 + $0x138] sm:$0xff]
      %v576 = vld [vmem:[#allocation2 + $0x140] sm:$0xff]
      %v577 = vld [vmem:[#allocation2 + $0x150] sm:$0xff]
      %v578 = vld [vmem:[#allocation2 + $0x158] sm:$0xff]
      %v579 = vld [vmem:[#allocation2 + $0x168] sm:$0xff]
      %v580 = vld [vmem:[#allocation2 + $0x170] sm:$0xff]
      %v581 = vld [vmem:[#allocation2 + $0x2] sm:$0xff]
      %v582 = vld [vmem:[#allocation2 + $0xa] sm:$0xff]
      %v583 = vld [vmem:[#allocation2 + $0x1a] sm:$0xff]
      %v584 = vld [vmem:[#allocation2 + $0x22] sm:$0xff]
      %v585 = vld [vmem:[#allocation2 + $0x32] sm:$0xff]
      %v586 = vld [vmem:[#allocation2 + $0x3a] sm:$0xff]
      %v587 = vld [vmem:[#allocation2 + $0x4a] sm:$0xff]
      %v588 = vld [vmem:[#allocation2 + $0x52] sm:$0xff]
      %v589 = vld [vmem:[#allocation2 + $0x62] sm:$0xff]
      %v590 = vld [vmem:[#allocation2 + $0x6a] sm:$0xff]
      %v591 = vld [vmem:[#allocation2 + $0x7a] sm:$0xff]
      %v592 = vld [vmem:[#allocation2 + $0x82] sm:$0xff]
      %v593 = vld [vmem:[#allocation2 + $0x92] sm:$0xff]
      %v594 = vld [vmem:[#allocation2 + $0x9a] sm:$0xff]
      %v595 = vld [vmem:[#allocation2 + $0xaa] sm:$0xff]
      %v596 = vld [vmem:[#allocation2 + $0xb2] sm:$0xff]
      %v597 = vld [vmem:[#allocation2 + $0xc2] sm:$0xff]
      %v598 = vld [vmem:[#allocation2 + $0xca] sm:$0xff]
      %v599 = vld [vmem:[#allocation2 + $0xda] sm:$0xff]
      %v600 = vld [vmem:[#allocation2 + $0xe2] sm:$0xff]
      %v601 = vld [vmem:[#allocation2 + $0xf2] sm:$0xff]
      %v602 = vld [vmem:[#allocation2 + $0xfa] sm:$0xff]
      %v603 = vld [vmem:[#allocation2 + $0x10a] sm:$0xff]
      %v604 = vld [vmem:[#allocation2 + $0x112] sm:$0xff]
      %v605 = vld [vmem:[#allocation2 + $0x122] sm:$0xff]
      %v606 = vld [vmem:[#allocation2 + $0x12a] sm:$0xff]
      %v607 = vld [vmem:[#allocation2 + $0x13a] sm:$0xff]
      %v608 = vld [vmem:[#allocation2 + $0x142] sm:$0xff]
      %v609 = vld [vmem:[#allocation2 + $0x152] sm:$0xff]
      %v610 = vld [vmem:[#allocation2 + $0x15a] sm:$0xff]
      %v611 = vld [vmem:[#allocation2 + $0x16a] sm:$0xff]
      %v612 = vld [vmem:[#allocation2 + $0x172] sm:$0xff]
      %v613 = vld [vmem:[#allocation2 + $0x4] sm:$0xff]
      %v614 = vld [vmem:[#allocation2 + $0xc] sm:$0xff]
      %v615 = vld [vmem:[#allocation2 + $0x1c] sm:$0xff]
      %v616 = vld [vmem:[#allocation2 + $0x24] sm:$0xff]
      %v617 = vld [vmem:[#allocation2 + $0x34] sm:$0xff]
      %v618 = vld [vmem:[#allocation2 + $0x3c] sm:$0xff]
      %v619 = vld [vmem:[#allocation2 + $0x4c] sm:$0xff]
      %v620 = vld [vmem:[#allocation2 + $0x54] sm:$0xff]
      %v621 = vld [vmem:[#allocation2 + $0x64] sm:$0xff]
      %v622 = vld [vmem:[#allocation2 + $0x6c] sm:$0xff]
      %v623 = vld [vmem:[#allocation2 + $0x7c] sm:$0xff]
      %v624 = vld [vmem:[#allocation2 + $0x84] sm:$0xff]
      %v625 = vld [vmem:[#allocation2 + $0x94] sm:$0xff]
      %v626 = vld [vmem:[#allocation2 + $0x9c] sm:$0xff]
      %v627 = vld [vmem:[#allocation2 + $0xac] sm:$0xff]
      %v628 = vld [vmem:[#allocation2 + $0xb4] sm:$0xff]
      %v629 = vld [vmem:[#allocation2 + $0xc4] sm:$0xff]
      %v630 = vld [vmem:[#allocation2 + $0xcc] sm:$0xff]
      %v631 = vld [vmem:[#allocation2 + $0xdc] sm:$0xff]
      %v632 = vld [vmem:[#allocation2 + $0xe4] sm:$0xff]
      %v633 = vld [vmem:[#allocation2 + $0xf4] sm:$0xff]
      %v634 = vld [vmem:[#allocation2 + $0xfc] sm:$0xff]
      %v635 = vld [vmem:[#allocation2 + $0x10c] sm:$0xff]
      %v636 = vld [vmem:[#allocation2 + $0x114] sm:$0xff]
      %v637 = vld [vmem:[#allocation2 + $0x124] sm:$0xff]
      %v638 = vld [vmem:[#allocation2 + $0x12c] sm:$0xff]
      %v639 = vld [vmem:[#allocation2 + $0x13c] sm:$0xff]
      %v640 = vld [vmem:[#allocation2 + $0x144] sm:$0xff]
      %v641 = vld [vmem:[#allocation2 + $0x154] sm:$0xff]
      %v642 = vld [vmem:[#allocation2 + $0x15c] sm:$0xff]
      %v643 = vld [vmem:[#allocation2 + $0x16c] sm:$0xff]
      %v644 = vld [vmem:[#allocation2 + $0x174] sm:$0xff]
      %v645 = vld [vmem:[%s451] sm:$0xff]
      %v646 = vld [vmem:[%s451 + $0x8] sm:$0xff]
      %v647 = vld [vmem:[%s451 + $0x18] sm:$0xff]
      %v648 = vld [vmem:[%s451 + $0x20] sm:$0xff]
      %v649 = vld [vmem:[%s451 + $0x30] sm:$0xff]
      %v650 = vld [vmem:[%s451 + $0x38] sm:$0xff]
      %v651 = vld [vmem:[%s451 + $0x48] sm:$0xff]
      %v652 = vld [vmem:[%s451 + $0x50] sm:$0xff]
      %v653 = vld [vmem:[%s451 + $0x60] sm:$0xff]
      %v654 = vld [vmem:[%s451 + $0x68] sm:$0xff]
      %v655 = vld [vmem:[%s451 + $0x78] sm:$0xff]
      %v656 = vld [vmem:[%s451 + $0x80] sm:$0xff]
      %v657 = vld [vmem:[%s451 + $0x90] sm:$0xff]
      %v658 = vld [vmem:[%s451 + $0x98] sm:$0xff]
      %v659 = vld [vmem:[%s451 + $0xa8] sm:$0xff]
      %v660 = vld [vmem:[%s451 + $0xb0] sm:$0xff]
      %v661 = vld [vmem:[%s451 + $0xc0] sm:$0xff]
      %v662 = vld [vmem:[%s451 + $0xc8] sm:$0xff]
      %v663 = vld [vmem:[%s451 + $0xd8] sm:$0xff]
      %v664 = vld [vmem:[%s451 + $0xe0] sm:$0xff]
      %v665 = vld [vmem:[%s451 + $0xf0] sm:$0xff]
      %v666 = vld [vmem:[%s451 + $0xf8] sm:$0xff]
      %v667 = vld [vmem:[%s451 + $0x108] sm:$0xff]
      %v668 = vld [vmem:[%s451 + $0x110] sm:$0xff]
      %v669 = vld [vmem:[%s451 + $0x120] sm:$0xff]
      %v670 = vld [vmem:[%s451 + $0x128] sm:$0xff]
      %v671 = vld [vmem:[%s451 + $0x138] sm:$0xff]
      %v672 = vld [vmem:[%s451 + $0x140] sm:$0xff]
      %v673 = vld [vmem:[%s451 + $0x150] sm:$0xff]
      %v674 = vld [vmem:[%s451 + $0x158] sm:$0xff]
      %v675 = vld [vmem:[%s451 + $0x168] sm:$0xff]
      %v676 = vld [vmem:[%s451 + $0x170] sm:$0xff]
      %v677 = vld [vmem:[%s451 + $0x2] sm:$0xff]
      %v678 = vld [vmem:[%s451 + $0xa] sm:$0xff]
      %v679 = vld [vmem:[%s451 + $0x1a] sm:$0xff]
      %v680 = vld [vmem:[%s451 + $0x22] sm:$0xff]
      %v681 = vld [vmem:[%s451 + $0x32] sm:$0xff]
      %v682 = vld [vmem:[%s451 + $0x3a] sm:$0xff]
      %v683 = vld [vmem:[%s451 + $0x4a] sm:$0xff]
      %v684 = vld [vmem:[%s451 + $0x52] sm:$0xff]
      %v685 = vld [vmem:[%s451 + $0x62] sm:$0xff]
      %v686 = vld [vmem:[%s451 + $0x6a] sm:$0xff]
      %v687 = vld [vmem:[%s451 + $0x7a] sm:$0xff]
      %v688 = vld [vmem:[%s451 + $0x82] sm:$0xff]
      %v689 = vld [vmem:[%s451 + $0x92] sm:$0xff]
      %v690 = vld [vmem:[%s451 + $0x9a] sm:$0xff]
      %v691 = vld [vmem:[%s451 + $0xaa] sm:$0xff]
      %v692 = vld [vmem:[%s451 + $0xb2] sm:$0xff]
      %v693 = vld [vmem:[%s451 + $0xc2] sm:$0xff]
      %v694 = vld [vmem:[%s451 + $0xca] sm:$0xff]
      %v695 = vld [vmem:[%s451 + $0xda] sm:$0xff]
      %v696 = vld [vmem:[%s451 + $0xe2] sm:$0xff]
      %v697 = vld [vmem:[%s451 + $0xf2] sm:$0xff]
      %v698 = vld [vmem:[%s451 + $0xfa] sm:$0xff]
      %v699 = vld [vmem:[%s451 + $0x10a] sm:$0xff]
      %v700 = vld [vmem:[%s451 + $0x112] sm:$0xff]
      %v701 = vld [vmem:[%s451 + $0x122] sm:$0xff]
      %v702 = vld [vmem:[%s451 + $0x12a] sm:$0xff]
      %v703 = vld [vmem:[%s451 + $0x13a] sm:$0xff]
      %v704 = vld [vmem:[%s451 + $0x142] sm:$0xff]
      %v705 = vld [vmem:[%s451 + $0x152] sm:$0xff]
      %v706 = vld [vmem:[%s451 + $0x15a] sm:$0xff]
      %v707 = vld [vmem:[%s451 + $0x16a] sm:$0xff]
      %v708 = vld [vmem:[%s451 + $0x172] sm:$0xff]
      %v709 = vld [vmem:[%s451 + $0x4] sm:$0xff]
      %v710 = vld [vmem:[%s451 + $0xc] sm:$0xff]
      %v711 = vld [vmem:[%s451 + $0x1c] sm:$0xff]
      %v712 = vld [vmem:[%s451 + $0x24] sm:$0xff]
      %v713 = vld [vmem:[%s451 + $0x34] sm:$0xff]
      %v714 = vld [vmem:[%s451 + $0x3c] sm:$0xff]
      %v715 = vld [vmem:[%s451 + $0x4c] sm:$0xff]
      %v716 = vld [vmem:[%s451 + $0x54] sm:$0xff]
      %v717 = vld [vmem:[%s451 + $0x64] sm:$0xff]
      %v718 = vld [vmem:[%s451 + $0x6c] sm:$0xff]
      %v719 = vld [vmem:[%s451 + $0x7c] sm:$0xff]
      %v720 = vld [vmem:[%s451 + $0x84] sm:$0xff]
      %v721 = vld [vmem:[%s451 + $0x94] sm:$0xff]
      %v722 = vld [vmem:[%s451 + $0x9c] sm:$0xff]
      %v723 = vld [vmem:[%s451 + $0xac] sm:$0xff]
      %v724 = vld [vmem:[%s451 + $0xb4] sm:$0xff]
      %v725 = vld [vmem:[%s451 + $0xc4] sm:$0xff]
      %v726 = vld [vmem:[%s451 + $0xcc] sm:$0xff]
      %v727 = vld [vmem:[%s451 + $0xdc] sm:$0xff]
      %v728 = vld [vmem:[%s451 + $0xe4] sm:$0xff]
      %v729 = vld [vmem:[%s451 + $0xf4] sm:$0xff]
      %v730 = vld [vmem:[%s451 + $0xfc] sm:$0xff]
      %v731 = vld [vmem:[%s451 + $0x10c] sm:$0xff]
      %v732 = vld [vmem:[%s451 + $0x114] sm:$0xff]
      %v733 = vld [vmem:[%s451 + $0x124] sm:$0xff]
      %v734 = vld [vmem:[%s451 + $0x12c] sm:$0xff]
      %v735 = vld [vmem:[%s451 + $0x13c] sm:$0xff]
      %v736 = vld [vmem:[%s451 + $0x144] sm:$0xff]
      %v737 = vld [vmem:[%s451 + $0x154] sm:$0xff]
      %v738 = vld [vmem:[%s451 + $0x15c] sm:$0xff]
      %v739 = vld [vmem:[%s451 + $0x16c] sm:$0xff]
      %v740 = vld [vmem:[%s451 + $0x174] sm:$0xff]
      %s741 = scalar_lea.vmem [#allocation2], 96
      %v742 = vld [vmem:[%s741] sm:$0xff]
      %v743 = vld [vmem:[%s741 + $0x8] sm:$0xff]
      %v744 = vld [vmem:[%s741 + $0x18] sm:$0xff]
      %v745 = vld [vmem:[%s741 + $0x20] sm:$0xff]
      %v746 = vld [vmem:[%s741 + $0x30] sm:$0xff]
      %v747 = vld [vmem:[%s741 + $0x38] sm:$0xff]
      %v748 = vld [vmem:[%s741 + $0x48] sm:$0xff]
      %v749 = vld [vmem:[%s741 + $0x50] sm:$0xff]
      %v750 = vld [vmem:[%s741 + $0x60] sm:$0xff]
      %v751 = vld [vmem:[%s741 + $0x68] sm:$0xff]
      %v752 = vld [vmem:[%s741 + $0x78] sm:$0xff]
      %v753 = vld [vmem:[%s741 + $0x80] sm:$0xff]
      %v754 = vld [vmem:[%s741 + $0x90] sm:$0xff]
      %v755 = vld [vmem:[%s741 + $0x98] sm:$0xff]
      %v756 = vld [vmem:[%s741 + $0xa8] sm:$0xff]
      %v757 = vld [vmem:[%s741 + $0xb0] sm:$0xff]
      %v758 = vld [vmem:[%s741 + $0xc0] sm:$0xff]
      %v759 = vld [vmem:[%s741 + $0xc8] sm:$0xff]
      %v760 = vld [vmem:[%s741 + $0xd8] sm:$0xff]
      %v761 = vld [vmem:[%s741 + $0xe0] sm:$0xff]
      %v762 = vld [vmem:[%s741 + $0xf0] sm:$0xff]
      %v763 = vld [vmem:[%s741 + $0xf8] sm:$0xff]
      %v764 = vld [vmem:[%s741 + $0x108] sm:$0xff]
      %v765 = vld [vmem:[%s741 + $0x110] sm:$0xff]
      %v766 = vld [vmem:[%s741 + $0x120] sm:$0xff]
      %v767 = vld [vmem:[%s741 + $0x128] sm:$0xff]
      %v768 = vld [vmem:[%s741 + $0x138] sm:$0xff]
      %v769 = vld [vmem:[%s741 + $0x140] sm:$0xff]
      %v770 = vld [vmem:[%s741 + $0x150] sm:$0xff]
      %v771 = vld [vmem:[%s741 + $0x158] sm:$0xff]
      %v772 = vld [vmem:[%s741 + $0x168] sm:$0xff]
      %v773 = vld [vmem:[%s741 + $0x170] sm:$0xff]
      %v774 = vld [vmem:[%s741 + $0x2] sm:$0xff]
      %v775 = vld [vmem:[%s741 + $0xa] sm:$0xff]
      %v776 = vld [vmem:[%s741 + $0x1a] sm:$0xff]
      %v777 = vld [vmem:[%s741 + $0x22] sm:$0xff]
      %v778 = vld [vmem:[%s741 + $0x32] sm:$0xff]
      %v779 = vld [vmem:[%s741 + $0x3a] sm:$0xff]
      %v780 = vld [vmem:[%s741 + $0x4a] sm:$0xff]
      %v781 = vld [vmem:[%s741 + $0x52] sm:$0xff]
      %v782 = vld [vmem:[%s741 + $0x62] sm:$0xff]
      %v783 = vld [vmem:[%s741 + $0x6a] sm:$0xff]
      %v784 = vld [vmem:[%s741 + $0x7a] sm:$0xff]
      %v785 = vld [vmem:[%s741 + $0x82] sm:$0xff]
      %v786 = vld [vmem:[%s741 + $0x92] sm:$0xff]
      %v787 = vld [vmem:[%s741 + $0x9a] sm:$0xff]
      %v788 = vld [vmem:[%s741 + $0xaa] sm:$0xff]
      %v789 = vld [vmem:[%s741 + $0xb2] sm:$0xff]
      %v790 = vld [vmem:[%s741 + $0xc2] sm:$0xff]
      %v791 = vld [vmem:[%s741 + $0xca] sm:$0xff]
      %v792 = vld [vmem:[%s741 + $0xda] sm:$0xff]
      %v793 = vld [vmem:[%s741 + $0xe2] sm:$0xff]
      %v794 = vld [vmem:[%s741 + $0xf2] sm:$0xff]
      %v795 = vld [vmem:[%s741 + $0xfa] sm:$0xff]
      %v796 = vld [vmem:[%s741 + $0x10a] sm:$0xff]
      %v797 = vld [vmem:[%s741 + $0x112] sm:$0xff]
      %v798 = vld [vmem:[%s741 + $0x122] sm:$0xff]
      %v799 = vld [vmem:[%s741 + $0x12a] sm:$0xff]
      %v800 = vld [vmem:[%s741 + $0x13a] sm:$0xff]
      %v801 = vld [vmem:[%s741 + $0x142] sm:$0xff]
      %v802 = vld [vmem:[%s741 + $0x152] sm:$0xff]
      %v803 = vld [vmem:[%s741 + $0x15a] sm:$0xff]
      %v804 = vld [vmem:[%s741 + $0x16a] sm:$0xff]
      %v805 = vld [vmem:[%s741 + $0x172] sm:$0xff]
      %v806 = vld [vmem:[%s741 + $0x4] sm:$0xff]
      %v807 = vld [vmem:[%s741 + $0xc] sm:$0xff]
      %v808 = vld [vmem:[%s741 + $0x1c] sm:$0xff]
      %v809 = vld [vmem:[%s741 + $0x24] sm:$0xff]
      %v810 = vld [vmem:[%s741 + $0x34] sm:$0xff]
      %v811 = vld [vmem:[%s741 + $0x3c] sm:$0xff]
      %v812 = vld [vmem:[%s741 + $0x4c] sm:$0xff]
      %v813 = vld [vmem:[%s741 + $0x54] sm:$0xff]
      %v814 = vld [vmem:[%s741 + $0x64] sm:$0xff]
      %v815 = vld [vmem:[%s741 + $0x6c] sm:$0xff]
      %v816 = vld [vmem:[%s741 + $0x7c] sm:$0xff]
      %v817 = vld [vmem:[%s741 + $0x84] sm:$0xff]
      %v818 = vld [vmem:[%s741 + $0x94] sm:$0xff]
      %v819 = vld [vmem:[%s741 + $0x9c] sm:$0xff]
      %v820 = vld [vmem:[%s741 + $0xac] sm:$0xff]
      %v821 = vld [vmem:[%s741 + $0xb4] sm:$0xff]
      %v822 = vld [vmem:[%s741 + $0xc4] sm:$0xff]
      %v823 = vld [vmem:[%s741 + $0xcc] sm:$0xff]
      %v824 = vld [vmem:[%s741 + $0xdc] sm:$0xff]
      %v825 = vld [vmem:[%s741 + $0xe4] sm:$0xff]
      %v826 = vld [vmem:[%s741 + $0xf4] sm:$0xff]
      %v827 = vld [vmem:[%s741 + $0xfc] sm:$0xff]
      %v828 = vld [vmem:[%s741 + $0x10c] sm:$0xff]
      %v829 = vld [vmem:[%s741 + $0x114] sm:$0xff]
      %v830 = vld [vmem:[%s741 + $0x124] sm:$0xff]
      %v831 = vld [vmem:[%s741 + $0x12c] sm:$0xff]
      %v832 = vld [vmem:[%s741 + $0x13c] sm:$0xff]
      %v833 = vld [vmem:[%s741 + $0x144] sm:$0xff]
      %v834 = vld [vmem:[%s741 + $0x154] sm:$0xff]
      %v835 = vld [vmem:[%s741 + $0x15c] sm:$0xff]
      %v836 = vld [vmem:[%s741 + $0x16c] sm:$0xff]
      %v837 = vld [vmem:[%s741 + $0x174] sm:$0xff]
      %v838 = vld [vmem:[%s2] sm:$0xff]
      %v839 = vld [vmem:[%s2 + $0x8] sm:$0xff]
      %v840 = vld [vmem:[%s2 + $0x10] sm:$0xff]
      %v841 = vld [vmem:[%s2 + $0x18] sm:$0xff]
      %v842 = vld [vmem:[%s2 + $0x20] sm:$0xff]
      %v843 = vld [vmem:[%s2 + $0x28] sm:$0xff]
      %v844 = vld [vmem:[%s2 + $0x30] sm:$0xff]
      %v845 = vld [vmem:[%s2 + $0x38] sm:$0xff]
      %v846 = vld [vmem:[%s2 + $0x40] sm:$0xff]
      %v847 = vld [vmem:[%s2 + $0x48] sm:$0xff]
      %v848 = vld [vmem:[%s2 + $0x50] sm:$0xff]
      %v849 = vld [vmem:[%s2 + $0x58] sm:$0xff]
      %v850 = vld [vmem:[%s2 + $0x60] sm:$0xff]
      %v851 = vld [vmem:[%s2 + $0x68] sm:$0xff]
      %v852 = vld [vmem:[%s2 + $0x70] sm:$0xff]
      %v853 = vld [vmem:[%s2 + $0x78] sm:$0xff]
      %v854 = vld [vmem:[%s2 + $0x80] sm:$0xff]
      %v855 = vld [vmem:[%s2 + $0x88] sm:$0xff]
      %v856 = vld [vmem:[%s2 + $0x90] sm:$0xff]
      %v857 = vld [vmem:[%s2 + $0x98] sm:$0xff]
      %v858 = vld [vmem:[%s2 + $0xa0] sm:$0xff]
      %v859 = vld [vmem:[%s2 + $0xa8] sm:$0xff]
      %v860 = vld [vmem:[%s2 + $0xb0] sm:$0xff]
      %v861 = vld [vmem:[%s2 + $0xb8] sm:$0xff]
      %v862 = vld [vmem:[%s2 + $0xc0] sm:$0xff]
      %v863 = vld [vmem:[%s2 + $0xc8] sm:$0xff]
      %v864 = vld [vmem:[%s2 + $0xd0] sm:$0xff]
      %v865 = vld [vmem:[%s2 + $0xd8] sm:$0xff]
      %v866 = vld [vmem:[%s2 + $0xe0] sm:$0xff]
      %v867 = vld [vmem:[%s2 + $0xe8] sm:$0xff]
      %v868 = vld [vmem:[%s2 + $0xf0] sm:$0xff]
      %v869 = vld [vmem:[%s2 + $0xf8] sm:$0xff]
      %v870 = vld [vmem:[%s2 + $0x100] sm:$0xff]
      %v871 = vld [vmem:[%s2 + $0x108] sm:$0xff]
      %v872 = vld [vmem:[%s2 + $0x110] sm:$0xff]
      %v873 = vld [vmem:[%s2 + $0x118] sm:$0xff]
      %v874 = vld [vmem:[%s2 + $0x120] sm:$0xff]
      %v875 = vld [vmem:[%s2 + $0x128] sm:$0xff]
      %v876 = vld [vmem:[%s2 + $0x130] sm:$0xff]
      %v877 = vld [vmem:[%s2 + $0x138] sm:$0xff]
      %v878 = vld [vmem:[%s2 + $0x140] sm:$0xff]
      %v879 = vld [vmem:[%s2 + $0x148] sm:$0xff]
      %v880 = vld [vmem:[%s2 + $0x150] sm:$0xff]
      %v881 = vld [vmem:[%s2 + $0x158] sm:$0xff]
      %v882 = vld [vmem:[%s2 + $0x160] sm:$0xff]
      %v883 = vld [vmem:[%s2 + $0x168] sm:$0xff]
      %v884 = vld [vmem:[%s2 + $0x170] sm:$0xff]
      %v885 = vld [vmem:[%s2 + $0x178] sm:$0xff]
      %v886 = vld [vmem:[%s2 + $0x180] sm:$0xff]
      %v887 = vld [vmem:[%s2 + $0x188] sm:$0xff]
      %v888 = vld [vmem:[%s2 + $0x190] sm:$0xff]
      %v889 = vld [vmem:[%s2 + $0x198] sm:$0xff]
      %v890 = vld [vmem:[%s2 + $0x1a0] sm:$0xff]
      %v891 = vld [vmem:[%s2 + $0x1a8] sm:$0xff]
      %v892 = vld [vmem:[%s2 + $0x1b0] sm:$0xff]
      %v893 = vld [vmem:[%s2 + $0x1b8] sm:$0xff]
      %v894 = vld [vmem:[%s2 + $0x1c0] sm:$0xff]
      %v895 = vld [vmem:[%s2 + $0x1c8] sm:$0xff]
      %v896 = vld [vmem:[%s2 + $0x1d0] sm:$0xff]
      %v897 = vld [vmem:[%s2 + $0x1d8] sm:$0xff]
      %v898 = vld [vmem:[%s2 + $0x1e0] sm:$0xff]
      %v899 = vld [vmem:[%s2 + $0x1e8] sm:$0xff]
      %v900 = vld [vmem:[%s2 + $0x1f0] sm:$0xff]
      %v901 = vld [vmem:[%s2 + $0x1f8] sm:$0xff]
      %v902 = vld [vmem:[%s2 + $0x200] sm:$0xff]
      %v903 = vld [vmem:[%s2 + $0x208] sm:$0xff]
      %v904 = vld [vmem:[%s2 + $0x210] sm:$0xff]
      %v905 = vld [vmem:[%s2 + $0x218] sm:$0xff]
      %v906 = vld [vmem:[%s2 + $0x220] sm:$0xff]
      %v907 = vld [vmem:[%s2 + $0x228] sm:$0xff]
      %v908 = vld [vmem:[%s2 + $0x230] sm:$0xff]
      %v909 = vld [vmem:[%s2 + $0x238] sm:$0xff]
      %v910 = vld [vmem:[%s2 + $0x240] sm:$0xff]
      %v911 = vld [vmem:[%s2 + $0x248] sm:$0xff]
      %v912 = vld [vmem:[%s2 + $0x250] sm:$0xff]
      %v913 = vld [vmem:[%s2 + $0x258] sm:$0xff]
      %v914 = vld [vmem:[%s2 + $0x260] sm:$0xff]
      %v915 = vld [vmem:[%s2 + $0x268] sm:$0xff]
      %v916 = vld [vmem:[%s2 + $0x270] sm:$0xff]
      %v917 = vld [vmem:[%s2 + $0x278] sm:$0xff]
      %v918 = vld [vmem:[%s2 + $0x280] sm:$0xff]
      %v919 = vld [vmem:[%s2 + $0x288] sm:$0xff]
      %v920 = vld [vmem:[%s2 + $0x290] sm:$0xff]
      %v921 = vld [vmem:[%s2 + $0x298] sm:$0xff]
      %v922 = vld [vmem:[%s2 + $0x2a0] sm:$0xff]
      %v923 = vld [vmem:[%s2 + $0x2a8] sm:$0xff]
      %v924 = vld [vmem:[%s2 + $0x2b0] sm:$0xff]
      %v925 = vld [vmem:[%s2 + $0x2b8] sm:$0xff]
      %v926 = vld [vmem:[%s2 + $0x2c0] sm:$0xff]
      %v927 = vld [vmem:[%s2 + $0x2c8] sm:$0xff]
      %v928 = vld [vmem:[%s2 + $0x2d0] sm:$0xff]
      %v929 = vld [vmem:[%s2 + $0x2d8] sm:$0xff]
      %v930 = vld [vmem:[%s2 + $0x2e0] sm:$0xff]
      %v931 = vld [vmem:[%s2 + $0x2e8] sm:$0xff]
      %v932 = vld [vmem:[%s2 + $0x2f0] sm:$0xff]
      %v933 = vld [vmem:[%s2 + $0x2f8] sm:$0xff]
      %v934 = vld [vmem:[%s2 + $0x300] sm:$0xff]
      %v935 = vld [vmem:[%s2 + $0x308] sm:$0xff]
      %v936 = vld [vmem:[%s2 + $0x310] sm:$0xff]
      %v937 = vld [vmem:[%s2 + $0x318] sm:$0xff]
      %v938 = vld [vmem:[%s2 + $0x320] sm:$0xff]
      %v939 = vld [vmem:[%s2 + $0x328] sm:$0xff]
      %v940 = vld [vmem:[%s2 + $0x330] sm:$0xff]
      %v941 = vld [vmem:[%s2 + $0x338] sm:$0xff]
      %v942 = vld [vmem:[%s2 + $0x340] sm:$0xff]
      %v943 = vld [vmem:[%s2 + $0x348] sm:$0xff]
      %v944 = vld [vmem:[%s2 + $0x350] sm:$0xff]
      %v945 = vld [vmem:[%s2 + $0x358] sm:$0xff]
      %v946 = vld [vmem:[%s2 + $0x360] sm:$0xff]
      %v947 = vld [vmem:[%s2 + $0x368] sm:$0xff]
      %v948 = vld [vmem:[%s2 + $0x370] sm:$0xff]
      %v949 = vld [vmem:[%s2 + $0x378] sm:$0xff]
      %v950 = vld [vmem:[%s2 + $0x380] sm:$0xff]
      %v951 = vld [vmem:[%s2 + $0x388] sm:$0xff]
      %v952 = vld [vmem:[%s2 + $0x390] sm:$0xff]
      %v953 = vld [vmem:[%s2 + $0x398] sm:$0xff]
      %v954 = vld [vmem:[%s2 + $0x3a0] sm:$0xff]
      %v955 = vld [vmem:[%s2 + $0x3a8] sm:$0xff]
      %v956 = vld [vmem:[%s2 + $0x3b0] sm:$0xff]
      %v957 = vld [vmem:[%s2 + $0x3b8] sm:$0xff]
      %v958 = vld [vmem:[%s2 + $0x3c0] sm:$0xff]
      %v959 = vld [vmem:[%s2 + $0x3c8] sm:$0xff]
      %v960 = vld [vmem:[%s2 + $0x3d0] sm:$0xff]
      %v961 = vld [vmem:[%s2 + $0x3d8] sm:$0xff]
      %v962 = vld [vmem:[%s2 + $0x3e0] sm:$0xff]
      %v963 = vld [vmem:[%s2 + $0x3e8] sm:$0xff]
      %v964 = vld [vmem:[%s2 + $0x3f0] sm:$0xff]
      %v965 = vld [vmem:[%s2 + $0x3f8] sm:$0xff]
      %v966 = vld [vmem:[%s2 + $0x400] sm:$0xff]
      %v967 = vld [vmem:[%s2 + $0x408] sm:$0xff]
      %v968 = vld [vmem:[%s2 + $0x410] sm:$0xff]
      %v969 = vld [vmem:[%s2 + $0x418] sm:$0xff]
      %v970 = vld [vmem:[%s2 + $0x420] sm:$0xff]
      %v971 = vld [vmem:[%s2 + $0x428] sm:$0xff]
      %v972 = vld [vmem:[%s2 + $0x430] sm:$0xff]
      %v973 = vld [vmem:[%s2 + $0x438] sm:$0xff]
      %v974 = vld [vmem:[%s2 + $0x440] sm:$0xff]
      %v975 = vld [vmem:[%s2 + $0x448] sm:$0xff]
      %v976 = vld [vmem:[%s2 + $0x450] sm:$0xff]
      %v977 = vld [vmem:[%s2 + $0x458] sm:$0xff]
      %v978 = vld [vmem:[%s2 + $0x460] sm:$0xff]
      %v979 = vld [vmem:[%s2 + $0x468] sm:$0xff]
      %v980 = vld [vmem:[%s2 + $0x470] sm:$0xff]
      %v981 = vld [vmem:[%s2 + $0x478] sm:$0xff]
      %v982 = vld [vmem:[#allocation3] sm:$0xff]
      %v983 = vld [vmem:[#allocation3 + $0x8] sm:$0xff]
      %v984 = vld [vmem:[#allocation3 + $0x18] sm:$0xff]
      %v985 = vld [vmem:[#allocation3 + $0x20] sm:$0xff]
      %v986 = vld [vmem:[#allocation3 + $0x30] sm:$0xff]
      %v987 = vld [vmem:[#allocation3 + $0x38] sm:$0xff]
      %v988 = vld [vmem:[#allocation3 + $0x48] sm:$0xff]
      %v989 = vld [vmem:[#allocation3 + $0x50] sm:$0xff]
      %v990 = vld [vmem:[#allocation3 + $0x60] sm:$0xff]
      %v991 = vld [vmem:[#allocation3 + $0x68] sm:$0xff]
      %v992 = vld [vmem:[#allocation3 + $0x78] sm:$0xff]
      %v993 = vld [vmem:[#allocation3 + $0x80] sm:$0xff]
      %v994 = vld [vmem:[#allocation3 + $0x90] sm:$0xff]
      %v995 = vld [vmem:[#allocation3 + $0x98] sm:$0xff]
      %v996 = vld [vmem:[#allocation3 + $0xa8] sm:$0xff]
      %v997 = vld [vmem:[#allocation3 + $0xb0] sm:$0xff]
      %v998 = vld [vmem:[#allocation3 + $0xc0] sm:$0xff]
      %v999 = vld [vmem:[#allocation3 + $0xc8] sm:$0xff]
      %v1000 = vld [vmem:[#allocation3 + $0xd8] sm:$0xff]
      %v1001 = vld [vmem:[#allocation3 + $0xe0] sm:$0xff]
      %v1002 = vld [vmem:[#allocation3 + $0xf0] sm:$0xff]
      %v1003 = vld [vmem:[#allocation3 + $0xf8] sm:$0xff]
      %v1004 = vld [vmem:[#allocation3 + $0x108] sm:$0xff]
      %v1005 = vld [vmem:[#allocation3 + $0x110] sm:$0xff]
      %v1006 = vld [vmem:[#allocation3 + $0x120] sm:$0xff]
      %v1007 = vld [vmem:[#allocation3 + $0x128] sm:$0xff]
      %v1008 = vld [vmem:[#allocation3 + $0x138] sm:$0xff]
      %v1009 = vld [vmem:[#allocation3 + $0x140] sm:$0xff]
      %v1010 = vld [vmem:[#allocation3 + $0x150] sm:$0xff]
      %v1011 = vld [vmem:[#allocation3 + $0x158] sm:$0xff]
      %v1012 = vld [vmem:[#allocation3 + $0x168] sm:$0xff]
      %v1013 = vld [vmem:[#allocation3 + $0x170] sm:$0xff]
      %v1014 = vld [vmem:[#allocation3 + $0x2] sm:$0xff]
      %v1015 = vld [vmem:[#allocation3 + $0xa] sm:$0xff]
      %v1016 = vld [vmem:[#allocation3 + $0x1a] sm:$0xff]
      %v1017 = vld [vmem:[#allocation3 + $0x22] sm:$0xff]
      %v1018 = vld [vmem:[#allocation3 + $0x32] sm:$0xff]
      %v1019 = vld [vmem:[#allocation3 + $0x3a] sm:$0xff]
      %v1020 = vld [vmem:[#allocation3 + $0x4a] sm:$0xff]
      %v1021 = vld [vmem:[#allocation3 + $0x52] sm:$0xff]
      %v1022 = vld [vmem:[#allocation3 + $0x62] sm:$0xff]
      %v1023 = vld [vmem:[#allocation3 + $0x6a] sm:$0xff]
      %v1024 = vld [vmem:[#allocation3 + $0x7a] sm:$0xff]
      %v1025 = vld [vmem:[#allocation3 + $0x82] sm:$0xff]
      %v1026 = vld [vmem:[#allocation3 + $0x92] sm:$0xff]
      %v1027 = vld [vmem:[#allocation3 + $0x9a] sm:$0xff]
      %v1028 = vld [vmem:[#allocation3 + $0xaa] sm:$0xff]
      %v1029 = vld [vmem:[#allocation3 + $0xb2] sm:$0xff]
      %v1030 = vld [vmem:[#allocation3 + $0xc2] sm:$0xff]
      %v1031 = vld [vmem:[#allocation3 + $0xca] sm:$0xff]
      %v1032 = vld [vmem:[#allocation3 + $0xda] sm:$0xff]
      %v1033 = vld [vmem:[#allocation3 + $0xe2] sm:$0xff]
      %v1034 = vld [vmem:[#allocation3 + $0xf2] sm:$0xff]
      %v1035 = vld [vmem:[#allocation3 + $0xfa] sm:$0xff]
      %v1036 = vld [vmem:[#allocation3 + $0x10a] sm:$0xff]
      %v1037 = vld [vmem:[#allocation3 + $0x112] sm:$0xff]
      %v1038 = vld [vmem:[#allocation3 + $0x122] sm:$0xff]
      %v1039 = vld [vmem:[#allocation3 + $0x12a] sm:$0xff]
      %v1040 = vld [vmem:[#allocation3 + $0x13a] sm:$0xff]
      %v1041 = vld [vmem:[#allocation3 + $0x142] sm:$0xff]
      %v1042 = vld [vmem:[#allocation3 + $0x152] sm:$0xff]
      %v1043 = vld [vmem:[#allocation3 + $0x15a] sm:$0xff]
      %v1044 = vld [vmem:[#allocation3 + $0x16a] sm:$0xff]
      %v1045 = vld [vmem:[#allocation3 + $0x172] sm:$0xff]
      %v1046 = vld [vmem:[#allocation3 + $0x4] sm:$0xff]
      %v1047 = vld [vmem:[#allocation3 + $0xc] sm:$0xff]
      %v1048 = vld [vmem:[#allocation3 + $0x1c] sm:$0xff]
      %v1049 = vld [vmem:[#allocation3 + $0x24] sm:$0xff]
      %v1050 = vld [vmem:[#allocation3 + $0x34] sm:$0xff]
      %v1051 = vld [vmem:[#allocation3 + $0x3c] sm:$0xff]
      %v1052 = vld [vmem:[#allocation3 + $0x4c] sm:$0xff]
      %v1053 = vld [vmem:[#allocation3 + $0x54] sm:$0xff]
      %v1054 = vld [vmem:[#allocation3 + $0x64] sm:$0xff]
      %v1055 = vld [vmem:[#allocation3 + $0x6c] sm:$0xff]
      %v1056 = vld [vmem:[#allocation3 + $0x7c] sm:$0xff]
      %v1057 = vld [vmem:[#allocation3 + $0x84] sm:$0xff]
      %v1058 = vld [vmem:[#allocation3 + $0x94] sm:$0xff]
      %v1059 = vld [vmem:[#allocation3 + $0x9c] sm:$0xff]
      %v1060 = vld [vmem:[#allocation3 + $0xac] sm:$0xff]
      %v1061 = vld [vmem:[#allocation3 + $0xb4] sm:$0xff]
      %v1062 = vld [vmem:[#allocation3 + $0xc4] sm:$0xff]
      %v1063 = vld [vmem:[#allocation3 + $0xcc] sm:$0xff]
      %v1064 = vld [vmem:[#allocation3 + $0xdc] sm:$0xff]
      %v1065 = vld [vmem:[#allocation3 + $0xe4] sm:$0xff]
      %v1066 = vld [vmem:[#allocation3 + $0xf4] sm:$0xff]
      %v1067 = vld [vmem:[#allocation3 + $0xfc] sm:$0xff]
      %v1068 = vld [vmem:[#allocation3 + $0x10c] sm:$0xff]
      %v1069 = vld [vmem:[#allocation3 + $0x114] sm:$0xff]
      %v1070 = vld [vmem:[#allocation3 + $0x124] sm:$0xff]
      %v1071 = vld [vmem:[#allocation3 + $0x12c] sm:$0xff]
      %v1072 = vld [vmem:[#allocation3 + $0x13c] sm:$0xff]
      %v1073 = vld [vmem:[#allocation3 + $0x144] sm:$0xff]
      %v1074 = vld [vmem:[#allocation3 + $0x154] sm:$0xff]
      %v1075 = vld [vmem:[#allocation3 + $0x15c] sm:$0xff]
      %v1076 = vld [vmem:[#allocation3 + $0x16c] sm:$0xff]
      %v1077 = vld [vmem:[#allocation3 + $0x174] sm:$0xff]
      %v1078 = vld [vmem:[%s516] sm:$0xff]
      %v1079 = vld [vmem:[%s516 + $0x8] sm:$0xff]
      %v1080 = vld [vmem:[%s516 + $0x18] sm:$0xff]
      %v1081 = vld [vmem:[%s516 + $0x20] sm:$0xff]
      %v1082 = vld [vmem:[%s516 + $0x30] sm:$0xff]
      %v1083 = vld [vmem:[%s516 + $0x38] sm:$0xff]
      %v1084 = vld [vmem:[%s516 + $0x48] sm:$0xff]
      %v1085 = vld [vmem:[%s516 + $0x50] sm:$0xff]
      %v1086 = vld [vmem:[%s516 + $0x60] sm:$0xff]
      %v1087 = vld [vmem:[%s516 + $0x68] sm:$0xff]
      %v1088 = vld [vmem:[%s516 + $0x78] sm:$0xff]
      %v1089 = vld [vmem:[%s516 + $0x80] sm:$0xff]
      %v1090 = vld [vmem:[%s516 + $0x90] sm:$0xff]
      %v1091 = vld [vmem:[%s516 + $0x98] sm:$0xff]
      %v1092 = vld [vmem:[%s516 + $0xa8] sm:$0xff]
      %v1093 = vld [vmem:[%s516 + $0xb0] sm:$0xff]
      %v1094 = vld [vmem:[%s516 + $0xc0] sm:$0xff]
      %v1095 = vld [vmem:[%s516 + $0xc8] sm:$0xff]
      %v1096 = vld [vmem:[%s516 + $0xd8] sm:$0xff]
      %v1097 = vld [vmem:[%s516 + $0xe0] sm:$0xff]
      %v1098 = vld [vmem:[%s516 + $0xf0] sm:$0xff]
      %v1099 = vld [vmem:[%s516 + $0xf8] sm:$0xff]
      %v1100 = vld [vmem:[%s516 + $0x108] sm:$0xff]
      %v1101 = vld [vmem:[%s516 + $0x110] sm:$0xff]
      %v1102 = vld [vmem:[%s516 + $0x120] sm:$0xff]
      %v1103 = vld [vmem:[%s516 + $0x128] sm:$0xff]
      %v1104 = vld [vmem:[%s516 + $0x138] sm:$0xff]
      %v1105 = vld [vmem:[%s516 + $0x140] sm:$0xff]
      %v1106 = vld [vmem:[%s516 + $0x150] sm:$0xff]
      %v1107 = vld [vmem:[%s516 + $0x158] sm:$0xff]
      %v1108 = vld [vmem:[%s516 + $0x168] sm:$0xff]
      %v1109 = vld [vmem:[%s516 + $0x170] sm:$0xff]
      %v1110 = vld [vmem:[%s516 + $0x2] sm:$0xff]
      %v1111 = vld [vmem:[%s516 + $0xa] sm:$0xff]
      %v1112 = vld [vmem:[%s516 + $0x1a] sm:$0xff]
      %v1113 = vld [vmem:[%s516 + $0x22] sm:$0xff]
      %v1114 = vld [vmem:[%s516 + $0x32] sm:$0xff]
      %v1115 = vld [vmem:[%s516 + $0x3a] sm:$0xff]
      %v1116 = vld [vmem:[%s516 + $0x4a] sm:$0xff]
      %v1117 = vld [vmem:[%s516 + $0x52] sm:$0xff]
      %v1118 = vld [vmem:[%s516 + $0x62] sm:$0xff]
      %v1119 = vld [vmem:[%s516 + $0x6a] sm:$0xff]
      %v1120 = vld [vmem:[%s516 + $0x7a] sm:$0xff]
      %v1121 = vld [vmem:[%s516 + $0x82] sm:$0xff]
      %v1122 = vld [vmem:[%s516 + $0x92] sm:$0xff]
      %v1123 = vld [vmem:[%s516 + $0x9a] sm:$0xff]
      %v1124 = vld [vmem:[%s516 + $0xaa] sm:$0xff]
      %v1125 = vld [vmem:[%s516 + $0xb2] sm:$0xff]
      %v1126 = vld [vmem:[%s516 + $0xc2] sm:$0xff]
      %v1127 = vld [vmem:[%s516 + $0xca] sm:$0xff]
      %v1128 = vld [vmem:[%s516 + $0xda] sm:$0xff]
      %v1129 = vld [vmem:[%s516 + $0xe2] sm:$0xff]
      %v1130 = vld [vmem:[%s516 + $0xf2] sm:$0xff]
      %v1131 = vld [vmem:[%s516 + $0xfa] sm:$0xff]
      %v1132 = vld [vmem:[%s516 + $0x10a] sm:$0xff]
      %v1133 = vld [vmem:[%s516 + $0x112] sm:$0xff]
      %v1134 = vld [vmem:[%s516 + $0x122] sm:$0xff]
      %v1135 = vld [vmem:[%s516 + $0x12a] sm:$0xff]
      %v1136 = vld [vmem:[%s516 + $0x13a] sm:$0xff]
      %v1137 = vld [vmem:[%s516 + $0x142] sm:$0xff]
      %v1138 = vld [vmem:[%s516 + $0x152] sm:$0xff]
      %v1139 = vld [vmem:[%s516 + $0x15a] sm:$0xff]
      %v1140 = vld [vmem:[%s516 + $0x16a] sm:$0xff]
      %v1141 = vld [vmem:[%s516 + $0x172] sm:$0xff]
      %v1142 = vld [vmem:[%s516 + $0x4] sm:$0xff]
      %v1143 = vld [vmem:[%s516 + $0xc] sm:$0xff]
      %v1144 = vld [vmem:[%s516 + $0x1c] sm:$0xff]
      %v1145 = vld [vmem:[%s516 + $0x24] sm:$0xff]
      %v1146 = vld [vmem:[%s516 + $0x34] sm:$0xff]
      %v1147 = vld [vmem:[%s516 + $0x3c] sm:$0xff]
      %v1148 = vld [vmem:[%s516 + $0x4c] sm:$0xff]
      %v1149 = vld [vmem:[%s516 + $0x54] sm:$0xff]
      %v1150 = vld [vmem:[%s516 + $0x64] sm:$0xff]
      %v1151 = vld [vmem:[%s516 + $0x6c] sm:$0xff]
      %v1152 = vld [vmem:[%s516 + $0x7c] sm:$0xff]
      %v1153 = vld [vmem:[%s516 + $0x84] sm:$0xff]
      %v1154 = vld [vmem:[%s516 + $0x94] sm:$0xff]
      %v1155 = vld [vmem:[%s516 + $0x9c] sm:$0xff]
      %v1156 = vld [vmem:[%s516 + $0xac] sm:$0xff]
      %v1157 = vld [vmem:[%s516 + $0xb4] sm:$0xff]
      %v1158 = vld [vmem:[%s516 + $0xc4] sm:$0xff]
      %v1159 = vld [vmem:[%s516 + $0xcc] sm:$0xff]
      %v1160 = vld [vmem:[%s516 + $0xdc] sm:$0xff]
      %v1161 = vld [vmem:[%s516 + $0xe4] sm:$0xff]
      %v1162 = vld [vmem:[%s516 + $0xf4] sm:$0xff]
      %v1163 = vld [vmem:[%s516 + $0xfc] sm:$0xff]
      %v1164 = vld [vmem:[%s516 + $0x10c] sm:$0xff]
      %v1165 = vld [vmem:[%s516 + $0x114] sm:$0xff]
      %v1166 = vld [vmem:[%s516 + $0x124] sm:$0xff]
      %v1167 = vld [vmem:[%s516 + $0x12c] sm:$0xff]
      %v1168 = vld [vmem:[%s516 + $0x13c] sm:$0xff]
      %v1169 = vld [vmem:[%s516 + $0x144] sm:$0xff]
      %v1170 = vld [vmem:[%s516 + $0x154] sm:$0xff]
      %v1171 = vld [vmem:[%s516 + $0x15c] sm:$0xff]
      %v1172 = vld [vmem:[%s516 + $0x16c] sm:$0xff]
      %v1173 = vld [vmem:[%s516 + $0x174] sm:$0xff]
      %s1174 = scalar_lea.vmem [#allocation3], 96
      %v1175 = vld [vmem:[%s1174] sm:$0xff]
      %v1176 = vld [vmem:[%s1174 + $0x8] sm:$0xff]
      %v1177 = vld [vmem:[%s1174 + $0x18] sm:$0xff]
      %v1178 = vld [vmem:[%s1174 + $0x20] sm:$0xff]
      %v1179 = vld [vmem:[%s1174 + $0x30] sm:$0xff]
      %v1180 = vld [vmem:[%s1174 + $0x38] sm:$0xff]
      %v1181 = vld [vmem:[%s1174 + $0x48] sm:$0xff]
      %v1182 = vld [vmem:[%s1174 + $0x50] sm:$0xff]
      %v1183 = vld [vmem:[%s1174 + $0x60] sm:$0xff]
      %v1184 = vld [vmem:[%s1174 + $0x68] sm:$0xff]
      %v1185 = vld [vmem:[%s1174 + $0x78] sm:$0xff]
      %v1186 = vld [vmem:[%s1174 + $0x80] sm:$0xff]
      %v1187 = vld [vmem:[%s1174 + $0x90] sm:$0xff]
      %v1188 = vld [vmem:[%s1174 + $0x98] sm:$0xff]
      %v1189 = vld [vmem:[%s1174 + $0xa8] sm:$0xff]
      %v1190 = vld [vmem:[%s1174 + $0xb0] sm:$0xff]
      %v1191 = vld [vmem:[%s1174 + $0xc0] sm:$0xff]
      %v1192 = vld [vmem:[%s1174 + $0xc8] sm:$0xff]
      %v1193 = vld [vmem:[%s1174 + $0xd8] sm:$0xff]
      %v1194 = vld [vmem:[%s1174 + $0xe0] sm:$0xff]
      %v1195 = vld [vmem:[%s1174 + $0xf0] sm:$0xff]
      %v1196 = vld [vmem:[%s1174 + $0xf8] sm:$0xff]
      %v1197 = vld [vmem:[%s1174 + $0x108] sm:$0xff]
      %v1198 = vld [vmem:[%s1174 + $0x110] sm:$0xff]
      %v1199 = vld [vmem:[%s1174 + $0x120] sm:$0xff]
      %v1200 = vld [vmem:[%s1174 + $0x128] sm:$0xff]
      %v1201 = vld [vmem:[%s1174 + $0x138] sm:$0xff]
      %v1202 = vld [vmem:[%s1174 + $0x140] sm:$0xff]
      %v1203 = vld [vmem:[%s1174 + $0x150] sm:$0xff]
      %v1204 = vld [vmem:[%s1174 + $0x158] sm:$0xff]
      %v1205 = vld [vmem:[%s1174 + $0x168] sm:$0xff]
      %v1206 = vld [vmem:[%s1174 + $0x170] sm:$0xff]
      %v1207 = vld [vmem:[%s1174 + $0x2] sm:$0xff]
      %v1208 = vld [vmem:[%s1174 + $0xa] sm:$0xff]
      %v1209 = vld [vmem:[%s1174 + $0x1a] sm:$0xff]
      %v1210 = vld [vmem:[%s1174 + $0x22] sm:$0xff]
      %v1211 = vld [vmem:[%s1174 + $0x32] sm:$0xff]
      %v1212 = vld [vmem:[%s1174 + $0x3a] sm:$0xff]
      %v1213 = vld [vmem:[%s1174 + $0x4a] sm:$0xff]
      %v1214 = vld [vmem:[%s1174 + $0x52] sm:$0xff]
      %v1215 = vld [vmem:[%s1174 + $0x62] sm:$0xff]
      %v1216 = vld [vmem:[%s1174 + $0x6a] sm:$0xff]
      %v1217 = vld [vmem:[%s1174 + $0x7a] sm:$0xff]
      %v1218 = vld [vmem:[%s1174 + $0x82] sm:$0xff]
      %v1219 = vld [vmem:[%s1174 + $0x92] sm:$0xff]
      %v1220 = vld [vmem:[%s1174 + $0x9a] sm:$0xff]
      %v1221 = vld [vmem:[%s1174 + $0xaa] sm:$0xff]
      %v1222 = vld [vmem:[%s1174 + $0xb2] sm:$0xff]
      %v1223 = vld [vmem:[%s1174 + $0xc2] sm:$0xff]
      %v1224 = vld [vmem:[%s1174 + $0xca] sm:$0xff]
      %v1225 = vld [vmem:[%s1174 + $0xda] sm:$0xff]
      %v1226 = vld [vmem:[%s1174 + $0xe2] sm:$0xff]
      %v1227 = vld [vmem:[%s1174 + $0xf2] sm:$0xff]
      %v1228 = vld [vmem:[%s1174 + $0xfa] sm:$0xff]
      %v1229 = vld [vmem:[%s1174 + $0x10a] sm:$0xff]
      %v1230 = vld [vmem:[%s1174 + $0x112] sm:$0xff]
      %v1231 = vld [vmem:[%s1174 + $0x122] sm:$0xff]
      %v1232 = vld [vmem:[%s1174 + $0x12a] sm:$0xff]
      %v1233 = vld [vmem:[%s1174 + $0x13a] sm:$0xff]
      %v1234 = vld [vmem:[%s1174 + $0x142] sm:$0xff]
      %v1235 = vld [vmem:[%s1174 + $0x152] sm:$0xff]
      %v1236 = vld [vmem:[%s1174 + $0x15a] sm:$0xff]
      %v1237 = vld [vmem:[%s1174 + $0x16a] sm:$0xff]
      %v1238 = vld [vmem:[%s1174 + $0x172] sm:$0xff]
      %v1239 = vld [vmem:[%s1174 + $0x4] sm:$0xff]
      %v1240 = vld [vmem:[%s1174 + $0xc] sm:$0xff]
      %v1241 = vld [vmem:[%s1174 + $0x1c] sm:$0xff]
      %v1242 = vld [vmem:[%s1174 + $0x24] sm:$0xff]
      %v1243 = vld [vmem:[%s1174 + $0x34] sm:$0xff]
      %v1244 = vld [vmem:[%s1174 + $0x3c] sm:$0xff]
      %v1245 = vld [vmem:[%s1174 + $0x4c] sm:$0xff]
      %v1246 = vld [vmem:[%s1174 + $0x54] sm:$0xff]
      %v1247 = vld [vmem:[%s1174 + $0x64] sm:$0xff]
      %v1248 = vld [vmem:[%s1174 + $0x6c] sm:$0xff]
      %v1249 = vld [vmem:[%s1174 + $0x7c] sm:$0xff]
      %v1250 = vld [vmem:[%s1174 + $0x84] sm:$0xff]
      %v1251 = vld [vmem:[%s1174 + $0x94] sm:$0xff]
      %v1252 = vld [vmem:[%s1174 + $0x9c] sm:$0xff]
      %v1253 = vld [vmem:[%s1174 + $0xac] sm:$0xff]
      %v1254 = vld [vmem:[%s1174 + $0xb4] sm:$0xff]
      %v1255 = vld [vmem:[%s1174 + $0xc4] sm:$0xff]
      %v1256 = vld [vmem:[%s1174 + $0xcc] sm:$0xff]
      %v1257 = vld [vmem:[%s1174 + $0xdc] sm:$0xff]
      %v1258 = vld [vmem:[%s1174 + $0xe4] sm:$0xff]
      %v1259 = vld [vmem:[%s1174 + $0xf4] sm:$0xff]
      %v1260 = vld [vmem:[%s1174 + $0xfc] sm:$0xff]
      %v1261 = vld [vmem:[%s1174 + $0x10c] sm:$0xff]
      %v1262 = vld [vmem:[%s1174 + $0x114] sm:$0xff]
      %v1263 = vld [vmem:[%s1174 + $0x124] sm:$0xff]
      %v1264 = vld [vmem:[%s1174 + $0x12c] sm:$0xff]
      %v1265 = vld [vmem:[%s1174 + $0x13c] sm:$0xff]
      %v1266 = vld [vmem:[%s1174 + $0x144] sm:$0xff]
      %v1267 = vld [vmem:[%s1174 + $0x154] sm:$0xff]
      %v1268 = vld [vmem:[%s1174 + $0x15c] sm:$0xff]
      %v1269 = vld [vmem:[%s1174 + $0x16c] sm:$0xff]
      %v1270 = vld [vmem:[%s1174 + $0x174] sm:$0xff]
      %v1271 = vld [vmem:[%s3] sm:$0xff]
      %v1272 = vld [vmem:[%s3 + $0x8] sm:$0xff]
      %v1273 = vld [vmem:[%s3 + $0x10] sm:$0xff]
      %v1274 = vld [vmem:[%s3 + $0x18] sm:$0xff]
      %v1275 = vld [vmem:[%s3 + $0x20] sm:$0xff]
      %v1276 = vld [vmem:[%s3 + $0x28] sm:$0xff]
      %v1277 = vld [vmem:[%s3 + $0x30] sm:$0xff]
      %v1278 = vld [vmem:[%s3 + $0x38] sm:$0xff]
      %v1279 = vld [vmem:[%s3 + $0x40] sm:$0xff]
      %v1280 = vld [vmem:[%s3 + $0x48] sm:$0xff]
      %v1281 = vld [vmem:[%s3 + $0x50] sm:$0xff]
      %v1282 = vld [vmem:[%s3 + $0x58] sm:$0xff]
      %v1283 = vld [vmem:[%s3 + $0x60] sm:$0xff]
      %v1284 = vld [vmem:[%s3 + $0x68] sm:$0xff]
      %v1285 = vld [vmem:[%s3 + $0x70] sm:$0xff]
      %v1286 = vld [vmem:[%s3 + $0x78] sm:$0xff]
      %v1287 = vld [vmem:[%s3 + $0x80] sm:$0xff]
      %v1288 = vld [vmem:[%s3 + $0x88] sm:$0xff]
      %v1289 = vld [vmem:[%s3 + $0x90] sm:$0xff]
      %v1290 = vld [vmem:[%s3 + $0x98] sm:$0xff]
      %v1291 = vld [vmem:[%s3 + $0xa0] sm:$0xff]
      %v1292 = vld [vmem:[%s3 + $0xa8] sm:$0xff]
      %v1293 = vld [vmem:[%s3 + $0xb0] sm:$0xff]
      %v1294 = vld [vmem:[%s3 + $0xb8] sm:$0xff]
      %v1295 = vld [vmem:[%s3 + $0xc0] sm:$0xff]
      %v1296 = vld [vmem:[%s3 + $0xc8] sm:$0xff]
      %v1297 = vld [vmem:[%s3 + $0xd0] sm:$0xff]
      %v1298 = vld [vmem:[%s3 + $0xd8] sm:$0xff]
      %v1299 = vld [vmem:[%s3 + $0xe0] sm:$0xff]
      %v1300 = vld [vmem:[%s3 + $0xe8] sm:$0xff]
      %v1301 = vld [vmem:[%s3 + $0xf0] sm:$0xff]
      %v1302 = vld [vmem:[%s3 + $0xf8] sm:$0xff]
      %v1303 = vld [vmem:[%s3 + $0x100] sm:$0xff]
      %v1304 = vld [vmem:[%s3 + $0x108] sm:$0xff]
      %v1305 = vld [vmem:[%s3 + $0x110] sm:$0xff]
      %v1306 = vld [vmem:[%s3 + $0x118] sm:$0xff]
      %v1307 = vld [vmem:[%s3 + $0x120] sm:$0xff]
      %v1308 = vld [vmem:[%s3 + $0x128] sm:$0xff]
      %v1309 = vld [vmem:[%s3 + $0x130] sm:$0xff]
      %v1310 = vld [vmem:[%s3 + $0x138] sm:$0xff]
      %v1311 = vld [vmem:[%s3 + $0x140] sm:$0xff]
      %v1312 = vld [vmem:[%s3 + $0x148] sm:$0xff]
      %v1313 = vld [vmem:[%s3 + $0x150] sm:$0xff]
      %v1314 = vld [vmem:[%s3 + $0x158] sm:$0xff]
      %v1315 = vld [vmem:[%s3 + $0x160] sm:$0xff]
      %v1316 = vld [vmem:[%s3 + $0x168] sm:$0xff]
      %v1317 = vld [vmem:[%s3 + $0x170] sm:$0xff]
      %v1318 = vld [vmem:[%s3 + $0x178] sm:$0xff]
      %v1319 = vld [vmem:[%s3 + $0x180] sm:$0xff]
      %v1320 = vld [vmem:[%s3 + $0x188] sm:$0xff]
      %v1321 = vld [vmem:[%s3 + $0x190] sm:$0xff]
      %v1322 = vld [vmem:[%s3 + $0x198] sm:$0xff]
      %v1323 = vld [vmem:[%s3 + $0x1a0] sm:$0xff]
      %v1324 = vld [vmem:[%s3 + $0x1a8] sm:$0xff]
      %v1325 = vld [vmem:[%s3 + $0x1b0] sm:$0xff]
      %v1326 = vld [vmem:[%s3 + $0x1b8] sm:$0xff]
      %v1327 = vld [vmem:[%s3 + $0x1c0] sm:$0xff]
      %v1328 = vld [vmem:[%s3 + $0x1c8] sm:$0xff]
      %v1329 = vld [vmem:[%s3 + $0x1d0] sm:$0xff]
      %v1330 = vld [vmem:[%s3 + $0x1d8] sm:$0xff]
      %v1331 = vld [vmem:[%s3 + $0x1e0] sm:$0xff]
      %v1332 = vld [vmem:[%s3 + $0x1e8] sm:$0xff]
      %v1333 = vld [vmem:[%s3 + $0x1f0] sm:$0xff]
      %v1334 = vld [vmem:[%s3 + $0x1f8] sm:$0xff]
      %v1335 = vld [vmem:[%s3 + $0x200] sm:$0xff]
      %v1336 = vld [vmem:[%s3 + $0x208] sm:$0xff]
      %v1337 = vld [vmem:[%s3 + $0x210] sm:$0xff]
      %v1338 = vld [vmem:[%s3 + $0x218] sm:$0xff]
      %v1339 = vld [vmem:[%s3 + $0x220] sm:$0xff]
      %v1340 = vld [vmem:[%s3 + $0x228] sm:$0xff]
      %v1341 = vld [vmem:[%s3 + $0x230] sm:$0xff]
      %v1342 = vld [vmem:[%s3 + $0x238] sm:$0xff]
      %v1343 = vld [vmem:[%s3 + $0x240] sm:$0xff]
      %v1344 = vld [vmem:[%s3 + $0x248] sm:$0xff]
      %v1345 = vld [vmem:[%s3 + $0x250] sm:$0xff]
      %v1346 = vld [vmem:[%s3 + $0x258] sm:$0xff]
      %v1347 = vld [vmem:[%s3 + $0x260] sm:$0xff]
      %v1348 = vld [vmem:[%s3 + $0x268] sm:$0xff]
      %v1349 = vld [vmem:[%s3 + $0x270] sm:$0xff]
      %v1350 = vld [vmem:[%s3 + $0x278] sm:$0xff]
      %v1351 = vld [vmem:[%s3 + $0x280] sm:$0xff]
      %v1352 = vld [vmem:[%s3 + $0x288] sm:$0xff]
      %v1353 = vld [vmem:[%s3 + $0x290] sm:$0xff]
      %v1354 = vld [vmem:[%s3 + $0x298] sm:$0xff]
      %v1355 = vld [vmem:[%s3 + $0x2a0] sm:$0xff]
      %v1356 = vld [vmem:[%s3 + $0x2a8] sm:$0xff]
      %v1357 = vld [vmem:[%s3 + $0x2b0] sm:$0xff]
      %v1358 = vld [vmem:[%s3 + $0x2b8] sm:$0xff]
      %v1359 = vld [vmem:[%s3 + $0x2c0] sm:$0xff]
      %v1360 = vld [vmem:[%s3 + $0x2c8] sm:$0xff]
      %v1361 = vld [vmem:[%s3 + $0x2d0] sm:$0xff]
      %v1362 = vld [vmem:[%s3 + $0x2d8] sm:$0xff]
      %v1363 = vld [vmem:[%s3 + $0x2e0] sm:$0xff]
      %v1364 = vld [vmem:[%s3 + $0x2e8] sm:$0xff]
      %v1365 = vld [vmem:[%s3 + $0x2f0] sm:$0xff]
      %v1366 = vld [vmem:[%s3 + $0x2f8] sm:$0xff]
      %v1367 = vld [vmem:[%s3 + $0x300] sm:$0xff]
      %v1368 = vld [vmem:[%s3 + $0x308] sm:$0xff]
      %v1369 = vld [vmem:[%s3 + $0x310] sm:$0xff]
      %v1370 = vld [vmem:[%s3 + $0x318] sm:$0xff]
      %v1371 = vld [vmem:[%s3 + $0x320] sm:$0xff]
      %v1372 = vld [vmem:[%s3 + $0x328] sm:$0xff]
      %v1373 = vld [vmem:[%s3 + $0x330] sm:$0xff]
      %v1374 = vld [vmem:[%s3 + $0x338] sm:$0xff]
      %v1375 = vld [vmem:[%s3 + $0x340] sm:$0xff]
      %v1376 = vld [vmem:[%s3 + $0x348] sm:$0xff]
      %v1377 = vld [vmem:[%s3 + $0x350] sm:$0xff]
      %v1378 = vld [vmem:[%s3 + $0x358] sm:$0xff]
      %v1379 = vld [vmem:[%s3 + $0x360] sm:$0xff]
      %v1380 = vld [vmem:[%s3 + $0x368] sm:$0xff]
      %v1381 = vld [vmem:[%s3 + $0x370] sm:$0xff]
      %v1382 = vld [vmem:[%s3 + $0x378] sm:$0xff]
      %v1383 = vld [vmem:[%s3 + $0x380] sm:$0xff]
      %v1384 = vld [vmem:[%s3 + $0x388] sm:$0xff]
      %v1385 = vld [vmem:[%s3 + $0x390] sm:$0xff]
      %v1386 = vld [vmem:[%s3 + $0x398] sm:$0xff]
      %v1387 = vld [vmem:[%s3 + $0x3a0] sm:$0xff]
      %v1388 = vld [vmem:[%s3 + $0x3a8] sm:$0xff]
      %v1389 = vld [vmem:[%s3 + $0x3b0] sm:$0xff]
      %v1390 = vld [vmem:[%s3 + $0x3b8] sm:$0xff]
      %v1391 = vld [vmem:[%s3 + $0x3c0] sm:$0xff]
      %v1392 = vld [vmem:[%s3 + $0x3c8] sm:$0xff]
      %v1393 = vld [vmem:[%s3 + $0x3d0] sm:$0xff]
      %v1394 = vld [vmem:[%s3 + $0x3d8] sm:$0xff]
      %v1395 = vld [vmem:[%s3 + $0x3e0] sm:$0xff]
      %v1396 = vld [vmem:[%s3 + $0x3e8] sm:$0xff]
      %v1397 = vld [vmem:[%s3 + $0x3f0] sm:$0xff]
      %v1398 = vld [vmem:[%s3 + $0x3f8] sm:$0xff]
      %v1399 = vld [vmem:[%s3 + $0x400] sm:$0xff]
      %v1400 = vld [vmem:[%s3 + $0x408] sm:$0xff]
      %v1401 = vld [vmem:[%s3 + $0x410] sm:$0xff]
      %v1402 = vld [vmem:[%s3 + $0x418] sm:$0xff]
      %v1403 = vld [vmem:[%s3 + $0x420] sm:$0xff]
      %v1404 = vld [vmem:[%s3 + $0x428] sm:$0xff]
      %v1405 = vld [vmem:[%s3 + $0x430] sm:$0xff]
      %v1406 = vld [vmem:[%s3 + $0x438] sm:$0xff]
      %v1407 = vld [vmem:[%s3 + $0x440] sm:$0xff]
      %v1408 = vld [vmem:[%s3 + $0x448] sm:$0xff]
      %v1409 = vld [vmem:[%s3 + $0x450] sm:$0xff]
      %v1410 = vld [vmem:[%s3 + $0x458] sm:$0xff]
      %v1411 = vld [vmem:[%s3 + $0x460] sm:$0xff]
      %v1412 = vld [vmem:[%s3 + $0x468] sm:$0xff]
      %v1413 = vld [vmem:[%s3 + $0x470] sm:$0xff]
      %v1414 = vld [vmem:[%s3 + $0x478] sm:$0xff]
      %1415 = vmatprep.subr.mxu0 0.0
      %1416 = vmatpush1.msra.mxu0 %v1271
      %1417 = vmatprep.subr.mxu0 0.0
      %1418 = vmatpush1.msra.mxu0 %v1272
      %1419 = vmatprep.subr.mxu0 0.0
      %1420 = vmatpush1.msra.mxu0 %v1273
      %1421 = vmatprep.subr.mxu0 0.0
      %1422 = vmatpush1.msra.mxu0 %v1274
      %1423 = vmatprep.subr.mxu0 0.0
      %1424 = vmatpush1.msra.mxu0 %v1275
      %1425 = vmatprep.subr.mxu0 0.0
      %1426 = vmatpush1.msra.mxu0 %v1276
      %1427 = vmatprep.subr.mxu0 0.0
      %1428 = vmatpush1.msra.mxu0 %v1277
      %1429 = vmatprep.subr.mxu0 0.0
      %1430 = vmatpush1.msra.mxu0 %v1278
      %1431 = vmatprep.subr.mxu0 0.0
      %1432 = vmatpush1.msra.mxu0 %v1279
      %1433 = vmatprep.subr.mxu0 0.0
      %1434 = vmatpush1.msra.mxu0 %v1280
      %1435 = vmatprep.subr.mxu0 0.0
      %1436 = vmatpush1.msra.mxu0 %v1281
      %1437 = vmatprep.subr.mxu0 0.0
      %1438 = vmatpush1.msra.mxu0 %v1282
      %1439 = vmatprep.subr.mxu0 0.0
      %1440 = vmatpush1.msra.mxu0 %v1283
      %1441 = vmatprep.subr.mxu0 0.0
      %1442 = vmatpush1.msra.mxu0 %v1284
      %1443 = vmatprep.subr.mxu0 0.0
      %1444 = vmatpush1.msra.mxu0 %v1285
      %1445 = vmatprep.subr.mxu0 0.0
      %1446 = vmatpush1.msra.mxu0 %v1286
      %1447 = vmatprep.subr.mxu0 0.0
      %1448 = vmatpush1.msra.mxu0 %v1287
      %1449 = vmatprep.subr.mxu0 0.0
      %1450 = vmatpush1.msra.mxu0 %v1288
      %1451 = vmatprep.subr.mxu0 0.0
      %1452 = vmatpush1.msra.mxu0 %v1289
      %1453 = vmatprep.subr.mxu0 0.0
      %1454 = vmatpush1.msra.mxu0 %v1290
      %1455 = vmatprep.subr.mxu0 0.0
      %1456 = vmatpush1.msra.mxu0 %v1291
      %1457 = vmatprep.subr.mxu0 0.0
      %1458 = vmatpush1.msra.mxu0 %v1292
      %1459 = vmatprep.subr.mxu0 0.0
      %1460 = vmatpush1.msra.mxu0 %v1293
      %1461 = vmatprep.subr.mxu0 0.0
      %1462 = vmatpush1.msra.mxu0 %v1294
      %1463 = vmatprep.subr.mxu0 0.0
      %1464 = vmatpush1.msra.mxu0 %v1295
      %1465 = vmatprep.subr.mxu0 0.0
      %1466 = vmatpush1.msra.mxu0 %v1296
      %1467 = vmatprep.subr.mxu0 0.0
      %1468 = vmatpush1.msra.mxu0 %v1297
      %1469 = vmatprep.subr.mxu0 0.0
      %1470 = vmatpush1.msra.mxu0 %v1298
      %1471 = vmatprep.subr.mxu0 0.0
      %1472 = vmatpush1.msra.mxu0 %v1299
      %1473 = vmatprep.subr.mxu0 0.0
      %1474 = vmatpush1.msra.mxu0 %v1300
      %1475 = vmatprep.subr.mxu0 0.0
      %1476 = vmatpush1.msra.mxu0 %v1301
      %1477 = vmatprep.subr.mxu0 0.0
      %1478 = vmatpush1.msra.mxu0 %v1302
      %1479 = vmatprep.mubr.f32.mxu0 %v1014
      %1480 = vmatmul.mubr.f32.gmra.mrb[0].mxu0 %v982
      %v1481 = vpop.f32.mrb[0].mxu0
      %v1482 = vadd.f32 0.0, %v1481
      %v1483 = vpop.f32.mrb[0].mxu0
      %1484 = vmatprep.mubr.f32.mxu0 %v1015
      %1485 = vmatmul.mubr.f32.gmra.mrb[0].mxu0 %v983
      %v1486 = vpop.f32.mrb[0].mxu0
      %v1487 = vadd.f32 0.0, %v1486
      %v1488 = vpop.f32.mrb[0].mxu0
      %1489 = vmatprep.mubr.f32.mxu0 %v1016
      %1490 = vmatmul.mubr.f32.gmra.mrb[0].mxu0 %v984
      %v1491 = vpop.f32.mrb[0].mxu0
      %v1492 = vadd.f32 0.0, %v1491
      %v1493 = vpop.f32.mrb[0].mxu0
      %1494 = vmatprep.mubr.f32.mxu0 %v1017
      %1495 = vmatmul.mubr.f32.gmra.mrb[0].mxu0 %v985
      %v1496 = vpop.f32.mrb[0].mxu0
      %v1497 = vadd.f32 0.0, %v1496
      %v1498 = vpop.f32.mrb[0].mxu0
      %1499 = vmatprep.mubr.f32.mxu0 %v1018
      %1500 = vmatmul.mubr.f32.gmra.mrb[0].mxu0 %v986
      %v1501 = vpop.f32.mrb[0].mxu0
      %v1502 = vadd.f32 0.0, %v1501
      %v1503 = vpop.f32.mrb[0].mxu0
      %1504 = vmatprep.mubr.f32.mxu0 %v1019
      %1505 = vmatmul.mubr.f32.gmra.mrb[0].mxu0 %v987
      %v1506 = vpop.f32.mrb[0].mxu0
      %v1507 = vadd.f32 0.0, %v1506
      %v1508 = vpop.f32.mrb[0].mxu0
      %1509 = vmatprep.mubr.f32.mxu0 %v1020
      %1510 = vmatmul.mubr.f32.gmra.mrb[0].mxu0 %v988
      %v1511 = vpop.f32.mrb[0].mxu0
      %v1512 = vadd.f32 0.0, %v1511
      %v1513 = vpop.f32.mrb[0].mxu0
      %1514 = vmatprep.mubr.f32.mxu0 %v1021
      %1515 = vmatmul.mubr.f32.gmra.mrb[0].mxu0 %v989
      %v1516 = vpop.f32.mrb[0].mxu0
      %v1517 = vadd.f32 0.0, %v1516
      %v1518 = vpop.f32.mrb[0].mxu0
      %1519 = vmatprep.mubr.f32.mxu0 %v1022
      %1520 = vmatmul.mubr.f32.gmra.mrb[0].mxu0 %v990
      %v1521 = vpop.f32.mrb[0].mxu0
      %v1522 = vadd.f32 0.0, %v1521
      %v1523 = vpop.f32.mrb[0].mxu0
      %1524 = vmatprep.mubr.f32.mxu0 %v1023
      %1525 = vmatmul.mubr.f32.gmra.mrb[0].mxu0 %v991
      %v1526 = vpop.f32.mrb[0].mxu0
      %v1527 = vadd.f32 0.0, %v1526
      %v1528 = vpop.f32.mrb[0].mxu0
      %1529 = vmatprep.mubr.f32.mxu0 %v1024
      %1530 = vmatmul.mubr.f32.gmra.mrb[0].mxu0 %v992
      %v1531 = vpop.f32.mrb[0].mxu0
      %v1532 = vadd.f32 0.0, %v1531
      %v1533 = vpop.f32.mrb[0].mxu0
      %1534 = vmatprep.mubr.f32.mxu0 %v1025
      %1535 = vmatmul.mubr.f32.gmra.mrb[0].mxu0 %v993
      %v1536 = vpop.f32.mrb[0].mxu0
      %v1537 = vadd.f32 0.0, %v1536
      %v1538 = vpop.f32.mrb[0].mxu0
      %1539 = vmatprep.mubr.f32.mxu0 %v1026
      %1540 = vmatmul.mubr.f32.gmra.mrb[0].mxu0 %v994
      %v1541 = vpop.f32.mrb[0].mxu0
      %v1542 = vadd.f32 0.0, %v1541
      %v1543 = vpop.f32.mrb[0].mxu0
      %1544 = vmatprep.mubr.f32.mxu0 %v1027
      %1545 = vmatmul.mubr.f32.gmra.mrb[0].mxu0 %v995
      %v1546 = vpop.f32.mrb[0].mxu0
      %v1547 = vadd.f32 0.0, %v1546
      %v1548 = vpop.f32.mrb[0].mxu0
      %1549 = vmatprep.mubr.f32.mxu0 %v1028
      %1550 = vmatmul.mubr.f32.gmra.mrb[0].mxu0 %v996
      %v1551 = vpop.f32.mrb[0].mxu0
      %v1552 = vadd.f32 0.0, %v1551
      %v1553 = vpop.f32.mrb[0].mxu0
      %1554 = vmatprep.mubr.f32.mxu0 %v1029
      %1555 = vmatmul.mubr.f32.gmra.mrb[0].mxu0 %v997
      %v1556 = vpop.f32.mrb[0].mxu0
      %v1557 = vadd.f32 0.0, %v1556
      %v1558 = vpop.f32.mrb[0].mxu0
      %1559 = vmatprep.mubr.f32.mxu0 %v1030
      %1560 = vmatmul.mubr.f32.gmra.mrb[0].mxu0 %v998
      %v1561 = vpop.f32.mrb[0].mxu0
      %v1562 = vadd.f32 0.0, %v1561
      %v1563 = vpop.f32.mrb[0].mxu0
      %1564 = vmatprep.mubr.f32.mxu0 %v1031
      %1565 = vmatmul.mubr.f32.gmra.mrb[0].mxu0 %v999
      %v1566 = vpop.f32.mrb[0].mxu0
      %v1567 = vadd.f32 0.0, %v1566
      %v1568 = vpop.f32.mrb[0].mxu0
      %1569 = vmatprep.mubr.f32.mxu0 %v1032
      %1570 = vmatmul.mubr.f32.gmra.mrb[0].mxu0 %v1000
      %v1571 = vpop.f32.mrb[0].mxu0
      %v1572 = vadd.f32 0.0, %v1571
      %v1573 = vpop.f32.mrb[0].mxu0
      %1574 = vmatprep.mubr.f32.mxu0 %v1033
      %1575 = vmatmul.mubr.f32.gmra.mrb[0].mxu0 %v1001
      %v1576 = vpop.f32.mrb[0].mxu0
      %v1577 = vadd.f32 0.0, %v1576
      %v1578 = vpop.f32.mrb[0].mxu0
      %1579 = vmatprep.mubr.f32.mxu0 %v1034
      %1580 = vmatmul.mubr.f32.gmra.mrb[0].mxu0 %v1002
      %v1581 = vpop.f32.mrb[0].mxu0
      %v1582 = vadd.f32 0.0, %v1581
      %v1583 = vpop.f32.mrb[0].mxu0
      %1584 = vmatprep.mubr.f32.mxu0 %v1035
      %1585 = vmatmul.mubr.f32.gmra.mrb[0].mxu0 %v1003
      %v1586 = vpop.f32.mrb[0].mxu0
      %v1587 = vadd.f32 0.0, %v1586
      %v1588 = vpop.f32.mrb[0].mxu0
      %1589 = vmatprep.mubr.f32.mxu0 %v1036
      %1590 = vmatmul.mubr.f32.gmra.mrb[0].mxu0 %v1004
      %v1591 = vpop.f32.mrb[0].mxu0
      %v1592 = vadd.f32 0.0, %v1591
      %v1593 = vpop.f32.mrb[0].mxu0
      %1594 = vmatprep.mubr.f32.mxu0 %v1037
      %1595 = vmatmul.mubr.f32.gmra.mrb[0].mxu0 %v1005
      %v1596 = vpop.f32.mrb[0].mxu0
      %v1597 = vadd.f32 0.0, %v1596
      %v1598 = vpop.f32.mrb[0].mxu0
      %1599 = vmatprep.mubr.f32.mxu0 %v1038
      %1600 = vmatmul.mubr.f32.gmra.mrb[0].mxu0 %v1006
      %v1601 = vpop.f32.mrb[0].mxu0
      %v1602 = vadd.f32 0.0, %v1601
      %v1603 = vpop.f32.mrb[0].mxu0
      %1604 = vmatprep.mubr.f32.mxu0 %v1039
      %1605 = vmatmul.mubr.f32.gmra.mrb[0].mxu0 %v1007
      %v1606 = vpop.f32.mrb[0].mxu0
      %v1607 = vadd.f32 0.0, %v1606
      %v1608 = vpop.f32.mrb[0].mxu0
      %1609 = vmatprep.mubr.f32.mxu0 %v1040
      %1610 = vmatmul.mubr.f32.gmra.mrb[0].mxu0 %v1008
      %v1611 = vpop.f32.mrb[0].mxu0
      %v1612 = vadd.f32 0.0, %v1611
      %v1613 = vpop.f32.mrb[0].mxu0
      %1614 = vmatprep.mubr.f32.mxu0 %v1041
      %1615 = vmatmul.mubr.f32.gmra.mrb[0].mxu0 %v1009
      %v1616 = vpop.f32.mrb[0].mxu0
      %v1617 = vadd.f32 0.0, %v1616
      %v1618 = vpop.f32.mrb[0].mxu0
      %1619 = vmatprep.mubr.f32.mxu0 %v1042
      %1620 = vmatmul.mubr.f32.gmra.mrb[0].mxu0 %v1010
      %v1621 = vpop.f32.mrb[0].mxu0
      %v1622 = vadd.f32 0.0, %v1621
      %v1623 = vpop.f32.mrb[0].mxu0
      %1624 = vmatprep.mubr.f32.mxu0 %v1043
      %1625 = vmatmul.mubr.f32.gmra.mrb[0].mxu0 %v1011
      %v1626 = vpop.f32.mrb[0].mxu0
      %v1627 = vadd.f32 0.0, %v1626
      %v1628 = vpop.f32.mrb[0].mxu0
      %1629 = vmatprep.mubr.f32.mxu0 %v1044
      %1630 = vmatmul.mubr.f32.gmra.mrb[0].mxu0 %v1012
      %v1631 = vpop.f32.mrb[0].mxu0
      %v1632 = vadd.f32 0.0, %v1631
      %v1633 = vpop.f32.mrb[0].mxu0
      %1634 = vmatprep.mubr.f32.mxu0 %v1045
      %1635 = vmatmul.mubr.f32.gmra.mrb[0].mxu0 %v1013
      %v1636 = vpop.f32.mrb[0].mxu0
      %v1637 = vadd.f32 0.0, %v1636
      %v1638 = vpop.f32.mrb[0].mxu0
      %1639 = vdwg.mxu0
      %1640 = vmatprep.subr.mxu0 0.0
      %1641 = vmatpush1.msra.mxu0 %v1303
      %1642 = vmatprep.subr.mxu0 0.0
      %1643 = vmatpush1.msra.mxu0 %v1304
      %1644 = vmatprep.subr.mxu0 0.0
      %1645 = vmatpush1.msra.mxu0 %v1305
      %1646 = vmatprep.subr.mxu0 0.0
      %1647 = vmatpush1.msra.mxu0 %v1306
      %1648 = vmatprep.subr.mxu0 0.0
      %1649 = vmatpush1.msra.mxu0 %v1307
      %1650 = vmatprep.subr.mxu0 0.0
      %1651 = vmatpush1.msra.mxu0 %v1308
      %1652 = vmatprep.subr.mxu0 0.0
      %1653 = vmatpush1.msra.mxu0 %v1309
      %1654 = vmatprep.subr.mxu0 0.0
      %1655 = vmatpush1.msra.mxu0 %v1310
      %1656 = vmatprep.subr.mxu0 0.0
      %1657 = vmatpush1.msra.mxu0 %v1311
      %1658 = vmatprep.subr.mxu0 0.0
      %1659 = vmatpush1.msra.mxu0 %v1312
      %1660 = vmatprep.subr.mxu0 0.0
      %1661 = vmatpush1.msra.mxu0 %v1313
      %1662 = vmatprep.subr.mxu0 0.0
      %1663 = vmatpush1.msra.mxu0 %v1314
      %1664 = vmatprep.subr.mxu0 0.0
      %1665 = vmatpush1.msra.mxu0 %v1315
      %1666 = vmatprep.subr.mxu0 0.0
      %1667 = vmatpush1.msra.mxu0 %v1316
      %1668 = vmatprep.subr.mxu0 0.0
      %1669 = vmatpush1.msra.mxu0 %v1317
      %1670 = vmatprep.subr.mxu0 0.0
      %1671 = vmatpush1.msra.mxu0 %v1318
      %1672 = vmatprep.subr.mxu0 0.0
      %1673 = vmatpush1.msra.mxu0 %v1319
      %1674 = vmatprep.subr.mxu0 0.0
      %1675 = vmatpush1.msra.mxu0 %v1320
      %1676 = vmatprep.subr.mxu0 0.0
      %1677 = vmatpush1.msra.mxu0 %v1321
      %1678 = vmatprep.subr.mxu0 0.0
      %1679 = vmatpush1.msra.mxu0 %v1322
      %1680 = vmatprep.subr.mxu0 0.0
      %1681 = vmatpush1.msra.mxu0 %v1323
      %1682 = vmatprep.subr.mxu0 0.0
      %1683 = vmatpush1.msra.mxu0 %v1324
      %1684 = vmatprep.subr.mxu0 0.0
      %1685 = vmatpush1.msra.mxu0 %v1325
      %1686 = vmatprep.subr.mxu0 0.0
      %1687 = vmatpush1.msra.mxu0 %v1326
      %1688 = vmatprep.subr.mxu0 0.0
      %1689 = vmatpush1.msra.mxu0 %v1327
      %1690 = vmatprep.subr.mxu0 0.0
      %1691 = vmatpush1.msra.mxu0 %v1328
      %1692 = vmatprep.subr.mxu0 0.0
      %1693 = vmatpush1.msra.mxu0 %v1329
      %1694 = vmatprep.subr.mxu0 0.0
      %1695 = vmatpush1.msra.mxu0 %v1330
      %1696 = vmatprep.subr.mxu0 0.0
      %1697 = vmatpush1.msra.mxu0 %v1331
      %1698 = vmatprep.subr.mxu0 0.0
      %1699 = vmatpush1.msra.mxu0 %v1332
      %1700 = vmatprep.subr.mxu0 0.0
      %1701 = vmatpush1.msra.mxu0 %v1333
      %1702 = vmatprep.subr.mxu0 0.0
      %1703 = vmatpush1.msra.mxu0 %v1334
      %1704 = vmatprep.mubr.f32.mxu0 %v1078
      %1705 = vmatmul.mubr.f32.gmra.mrb[0].mxu0 %v1046
      %v1706 = vpop.f32.mrb[0].mxu0
      %v1707 = vadd.f32 %v1482, %v1706
      %v1708 = vpop.f32.mrb[0].mxu0
      %1709 = vmatprep.mubr.f32.mxu0 %v1079
      %1710 = vmatmul.mubr.f32.gmra.mrb[0].mxu0 %v1047
      %v1711 = vpop.f32.mrb[0].mxu0
      %v1712 = vadd.f32 %v1487, %v1711
      %v1713 = vpop.f32.mrb[0].mxu0
      %1714 = vmatprep.mubr.f32.mxu0 %v1080
      %1715 = vmatmul.mubr.f32.gmra.mrb[0].mxu0 %v1048
      %v1716 = vpop.f32.mrb[0].mxu0
      %v1717 = vadd.f32 %v1492, %v1716
      %v1718 = vpop.f32.mrb[0].mxu0
      %1719 = vmatprep.mubr.f32.mxu0 %v1081
      %1720 = vmatmul.mubr.f32.gmra.mrb[0].mxu0 %v1049
      %v1721 = vpop.f32.mrb[0].mxu0
      %v1722 = vadd.f32 %v1497, %v1721
      %v1723 = vpop.f32.mrb[0].mxu0
      %1724 = vmatprep.mubr.f32.mxu0 %v1082
      %1725 = vmatmul.mubr.f32.gmra.mrb[0].mxu0 %v1050
      %v1726 = vpop.f32.mrb[0].mxu0
      %v1727 = vadd.f32 %v1502, %v1726
      %v1728 = vpop.f32.mrb[0].mxu0
      %1729 = vmatprep.mubr.f32.mxu0 %v1083
      %1730 = vmatmul.mubr.f32.gmra.mrb[0].mxu0 %v1051
      %v1731 = vpop.f32.mrb[0].mxu0
      %v1732 = vadd.f32 %v1507, %v1731
      %v1733 = vpop.f32.mrb[0].mxu0
      %1734 = vmatprep.mubr.f32.mxu0 %v1084
      %1735 = vmatmul.mubr.f32.gmra.mrb[0].mxu0 %v1052
      %v1736 = vpop.f32.mrb[0].mxu0
      %v1737 = vadd.f32 %v1512, %v1736
      %v1738 = vpop.f32.mrb[0].mxu0
      %1739 = vmatprep.mubr.f32.mxu0 %v1085
      %1740 = vmatmul.mubr.f32.gmra.mrb[0].mxu0 %v1053
      %v1741 = vpop.f32.mrb[0].mxu0
      %v1742 = vadd.f32 %v1517, %v1741
      %v1743 = vpop.f32.mrb[0].mxu0
      %1744 = vmatprep.mubr.f32.mxu0 %v1086
      %1745 = vmatmul.mubr.f32.gmra.mrb[0].mxu0 %v1054
      %v1746 = vpop.f32.mrb[0].mxu0
      %v1747 = vadd.f32 %v1522, %v1746
      %v1748 = vpop.f32.mrb[0].mxu0
      %1749 = vmatprep.mubr.f32.mxu0 %v1087
      %1750 = vmatmul.mubr.f32.gmra.mrb[0].mxu0 %v1055
      %v1751 = vpop.f32.mrb[0].mxu0
      %v1752 = vadd.f32 %v1527, %v1751
      %v1753 = vpop.f32.mrb[0].mxu0
      %1754 = vmatprep.mubr.f32.mxu0 %v1088
      %1755 = vmatmul.mubr.f32.gmra.mrb[0].mxu0 %v1056
      %v1756 = vpop.f32.mrb[0].mxu0
      %v1757 = vadd.f32 %v1532, %v1756
      %v1758 = vpop.f32.mrb[0].mxu0
      %1759 = vmatprep.mubr.f32.mxu0 %v1089
      %1760 = vmatmul.mubr.f32.gmra.mrb[0].mxu0 %v1057
      %v1761 = vpop.f32.mrb[0].mxu0
      %v1762 = vadd.f32 %v1537, %v1761
      %v1763 = vpop.f32.mrb[0].mxu0
      %1764 = vmatprep.mubr.f32.mxu0 %v1090
      %1765 = vmatmul.mubr.f32.gmra.mrb[0].mxu0 %v1058
      %v1766 = vpop.f32.mrb[0].mxu0
      %v1767 = vadd.f32 %v1542, %v1766
      %v1768 = vpop.f32.mrb[0].mxu0
      %1769 = vmatprep.mubr.f32.mxu0 %v1091
      %1770 = vmatmul.mubr.f32.gmra.mrb[0].mxu0 %v1059
      %v1771 = vpop.f32.mrb[0].mxu0
      %v1772 = vadd.f32 %v1547, %v1771
      %v1773 = vpop.f32.mrb[0].mxu0
      %1774 = vmatprep.mubr.f32.mxu0 %v1092
      %1775 = vmatmul.mubr.f32.gmra.mrb[0].mxu0 %v1060
      %v1776 = vpop.f32.mrb[0].mxu0
      %v1777 = vadd.f32 %v1552, %v1776
      %v1778 = vpop.f32.mrb[0].mxu0
      %1779 = vmatprep.mubr.f32.mxu0 %v1093
      %1780 = vmatmul.mubr.f32.gmra.mrb[0].mxu0 %v1061
      %v1781 = vpop.f32.mrb[0].mxu0
      %v1782 = vadd.f32 %v1557, %v1781
      %v1783 = vpop.f32.mrb[0].mxu0
      %1784 = vmatprep.mubr.f32.mxu0 %v1094
      %1785 = vmatmul.mubr.f32.gmra.mrb[0].mxu0 %v1062
      %v1786 = vpop.f32.mrb[0].mxu0
      %v1787 = vadd.f32 %v1562, %v1786
      %v1788 = vpop.f32.mrb[0].mxu0
      %1789 = vmatprep.mubr.f32.mxu0 %v1095
      %1790 = vmatmul.mubr.f32.gmra.mrb[0].mxu0 %v1063
      %v1791 = vpop.f32.mrb[0].mxu0
      %v1792 = vadd.f32 %v1567, %v1791
      %v1793 = vpop.f32.mrb[0].mxu0
      %1794 = vmatprep.mubr.f32.mxu0 %v1096
      %1795 = vmatmul.mubr.f32.gmra.mrb[0].mxu0 %v1064
      %v1796 = vpop.f32.mrb[0].mxu0
      %v1797 = vadd.f32 %v1572, %v1796
      %v1798 = vpop.f32.mrb[0].mxu0
      %1799 = vmatprep.mubr.f32.mxu0 %v1097
      %1800 = vmatmul.mubr.f32.gmra.mrb[0].mxu0 %v1065
      %v1801 = vpop.f32.mrb[0].mxu0
      %v1802 = vadd.f32 %v1577, %v1801
      %v1803 = vpop.f32.mrb[0].mxu0
      %1804 = vmatprep.mubr.f32.mxu0 %v1098
      %1805 = vmatmul.mubr.f32.gmra.mrb[0].mxu0 %v1066
      %v1806 = vpop.f32.mrb[0].mxu0
      %v1807 = vadd.f32 %v1582, %v1806
      %v1808 = vpop.f32.mrb[0].mxu0
      %1809 = vmatprep.mubr.f32.mxu0 %v1099
      %1810 = vmatmul.mubr.f32.gmra.mrb[0].mxu0 %v1067
      %v1811 = vpop.f32.mrb[0].mxu0
      %v1812 = vadd.f32 %v1587, %v1811
      %v1813 = vpop.f32.mrb[0].mxu0
      %1814 = vmatprep.mubr.f32.mxu0 %v1100
      %1815 = vmatmul.mubr.f32.gmra.mrb[0].mxu0 %v1068
      %v1816 = vpop.f32.mrb[0].mxu0
      %v1817 = vadd.f32 %v1592, %v1816
      %v1818 = vpop.f32.mrb[0].mxu0
      %1819 = vmatprep.mubr.f32.mxu0 %v1101
      %1820 = vmatmul.mubr.f32.gmra.mrb[0].mxu0 %v1069
      %v1821 = vpop.f32.mrb[0].mxu0
      %v1822 = vadd.f32 %v1597, %v1821
      %v1823 = vpop.f32.mrb[0].mxu0
      %1824 = vmatprep.mubr.f32.mxu0 %v1102
      %1825 = vmatmul.mubr.f32.gmra.mrb[0].mxu0 %v1070
      %v1826 = vpop.f32.mrb[0].mxu0
      %v1827 = vadd.f32 %v1602, %v1826
      %v1828 = vpop.f32.mrb[0].mxu0
      %1829 = vmatprep.mubr.f32.mxu0 %v1103
      %1830 = vmatmul.mubr.f32.gmra.mrb[0].mxu0 %v1071
      %v1831 = vpop.f32.mrb[0].mxu0
      %v1832 = vadd.f32 %v1607, %v1831
      %v1833 = vpop.f32.mrb[0].mxu0
      %1834 = vmatprep.mubr.f32.mxu0 %v1104
      %1835 = vmatmul.mubr.f32.gmra.mrb[0].mxu0 %v1072
      %v1836 = vpop.f32.mrb[0].mxu0
      %v1837 = vadd.f32 %v1612, %v1836
      %v1838 = vpop.f32.mrb[0].mxu0
      %1839 = vmatprep.mubr.f32.mxu0 %v1105
      %1840 = vmatmul.mubr.f32.gmra.mrb[0].mxu0 %v1073
      %v1841 = vpop.f32.mrb[0].mxu0
      %v1842 = vadd.f32 %v1617, %v1841
      %v1843 = vpop.f32.mrb[0].mxu0
      %1844 = vmatprep.mubr.f32.mxu0 %v1106
      %1845 = vmatmul.mubr.f32.gmra.mrb[0].mxu0 %v1074
      %v1846 = vpop.f32.mrb[0].mxu0
      %v1847 = vadd.f32 %v1622, %v1846
      %v1848 = vpop.f32.mrb[0].mxu0
      %1849 = vmatprep.mubr.f32.mxu0 %v1107
      %1850 = vmatmul.mubr.f32.gmra.mrb[0].mxu0 %v1075
      %v1851 = vpop.f32.mrb[0].mxu0
      %v1852 = vadd.f32 %v1627, %v1851
      %v1853 = vpop.f32.mrb[0].mxu0
      %1854 = vmatprep.mubr.f32.mxu0 %v1108
      %1855 = vmatmul.mubr.f32.gmra.mrb[0].mxu0 %v1076
      %v1856 = vpop.f32.mrb[0].mxu0
      %v1857 = vadd.f32 %v1632, %v1856
      %v1858 = vpop.f32.mrb[0].mxu0
      %1859 = vmatprep.mubr.f32.mxu0 %v1109
      %1860 = vmatmul.mubr.f32.gmra.mrb[0].mxu0 %v1077
      %v1861 = vpop.f32.mrb[0].mxu0
      %v1862 = vadd.f32 %v1637, %v1861
      %v1863 = vpop.f32.mrb[0].mxu0
      %1864 = vdwg.mxu0
      %1865 = vmatprep.subr.mxu0 0.0
      %1866 = vmatpush1.msra.mxu0 %v1335
      %1867 = vmatprep.subr.mxu0 0.0
      %1868 = vmatpush1.msra.mxu0 %v1336
      %1869 = vmatprep.subr.mxu0 0.0
      %1870 = vmatpush1.msra.mxu0 %v1337
      %1871 = vmatprep.subr.mxu0 0.0
      %1872 = vmatpush1.msra.mxu0 %v1338
      %1873 = vmatprep.subr.mxu0 0.0
      %1874 = vmatpush1.msra.mxu0 %v1339
      %1875 = vmatprep.subr.mxu0 0.0
      %1876 = vmatpush1.msra.mxu0 %v1340
      %1877 = vmatprep.subr.mxu0 0.0
      %1878 = vmatpush1.msra.mxu0 %v1341
      %1879 = vmatprep.subr.mxu0 0.0
      %1880 = vmatpush1.msra.mxu0 %v1342
      %1881 = vmatprep.subr.mxu0 0.0
      %1882 = vmatpush1.msra.mxu0 %v1343
      %1883 = vmatprep.subr.mxu0 0.0
      %1884 = vmatpush1.msra.mxu0 %v1344
      %1885 = vmatprep.subr.mxu0 0.0
      %1886 = vmatpush1.msra.mxu0 %v1345
      %1887 = vmatprep.subr.mxu0 0.0
      %1888 = vmatpush1.msra.mxu0 %v1346
      %1889 = vmatprep.subr.mxu0 0.0
      %1890 = vmatpush1.msra.mxu0 %v1347
      %1891 = vmatprep.subr.mxu0 0.0
      %1892 = vmatpush1.msra.mxu0 %v1348
      %1893 = vmatprep.subr.mxu0 0.0
      %1894 = vmatpush1.msra.mxu0 %v1349
      %1895 = vmatprep.subr.mxu0 0.0
      %1896 = vmatpush1.msra.mxu0 %v1350
      %1897 = vmatprep.subr.mxu0 0.0
      %1898 = vmatpush1.msra.mxu0 %v1351
      %1899 = vmatprep.subr.mxu0 0.0
      %1900 = vmatpush1.msra.mxu0 %v1352
      %1901 = vmatprep.subr.mxu0 0.0
      %1902 = vmatpush1.msra.mxu0 %v1353
      %1903 = vmatprep.subr.mxu0 0.0
      %1904 = vmatpush1.msra.mxu0 %v1354
      %1905 = vmatprep.subr.mxu0 0.0
      %1906 = vmatpush1.msra.mxu0 %v1355
      %1907 = vmatprep.subr.mxu0 0.0
      %1908 = vmatpush1.msra.mxu0 %v1356
      %1909 = vmatprep.subr.mxu0 0.0
      %1910 = vmatpush1.msra.mxu0 %v1357
      %1911 = vmatprep.subr.mxu0 0.0
      %1912 = vmatpush1.msra.mxu0 %v1358
      %1913 = vmatprep.subr.mxu0 0.0
      %1914 = vmatpush1.msra.mxu0 %v1359
      %1915 = vmatprep.subr.mxu0 0.0
      %1916 = vmatpush1.msra.mxu0 %v1360
      %1917 = vmatprep.subr.mxu0 0.0
      %1918 = vmatpush1.msra.mxu0 %v1361
      %1919 = vmatprep.subr.mxu0 0.0
      %1920 = vmatpush1.msra.mxu0 %v1362
      %1921 = vmatprep.subr.mxu0 0.0
      %1922 = vmatpush1.msra.mxu0 %v1363
      %1923 = vmatprep.subr.mxu0 0.0
      %1924 = vmatpush1.msra.mxu0 %v1364
      %1925 = vmatprep.subr.mxu0 0.0
      %1926 = vmatpush1.msra.mxu0 %v1365
      %1927 = vmatprep.subr.mxu0 0.0
      %1928 = vmatpush1.msra.mxu0 %v1366
      %1929 = vmatprep.mubr.f32.mxu0 %v1142
      %1930 = vmatmul.mubr.f32.gmra.mrb[0].mxu0 %v1110
      %v1931 = vpop.f32.mrb[0].mxu0
      %v1932 = vadd.f32 %v1707, %v1931
      %v1933 = vpop.f32.mrb[0].mxu0
      %1934 = vmatprep.mubr.f32.mxu0 %v1143
      %1935 = vmatmul.mubr.f32.gmra.mrb[0].mxu0 %v1111
      %v1936 = vpop.f32.mrb[0].mxu0
      %v1937 = vadd.f32 %v1712, %v1936
      %v1938 = vpop.f32.mrb[0].mxu0
      %1939 = vmatprep.mubr.f32.mxu0 %v1144
      %1940 = vmatmul.mubr.f32.gmra.mrb[0].mxu0 %v1112
      %v1941 = vpop.f32.mrb[0].mxu0
      %v1942 = vadd.f32 %v1717, %v1941
      %v1943 = vpop.f32.mrb[0].mxu0
      %1944 = vmatprep.mubr.f32.mxu0 %v1145
      %1945 = vmatmul.mubr.f32.gmra.mrb[0].mxu0 %v1113
      %v1946 = vpop.f32.mrb[0].mxu0
      %v1947 = vadd.f32 %v1722, %v1946
      %v1948 = vpop.f32.mrb[0].mxu0
      %1949 = vmatprep.mubr.f32.mxu0 %v1146
      %1950 = vmatmul.mubr.f32.gmra.mrb[0].mxu0 %v1114
      %v1951 = vpop.f32.mrb[0].mxu0
      %v1952 = vadd.f32 %v1727, %v1951
      %v1953 = vpop.f32.mrb[0].mxu0
      %1954 = vmatprep.mubr.f32.mxu0 %v1147
      %1955 = vmatmul.mubr.f32.gmra.mrb[0].mxu0 %v1115
      %v1956 = vpop.f32.mrb[0].mxu0
      %v1957 = vadd.f32 %v1732, %v1956
      %v1958 = vpop.f32.mrb[0].mxu0
      %1959 = vmatprep.mubr.f32.mxu0 %v1148
      %1960 = vmatmul.mubr.f32.gmra.mrb[0].mxu0 %v1116
      %v1961 = vpop.f32.mrb[0].mxu0
      %v1962 = vadd.f32 %v1737, %v1961
      %v1963 = vpop.f32.mrb[0].mxu0
      %1964 = vmatprep.mubr.f32.mxu0 %v1149
      %1965 = vmatmul.mubr.f32.gmra.mrb[0].mxu0 %v1117
      %v1966 = vpop.f32.mrb[0].mxu0
      %v1967 = vadd.f32 %v1742, %v1966
      %v1968 = vpop.f32.mrb[0].mxu0
      %1969 = vmatprep.mubr.f32.mxu0 %v1150
      %1970 = vmatmul.mubr.f32.gmra.mrb[0].mxu0 %v1118
      %v1971 = vpop.f32.mrb[0].mxu0
      %v1972 = vadd.f32 %v1747, %v1971
      %v1973 = vpop.f32.mrb[0].mxu0
      %1974 = vmatprep.mubr.f32.mxu0 %v1151
      %1975 = vmatmul.mubr.f32.gmra.mrb[0].mxu0 %v1119
      %v1976 = vpop.f32.mrb[0].mxu0
      %v1977 = vadd.f32 %v1752, %v1976
      %v1978 = vpop.f32.mrb[0].mxu0
      %1979 = vmatprep.mubr.f32.mxu0 %v1152
      %1980 = vmatmul.mubr.f32.gmra.mrb[0].mxu0 %v1120
      %v1981 = vpop.f32.mrb[0].mxu0
      %v1982 = vadd.f32 %v1757, %v1981
      %v1983 = vpop.f32.mrb[0].mxu0
      %1984 = vmatprep.mubr.f32.mxu0 %v1153
      %1985 = vmatmul.mubr.f32.gmra.mrb[0].mxu0 %v1121
      %v1986 = vpop.f32.mrb[0].mxu0
      %v1987 = vadd.f32 %v1762, %v1986
      %v1988 = vpop.f32.mrb[0].mxu0
      %1989 = vmatprep.mubr.f32.mxu0 %v1154
      %1990 = vmatmul.mubr.f32.gmra.mrb[0].mxu0 %v1122
      %v1991 = vpop.f32.mrb[0].mxu0
      %v1992 = vadd.f32 %v1767, %v1991
      %v1993 = vpop.f32.mrb[0].mxu0
      %1994 = vmatprep.mubr.f32.mxu0 %v1155
      %1995 = vmatmul.mubr.f32.gmra.mrb[0].mxu0 %v1123
      %v1996 = vpop.f32.mrb[0].mxu0
      %v1997 = vadd.f32 %v1772, %v1996
      %v1998 = vpop.f32.mrb[0].mxu0
      %1999 = vmatprep.mubr.f32.mxu0 %v1156
      %2000 = vmatmul.mubr.f32.gmra.mrb[0].mxu0 %v1124
      %v2001 = vpop.f32.mrb[0].mxu0
      %v2002 = vadd.f32 %v1777, %v2001
      %v2003 = vpop.f32.mrb[0].mxu0
      %2004 = vmatprep.mubr.f32.mxu0 %v1157
      %2005 = vmatmul.mubr.f32.gmra.mrb[0].mxu0 %v1125
      %v2006 = vpop.f32.mrb[0].mxu0
      %v2007 = vadd.f32 %v1782, %v2006
      %v2008 = vpop.f32.mrb[0].mxu0
      %2009 = vmatprep.mubr.f32.mxu0 %v1158
      %2010 = vmatmul.mubr.f32.gmra.mrb[0].mxu0 %v1126
      %v2011 = vpop.f32.mrb[0].mxu0
      %v2012 = vadd.f32 %v1787, %v2011
      %v2013 = vpop.f32.mrb[0].mxu0
      %2014 = vmatprep.mubr.f32.mxu0 %v1159
      %2015 = vmatmul.mubr.f32.gmra.mrb[0].mxu0 %v1127
      %v2016 = vpop.f32.mrb[0].mxu0
      %v2017 = vadd.f32 %v1792, %v2016
      %v2018 = vpop.f32.mrb[0].mxu0
      %2019 = vmatprep.mubr.f32.mxu0 %v1160
      %2020 = vmatmul.mubr.f32.gmra.mrb[0].mxu0 %v1128
      %v2021 = vpop.f32.mrb[0].mxu0
      %v2022 = vadd.f32 %v1797, %v2021
      %v2023 = vpop.f32.mrb[0].mxu0
      %2024 = vmatprep.mubr.f32.mxu0 %v1161
      %2025 = vmatmul.mubr.f32.gmra.mrb[0].mxu0 %v1129
      %v2026 = vpop.f32.mrb[0].mxu0
      %v2027 = vadd.f32 %v1802, %v2026
      %v2028 = vpop.f32.mrb[0].mxu0
      %2029 = vmatprep.mubr.f32.mxu0 %v1162
      %2030 = vmatmul.mubr.f32.gmra.mrb[0].mxu0 %v1130
      %v2031 = vpop.f32.mrb[0].mxu0
      %v2032 = vadd.f32 %v1807, %v2031
      %v2033 = vpop.f32.mrb[0].mxu0
      %2034 = vmatprep.mubr.f32.mxu0 %v1163
      %2035 = vmatmul.mubr.f32.gmra.mrb[0].mxu0 %v1131
      %v2036 = vpop.f32.mrb[0].mxu0
      %v2037 = vadd.f32 %v1812, %v2036
      %v2038 = vpop.f32.mrb[0].mxu0
      %2039 = vmatprep.mubr.f32.mxu0 %v1164
      %2040 = vmatmul.mubr.f32.gmra.mrb[0].mxu0 %v1132
      %v2041 = vpop.f32.mrb[0].mxu0
      %v2042 = vadd.f32 %v1817, %v2041
      %v2043 = vpop.f32.mrb[0].mxu0
      %2044 = vmatprep.mubr.f32.mxu0 %v1165
      %2045 = vmatmul.mubr.f32.gmra.mrb[0].mxu0 %v1133
      %v2046 = vpop.f32.mrb[0].mxu0
      %v2047 = vadd.f32 %v1822, %v2046
      %v2048 = vpop.f32.mrb[0].mxu0
      %2049 = vmatprep.mubr.f32.mxu0 %v1166
      %2050 = vmatmul.mubr.f32.gmra.mrb[0].mxu0 %v1134
      %v2051 = vpop.f32.mrb[0].mxu0
      %v2052 = vadd.f32 %v1827, %v2051
      %v2053 = vpop.f32.mrb[0].mxu0
      %2054 = vmatprep.mubr.f32.mxu0 %v1167
      %2055 = vmatmul.mubr.f32.gmra.mrb[0].mxu0 %v1135
      %v2056 = vpop.f32.mrb[0].mxu0
      %v2057 = vadd.f32 %v1832, %v2056
      %v2058 = vpop.f32.mrb[0].mxu0
      %2059 = vmatprep.mubr.f32.mxu0 %v1168
      %2060 = vmatmul.mubr.f32.gmra.mrb[0].mxu0 %v1136
      %v2061 = vpop.f32.mrb[0].mxu0
      %v2062 = vadd.f32 %v1837, %v2061
      %v2063 = vpop.f32.mrb[0].mxu0
      %2064 = vmatprep.mubr.f32.mxu0 %v1169
      %2065 = vmatmul.mubr.f32.gmra.mrb[0].mxu0 %v1137
      %v2066 = vpop.f32.mrb[0].mxu0
      %v2067 = vadd.f32 %v1842, %v2066
      %v2068 = vpop.f32.mrb[0].mxu0
      %2069 = vmatprep.mubr.f32.mxu0 %v1170
      %2070 = vmatmul.mubr.f32.gmra.mrb[0].mxu0 %v1138
      %v2071 = vpop.f32.mrb[0].mxu0
      %v2072 = vadd.f32 %v1847, %v2071
      %v2073 = vpop.f32.mrb[0].mxu0
      %2074 = vmatprep.mubr.f32.mxu0 %v1171
      %2075 = vmatmul.mubr.f32.gmra.mrb[0].mxu0 %v1139
      %v2076 = vpop.f32.mrb[0].mxu0
      %v2077 = vadd.f32 %v1852, %v2076
      %v2078 = vpop.f32.mrb[0].mxu0
      %2079 = vmatprep.mubr.f32.mxu0 %v1172
      %2080 = vmatmul.mubr.f32.gmra.mrb[0].mxu0 %v1140
      %v2081 = vpop.f32.mrb[0].mxu0
      %v2082 = vadd.f32 %v1857, %v2081
      %v2083 = vpop.f32.mrb[0].mxu0
      %2084 = vmatprep.mubr.f32.mxu0 %v1173
      %2085 = vmatmul.mubr.f32.gmra.mrb[0].mxu0 %v1141
      %v2086 = vpop.f32.mrb[0].mxu0
      %v2087 = vadd.f32 %v1862, %v2086
      %v2088 = vpop.f32.mrb[0].mxu0
      %2089 = vdwg.mxu0
      %2090 = vmatprep.subr.mxu0 0.0
      %2091 = vmatpush1.msra.mxu0 %v1367
      %2092 = vmatprep.subr.mxu0 0.0
      %2093 = vmatpush1.msra.mxu0 %v1368
      %2094 = vmatprep.subr.mxu0 0.0
      %2095 = vmatpush1.msra.mxu0 %v1369
      %2096 = vmatprep.subr.mxu0 0.0
      %2097 = vmatpush1.msra.mxu0 %v1370
      %2098 = vmatprep.subr.mxu0 0.0
      %2099 = vmatpush1.msra.mxu0 %v1371
      %2100 = vmatprep.subr.mxu0 0.0
      %2101 = vmatpush1.msra.mxu0 %v1372
      %2102 = vmatprep.subr.mxu0 0.0
      %2103 = vmatpush1.msra.mxu0 %v1373
      %2104 = vmatprep.subr.mxu0 0.0
      %2105 = vmatpush1.msra.mxu0 %v1374
      %2106 = vmatprep.subr.mxu0 0.0
      %2107 = vmatpush1.msra.mxu0 %v1375
      %2108 = vmatprep.subr.mxu0 0.0
      %2109 = vmatpush1.msra.mxu0 %v1376
      %2110 = vmatprep.subr.mxu0 0.0
      %2111 = vmatpush1.msra.mxu0 %v1377
      %2112 = vmatprep.subr.mxu0 0.0
      %2113 = vmatpush1.msra.mxu0 %v1378
      %2114 = vmatprep.subr.mxu0 0.0
      %2115 = vmatpush1.msra.mxu0 %v1379
      %2116 = vmatprep.subr.mxu0 0.0
      %2117 = vmatpush1.msra.mxu0 %v1380
      %2118 = vmatprep.subr.mxu0 0.0
      %2119 = vmatpush1.msra.mxu0 %v1381
      %2120 = vmatprep.subr.mxu0 0.0
      %2121 = vmatpush1.msra.mxu0 %v1382
      %2122 = vmatprep.subr.mxu0 0.0
      %2123 = vmatpush1.msra.mxu0 %v1383
      %2124 = vmatprep.subr.mxu0 0.0
      %2125 = vmatpush1.msra.mxu0 %v1384
      %2126 = vmatprep.subr.mxu0 0.0
      %2127 = vmatpush1.msra.mxu0 %v1385
      %2128 = vmatprep.subr.mxu0 0.0
      %2129 = vmatpush1.msra.mxu0 %v1386
      %2130 = vmatprep.subr.mxu0 0.0
      %2131 = vmatpush1.msra.mxu0 %v1387
      %2132 = vmatprep.subr.mxu0 0.0
      %2133 = vmatpush1.msra.mxu0 %v1388
      %2134 = vmatprep.subr.mxu0 0.0
      %2135 = vmatpush1.msra.mxu0 %v1389
      %2136 = vmatprep.subr.mxu0 0.0
      %2137 = vmatpush1.msra.mxu0 %v1390
      %2138 = vmatprep.subr.mxu0 0.0
      %2139 = vmatpush1.msra.mxu0 %v1391
      %2140 = vmatprep.subr.mxu0 0.0
      %2141 = vmatpush1.msra.mxu0 %v1392
      %2142 = vmatprep.subr.mxu0 0.0
      %2143 = vmatpush1.msra.mxu0 %v1393
      %2144 = vmatprep.subr.mxu0 0.0
      %2145 = vmatpush1.msra.mxu0 %v1394
      %2146 = vmatprep.subr.mxu0 0.0
      %2147 = vmatpush1.msra.mxu0 %v1395
      %2148 = vmatprep.subr.mxu0 0.0
      %2149 = vmatpush1.msra.mxu0 %v1396
      %2150 = vmatprep.subr.mxu0 0.0
      %2151 = vmatpush1.msra.mxu0 %v1397
      %2152 = vmatprep.subr.mxu0 0.0
      %2153 = vmatpush1.msra.mxu0 %v1398
      %2154 = vmatprep.mubr.f32.mxu0 %v1207
      %2155 = vmatmul.mubr.f32.gmra.mrb[0].mxu0 %v1175
      %v2156 = vpop.f32.mrb[0].mxu0
      %v2157 = vadd.f32 %v1932, %v2156
      %v2158 = vpop.f32.mrb[0].mxu0
      %2159 = vmatprep.mubr.f32.mxu0 %v1208
      %2160 = vmatmul.mubr.f32.gmra.mrb[0].mxu0 %v1176
      %v2161 = vpop.f32.mrb[0].mxu0
      %v2162 = vadd.f32 %v1937, %v2161
      %v2163 = vpop.f32.mrb[0].mxu0
      %2164 = vmatprep.mubr.f32.mxu0 %v1209
      %2165 = vmatmul.mubr.f32.gmra.mrb[0].mxu0 %v1177
      %v2166 = vpop.f32.mrb[0].mxu0
      %v2167 = vadd.f32 %v1942, %v2166
      %v2168 = vpop.f32.mrb[0].mxu0
      %2169 = vmatprep.mubr.f32.mxu0 %v1210
      %2170 = vmatmul.mubr.f32.gmra.mrb[0].mxu0 %v1178
      %v2171 = vpop.f32.mrb[0].mxu0
      %v2172 = vadd.f32 %v1947, %v2171
      %v2173 = vpop.f32.mrb[0].mxu0
      %2174 = vmatprep.mubr.f32.mxu0 %v1211
      %2175 = vmatmul.mubr.f32.gmra.mrb[0].mxu0 %v1179
      %v2176 = vpop.f32.mrb[0].mxu0
      %v2177 = vadd.f32 %v1952, %v2176
      %v2178 = vpop.f32.mrb[0].mxu0
      %2179 = vmatprep.mubr.f32.mxu0 %v1212
      %2180 = vmatmul.mubr.f32.gmra.mrb[0].mxu0 %v1180
      %v2181 = vpop.f32.mrb[0].mxu0
      %v2182 = vadd.f32 %v1957, %v2181
      %v2183 = vpop.f32.mrb[0].mxu0
      %2184 = vmatprep.mubr.f32.mxu0 %v1213
      %2185 = vmatmul.mubr.f32.gmra.mrb[0].mxu0 %v1181
      %v2186 = vpop.f32.mrb[0].mxu0
      %v2187 = vadd.f32 %v1962, %v2186
      %v2188 = vpop.f32.mrb[0].mxu0
      %2189 = vmatprep.mubr.f32.mxu0 %v1214
      %2190 = vmatmul.mubr.f32.gmra.mrb[0].mxu0 %v1182
      %v2191 = vpop.f32.mrb[0].mxu0
      %v2192 = vadd.f32 %v1967, %v2191
      %v2193 = vpop.f32.mrb[0].mxu0
      %2194 = vmatprep.mubr.f32.mxu0 %v1215
      %2195 = vmatmul.mubr.f32.gmra.mrb[0].mxu0 %v1183
      %v2196 = vpop.f32.mrb[0].mxu0
      %v2197 = vadd.f32 %v1972, %v2196
      %v2198 = vpop.f32.mrb[0].mxu0
      %2199 = vmatprep.mubr.f32.mxu0 %v1216
      %2200 = vmatmul.mubr.f32.gmra.mrb[0].mxu0 %v1184
      %v2201 = vpop.f32.mrb[0].mxu0
      %v2202 = vadd.f32 %v1977, %v2201
      %v2203 = vpop.f32.mrb[0].mxu0
      %2204 = vmatprep.mubr.f32.mxu0 %v1217
      %2205 = vmatmul.mubr.f32.gmra.mrb[0].mxu0 %v1185
      %v2206 = vpop.f32.mrb[0].mxu0
      %v2207 = vadd.f32 %v1982, %v2206
      %v2208 = vpop.f32.mrb[0].mxu0
      %2209 = vmatprep.mubr.f32.mxu0 %v1218
      %2210 = vmatmul.mubr.f32.gmra.mrb[0].mxu0 %v1186
      %v2211 = vpop.f32.mrb[0].mxu0
      %v2212 = vadd.f32 %v1987, %v2211
      %v2213 = vpop.f32.mrb[0].mxu0
      %2214 = vmatprep.mubr.f32.mxu0 %v1219
      %2215 = vmatmul.mubr.f32.gmra.mrb[0].mxu0 %v1187
      %v2216 = vpop.f32.mrb[0].mxu0
      %v2217 = vadd.f32 %v1992, %v2216
      %v2218 = vpop.f32.mrb[0].mxu0
      %2219 = vmatprep.mubr.f32.mxu0 %v1220
      %2220 = vmatmul.mubr.f32.gmra.mrb[0].mxu0 %v1188
      %v2221 = vpop.f32.mrb[0].mxu0
      %v2222 = vadd.f32 %v1997, %v2221
      %v2223 = vpop.f32.mrb[0].mxu0
      %2224 = vmatprep.mubr.f32.mxu0 %v1221
      %2225 = vmatmul.mubr.f32.gmra.mrb[0].mxu0 %v1189
      %v2226 = vpop.f32.mrb[0].mxu0
      %v2227 = vadd.f32 %v2002, %v2226
      %v2228 = vpop.f32.mrb[0].mxu0
      %2229 = vmatprep.mubr.f32.mxu0 %v1222
      %2230 = vmatmul.mubr.f32.gmra.mrb[0].mxu0 %v1190
      %v2231 = vpop.f32.mrb[0].mxu0
      %v2232 = vadd.f32 %v2007, %v2231
      %v2233 = vpop.f32.mrb[0].mxu0
      %2234 = vmatprep.mubr.f32.mxu0 %v1223
      %2235 = vmatmul.mubr.f32.gmra.mrb[0].mxu0 %v1191
      %v2236 = vpop.f32.mrb[0].mxu0
      %v2237 = vadd.f32 %v2012, %v2236
      %v2238 = vpop.f32.mrb[0].mxu0
      %2239 = vmatprep.mubr.f32.mxu0 %v1224
      %2240 = vmatmul.mubr.f32.gmra.mrb[0].mxu0 %v1192
      %v2241 = vpop.f32.mrb[0].mxu0
      %v2242 = vadd.f32 %v2017, %v2241
      %v2243 = vpop.f32.mrb[0].mxu0
      %2244 = vmatprep.mubr.f32.mxu0 %v1225
      %2245 = vmatmul.mubr.f32.gmra.mrb[0].mxu0 %v1193
      %v2246 = vpop.f32.mrb[0].mxu0
      %v2247 = vadd.f32 %v2022, %v2246
      %v2248 = vpop.f32.mrb[0].mxu0
      %2249 = vmatprep.mubr.f32.mxu0 %v1226
      %2250 = vmatmul.mubr.f32.gmra.mrb[0].mxu0 %v1194
      %v2251 = vpop.f32.mrb[0].mxu0
      %v2252 = vadd.f32 %v2027, %v2251
      %v2253 = vpop.f32.mrb[0].mxu0
      %2254 = vmatprep.mubr.f32.mxu0 %v1227
      %2255 = vmatmul.mubr.f32.gmra.mrb[0].mxu0 %v1195
      %v2256 = vpop.f32.mrb[0].mxu0
      %v2257 = vadd.f32 %v2032, %v2256
      %v2258 = vpop.f32.mrb[0].mxu0
      %2259 = vmatprep.mubr.f32.mxu0 %v1228
      %2260 = vmatmul.mubr.f32.gmra.mrb[0].mxu0 %v1196
      %v2261 = vpop.f32.mrb[0].mxu0
      %v2262 = vadd.f32 %v2037, %v2261
      %v2263 = vpop.f32.mrb[0].mxu0
      %2264 = vmatprep.mubr.f32.mxu0 %v1229
      %2265 = vmatmul.mubr.f32.gmra.mrb[0].mxu0 %v1197
      %v2266 = vpop.f32.mrb[0].mxu0
      %v2267 = vadd.f32 %v2042, %v2266
      %v2268 = vpop.f32.mrb[0].mxu0
      %2269 = vmatprep.mubr.f32.mxu0 %v1230
      %2270 = vmatmul.mubr.f32.gmra.mrb[0].mxu0 %v1198
      %v2271 = vpop.f32.mrb[0].mxu0
      %v2272 = vadd.f32 %v2047, %v2271
      %v2273 = vpop.f32.mrb[0].mxu0
      %2274 = vmatprep.mubr.f32.mxu0 %v1231
      %2275 = vmatmul.mubr.f32.gmra.mrb[0].mxu0 %v1199
      %v2276 = vpop.f32.mrb[0].mxu0
      %v2277 = vadd.f32 %v2052, %v2276
      %v2278 = vpop.f32.mrb[0].mxu0
      %2279 = vmatprep.mubr.f32.mxu0 %v1232
      %2280 = vmatmul.mubr.f32.gmra.mrb[0].mxu0 %v1200
      %v2281 = vpop.f32.mrb[0].mxu0
      %v2282 = vadd.f32 %v2057, %v2281
      %v2283 = vpop.f32.mrb[0].mxu0
      %2284 = vmatprep.mubr.f32.mxu0 %v1233
      %2285 = vmatmul.mubr.f32.gmra.mrb[0].mxu0 %v1201
      %v2286 = vpop.f32.mrb[0].mxu0
      %v2287 = vadd.f32 %v2062, %v2286
      %v2288 = vpop.f32.mrb[0].mxu0
      %2289 = vmatprep.mubr.f32.mxu0 %v1234
      %2290 = vmatmul.mubr.f32.gmra.mrb[0].mxu0 %v1202
      %v2291 = vpop.f32.mrb[0].mxu0
      %v2292 = vadd.f32 %v2067, %v2291
      %v2293 = vpop.f32.mrb[0].mxu0
      %2294 = vmatprep.mubr.f32.mxu0 %v1235
      %2295 = vmatmul.mubr.f32.gmra.mrb[0].mxu0 %v1203
      %v2296 = vpop.f32.mrb[0].mxu0
      %v2297 = vadd.f32 %v2072, %v2296
      %v2298 = vpop.f32.mrb[0].mxu0
      %2299 = vmatprep.mubr.f32.mxu0 %v1236
      %2300 = vmatmul.mubr.f32.gmra.mrb[0].mxu0 %v1204
      %v2301 = vpop.f32.mrb[0].mxu0
      %v2302 = vadd.f32 %v2077, %v2301
      %v2303 = vpop.f32.mrb[0].mxu0
      %2304 = vmatprep.mubr.f32.mxu0 %v1237
      %2305 = vmatmul.mubr.f32.gmra.mrb[0].mxu0 %v1205
      %v2306 = vpop.f32.mrb[0].mxu0
      %v2307 = vadd.f32 %v2082, %v2306
      %v2308 = vpop.f32.mrb[0].mxu0
      %2309 = vmatprep.mubr.f32.mxu0 %v1238
      %2310 = vmatmul.mubr.f32.gmra.mrb[0].mxu0 %v1206
      %v2311 = vpop.f32.mrb[0].mxu0
      %v2312 = vadd.f32 %v2087, %v2311
      %v2313 = vpop.f32.mrb[0].mxu0
      %2314 = vdwg.mxu0
      %2315 = vmatprep.subr.mxu0 0.0
      %2316 = vmatpush1.msra.mxu0 %v1399
      %2317 = vmatprep.subr.mxu0 0.0
      %2318 = vmatpush1.msra.mxu0 %v1400
      %2319 = vmatprep.subr.mxu0 0.0
      %2320 = vmatpush1.msra.mxu0 %v1401
      %2321 = vmatprep.subr.mxu0 0.0
      %2322 = vmatpush1.msra.mxu0 %v1402
      %2323 = vmatprep.subr.mxu0 0.0
      %2324 = vmatpush1.msra.mxu0 %v1403
      %2325 = vmatprep.subr.mxu0 0.0
      %2326 = vmatpush1.msra.mxu0 %v1404
      %2327 = vmatprep.subr.mxu0 0.0
      %2328 = vmatpush1.msra.mxu0 %v1405
      %2329 = vmatprep.subr.mxu0 0.0
      %2330 = vmatpush1.msra.mxu0 %v1406
      %2331 = vmatprep.subr.mxu0 0.0
      %2332 = vmatpush1.msra.mxu0 %v1407
      %2333 = vmatprep.subr.mxu0 0.0
      %2334 = vmatpush1.msra.mxu0 %v1408
      %2335 = vmatprep.subr.mxu0 0.0
      %2336 = vmatpush1.msra.mxu0 %v1409
      %2337 = vmatprep.subr.mxu0 0.0
      %2338 = vmatpush1.msra.mxu0 %v1410
      %2339 = vmatprep.subr.mxu0 0.0
      %2340 = vmatpush1.msra.mxu0 %v1411
      %2341 = vmatprep.subr.mxu0 0.0
      %2342 = vmatpush1.msra.mxu0 %v1412
      %2343 = vmatprep.subr.mxu0 0.0
      %2344 = vmatpush1.msra.mxu0 %v1413
      %2345 = vmatprep.subr.mxu0 0.0
      %2346 = vmatpush1.msra.mxu0 %v1414
      %2347 = vmatprep.subr.mxu0 0.0
      %2348 = vmatpush1.msra.mxu0 0.0
      %2349 = vmatprep.subr.mxu0 0.0
      %2350 = vmatpush1.msra.mxu0 0.0
      %2351 = vmatprep.subr.mxu0 0.0
      %2352 = vmatpush1.msra.mxu0 0.0
      %2353 = vmatprep.subr.mxu0 0.0
      %2354 = vmatpush1.msra.mxu0 0.0
      %2355 = vmatprep.subr.mxu0 0.0
      %2356 = vmatpush1.msra.mxu0 0.0
      %2357 = vmatprep.subr.mxu0 0.0
      %2358 = vmatpush1.msra.mxu0 0.0
      %2359 = vmatprep.subr.mxu0 0.0
      %2360 = vmatpush1.msra.mxu0 0.0
      %2361 = vmatprep.subr.mxu0 0.0
      %2362 = vmatpush1.msra.mxu0 0.0
      %2363 = vmatprep.subr.mxu0 0.0
      %2364 = vmatpush1.msra.mxu0 0.0
      %2365 = vmatprep.subr.mxu0 0.0
      %2366 = vmatpush1.msra.mxu0 0.0
      %2367 = vmatprep.subr.mxu0 0.0
      %2368 = vmatpush1.msra.mxu0 0.0
      %2369 = vmatprep.subr.mxu0 0.0
      %2370 = vmatpush1.msra.mxu0 0.0
      %2371 = vmatprep.subr.mxu0 0.0
      %2372 = vmatpush1.msra.mxu0 0.0
      %2373 = vmatprep.subr.mxu0 0.0
      %2374 = vmatpush1.msra.mxu0 0.0
      %2375 = vmatprep.subr.mxu0 0.0
      %2376 = vmatpush1.msra.mxu0 0.0
      %2377 = vmatprep.subr.mxu0 0.0
      %2378 = vmatpush1.msra.mxu0 0.0
      %2379 = vmatprep.mubr.f32.mxu0 0.0
      %2380 = vmatmul.mubr.f32.gmra.mrb[0].mxu0 %v1239
      %v2381 = vpop.f32.mrb[0].mxu0
      %v2382 = vadd.f32 %v2157, %v2381
      %v2383 = vpop.f32.mrb[0].mxu0
      %2384 = vmatprep.mubr.f32.mxu0 0.0
      %2385 = vmatmul.mubr.f32.gmra.mrb[0].mxu0 %v1240
      %v2386 = vpop.f32.mrb[0].mxu0
      %v2387 = vadd.f32 %v2162, %v2386
      %v2388 = vpop.f32.mrb[0].mxu0
      %2389 = vmatprep.mubr.f32.mxu0 0.0
      %2390 = vmatmul.mubr.f32.gmra.mrb[0].mxu0 %v1241
      %v2391 = vpop.f32.mrb[0].mxu0
      %v2392 = vadd.f32 %v2167, %v2391
      %v2393 = vpop.f32.mrb[0].mxu0
      %2394 = vmatprep.mubr.f32.mxu0 0.0
      %2395 = vmatmul.mubr.f32.gmra.mrb[0].mxu0 %v1242
      %v2396 = vpop.f32.mrb[0].mxu0
      %v2397 = vadd.f32 %v2172, %v2396
      %v2398 = vpop.f32.mrb[0].mxu0
      %2399 = vmatprep.mubr.f32.mxu0 0.0
      %2400 = vmatmul.mubr.f32.gmra.mrb[0].mxu0 %v1243
      %v2401 = vpop.f32.mrb[0].mxu0
      %v2402 = vadd.f32 %v2177, %v2401
      %v2403 = vpop.f32.mrb[0].mxu0
      %2404 = vmatprep.mubr.f32.mxu0 0.0
      %2405 = vmatmul.mubr.f32.gmra.mrb[0].mxu0 %v1244
      %v2406 = vpop.f32.mrb[0].mxu0
      %v2407 = vadd.f32 %v2182, %v2406
      %v2408 = vpop.f32.mrb[0].mxu0
      %2409 = vmatprep.mubr.f32.mxu0 0.0
      %2410 = vmatmul.mubr.f32.gmra.mrb[0].mxu0 %v1245
      %v2411 = vpop.f32.mrb[0].mxu0
      %v2412 = vadd.f32 %v2187, %v2411
      %v2413 = vpop.f32.mrb[0].mxu0
      %2414 = vmatprep.mubr.f32.mxu0 0.0
      %2415 = vmatmul.mubr.f32.gmra.mrb[0].mxu0 %v1246
      %v2416 = vpop.f32.mrb[0].mxu0
      %v2417 = vadd.f32 %v2192, %v2416
      %v2418 = vpop.f32.mrb[0].mxu0
      %2419 = vmatprep.mubr.f32.mxu0 0.0
      %2420 = vmatmul.mubr.f32.gmra.mrb[0].mxu0 %v1247
      %v2421 = vpop.f32.mrb[0].mxu0
      %v2422 = vadd.f32 %v2197, %v2421
      %v2423 = vpop.f32.mrb[0].mxu0
      %2424 = vmatprep.mubr.f32.mxu0 0.0
      %2425 = vmatmul.mubr.f32.gmra.mrb[0].mxu0 %v1248
      %v2426 = vpop.f32.mrb[0].mxu0
      %v2427 = vadd.f32 %v2202, %v2426
      %v2428 = vpop.f32.mrb[0].mxu0
      %2429 = vmatprep.mubr.f32.mxu0 0.0
      %2430 = vmatmul.mubr.f32.gmra.mrb[0].mxu0 %v1249
      %v2431 = vpop.f32.mrb[0].mxu0
      %v2432 = vadd.f32 %v2207, %v2431
      %v2433 = vpop.f32.mrb[0].mxu0
      %2434 = vmatprep.mubr.f32.mxu0 0.0
      %2435 = vmatmul.mubr.f32.gmra.mrb[0].mxu0 %v1250
      %v2436 = vpop.f32.mrb[0].mxu0
      %v2437 = vadd.f32 %v2212, %v2436
      %v2438 = vpop.f32.mrb[0].mxu0
      %2439 = vmatprep.mubr.f32.mxu0 0.0
      %2440 = vmatmul.mubr.f32.gmra.mrb[0].mxu0 %v1251
      %v2441 = vpop.f32.mrb[0].mxu0
      %v2442 = vadd.f32 %v2217, %v2441
      %v2443 = vpop.f32.mrb[0].mxu0
      %2444 = vmatprep.mubr.f32.mxu0 0.0
      %2445 = vmatmul.mubr.f32.gmra.mrb[0].mxu0 %v1252
      %v2446 = vpop.f32.mrb[0].mxu0
      %v2447 = vadd.f32 %v2222, %v2446
      %v2448 = vpop.f32.mrb[0].mxu0
      %2449 = vmatprep.mubr.f32.mxu0 0.0
      %2450 = vmatmul.mubr.f32.gmra.mrb[0].mxu0 %v1253
      %v2451 = vpop.f32.mrb[0].mxu0
      %v2452 = vadd.f32 %v2227, %v2451
      %v2453 = vpop.f32.mrb[0].mxu0
      %2454 = vmatprep.mubr.f32.mxu0 0.0
      %2455 = vmatmul.mubr.f32.gmra.mrb[0].mxu0 %v1254
      %v2456 = vpop.f32.mrb[0].mxu0
      %v2457 = vadd.f32 %v2232, %v2456
      %v2458 = vpop.f32.mrb[0].mxu0
      %2459 = vmatprep.mubr.f32.mxu0 0.0
      %2460 = vmatmul.mubr.f32.gmra.mrb[0].mxu0 %v1255
      %v2461 = vpop.f32.mrb[0].mxu0
      %v2462 = vadd.f32 %v2237, %v2461
      %v2463 = vpop.f32.mrb[0].mxu0
      %2464 = vmatprep.mubr.f32.mxu0 0.0
      %2465 = vmatmul.mubr.f32.gmra.mrb[0].mxu0 %v1256
      %v2466 = vpop.f32.mrb[0].mxu0
      %v2467 = vadd.f32 %v2242, %v2466
      %v2468 = vpop.f32.mrb[0].mxu0
      %2469 = vmatprep.mubr.f32.mxu0 0.0
      %2470 = vmatmul.mubr.f32.gmra.mrb[0].mxu0 %v1257
      %v2471 = vpop.f32.mrb[0].mxu0
      %v2472 = vadd.f32 %v2247, %v2471
      %v2473 = vpop.f32.mrb[0].mxu0
      %2474 = vmatprep.mubr.f32.mxu0 0.0
      %2475 = vmatmul.mubr.f32.gmra.mrb[0].mxu0 %v1258
      %v2476 = vpop.f32.mrb[0].mxu0
      %v2477 = vadd.f32 %v2252, %v2476
      %v2478 = vpop.f32.mrb[0].mxu0
      %2479 = vmatprep.mubr.f32.mxu0 0.0
      %2480 = vmatmul.mubr.f32.gmra.mrb[0].mxu0 %v1259
      %v2481 = vpop.f32.mrb[0].mxu0
      %v2482 = vadd.f32 %v2257, %v2481
      %v2483 = vpop.f32.mrb[0].mxu0
      %2484 = vmatprep.mubr.f32.mxu0 0.0
      %2485 = vmatmul.mubr.f32.gmra.mrb[0].mxu0 %v1260
      %v2486 = vpop.f32.mrb[0].mxu0
      %v2487 = vadd.f32 %v2262, %v2486
      %v2488 = vpop.f32.mrb[0].mxu0
      %2489 = vmatprep.mubr.f32.mxu0 0.0
      %2490 = vmatmul.mubr.f32.gmra.mrb[0].mxu0 %v1261
      %v2491 = vpop.f32.mrb[0].mxu0
      %v2492 = vadd.f32 %v2267, %v2491
      %v2493 = vpop.f32.mrb[0].mxu0
      %2494 = vmatprep.mubr.f32.mxu0 0.0
      %2495 = vmatmul.mubr.f32.gmra.mrb[0].mxu0 %v1262
      %v2496 = vpop.f32.mrb[0].mxu0
      %v2497 = vadd.f32 %v2272, %v2496
      %v2498 = vpop.f32.mrb[0].mxu0
      %2499 = vmatprep.mubr.f32.mxu0 0.0
      %2500 = vmatmul.mubr.f32.gmra.mrb[0].mxu0 %v1263
      %v2501 = vpop.f32.mrb[0].mxu0
      %v2502 = vadd.f32 %v2277, %v2501
      %v2503 = vpop.f32.mrb[0].mxu0
      %2504 = vmatprep.mubr.f32.mxu0 0.0
      %2505 = vmatmul.mubr.f32.gmra.mrb[0].mxu0 %v1264
      %v2506 = vpop.f32.mrb[0].mxu0
      %v2507 = vadd.f32 %v2282, %v2506
      %v2508 = vpop.f32.mrb[0].mxu0
      %2509 = vmatprep.mubr.f32.mxu0 0.0
      %2510 = vmatmul.mubr.f32.gmra.mrb[0].mxu0 %v1265
      %v2511 = vpop.f32.mrb[0].mxu0
      %v2512 = vadd.f32 %v2287, %v2511
      %v2513 = vpop.f32.mrb[0].mxu0
      %2514 = vmatprep.mubr.f32.mxu0 0.0
      %2515 = vmatmul.mubr.f32.gmra.mrb[0].mxu0 %v1266
      %v2516 = vpop.f32.mrb[0].mxu0
      %v2517 = vadd.f32 %v2292, %v2516
      %v2518 = vpop.f32.mrb[0].mxu0
      %2519 = vmatprep.mubr.f32.mxu0 0.0
      %2520 = vmatmul.mubr.f32.gmra.mrb[0].mxu0 %v1267
      %v2521 = vpop.f32.mrb[0].mxu0
      %v2522 = vadd.f32 %v2297, %v2521
      %v2523 = vpop.f32.mrb[0].mxu0
      %2524 = vmatprep.mubr.f32.mxu0 0.0
      %2525 = vmatmul.mubr.f32.gmra.mrb[0].mxu0 %v1268
      %v2526 = vpop.f32.mrb[0].mxu0
      %v2527 = vadd.f32 %v2302, %v2526
      %v2528 = vpop.f32.mrb[0].mxu0
      %2529 = vmatprep.mubr.f32.mxu0 0.0
      %2530 = vmatmul.mubr.f32.gmra.mrb[0].mxu0 %v1269
      %v2531 = vpop.f32.mrb[0].mxu0
      %v2532 = vadd.f32 %v2307, %v2531
      %v2533 = vpop.f32.mrb[0].mxu0
      %2534 = vmatprep.mubr.f32.mxu0 0.0
      %2535 = vmatmul.mubr.f32.gmra.mrb[0].mxu0 %v1270
      %v2536 = vpop.f32.mrb[0].mxu0
      %v2537 = vadd.f32 %v2312, %v2536
      %v2538 = vpop.f32.mrb[0].mxu0
      %2539 = vdwg.mxu0
      %2540 = vmatprep.subr.mxu0 0.0
      %2541 = vmatpush1.msra.mxu0 %v838
      %2542 = vmatprep.subr.mxu0 0.0
      %2543 = vmatpush1.msra.mxu0 %v839
      %2544 = vmatprep.subr.mxu0 0.0
      %2545 = vmatpush1.msra.mxu0 %v840
      %2546 = vmatprep.subr.mxu0 0.0
      %2547 = vmatpush1.msra.mxu0 %v841
      %2548 = vmatprep.subr.mxu0 0.0
      %2549 = vmatpush1.msra.mxu0 %v842
      %2550 = vmatprep.subr.mxu0 0.0
      %2551 = vmatpush1.msra.mxu0 %v843
      %2552 = vmatprep.subr.mxu0 0.0
      %2553 = vmatpush1.msra.mxu0 %v844
      %2554 = vmatprep.subr.mxu0 0.0
      %2555 = vmatpush1.msra.mxu0 %v845
      %2556 = vmatprep.subr.mxu0 0.0
      %2557 = vmatpush1.msra.mxu0 %v846
      %2558 = vmatprep.subr.mxu0 0.0
      %2559 = vmatpush1.msra.mxu0 %v847
      %2560 = vmatprep.subr.mxu0 0.0
      %2561 = vmatpush1.msra.mxu0 %v848
      %2562 = vmatprep.subr.mxu0 0.0
      %2563 = vmatpush1.msra.mxu0 %v849
      %2564 = vmatprep.subr.mxu0 0.0
      %2565 = vmatpush1.msra.mxu0 %v850
      %2566 = vmatprep.subr.mxu0 0.0
      %2567 = vmatpush1.msra.mxu0 %v851
      %2568 = vmatprep.subr.mxu0 0.0
      %2569 = vmatpush1.msra.mxu0 %v852
      %2570 = vmatprep.subr.mxu0 0.0
      %2571 = vmatpush1.msra.mxu0 %v853
      %2572 = vmatprep.subr.mxu0 0.0
      %2573 = vmatpush1.msra.mxu0 %v854
      %2574 = vmatprep.subr.mxu0 0.0
      %2575 = vmatpush1.msra.mxu0 %v855
      %2576 = vmatprep.subr.mxu0 0.0
      %2577 = vmatpush1.msra.mxu0 %v856
      %2578 = vmatprep.subr.mxu0 0.0
      %2579 = vmatpush1.msra.mxu0 %v857
      %2580 = vmatprep.subr.mxu0 0.0
      %2581 = vmatpush1.msra.mxu0 %v858
      %2582 = vmatprep.subr.mxu0 0.0
      %2583 = vmatpush1.msra.mxu0 %v859
      %2584 = vmatprep.subr.mxu0 0.0
      %2585 = vmatpush1.msra.mxu0 %v860
      %2586 = vmatprep.subr.mxu0 0.0
      %2587 = vmatpush1.msra.mxu0 %v861
      %2588 = vmatprep.subr.mxu0 0.0
      %2589 = vmatpush1.msra.mxu0 %v862
      %2590 = vmatprep.subr.mxu0 0.0
      %2591 = vmatpush1.msra.mxu0 %v863
      %2592 = vmatprep.subr.mxu0 0.0
      %2593 = vmatpush1.msra.mxu0 %v864
      %2594 = vmatprep.subr.mxu0 0.0
      %2595 = vmatpush1.msra.mxu0 %v865
      %2596 = vmatprep.subr.mxu0 0.0
      %2597 = vmatpush1.msra.mxu0 %v866
      %2598 = vmatprep.subr.mxu0 0.0
      %2599 = vmatpush1.msra.mxu0 %v867
      %2600 = vmatprep.subr.mxu0 0.0
      %2601 = vmatpush1.msra.mxu0 %v868
      %2602 = vmatprep.subr.mxu0 0.0
      %2603 = vmatpush1.msra.mxu0 %v869
      %2604 = vmatprep.mubr.f32.mxu0 %v581
      %2605 = vmatmul.mubr.f32.gmra.mrb[0].mxu0 %v549
      %v2606 = vpop.f32.mrb[0].mxu0
      %v2607 = vadd.f32 %v2382, %v2606
      %v2608 = vpop.f32.mrb[0].mxu0
      %2609 = vmatprep.mubr.f32.mxu0 %v582
      %2610 = vmatmul.mubr.f32.gmra.mrb[0].mxu0 %v550
      %v2611 = vpop.f32.mrb[0].mxu0
      %v2612 = vadd.f32 %v2387, %v2611
      %v2613 = vpop.f32.mrb[0].mxu0
      %2614 = vmatprep.mubr.f32.mxu0 %v583
      %2615 = vmatmul.mubr.f32.gmra.mrb[0].mxu0 %v551
      %v2616 = vpop.f32.mrb[0].mxu0
      %v2617 = vadd.f32 %v2392, %v2616
      %v2618 = vpop.f32.mrb[0].mxu0
      %2619 = vmatprep.mubr.f32.mxu0 %v584
      %2620 = vmatmul.mubr.f32.gmra.mrb[0].mxu0 %v552
      %v2621 = vpop.f32.mrb[0].mxu0
      %v2622 = vadd.f32 %v2397, %v2621
      %v2623 = vpop.f32.mrb[0].mxu0
      %2624 = vmatprep.mubr.f32.mxu0 %v585
      %2625 = vmatmul.mubr.f32.gmra.mrb[0].mxu0 %v553
      %v2626 = vpop.f32.mrb[0].mxu0
      %v2627 = vadd.f32 %v2402, %v2626
      %v2628 = vpop.f32.mrb[0].mxu0
      %2629 = vmatprep.mubr.f32.mxu0 %v586
      %2630 = vmatmul.mubr.f32.gmra.mrb[0].mxu0 %v554
      %v2631 = vpop.f32.mrb[0].mxu0
      %v2632 = vadd.f32 %v2407, %v2631
      %v2633 = vpop.f32.mrb[0].mxu0
      %2634 = vmatprep.mubr.f32.mxu0 %v587
      %2635 = vmatmul.mubr.f32.gmra.mrb[0].mxu0 %v555
      %v2636 = vpop.f32.mrb[0].mxu0
      %v2637 = vadd.f32 %v2412, %v2636
      %v2638 = vpop.f32.mrb[0].mxu0
      %2639 = vmatprep.mubr.f32.mxu0 %v588
      %2640 = vmatmul.mubr.f32.gmra.mrb[0].mxu0 %v556
      %v2641 = vpop.f32.mrb[0].mxu0
      %v2642 = vadd.f32 %v2417, %v2641
      %v2643 = vpop.f32.mrb[0].mxu0
      %2644 = vmatprep.mubr.f32.mxu0 %v589
      %2645 = vmatmul.mubr.f32.gmra.mrb[0].mxu0 %v557
      %v2646 = vpop.f32.mrb[0].mxu0
      %v2647 = vadd.f32 %v2422, %v2646
      %v2648 = vpop.f32.mrb[0].mxu0
      %2649 = vmatprep.mubr.f32.mxu0 %v590
      %2650 = vmatmul.mubr.f32.gmra.mrb[0].mxu0 %v558
      %v2651 = vpop.f32.mrb[0].mxu0
      %v2652 = vadd.f32 %v2427, %v2651
      %v2653 = vpop.f32.mrb[0].mxu0
      %2654 = vmatprep.mubr.f32.mxu0 %v591
      %2655 = vmatmul.mubr.f32.gmra.mrb[0].mxu0 %v559
      %v2656 = vpop.f32.mrb[0].mxu0
      %v2657 = vadd.f32 %v2432, %v2656
      %v2658 = vpop.f32.mrb[0].mxu0
      %2659 = vmatprep.mubr.f32.mxu0 %v592
      %2660 = vmatmul.mubr.f32.gmra.mrb[0].mxu0 %v560
      %v2661 = vpop.f32.mrb[0].mxu0
      %v2662 = vadd.f32 %v2437, %v2661
      %v2663 = vpop.f32.mrb[0].mxu0
      %2664 = vmatprep.mubr.f32.mxu0 %v593
      %2665 = vmatmul.mubr.f32.gmra.mrb[0].mxu0 %v561
      %v2666 = vpop.f32.mrb[0].mxu0
      %v2667 = vadd.f32 %v2442, %v2666
      %v2668 = vpop.f32.mrb[0].mxu0
      %2669 = vmatprep.mubr.f32.mxu0 %v594
      %2670 = vmatmul.mubr.f32.gmra.mrb[0].mxu0 %v562
      %v2671 = vpop.f32.mrb[0].mxu0
      %v2672 = vadd.f32 %v2447, %v2671
      %v2673 = vpop.f32.mrb[0].mxu0
      %2674 = vmatprep.mubr.f32.mxu0 %v595
      %2675 = vmatmul.mubr.f32.gmra.mrb[0].mxu0 %v563
      %v2676 = vpop.f32.mrb[0].mxu0
      %v2677 = vadd.f32 %v2452, %v2676
      %v2678 = vpop.f32.mrb[0].mxu0
      %2679 = vmatprep.mubr.f32.mxu0 %v596
      %2680 = vmatmul.mubr.f32.gmra.mrb[0].mxu0 %v564
      %v2681 = vpop.f32.mrb[0].mxu0
      %v2682 = vadd.f32 %v2457, %v2681
      %v2683 = vpop.f32.mrb[0].mxu0
      %2684 = vmatprep.mubr.f32.mxu0 %v597
      %2685 = vmatmul.mubr.f32.gmra.mrb[0].mxu0 %v565
      %v2686 = vpop.f32.mrb[0].mxu0
      %v2687 = vadd.f32 %v2462, %v2686
      %v2688 = vpop.f32.mrb[0].mxu0
      %2689 = vmatprep.mubr.f32.mxu0 %v598
      %2690 = vmatmul.mubr.f32.gmra.mrb[0].mxu0 %v566
      %v2691 = vpop.f32.mrb[0].mxu0
      %v2692 = vadd.f32 %v2467, %v2691
      %v2693 = vpop.f32.mrb[0].mxu0
      %2694 = vmatprep.mubr.f32.mxu0 %v599
      %2695 = vmatmul.mubr.f32.gmra.mrb[0].mxu0 %v567
      %v2696 = vpop.f32.mrb[0].mxu0
      %v2697 = vadd.f32 %v2472, %v2696
      %v2698 = vpop.f32.mrb[0].mxu0
      %2699 = vmatprep.mubr.f32.mxu0 %v600
      %2700 = vmatmul.mubr.f32.gmra.mrb[0].mxu0 %v568
      %v2701 = vpop.f32.mrb[0].mxu0
      %v2702 = vadd.f32 %v2477, %v2701
      %v2703 = vpop.f32.mrb[0].mxu0
      %2704 = vmatprep.mubr.f32.mxu0 %v601
      %2705 = vmatmul.mubr.f32.gmra.mrb[0].mxu0 %v569
      %v2706 = vpop.f32.mrb[0].mxu0
      %v2707 = vadd.f32 %v2482, %v2706
      %v2708 = vpop.f32.mrb[0].mxu0
      %2709 = vmatprep.mubr.f32.mxu0 %v602
      %2710 = vmatmul.mubr.f32.gmra.mrb[0].mxu0 %v570
      %v2711 = vpop.f32.mrb[0].mxu0
      %v2712 = vadd.f32 %v2487, %v2711
      %v2713 = vpop.f32.mrb[0].mxu0
      %2714 = vmatprep.mubr.f32.mxu0 %v603
      %2715 = vmatmul.mubr.f32.gmra.mrb[0].mxu0 %v571
      %v2716 = vpop.f32.mrb[0].mxu0
      %v2717 = vadd.f32 %v2492, %v2716
      %v2718 = vpop.f32.mrb[0].mxu0
      %2719 = vmatprep.mubr.f32.mxu0 %v604
      %2720 = vmatmul.mubr.f32.gmra.mrb[0].mxu0 %v572
      %v2721 = vpop.f32.mrb[0].mxu0
      %v2722 = vadd.f32 %v2497, %v2721
      %v2723 = vpop.f32.mrb[0].mxu0
      %2724 = vmatprep.mubr.f32.mxu0 %v605
      %2725 = vmatmul.mubr.f32.gmra.mrb[0].mxu0 %v573
      %v2726 = vpop.f32.mrb[0].mxu0
      %v2727 = vadd.f32 %v2502, %v2726
      %v2728 = vpop.f32.mrb[0].mxu0
      %2729 = vmatprep.mubr.f32.mxu0 %v606
      %2730 = vmatmul.mubr.f32.gmra.mrb[0].mxu0 %v574
      %v2731 = vpop.f32.mrb[0].mxu0
      %v2732 = vadd.f32 %v2507, %v2731
      %v2733 = vpop.f32.mrb[0].mxu0
      %2734 = vmatprep.mubr.f32.mxu0 %v607
      %2735 = vmatmul.mubr.f32.gmra.mrb[0].mxu0 %v575
      %v2736 = vpop.f32.mrb[0].mxu0
      %v2737 = vadd.f32 %v2512, %v2736
      %v2738 = vpop.f32.mrb[0].mxu0
      %2739 = vmatprep.mubr.f32.mxu0 %v608
      %2740 = vmatmul.mubr.f32.gmra.mrb[0].mxu0 %v576
      %v2741 = vpop.f32.mrb[0].mxu0
      %v2742 = vadd.f32 %v2517, %v2741
      %v2743 = vpop.f32.mrb[0].mxu0
      %2744 = vmatprep.mubr.f32.mxu0 %v609
      %2745 = vmatmul.mubr.f32.gmra.mrb[0].mxu0 %v577
      %v2746 = vpop.f32.mrb[0].mxu0
      %v2747 = vadd.f32 %v2522, %v2746
      %v2748 = vpop.f32.mrb[0].mxu0
      %2749 = vmatprep.mubr.f32.mxu0 %v610
      %2750 = vmatmul.mubr.f32.gmra.mrb[0].mxu0 %v578
      %v2751 = vpop.f32.mrb[0].mxu0
      %v2752 = vadd.f32 %v2527, %v2751
      %v2753 = vpop.f32.mrb[0].mxu0
      %2754 = vmatprep.mubr.f32.mxu0 %v611
      %2755 = vmatmul.mubr.f32.gmra.mrb[0].mxu0 %v579
      %v2756 = vpop.f32.mrb[0].mxu0
      %v2757 = vadd.f32 %v2532, %v2756
      %v2758 = vpop.f32.mrb[0].mxu0
      %2759 = vmatprep.mubr.f32.mxu0 %v612
      %2760 = vmatmul.mubr.f32.gmra.mrb[0].mxu0 %v580
      %v2761 = vpop.f32.mrb[0].mxu0
      %v2762 = vadd.f32 %v2537, %v2761
      %v2763 = vpop.f32.mrb[0].mxu0
      %2764 = vdwg.mxu0
      %2765 = vmatprep.subr.mxu0 0.0
      %2766 = vmatpush1.msra.mxu0 %v870
      %2767 = vmatprep.subr.mxu0 0.0
      %2768 = vmatpush1.msra.mxu0 %v871
      %2769 = vmatprep.subr.mxu0 0.0
      %2770 = vmatpush1.msra.mxu0 %v872
      %2771 = vmatprep.subr.mxu0 0.0
      %2772 = vmatpush1.msra.mxu0 %v873
      %2773 = vmatprep.subr.mxu0 0.0
      %2774 = vmatpush1.msra.mxu0 %v874
      %2775 = vmatprep.subr.mxu0 0.0
      %2776 = vmatpush1.msra.mxu0 %v875
      %2777 = vmatprep.subr.mxu0 0.0
      %2778 = vmatpush1.msra.mxu0 %v876
      %2779 = vmatprep.subr.mxu0 0.0
      %2780 = vmatpush1.msra.mxu0 %v877
      %2781 = vmatprep.subr.mxu0 0.0
      %2782 = vmatpush1.msra.mxu0 %v878
      %2783 = vmatprep.subr.mxu0 0.0
      %2784 = vmatpush1.msra.mxu0 %v879
      %2785 = vmatprep.subr.mxu0 0.0
      %2786 = vmatpush1.msra.mxu0 %v880
      %2787 = vmatprep.subr.mxu0 0.0
      %2788 = vmatpush1.msra.mxu0 %v881
      %2789 = vmatprep.subr.mxu0 0.0
      %2790 = vmatpush1.msra.mxu0 %v882
      %2791 = vmatprep.subr.mxu0 0.0
      %2792 = vmatpush1.msra.mxu0 %v883
      %2793 = vmatprep.subr.mxu0 0.0
      %2794 = vmatpush1.msra.mxu0 %v884
      %2795 = vmatprep.subr.mxu0 0.0
      %2796 = vmatpush1.msra.mxu0 %v885
      %2797 = vmatprep.subr.mxu0 0.0
      %2798 = vmatpush1.msra.mxu0 %v886
      %2799 = vmatprep.subr.mxu0 0.0
      %2800 = vmatpush1.msra.mxu0 %v887
      %2801 = vmatprep.subr.mxu0 0.0
      %2802 = vmatpush1.msra.mxu0 %v888
      %2803 = vmatprep.subr.mxu0 0.0
      %2804 = vmatpush1.msra.mxu0 %v889
      %2805 = vmatprep.subr.mxu0 0.0
      %2806 = vmatpush1.msra.mxu0 %v890
      %2807 = vmatprep.subr.mxu0 0.0
      %2808 = vmatpush1.msra.mxu0 %v891
      %2809 = vmatprep.subr.mxu0 0.0
      %2810 = vmatpush1.msra.mxu0 %v892
      %2811 = vmatprep.subr.mxu0 0.0
      %2812 = vmatpush1.msra.mxu0 %v893
      %2813 = vmatprep.subr.mxu0 0.0
      %2814 = vmatpush1.msra.mxu0 %v894
      %2815 = vmatprep.subr.mxu0 0.0
      %2816 = vmatpush1.msra.mxu0 %v895
      %2817 = vmatprep.subr.mxu0 0.0
      %2818 = vmatpush1.msra.mxu0 %v896
      %2819 = vmatprep.subr.mxu0 0.0
      %2820 = vmatpush1.msra.mxu0 %v897
      %2821 = vmatprep.subr.mxu0 0.0
      %2822 = vmatpush1.msra.mxu0 %v898
      %2823 = vmatprep.subr.mxu0 0.0
      %2824 = vmatpush1.msra.mxu0 %v899
      %2825 = vmatprep.subr.mxu0 0.0
      %2826 = vmatpush1.msra.mxu0 %v900
      %2827 = vmatprep.subr.mxu0 0.0
      %2828 = vmatpush1.msra.mxu0 %v901
      %2829 = vmatprep.mubr.f32.mxu0 %v645
      %2830 = vmatmul.mubr.f32.gmra.mrb[0].mxu0 %v613
      %v2831 = vpop.f32.mrb[0].mxu0
      %v2832 = vadd.f32 %v2607, %v2831
      %v2833 = vpop.f32.mrb[0].mxu0
      %2834 = vmatprep.mubr.f32.mxu0 %v646
      %2835 = vmatmul.mubr.f32.gmra.mrb[0].mxu0 %v614
      %v2836 = vpop.f32.mrb[0].mxu0
      %v2837 = vadd.f32 %v2612, %v2836
      %v2838 = vpop.f32.mrb[0].mxu0
      %2839 = vmatprep.mubr.f32.mxu0 %v647
      %2840 = vmatmul.mubr.f32.gmra.mrb[0].mxu0 %v615
      %v2841 = vpop.f32.mrb[0].mxu0
      %v2842 = vadd.f32 %v2617, %v2841
      %v2843 = vpop.f32.mrb[0].mxu0
      %2844 = vmatprep.mubr.f32.mxu0 %v648
      %2845 = vmatmul.mubr.f32.gmra.mrb[0].mxu0 %v616
      %v2846 = vpop.f32.mrb[0].mxu0
      %v2847 = vadd.f32 %v2622, %v2846
      %v2848 = vpop.f32.mrb[0].mxu0
      %2849 = vmatprep.mubr.f32.mxu0 %v649
      %2850 = vmatmul.mubr.f32.gmra.mrb[0].mxu0 %v617
      %v2851 = vpop.f32.mrb[0].mxu0
      %v2852 = vadd.f32 %v2627, %v2851
      %v2853 = vpop.f32.mrb[0].mxu0
      %2854 = vmatprep.mubr.f32.mxu0 %v650
      %2855 = vmatmul.mubr.f32.gmra.mrb[0].mxu0 %v618
      %v2856 = vpop.f32.mrb[0].mxu0
      %v2857 = vadd.f32 %v2632, %v2856
      %v2858 = vpop.f32.mrb[0].mxu0
      %2859 = vmatprep.mubr.f32.mxu0 %v651
      %2860 = vmatmul.mubr.f32.gmra.mrb[0].mxu0 %v619
      %v2861 = vpop.f32.mrb[0].mxu0
      %v2862 = vadd.f32 %v2637, %v2861
      %v2863 = vpop.f32.mrb[0].mxu0
      %2864 = vmatprep.mubr.f32.mxu0 %v652
      %2865 = vmatmul.mubr.f32.gmra.mrb[0].mxu0 %v620
      %v2866 = vpop.f32.mrb[0].mxu0
      %v2867 = vadd.f32 %v2642, %v2866
      %v2868 = vpop.f32.mrb[0].mxu0
      %2869 = vmatprep.mubr.f32.mxu0 %v653
      %2870 = vmatmul.mubr.f32.gmra.mrb[0].mxu0 %v621
      %v2871 = vpop.f32.mrb[0].mxu0
      %v2872 = vadd.f32 %v2647, %v2871
      %v2873 = vpop.f32.mrb[0].mxu0
      %2874 = vmatprep.mubr.f32.mxu0 %v654
      %2875 = vmatmul.mubr.f32.gmra.mrb[0].mxu0 %v622
      %v2876 = vpop.f32.mrb[0].mxu0
      %v2877 = vadd.f32 %v2652, %v2876
      %v2878 = vpop.f32.mrb[0].mxu0
      %2879 = vmatprep.mubr.f32.mxu0 %v655
      %2880 = vmatmul.mubr.f32.gmra.mrb[0].mxu0 %v623
      %v2881 = vpop.f32.mrb[0].mxu0
      %v2882 = vadd.f32 %v2657, %v2881
      %v2883 = vpop.f32.mrb[0].mxu0
      %2884 = vmatprep.mubr.f32.mxu0 %v656
      %2885 = vmatmul.mubr.f32.gmra.mrb[0].mxu0 %v624
      %v2886 = vpop.f32.mrb[0].mxu0
      %v2887 = vadd.f32 %v2662, %v2886
      %v2888 = vpop.f32.mrb[0].mxu0
      %2889 = vmatprep.mubr.f32.mxu0 %v657
      %2890 = vmatmul.mubr.f32.gmra.mrb[0].mxu0 %v625
      %v2891 = vpop.f32.mrb[0].mxu0
      %v2892 = vadd.f32 %v2667, %v2891
      %v2893 = vpop.f32.mrb[0].mxu0
      %2894 = vmatprep.mubr.f32.mxu0 %v658
      %2895 = vmatmul.mubr.f32.gmra.mrb[0].mxu0 %v626
      %v2896 = vpop.f32.mrb[0].mxu0
      %v2897 = vadd.f32 %v2672, %v2896
      %v2898 = vpop.f32.mrb[0].mxu0
      %2899 = vmatprep.mubr.f32.mxu0 %v659
      %2900 = vmatmul.mubr.f32.gmra.mrb[0].mxu0 %v627
      %v2901 = vpop.f32.mrb[0].mxu0
      %v2902 = vadd.f32 %v2677, %v2901
      %v2903 = vpop.f32.mrb[0].mxu0
      %2904 = vmatprep.mubr.f32.mxu0 %v660
      %2905 = vmatmul.mubr.f32.gmra.mrb[0].mxu0 %v628
      %v2906 = vpop.f32.mrb[0].mxu0
      %v2907 = vadd.f32 %v2682, %v2906
      %v2908 = vpop.f32.mrb[0].mxu0
      %2909 = vmatprep.mubr.f32.mxu0 %v661
      %2910 = vmatmul.mubr.f32.gmra.mrb[0].mxu0 %v629
      %v2911 = vpop.f32.mrb[0].mxu0
      %v2912 = vadd.f32 %v2687, %v2911
      %v2913 = vpop.f32.mrb[0].mxu0
      %2914 = vmatprep.mubr.f32.mxu0 %v662
      %2915 = vmatmul.mubr.f32.gmra.mrb[0].mxu0 %v630
      %v2916 = vpop.f32.mrb[0].mxu0
      %v2917 = vadd.f32 %v2692, %v2916
      %v2918 = vpop.f32.mrb[0].mxu0
      %2919 = vmatprep.mubr.f32.mxu0 %v663
      %2920 = vmatmul.mubr.f32.gmra.mrb[0].mxu0 %v631
      %v2921 = vpop.f32.mrb[0].mxu0
      %v2922 = vadd.f32 %v2697, %v2921
      %v2923 = vpop.f32.mrb[0].mxu0
      %2924 = vmatprep.mubr.f32.mxu0 %v664
      %2925 = vmatmul.mubr.f32.gmra.mrb[0].mxu0 %v632
      %v2926 = vpop.f32.mrb[0].mxu0
      %v2927 = vadd.f32 %v2702, %v2926
      %v2928 = vpop.f32.mrb[0].mxu0
      %2929 = vmatprep.mubr.f32.mxu0 %v665
      %2930 = vmatmul.mubr.f32.gmra.mrb[0].mxu0 %v633
      %v2931 = vpop.f32.mrb[0].mxu0
      %v2932 = vadd.f32 %v2707, %v2931
      %v2933 = vpop.f32.mrb[0].mxu0
      %2934 = vmatprep.mubr.f32.mxu0 %v666
      %2935 = vmatmul.mubr.f32.gmra.mrb[0].mxu0 %v634
      %v2936 = vpop.f32.mrb[0].mxu0
      %v2937 = vadd.f32 %v2712, %v2936
      %v2938 = vpop.f32.mrb[0].mxu0
      %2939 = vmatprep.mubr.f32.mxu0 %v667
      %2940 = vmatmul.mubr.f32.gmra.mrb[0].mxu0 %v635
      %v2941 = vpop.f32.mrb[0].mxu0
      %v2942 = vadd.f32 %v2717, %v2941
      %v2943 = vpop.f32.mrb[0].mxu0
      %2944 = vmatprep.mubr.f32.mxu0 %v668
      %2945 = vmatmul.mubr.f32.gmra.mrb[0].mxu0 %v636
      %v2946 = vpop.f32.mrb[0].mxu0
      %v2947 = vadd.f32 %v2722, %v2946
      %v2948 = vpop.f32.mrb[0].mxu0
      %2949 = vmatprep.mubr.f32.mxu0 %v669
      %2950 = vmatmul.mubr.f32.gmra.mrb[0].mxu0 %v637
      %v2951 = vpop.f32.mrb[0].mxu0
      %v2952 = vadd.f32 %v2727, %v2951
      %v2953 = vpop.f32.mrb[0].mxu0
      %2954 = vmatprep.mubr.f32.mxu0 %v670
      %2955 = vmatmul.mubr.f32.gmra.mrb[0].mxu0 %v638
      %v2956 = vpop.f32.mrb[0].mxu0
      %v2957 = vadd.f32 %v2732, %v2956
      %v2958 = vpop.f32.mrb[0].mxu0
      %2959 = vmatprep.mubr.f32.mxu0 %v671
      %2960 = vmatmul.mubr.f32.gmra.mrb[0].mxu0 %v639
      %v2961 = vpop.f32.mrb[0].mxu0
      %v2962 = vadd.f32 %v2737, %v2961
      %v2963 = vpop.f32.mrb[0].mxu0
      %2964 = vmatprep.mubr.f32.mxu0 %v672
      %2965 = vmatmul.mubr.f32.gmra.mrb[0].mxu0 %v640
      %v2966 = vpop.f32.mrb[0].mxu0
      %v2967 = vadd.f32 %v2742, %v2966
      %v2968 = vpop.f32.mrb[0].mxu0
      %2969 = vmatprep.mubr.f32.mxu0 %v673
      %2970 = vmatmul.mubr.f32.gmra.mrb[0].mxu0 %v641
      %v2971 = vpop.f32.mrb[0].mxu0
      %v2972 = vadd.f32 %v2747, %v2971
      %v2973 = vpop.f32.mrb[0].mxu0
      %2974 = vmatprep.mubr.f32.mxu0 %v674
      %2975 = vmatmul.mubr.f32.gmra.mrb[0].mxu0 %v642
      %v2976 = vpop.f32.mrb[0].mxu0
      %v2977 = vadd.f32 %v2752, %v2976
      %v2978 = vpop.f32.mrb[0].mxu0
      %2979 = vmatprep.mubr.f32.mxu0 %v675
      %2980 = vmatmul.mubr.f32.gmra.mrb[0].mxu0 %v643
      %v2981 = vpop.f32.mrb[0].mxu0
      %v2982 = vadd.f32 %v2757, %v2981
      %v2983 = vpop.f32.mrb[0].mxu0
      %2984 = vmatprep.mubr.f32.mxu0 %v676
      %2985 = vmatmul.mubr.f32.gmra.mrb[0].mxu0 %v644
      %v2986 = vpop.f32.mrb[0].mxu0
      %v2987 = vadd.f32 %v2762, %v2986
      %v2988 = vpop.f32.mrb[0].mxu0
      %2989 = vdwg.mxu0
      %2990 = vmatprep.subr.mxu0 0.0
      %2991 = vmatpush1.msra.mxu0 %v902
      %2992 = vmatprep.subr.mxu0 0.0
      %2993 = vmatpush1.msra.mxu0 %v903
      %2994 = vmatprep.subr.mxu0 0.0
      %2995 = vmatpush1.msra.mxu0 %v904
      %2996 = vmatprep.subr.mxu0 0.0
      %2997 = vmatpush1.msra.mxu0 %v905
      %2998 = vmatprep.subr.mxu0 0.0
      %2999 = vmatpush1.msra.mxu0 %v906
      %3000 = vmatprep.subr.mxu0 0.0
      %3001 = vmatpush1.msra.mxu0 %v907
      %3002 = vmatprep.subr.mxu0 0.0
      %3003 = vmatpush1.msra.mxu0 %v908
      %3004 = vmatprep.subr.mxu0 0.0
      %3005 = vmatpush1.msra.mxu0 %v909
      %3006 = vmatprep.subr.mxu0 0.0
      %3007 = vmatpush1.msra.mxu0 %v910
      %3008 = vmatprep.subr.mxu0 0.0
      %3009 = vmatpush1.msra.mxu0 %v911
      %3010 = vmatprep.subr.mxu0 0.0
      %3011 = vmatpush1.msra.mxu0 %v912
      %3012 = vmatprep.subr.mxu0 0.0
      %3013 = vmatpush1.msra.mxu0 %v913
      %3014 = vmatprep.subr.mxu0 0.0
      %3015 = vmatpush1.msra.mxu0 %v914
      %3016 = vmatprep.subr.mxu0 0.0
      %3017 = vmatpush1.msra.mxu0 %v915
      %3018 = vmatprep.subr.mxu0 0.0
      %3019 = vmatpush1.msra.mxu0 %v916
      %3020 = vmatprep.subr.mxu0 0.0
      %3021 = vmatpush1.msra.mxu0 %v917
      %3022 = vmatprep.subr.mxu0 0.0
      %3023 = vmatpush1.msra.mxu0 %v918
      %3024 = vmatprep.subr.mxu0 0.0
      %3025 = vmatpush1.msra.mxu0 %v919
      %3026 = vmatprep.subr.mxu0 0.0
      %3027 = vmatpush1.msra.mxu0 %v920
      %3028 = vmatprep.subr.mxu0 0.0
      %3029 = vmatpush1.msra.mxu0 %v921
      %3030 = vmatprep.subr.mxu0 0.0
      %3031 = vmatpush1.msra.mxu0 %v922
      %3032 = vmatprep.subr.mxu0 0.0
      %3033 = vmatpush1.msra.mxu0 %v923
      %3034 = vmatprep.subr.mxu0 0.0
      %3035 = vmatpush1.msra.mxu0 %v924
      %3036 = vmatprep.subr.mxu0 0.0
      %3037 = vmatpush1.msra.mxu0 %v925
      %3038 = vmatprep.subr.mxu0 0.0
      %3039 = vmatpush1.msra.mxu0 %v926
      %3040 = vmatprep.subr.mxu0 0.0
      %3041 = vmatpush1.msra.mxu0 %v927
      %3042 = vmatprep.subr.mxu0 0.0
      %3043 = vmatpush1.msra.mxu0 %v928
      %3044 = vmatprep.subr.mxu0 0.0
      %3045 = vmatpush1.msra.mxu0 %v929
      %3046 = vmatprep.subr.mxu0 0.0
      %3047 = vmatpush1.msra.mxu0 %v930
      %3048 = vmatprep.subr.mxu0 0.0
      %3049 = vmatpush1.msra.mxu0 %v931
      %3050 = vmatprep.subr.mxu0 0.0
      %3051 = vmatpush1.msra.mxu0 %v932
      %3052 = vmatprep.subr.mxu0 0.0
      %3053 = vmatpush1.msra.mxu0 %v933
      %3054 = vmatprep.mubr.f32.mxu0 %v709
      %3055 = vmatmul.mubr.f32.gmra.mrb[0].mxu0 %v677
      %v3056 = vpop.f32.mrb[0].mxu0
      %v3057 = vadd.f32 %v2832, %v3056
      %v3058 = vpop.f32.mrb[0].mxu0
      %3059 = vmatprep.mubr.f32.mxu0 %v710
      %3060 = vmatmul.mubr.f32.gmra.mrb[0].mxu0 %v678
      %v3061 = vpop.f32.mrb[0].mxu0
      %v3062 = vadd.f32 %v2837, %v3061
      %v3063 = vpop.f32.mrb[0].mxu0
      %3064 = vmatprep.mubr.f32.mxu0 %v711
      %3065 = vmatmul.mubr.f32.gmra.mrb[0].mxu0 %v679
      %v3066 = vpop.f32.mrb[0].mxu0
      %v3067 = vadd.f32 %v2842, %v3066
      %v3068 = vpop.f32.mrb[0].mxu0
      %3069 = vmatprep.mubr.f32.mxu0 %v712
      %3070 = vmatmul.mubr.f32.gmra.mrb[0].mxu0 %v680
      %v3071 = vpop.f32.mrb[0].mxu0
      %v3072 = vadd.f32 %v2847, %v3071
      %v3073 = vpop.f32.mrb[0].mxu0
      %3074 = vmatprep.mubr.f32.mxu0 %v713
      %3075 = vmatmul.mubr.f32.gmra.mrb[0].mxu0 %v681
      %v3076 = vpop.f32.mrb[0].mxu0
      %v3077 = vadd.f32 %v2852, %v3076
      %v3078 = vpop.f32.mrb[0].mxu0
      %3079 = vmatprep.mubr.f32.mxu0 %v714
      %3080 = vmatmul.mubr.f32.gmra.mrb[0].mxu0 %v682
      %v3081 = vpop.f32.mrb[0].mxu0
      %v3082 = vadd.f32 %v2857, %v3081
      %v3083 = vpop.f32.mrb[0].mxu0
      %3084 = vmatprep.mubr.f32.mxu0 %v715
      %3085 = vmatmul.mubr.f32.gmra.mrb[0].mxu0 %v683
      %v3086 = vpop.f32.mrb[0].mxu0
      %v3087 = vadd.f32 %v2862, %v3086
      %v3088 = vpop.f32.mrb[0].mxu0
      %3089 = vmatprep.mubr.f32.mxu0 %v716
      %3090 = vmatmul.mubr.f32.gmra.mrb[0].mxu0 %v684
      %v3091 = vpop.f32.mrb[0].mxu0
      %v3092 = vadd.f32 %v2867, %v3091
      %v3093 = vpop.f32.mrb[0].mxu0
      %3094 = vmatprep.mubr.f32.mxu0 %v717
      %3095 = vmatmul.mubr.f32.gmra.mrb[0].mxu0 %v685
      %v3096 = vpop.f32.mrb[0].mxu0
      %v3097 = vadd.f32 %v2872, %v3096
      %v3098 = vpop.f32.mrb[0].mxu0
      %3099 = vmatprep.mubr.f32.mxu0 %v718
      %3100 = vmatmul.mubr.f32.gmra.mrb[0].mxu0 %v686
      %v3101 = vpop.f32.mrb[0].mxu0
      %v3102 = vadd.f32 %v2877, %v3101
      %v3103 = vpop.f32.mrb[0].mxu0
      %3104 = vmatprep.mubr.f32.mxu0 %v719
      %3105 = vmatmul.mubr.f32.gmra.mrb[0].mxu0 %v687
      %v3106 = vpop.f32.mrb[0].mxu0
      %v3107 = vadd.f32 %v2882, %v3106
      %v3108 = vpop.f32.mrb[0].mxu0
      %3109 = vmatprep.mubr.f32.mxu0 %v720
      %3110 = vmatmul.mubr.f32.gmra.mrb[0].mxu0 %v688
      %v3111 = vpop.f32.mrb[0].mxu0
      %v3112 = vadd.f32 %v2887, %v3111
      %v3113 = vpop.f32.mrb[0].mxu0
      %3114 = vmatprep.mubr.f32.mxu0 %v721
      %3115 = vmatmul.mubr.f32.gmra.mrb[0].mxu0 %v689
      %v3116 = vpop.f32.mrb[0].mxu0
      %v3117 = vadd.f32 %v2892, %v3116
      %v3118 = vpop.f32.mrb[0].mxu0
      %3119 = vmatprep.mubr.f32.mxu0 %v722
      %3120 = vmatmul.mubr.f32.gmra.mrb[0].mxu0 %v690
      %v3121 = vpop.f32.mrb[0].mxu0
      %v3122 = vadd.f32 %v2897, %v3121
      %v3123 = vpop.f32.mrb[0].mxu0
      %3124 = vmatprep.mubr.f32.mxu0 %v723
      %3125 = vmatmul.mubr.f32.gmra.mrb[0].mxu0 %v691
      %v3126 = vpop.f32.mrb[0].mxu0
      %v3127 = vadd.f32 %v2902, %v3126
      %v3128 = vpop.f32.mrb[0].mxu0
      %3129 = vmatprep.mubr.f32.mxu0 %v724
      %3130 = vmatmul.mubr.f32.gmra.mrb[0].mxu0 %v692
      %v3131 = vpop.f32.mrb[0].mxu0
      %v3132 = vadd.f32 %v2907, %v3131
      %v3133 = vpop.f32.mrb[0].mxu0
      %3134 = vmatprep.mubr.f32.mxu0 %v725
      %3135 = vmatmul.mubr.f32.gmra.mrb[0].mxu0 %v693
      %v3136 = vpop.f32.mrb[0].mxu0
      %v3137 = vadd.f32 %v2912, %v3136
      %v3138 = vpop.f32.mrb[0].mxu0
      %3139 = vmatprep.mubr.f32.mxu0 %v726
      %3140 = vmatmul.mubr.f32.gmra.mrb[0].mxu0 %v694
      %v3141 = vpop.f32.mrb[0].mxu0
      %v3142 = vadd.f32 %v2917, %v3141
      %v3143 = vpop.f32.mrb[0].mxu0
      %3144 = vmatprep.mubr.f32.mxu0 %v727
      %3145 = vmatmul.mubr.f32.gmra.mrb[0].mxu0 %v695
      %v3146 = vpop.f32.mrb[0].mxu0
      %v3147 = vadd.f32 %v2922, %v3146
      %v3148 = vpop.f32.mrb[0].mxu0
      %3149 = vmatprep.mubr.f32.mxu0 %v728
      %3150 = vmatmul.mubr.f32.gmra.mrb[0].mxu0 %v696
      %v3151 = vpop.f32.mrb[0].mxu0
      %v3152 = vadd.f32 %v2927, %v3151
      %v3153 = vpop.f32.mrb[0].mxu0
      %3154 = vmatprep.mubr.f32.mxu0 %v729
      %3155 = vmatmul.mubr.f32.gmra.mrb[0].mxu0 %v697
      %v3156 = vpop.f32.mrb[0].mxu0
      %v3157 = vadd.f32 %v2932, %v3156
      %v3158 = vpop.f32.mrb[0].mxu0
      %3159 = vmatprep.mubr.f32.mxu0 %v730
      %3160 = vmatmul.mubr.f32.gmra.mrb[0].mxu0 %v698
      %v3161 = vpop.f32.mrb[0].mxu0
      %v3162 = vadd.f32 %v2937, %v3161
      %v3163 = vpop.f32.mrb[0].mxu0
      %3164 = vmatprep.mubr.f32.mxu0 %v731
      %3165 = vmatmul.mubr.f32.gmra.mrb[0].mxu0 %v699
      %v3166 = vpop.f32.mrb[0].mxu0
      %v3167 = vadd.f32 %v2942, %v3166
      %v3168 = vpop.f32.mrb[0].mxu0
      %3169 = vmatprep.mubr.f32.mxu0 %v732
      %3170 = vmatmul.mubr.f32.gmra.mrb[0].mxu0 %v700
      %v3171 = vpop.f32.mrb[0].mxu0
      %v3172 = vadd.f32 %v2947, %v3171
      %v3173 = vpop.f32.mrb[0].mxu0
      %3174 = vmatprep.mubr.f32.mxu0 %v733
      %3175 = vmatmul.mubr.f32.gmra.mrb[0].mxu0 %v701
      %v3176 = vpop.f32.mrb[0].mxu0
      %v3177 = vadd.f32 %v2952, %v3176
      %v3178 = vpop.f32.mrb[0].mxu0
      %3179 = vmatprep.mubr.f32.mxu0 %v734
      %3180 = vmatmul.mubr.f32.gmra.mrb[0].mxu0 %v702
      %v3181 = vpop.f32.mrb[0].mxu0
      %v3182 = vadd.f32 %v2957, %v3181
      %v3183 = vpop.f32.mrb[0].mxu0
      %3184 = vmatprep.mubr.f32.mxu0 %v735
      %3185 = vmatmul.mubr.f32.gmra.mrb[0].mxu0 %v703
      %v3186 = vpop.f32.mrb[0].mxu0
      %v3187 = vadd.f32 %v2962, %v3186
      %v3188 = vpop.f32.mrb[0].mxu0
      %3189 = vmatprep.mubr.f32.mxu0 %v736
      %3190 = vmatmul.mubr.f32.gmra.mrb[0].mxu0 %v704
      %v3191 = vpop.f32.mrb[0].mxu0
      %v3192 = vadd.f32 %v2967, %v3191
      %v3193 = vpop.f32.mrb[0].mxu0
      %3194 = vmatprep.mubr.f32.mxu0 %v737
      %3195 = vmatmul.mubr.f32.gmra.mrb[0].mxu0 %v705
      %v3196 = vpop.f32.mrb[0].mxu0
      %v3197 = vadd.f32 %v2972, %v3196
      %v3198 = vpop.f32.mrb[0].mxu0
      %3199 = vmatprep.mubr.f32.mxu0 %v738
      %3200 = vmatmul.mubr.f32.gmra.mrb[0].mxu0 %v706
      %v3201 = vpop.f32.mrb[0].mxu0
      %v3202 = vadd.f32 %v2977, %v3201
      %v3203 = vpop.f32.mrb[0].mxu0
      %3204 = vmatprep.mubr.f32.mxu0 %v739
      %3205 = vmatmul.mubr.f32.gmra.mrb[0].mxu0 %v707
      %v3206 = vpop.f32.mrb[0].mxu0
      %v3207 = vadd.f32 %v2982, %v3206
      %v3208 = vpop.f32.mrb[0].mxu0
      %3209 = vmatprep.mubr.f32.mxu0 %v740
      %3210 = vmatmul.mubr.f32.gmra.mrb[0].mxu0 %v708
      %v3211 = vpop.f32.mrb[0].mxu0
      %v3212 = vadd.f32 %v2987, %v3211
      %v3213 = vpop.f32.mrb[0].mxu0
      %3214 = vdwg.mxu0
      %3215 = vmatprep.subr.mxu0 0.0
      %3216 = vmatpush1.msra.mxu0 %v934
      %3217 = vmatprep.subr.mxu0 0.0
      %3218 = vmatpush1.msra.mxu0 %v935
      %3219 = vmatprep.subr.mxu0 0.0
      %3220 = vmatpush1.msra.mxu0 %v936
      %3221 = vmatprep.subr.mxu0 0.0
      %3222 = vmatpush1.msra.mxu0 %v937
      %3223 = vmatprep.subr.mxu0 0.0
      %3224 = vmatpush1.msra.mxu0 %v938
      %3225 = vmatprep.subr.mxu0 0.0
      %3226 = vmatpush1.msra.mxu0 %v939
      %3227 = vmatprep.subr.mxu0 0.0
      %3228 = vmatpush1.msra.mxu0 %v940
      %3229 = vmatprep.subr.mxu0 0.0
      %3230 = vmatpush1.msra.mxu0 %v941
      %3231 = vmatprep.subr.mxu0 0.0
      %3232 = vmatpush1.msra.mxu0 %v942
      %3233 = vmatprep.subr.mxu0 0.0
      %3234 = vmatpush1.msra.mxu0 %v943
      %3235 = vmatprep.subr.mxu0 0.0
      %3236 = vmatpush1.msra.mxu0 %v944
      %3237 = vmatprep.subr.mxu0 0.0
      %3238 = vmatpush1.msra.mxu0 %v945
      %3239 = vmatprep.subr.mxu0 0.0
      %3240 = vmatpush1.msra.mxu0 %v946
      %3241 = vmatprep.subr.mxu0 0.0
      %3242 = vmatpush1.msra.mxu0 %v947
      %3243 = vmatprep.subr.mxu0 0.0
      %3244 = vmatpush1.msra.mxu0 %v948
      %3245 = vmatprep.subr.mxu0 0.0
      %3246 = vmatpush1.msra.mxu0 %v949
      %3247 = vmatprep.subr.mxu0 0.0
      %3248 = vmatpush1.msra.mxu0 %v950
      %3249 = vmatprep.subr.mxu0 0.0
      %3250 = vmatpush1.msra.mxu0 %v951
      %3251 = vmatprep.subr.mxu0 0.0
      %3252 = vmatpush1.msra.mxu0 %v952
      %3253 = vmatprep.subr.mxu0 0.0
      %3254 = vmatpush1.msra.mxu0 %v953
      %3255 = vmatprep.subr.mxu0 0.0
      %3256 = vmatpush1.msra.mxu0 %v954
      %3257 = vmatprep.subr.mxu0 0.0
      %3258 = vmatpush1.msra.mxu0 %v955
      %3259 = vmatprep.subr.mxu0 0.0
      %3260 = vmatpush1.msra.mxu0 %v956
      %3261 = vmatprep.subr.mxu0 0.0
      %3262 = vmatpush1.msra.mxu0 %v957
      %3263 = vmatprep.subr.mxu0 0.0
      %3264 = vmatpush1.msra.mxu0 %v958
      %3265 = vmatprep.subr.mxu0 0.0
      %3266 = vmatpush1.msra.mxu0 %v959
      %3267 = vmatprep.subr.mxu0 0.0
      %3268 = vmatpush1.msra.mxu0 %v960
      %3269 = vmatprep.subr.mxu0 0.0
      %3270 = vmatpush1.msra.mxu0 %v961
      %3271 = vmatprep.subr.mxu0 0.0
      %3272 = vmatpush1.msra.mxu0 %v962
      %3273 = vmatprep.subr.mxu0 0.0
      %3274 = vmatpush1.msra.mxu0 %v963
      %3275 = vmatprep.subr.mxu0 0.0
      %3276 = vmatpush1.msra.mxu0 %v964
      %3277 = vmatprep.subr.mxu0 0.0
      %3278 = vmatpush1.msra.mxu0 %v965
      %3279 = vmatprep.mubr.f32.mxu0 %v774
      %3280 = vmatmul.mubr.f32.gmra.mrb[0].mxu0 %v742
      %v3281 = vpop.f32.mrb[0].mxu0
      %v3282 = vadd.f32 %v3057, %v3281
      %v3283 = vpop.f32.mrb[0].mxu0
      %3284 = vmatprep.mubr.f32.mxu0 %v775
      %3285 = vmatmul.mubr.f32.gmra.mrb[0].mxu0 %v743
      %v3286 = vpop.f32.mrb[0].mxu0
      %v3287 = vadd.f32 %v3062, %v3286
      %v3288 = vpop.f32.mrb[0].mxu0
      %3289 = vmatprep.mubr.f32.mxu0 %v776
      %3290 = vmatmul.mubr.f32.gmra.mrb[0].mxu0 %v744
      %v3291 = vpop.f32.mrb[0].mxu0
      %v3292 = vadd.f32 %v3067, %v3291
      %v3293 = vpop.f32.mrb[0].mxu0
      %3294 = vmatprep.mubr.f32.mxu0 %v777
      %3295 = vmatmul.mubr.f32.gmra.mrb[0].mxu0 %v745
      %v3296 = vpop.f32.mrb[0].mxu0
      %v3297 = vadd.f32 %v3072, %v3296
      %v3298 = vpop.f32.mrb[0].mxu0
      %3299 = vmatprep.mubr.f32.mxu0 %v778
      %3300 = vmatmul.mubr.f32.gmra.mrb[0].mxu0 %v746
      %v3301 = vpop.f32.mrb[0].mxu0
      %v3302 = vadd.f32 %v3077, %v3301
      %v3303 = vpop.f32.mrb[0].mxu0
      %3304 = vmatprep.mubr.f32.mxu0 %v779
      %3305 = vmatmul.mubr.f32.gmra.mrb[0].mxu0 %v747
      %v3306 = vpop.f32.mrb[0].mxu0
      %v3307 = vadd.f32 %v3082, %v3306
      %v3308 = vpop.f32.mrb[0].mxu0
      %3309 = vmatprep.mubr.f32.mxu0 %v780
      %3310 = vmatmul.mubr.f32.gmra.mrb[0].mxu0 %v748
      %v3311 = vpop.f32.mrb[0].mxu0
      %v3312 = vadd.f32 %v3087, %v3311
      %v3313 = vpop.f32.mrb[0].mxu0
      %3314 = vmatprep.mubr.f32.mxu0 %v781
      %3315 = vmatmul.mubr.f32.gmra.mrb[0].mxu0 %v749
      %v3316 = vpop.f32.mrb[0].mxu0
      %v3317 = vadd.f32 %v3092, %v3316
      %v3318 = vpop.f32.mrb[0].mxu0
      %3319 = vmatprep.mubr.f32.mxu0 %v782
      %3320 = vmatmul.mubr.f32.gmra.mrb[0].mxu0 %v750
      %v3321 = vpop.f32.mrb[0].mxu0
      %v3322 = vadd.f32 %v3097, %v3321
      %v3323 = vpop.f32.mrb[0].mxu0
      %3324 = vmatprep.mubr.f32.mxu0 %v783
      %3325 = vmatmul.mubr.f32.gmra.mrb[0].mxu0 %v751
      %v3326 = vpop.f32.mrb[0].mxu0
      %v3327 = vadd.f32 %v3102, %v3326
      %v3328 = vpop.f32.mrb[0].mxu0
      %3329 = vmatprep.mubr.f32.mxu0 %v784
      %3330 = vmatmul.mubr.f32.gmra.mrb[0].mxu0 %v752
      %v3331 = vpop.f32.mrb[0].mxu0
      %v3332 = vadd.f32 %v3107, %v3331
      %v3333 = vpop.f32.mrb[0].mxu0
      %3334 = vmatprep.mubr.f32.mxu0 %v785
      %3335 = vmatmul.mubr.f32.gmra.mrb[0].mxu0 %v753
      %v3336 = vpop.f32.mrb[0].mxu0
      %v3337 = vadd.f32 %v3112, %v3336
      %v3338 = vpop.f32.mrb[0].mxu0
      %3339 = vmatprep.mubr.f32.mxu0 %v786
      %3340 = vmatmul.mubr.f32.gmra.mrb[0].mxu0 %v754
      %v3341 = vpop.f32.mrb[0].mxu0
      %v3342 = vadd.f32 %v3117, %v3341
      %v3343 = vpop.f32.mrb[0].mxu0
      %3344 = vmatprep.mubr.f32.mxu0 %v787
      %3345 = vmatmul.mubr.f32.gmra.mrb[0].mxu0 %v755
      %v3346 = vpop.f32.mrb[0].mxu0
      %v3347 = vadd.f32 %v3122, %v3346
      %v3348 = vpop.f32.mrb[0].mxu0
      %3349 = vmatprep.mubr.f32.mxu0 %v788
      %3350 = vmatmul.mubr.f32.gmra.mrb[0].mxu0 %v756
      %v3351 = vpop.f32.mrb[0].mxu0
      %v3352 = vadd.f32 %v3127, %v3351
      %v3353 = vpop.f32.mrb[0].mxu0
      %3354 = vmatprep.mubr.f32.mxu0 %v789
      %3355 = vmatmul.mubr.f32.gmra.mrb[0].mxu0 %v757
      %v3356 = vpop.f32.mrb[0].mxu0
      %v3357 = vadd.f32 %v3132, %v3356
      %v3358 = vpop.f32.mrb[0].mxu0
      %3359 = vmatprep.mubr.f32.mxu0 %v790
      %3360 = vmatmul.mubr.f32.gmra.mrb[0].mxu0 %v758
      %v3361 = vpop.f32.mrb[0].mxu0
      %v3362 = vadd.f32 %v3137, %v3361
      %v3363 = vpop.f32.mrb[0].mxu0
      %3364 = vmatprep.mubr.f32.mxu0 %v791
      %3365 = vmatmul.mubr.f32.gmra.mrb[0].mxu0 %v759
      %v3366 = vpop.f32.mrb[0].mxu0
      %v3367 = vadd.f32 %v3142, %v3366
      %v3368 = vpop.f32.mrb[0].mxu0
      %3369 = vmatprep.mubr.f32.mxu0 %v792
      %3370 = vmatmul.mubr.f32.gmra.mrb[0].mxu0 %v760
      %v3371 = vpop.f32.mrb[0].mxu0
      %v3372 = vadd.f32 %v3147, %v3371
      %v3373 = vpop.f32.mrb[0].mxu0
      %3374 = vmatprep.mubr.f32.mxu0 %v793
      %3375 = vmatmul.mubr.f32.gmra.mrb[0].mxu0 %v761
      %v3376 = vpop.f32.mrb[0].mxu0
      %v3377 = vadd.f32 %v3152, %v3376
      %v3378 = vpop.f32.mrb[0].mxu0
      %3379 = vmatprep.mubr.f32.mxu0 %v794
      %3380 = vmatmul.mubr.f32.gmra.mrb[0].mxu0 %v762
      %v3381 = vpop.f32.mrb[0].mxu0
      %v3382 = vadd.f32 %v3157, %v3381
      %v3383 = vpop.f32.mrb[0].mxu0
      %3384 = vmatprep.mubr.f32.mxu0 %v795
      %3385 = vmatmul.mubr.f32.gmra.mrb[0].mxu0 %v763
      %v3386 = vpop.f32.mrb[0].mxu0
      %v3387 = vadd.f32 %v3162, %v3386
      %v3388 = vpop.f32.mrb[0].mxu0
      %3389 = vmatprep.mubr.f32.mxu0 %v796
      %3390 = vmatmul.mubr.f32.gmra.mrb[0].mxu0 %v764
      %v3391 = vpop.f32.mrb[0].mxu0
      %v3392 = vadd.f32 %v3167, %v3391
      %v3393 = vpop.f32.mrb[0].mxu0
      %3394 = vmatprep.mubr.f32.mxu0 %v797
      %3395 = vmatmul.mubr.f32.gmra.mrb[0].mxu0 %v765
      %v3396 = vpop.f32.mrb[0].mxu0
      %v3397 = vadd.f32 %v3172, %v3396
      %v3398 = vpop.f32.mrb[0].mxu0
      %3399 = vmatprep.mubr.f32.mxu0 %v798
      %3400 = vmatmul.mubr.f32.gmra.mrb[0].mxu0 %v766
      %v3401 = vpop.f32.mrb[0].mxu0
      %v3402 = vadd.f32 %v3177, %v3401
      %v3403 = vpop.f32.mrb[0].mxu0
      %3404 = vmatprep.mubr.f32.mxu0 %v799
      %3405 = vmatmul.mubr.f32.gmra.mrb[0].mxu0 %v767
      %v3406 = vpop.f32.mrb[0].mxu0
      %v3407 = vadd.f32 %v3182, %v3406
      %v3408 = vpop.f32.mrb[0].mxu0
      %3409 = vmatprep.mubr.f32.mxu0 %v800
      %3410 = vmatmul.mubr.f32.gmra.mrb[0].mxu0 %v768
      %v3411 = vpop.f32.mrb[0].mxu0
      %v3412 = vadd.f32 %v3187, %v3411
      %v3413 = vpop.f32.mrb[0].mxu0
      %3414 = vmatprep.mubr.f32.mxu0 %v801
      %3415 = vmatmul.mubr.f32.gmra.mrb[0].mxu0 %v769
      %v3416 = vpop.f32.mrb[0].mxu0
      %v3417 = vadd.f32 %v3192, %v3416
      %v3418 = vpop.f32.mrb[0].mxu0
      %3419 = vmatprep.mubr.f32.mxu0 %v802
      %3420 = vmatmul.mubr.f32.gmra.mrb[0].mxu0 %v770
      %v3421 = vpop.f32.mrb[0].mxu0
      %v3422 = vadd.f32 %v3197, %v3421
      %v3423 = vpop.f32.mrb[0].mxu0
      %3424 = vmatprep.mubr.f32.mxu0 %v803
      %3425 = vmatmul.mubr.f32.gmra.mrb[0].mxu0 %v771
      %v3426 = vpop.f32.mrb[0].mxu0
      %v3427 = vadd.f32 %v3202, %v3426
      %v3428 = vpop.f32.mrb[0].mxu0
      %3429 = vmatprep.mubr.f32.mxu0 %v804
      %3430 = vmatmul.mubr.f32.gmra.mrb[0].mxu0 %v772
      %v3431 = vpop.f32.mrb[0].mxu0
      %v3432 = vadd.f32 %v3207, %v3431
      %v3433 = vpop.f32.mrb[0].mxu0
      %3434 = vmatprep.mubr.f32.mxu0 %v805
      %3435 = vmatmul.mubr.f32.gmra.mrb[0].mxu0 %v773
      %v3436 = vpop.f32.mrb[0].mxu0
      %v3437 = vadd.f32 %v3212, %v3436
      %v3438 = vpop.f32.mrb[0].mxu0
      %3439 = vdwg.mxu0
      %3440 = vmatprep.subr.mxu0 0.0
      %3441 = vmatpush1.msra.mxu0 %v966
      %3442 = vmatprep.subr.mxu0 0.0
      %3443 = vmatpush1.msra.mxu0 %v967
      %3444 = vmatprep.subr.mxu0 0.0
      %3445 = vmatpush1.msra.mxu0 %v968
      %3446 = vmatprep.subr.mxu0 0.0
      %3447 = vmatpush1.msra.mxu0 %v969
      %3448 = vmatprep.subr.mxu0 0.0
      %3449 = vmatpush1.msra.mxu0 %v970
      %3450 = vmatprep.subr.mxu0 0.0
      %3451 = vmatpush1.msra.mxu0 %v971
      %3452 = vmatprep.subr.mxu0 0.0
      %3453 = vmatpush1.msra.mxu0 %v972
      %3454 = vmatprep.subr.mxu0 0.0
      %3455 = vmatpush1.msra.mxu0 %v973
      %3456 = vmatprep.subr.mxu0 0.0
      %3457 = vmatpush1.msra.mxu0 %v974
      %3458 = vmatprep.subr.mxu0 0.0
      %3459 = vmatpush1.msra.mxu0 %v975
      %3460 = vmatprep.subr.mxu0 0.0
      %3461 = vmatpush1.msra.mxu0 %v976
      %3462 = vmatprep.subr.mxu0 0.0
      %3463 = vmatpush1.msra.mxu0 %v977
      %3464 = vmatprep.subr.mxu0 0.0
      %3465 = vmatpush1.msra.mxu0 %v978
      %3466 = vmatprep.subr.mxu0 0.0
      %3467 = vmatpush1.msra.mxu0 %v979
      %3468 = vmatprep.subr.mxu0 0.0
      %3469 = vmatpush1.msra.mxu0 %v980
      %3470 = vmatprep.subr.mxu0 0.0
      %3471 = vmatpush1.msra.mxu0 %v981
      %3472 = vmatprep.subr.mxu0 0.0
      %3473 = vmatpush1.msra.mxu0 0.0
      %3474 = vmatprep.subr.mxu0 0.0
      %3475 = vmatpush1.msra.mxu0 0.0
      %3476 = vmatprep.subr.mxu0 0.0
      %3477 = vmatpush1.msra.mxu0 0.0
      %3478 = vmatprep.subr.mxu0 0.0
      %3479 = vmatpush1.msra.mxu0 0.0
      %3480 = vmatprep.subr.mxu0 0.0
      %3481 = vmatpush1.msra.mxu0 0.0
      %3482 = vmatprep.subr.mxu0 0.0
      %3483 = vmatpush1.msra.mxu0 0.0
      %3484 = vmatprep.subr.mxu0 0.0
      %3485 = vmatpush1.msra.mxu0 0.0
      %3486 = vmatprep.subr.mxu0 0.0
      %3487 = vmatpush1.msra.mxu0 0.0
      %3488 = vmatprep.subr.mxu0 0.0
      %3489 = vmatpush1.msra.mxu0 0.0
      %3490 = vmatprep.subr.mxu0 0.0
      %3491 = vmatpush1.msra.mxu0 0.0
      %3492 = vmatprep.subr.mxu0 0.0
      %3493 = vmatpush1.msra.mxu0 0.0
      %3494 = vmatprep.subr.mxu0 0.0
      %3495 = vmatpush1.msra.mxu0 0.0
      %3496 = vmatprep.subr.mxu0 0.0
      %3497 = vmatpush1.msra.mxu0 0.0
      %3498 = vmatprep.subr.mxu0 0.0
      %3499 = vmatpush1.msra.mxu0 0.0
      %3500 = vmatprep.subr.mxu0 0.0
      %3501 = vmatpush1.msra.mxu0 0.0
      %3502 = vmatprep.subr.mxu0 0.0
      %3503 = vmatpush1.msra.mxu0 0.0
      %3504 = vmatprep.mubr.f32.mxu0 0.0
      %3505 = vmatmul.mubr.f32.gmra.mrb[0].mxu0 %v806
      %v3506 = vpop.f32.mrb[0].mxu0
      %v3507 = vadd.f32 %v3282, %v3506
      %v3508 = vpop.f32.mrb[0].mxu0
      %3509 = vmatprep.mubr.f32.mxu0 0.0
      %3510 = vmatmul.mubr.f32.gmra.mrb[0].mxu0 %v807
      %v3511 = vpop.f32.mrb[0].mxu0
      %v3512 = vadd.f32 %v3287, %v3511
      %v3513 = vpop.f32.mrb[0].mxu0
      %3514 = vmatprep.mubr.f32.mxu0 0.0
      %3515 = vmatmul.mubr.f32.gmra.mrb[0].mxu0 %v808
      %v3516 = vpop.f32.mrb[0].mxu0
      %v3517 = vadd.f32 %v3292, %v3516
      %v3518 = vpop.f32.mrb[0].mxu0
      %3519 = vmatprep.mubr.f32.mxu0 0.0
      %3520 = vmatmul.mubr.f32.gmra.mrb[0].mxu0 %v809
      %v3521 = vpop.f32.mrb[0].mxu0
      %v3522 = vadd.f32 %v3297, %v3521
      %v3523 = vpop.f32.mrb[0].mxu0
      %3524 = vmatprep.mubr.f32.mxu0 0.0
      %3525 = vmatmul.mubr.f32.gmra.mrb[0].mxu0 %v810
      %v3526 = vpop.f32.mrb[0].mxu0
      %v3527 = vadd.f32 %v3302, %v3526
      %v3528 = vpop.f32.mrb[0].mxu0
      %3529 = vmatprep.mubr.f32.mxu0 0.0
      %3530 = vmatmul.mubr.f32.gmra.mrb[0].mxu0 %v811
      %v3531 = vpop.f32.mrb[0].mxu0
      %v3532 = vadd.f32 %v3307, %v3531
      %v3533 = vpop.f32.mrb[0].mxu0
      %3534 = vmatprep.mubr.f32.mxu0 0.0
      %3535 = vmatmul.mubr.f32.gmra.mrb[0].mxu0 %v812
      %v3536 = vpop.f32.mrb[0].mxu0
      %v3537 = vadd.f32 %v3312, %v3536
      %v3538 = vpop.f32.mrb[0].mxu0
      %3539 = vmatprep.mubr.f32.mxu0 0.0
      %3540 = vmatmul.mubr.f32.gmra.mrb[0].mxu0 %v813
      %v3541 = vpop.f32.mrb[0].mxu0
      %v3542 = vadd.f32 %v3317, %v3541
      %v3543 = vpop.f32.mrb[0].mxu0
      %3544 = vmatprep.mubr.f32.mxu0 0.0
      %3545 = vmatmul.mubr.f32.gmra.mrb[0].mxu0 %v814
      %v3546 = vpop.f32.mrb[0].mxu0
      %v3547 = vadd.f32 %v3322, %v3546
      %v3548 = vpop.f32.mrb[0].mxu0
      %3549 = vmatprep.mubr.f32.mxu0 0.0
      %3550 = vmatmul.mubr.f32.gmra.mrb[0].mxu0 %v815
      %v3551 = vpop.f32.mrb[0].mxu0
      %v3552 = vadd.f32 %v3327, %v3551
      %v3553 = vpop.f32.mrb[0].mxu0
      %3554 = vmatprep.mubr.f32.mxu0 0.0
      %3555 = vmatmul.mubr.f32.gmra.mrb[0].mxu0 %v816
      %v3556 = vpop.f32.mrb[0].mxu0
      %v3557 = vadd.f32 %v3332, %v3556
      %v3558 = vpop.f32.mrb[0].mxu0
      %3559 = vmatprep.mubr.f32.mxu0 0.0
      %3560 = vmatmul.mubr.f32.gmra.mrb[0].mxu0 %v817
      %v3561 = vpop.f32.mrb[0].mxu0
      %v3562 = vadd.f32 %v3337, %v3561
      %v3563 = vpop.f32.mrb[0].mxu0
      %3564 = vmatprep.mubr.f32.mxu0 0.0
      %3565 = vmatmul.mubr.f32.gmra.mrb[0].mxu0 %v818
      %v3566 = vpop.f32.mrb[0].mxu0
      %v3567 = vadd.f32 %v3342, %v3566
      %v3568 = vpop.f32.mrb[0].mxu0
      %3569 = vmatprep.mubr.f32.mxu0 0.0
      %3570 = vmatmul.mubr.f32.gmra.mrb[0].mxu0 %v819
      %v3571 = vpop.f32.mrb[0].mxu0
      %v3572 = vadd.f32 %v3347, %v3571
      %v3573 = vpop.f32.mrb[0].mxu0
      %3574 = vmatprep.mubr.f32.mxu0 0.0
      %3575 = vmatmul.mubr.f32.gmra.mrb[0].mxu0 %v820
      %v3576 = vpop.f32.mrb[0].mxu0
      %v3577 = vadd.f32 %v3352, %v3576
      %v3578 = vpop.f32.mrb[0].mxu0
      %3579 = vmatprep.mubr.f32.mxu0 0.0
      %3580 = vmatmul.mubr.f32.gmra.mrb[0].mxu0 %v821
      %v3581 = vpop.f32.mrb[0].mxu0
      %v3582 = vadd.f32 %v3357, %v3581
      %v3583 = vpop.f32.mrb[0].mxu0
      %3584 = vmatprep.mubr.f32.mxu0 0.0
      %3585 = vmatmul.mubr.f32.gmra.mrb[0].mxu0 %v822
      %v3586 = vpop.f32.mrb[0].mxu0
      %v3587 = vadd.f32 %v3362, %v3586
      %v3588 = vpop.f32.mrb[0].mxu0
      %3589 = vmatprep.mubr.f32.mxu0 0.0
      %3590 = vmatmul.mubr.f32.gmra.mrb[0].mxu0 %v823
      %v3591 = vpop.f32.mrb[0].mxu0
      %v3592 = vadd.f32 %v3367, %v3591
      %v3593 = vpop.f32.mrb[0].mxu0
      %3594 = vmatprep.mubr.f32.mxu0 0.0
      %3595 = vmatmul.mubr.f32.gmra.mrb[0].mxu0 %v824
      %v3596 = vpop.f32.mrb[0].mxu0
      %v3597 = vadd.f32 %v3372, %v3596
      %v3598 = vpop.f32.mrb[0].mxu0
      %3599 = vmatprep.mubr.f32.mxu0 0.0
      %3600 = vmatmul.mubr.f32.gmra.mrb[0].mxu0 %v825
      %v3601 = vpop.f32.mrb[0].mxu0
      %v3602 = vadd.f32 %v3377, %v3601
      %v3603 = vpop.f32.mrb[0].mxu0
      %3604 = vmatprep.mubr.f32.mxu0 0.0
      %3605 = vmatmul.mubr.f32.gmra.mrb[0].mxu0 %v826
      %v3606 = vpop.f32.mrb[0].mxu0
      %v3607 = vadd.f32 %v3382, %v3606
      %v3608 = vpop.f32.mrb[0].mxu0
      %3609 = vmatprep.mubr.f32.mxu0 0.0
      %3610 = vmatmul.mubr.f32.gmra.mrb[0].mxu0 %v827
      %v3611 = vpop.f32.mrb[0].mxu0
      %v3612 = vadd.f32 %v3387, %v3611
      %v3613 = vpop.f32.mrb[0].mxu0
      %3614 = vmatprep.mubr.f32.mxu0 0.0
      %3615 = vmatmul.mubr.f32.gmra.mrb[0].mxu0 %v828
      %v3616 = vpop.f32.mrb[0].mxu0
      %v3617 = vadd.f32 %v3392, %v3616
      %v3618 = vpop.f32.mrb[0].mxu0
      %3619 = vmatprep.mubr.f32.mxu0 0.0
      %3620 = vmatmul.mubr.f32.gmra.mrb[0].mxu0 %v829
      %v3621 = vpop.f32.mrb[0].mxu0
      %v3622 = vadd.f32 %v3397, %v3621
      %v3623 = vpop.f32.mrb[0].mxu0
      %3624 = vmatprep.mubr.f32.mxu0 0.0
      %3625 = vmatmul.mubr.f32.gmra.mrb[0].mxu0 %v830
      %v3626 = vpop.f32.mrb[0].mxu0
      %v3627 = vadd.f32 %v3402, %v3626
      %v3628 = vpop.f32.mrb[0].mxu0
      %3629 = vmatprep.mubr.f32.mxu0 0.0
      %3630 = vmatmul.mubr.f32.gmra.mrb[0].mxu0 %v831
      %v3631 = vpop.f32.mrb[0].mxu0
      %v3632 = vadd.f32 %v3407, %v3631
      %v3633 = vpop.f32.mrb[0].mxu0
      %3634 = vmatprep.mubr.f32.mxu0 0.0
      %3635 = vmatmul.mubr.f32.gmra.mrb[0].mxu0 %v832
      %v3636 = vpop.f32.mrb[0].mxu0
      %v3637 = vadd.f32 %v3412, %v3636
      %v3638 = vpop.f32.mrb[0].mxu0
      %3639 = vmatprep.mubr.f32.mxu0 0.0
      %3640 = vmatmul.mubr.f32.gmra.mrb[0].mxu0 %v833
      %v3641 = vpop.f32.mrb[0].mxu0
      %v3642 = vadd.f32 %v3417, %v3641
      %v3643 = vpop.f32.mrb[0].mxu0
      %3644 = vmatprep.mubr.f32.mxu0 0.0
      %3645 = vmatmul.mubr.f32.gmra.mrb[0].mxu0 %v834
      %v3646 = vpop.f32.mrb[0].mxu0
      %v3647 = vadd.f32 %v3422, %v3646
      %v3648 = vpop.f32.mrb[0].mxu0
      %3649 = vmatprep.mubr.f32.mxu0 0.0
      %3650 = vmatmul.mubr.f32.gmra.mrb[0].mxu0 %v835
      %v3651 = vpop.f32.mrb[0].mxu0
      %v3652 = vadd.f32 %v3427, %v3651
      %v3653 = vpop.f32.mrb[0].mxu0
      %3654 = vmatprep.mubr.f32.mxu0 0.0
      %3655 = vmatmul.mubr.f32.gmra.mrb[0].mxu0 %v836
      %v3656 = vpop.f32.mrb[0].mxu0
      %v3657 = vadd.f32 %v3432, %v3656
      %v3658 = vpop.f32.mrb[0].mxu0
      %3659 = vmatprep.mubr.f32.mxu0 0.0
      %3660 = vmatmul.mubr.f32.gmra.mrb[0].mxu0 %v837
      %v3661 = vpop.f32.mrb[0].mxu0
      %v3662 = vadd.f32 %v3437, %v3661
      %v3663 = vpop.f32.mrb[0].mxu0
      %3664 = vdwg.mxu0
      %v3665 = vld [vmem:[%s4] sm:$0x1]
      %v3667 = vlaneseq
      %v3668 = vshrl.u32 %v3667, 7
      %v3669 = vsub.s32 0, %v3668
      %v3670 = vrot.slane %v3665, %v3669
      %v3672 = vadd.f32 %v3507, %v3670
      %v3673 = vadd.f32 %v3512, %v3670
      %v3674 = vadd.f32 %v3517, %v3670
      %v3675 = vadd.f32 %v3522, %v3670
      %v3676 = vadd.f32 %v3527, %v3670
      %v3677 = vadd.f32 %v3532, %v3670
      %v3678 = vadd.f32 %v3537, %v3670
      %v3679 = vadd.f32 %v3542, %v3670
      %v3680 = vadd.f32 %v3547, %v3670
      %v3681 = vadd.f32 %v3552, %v3670
      %v3682 = vadd.f32 %v3557, %v3670
      %v3683 = vadd.f32 %v3562, %v3670
      %v3684 = vadd.f32 %v3567, %v3670
      %v3685 = vadd.f32 %v3572, %v3670
      %v3686 = vadd.f32 %v3577, %v3670
      %v3687 = vadd.f32 %v3582, %v3670
      %v3688 = vadd.f32 %v3587, %v3670
      %v3689 = vadd.f32 %v3592, %v3670
      %v3690 = vadd.f32 %v3597, %v3670
      %v3691 = vadd.f32 %v3602, %v3670
      %v3692 = vadd.f32 %v3607, %v3670
      %v3693 = vadd.f32 %v3612, %v3670
      %v3694 = vadd.f32 %v3617, %v3670
      %v3695 = vadd.f32 %v3622, %v3670
      %v3696 = vadd.f32 %v3627, %v3670
      %v3697 = vadd.f32 %v3632, %v3670
      %v3698 = vadd.f32 %v3637, %v3670
      %v3699 = vadd.f32 %v3642, %v3670
      %v3700 = vadd.f32 %v3647, %v3670
      %v3701 = vadd.f32 %v3652, %v3670
      %v3702 = vadd.f32 %v3657, %v3670
      %v3703 = vadd.f32 %v3662, %v3670
      %v3704 = vmax.f32 %v3672, 0.0
      %v3705 = vmax.f32 %v3673, 0.0
      %v3706 = vmax.f32 %v3674, 0.0
      %v3707 = vmax.f32 %v3675, 0.0
      %v3708 = vmax.f32 %v3676, 0.0
      %v3709 = vmax.f32 %v3677, 0.0
      %v3710 = vmax.f32 %v3678, 0.0
      %v3711 = vmax.f32 %v3679, 0.0
      %v3712 = vmax.f32 %v3680, 0.0
      %v3713 = vmax.f32 %v3681, 0.0
      %v3714 = vmax.f32 %v3682, 0.0
      %v3715 = vmax.f32 %v3683, 0.0
      %v3716 = vmax.f32 %v3684, 0.0
      %v3717 = vmax.f32 %v3685, 0.0
      %v3718 = vmax.f32 %v3686, 0.0
      %v3719 = vmax.f32 %v3687, 0.0
      %v3720 = vmax.f32 %v3688, 0.0
      %v3721 = vmax.f32 %v3689, 0.0
      %v3722 = vmax.f32 %v3690, 0.0
      %v3723 = vmax.f32 %v3691, 0.0
      %v3724 = vmax.f32 %v3692, 0.0
      %v3725 = vmax.f32 %v3693, 0.0
      %v3726 = vmax.f32 %v3694, 0.0
      %v3727 = vmax.f32 %v3695, 0.0
      %v3728 = vmax.f32 %v3696, 0.0
      %v3729 = vmax.f32 %v3697, 0.0
      %v3730 = vmax.f32 %v3698, 0.0
      %v3731 = vmax.f32 %v3699, 0.0
      %v3732 = vmax.f32 %v3700, 0.0
      %v3733 = vmax.f32 %v3701, 0.0
      %v3734 = vmax.f32 %v3702, 0.0
      %v3735 = vmax.f32 %v3703, 0.0
      %v3736 = vld [vmem:[%s5] sm:$0xff]
      %v3737 = vld [vmem:[%s5 + $0x8] sm:$0xff]
      %v3738 = vld [vmem:[%s5 + $0x10] sm:$0xff]
      %v3739 = vld [vmem:[%s5 + $0x18] sm:$0xff]
      %v3740 = vld [vmem:[%s5 + $0x20] sm:$0xff]
      %v3741 = vld [vmem:[%s5 + $0x28] sm:$0xff]
      %v3742 = vld [vmem:[%s5 + $0x30] sm:$0xff]
      %v3743 = vld [vmem:[%s5 + $0x38] sm:$0xff]
      %v3744 = vld [vmem:[%s5 + $0x40] sm:$0xff]
      %v3745 = vld [vmem:[%s5 + $0x48] sm:$0xff]
      %v3746 = vld [vmem:[%s5 + $0x50] sm:$0xff]
      %v3747 = vld [vmem:[%s5 + $0x58] sm:$0xff]
      %v3748 = vld [vmem:[%s5 + $0x60] sm:$0xff]
      %v3749 = vld [vmem:[%s5 + $0x68] sm:$0xff]
      %v3750 = vld [vmem:[%s5 + $0x70] sm:$0xff]
      %v3751 = vld [vmem:[%s5 + $0x78] sm:$0xff]
      %v3752 = vld [vmem:[%s6] sm:$0x1]
      %v3754 = vlaneseq
      %v3755 = vshrl.u32 %v3754, 7
      %v3756 = vsub.s32 0, %v3755
      %v3757 = vrot.slane %v3752, %v3756
      %3759 = vmatprep.subr.mxu0 0.0
      %3760 = vmatpush1.msra.mxu0 %v3736
      %3761 = vmatprep.subr.mxu0 0.0
      %3762 = vmatpush1.msra.mxu0 %v3737
      %3763 = vmatprep.subr.mxu0 0.0
      %3764 = vmatpush1.msra.mxu0 %v3738
      %3765 = vmatprep.subr.mxu0 0.0
      %3766 = vmatpush1.msra.mxu0 %v3739
      %3767 = vmatprep.subr.mxu0 0.0
      %3768 = vmatpush1.msra.mxu0 %v3740
      %3769 = vmatprep.subr.mxu0 0.0
      %3770 = vmatpush1.msra.mxu0 %v3741
      %3771 = vmatprep.subr.mxu0 0.0
      %3772 = vmatpush1.msra.mxu0 %v3742
      %3773 = vmatprep.subr.mxu0 0.0
      %3774 = vmatpush1.msra.mxu0 %v3743
      %3775 = vmatprep.subr.mxu0 0.0
      %3776 = vmatpush1.msra.mxu0 %v3744
      %3777 = vmatprep.subr.mxu0 0.0
      %3778 = vmatpush1.msra.mxu0 %v3745
      %3779 = vmatprep.subr.mxu0 0.0
      %3780 = vmatpush1.msra.mxu0 %v3746
      %3781 = vmatprep.subr.mxu0 0.0
      %3782 = vmatpush1.msra.mxu0 %v3747
      %3783 = vmatprep.subr.mxu0 0.0
      %3784 = vmatpush1.msra.mxu0 %v3748
      %3785 = vmatprep.subr.mxu0 0.0
      %3786 = vmatpush1.msra.mxu0 %v3749
      %3787 = vmatprep.subr.mxu0 0.0
      %3788 = vmatpush1.msra.mxu0 %v3750
      %3789 = vmatprep.subr.mxu0 0.0
      %3790 = vmatpush1.msra.mxu0 %v3751
      %3791 = vmatprep.subr.mxu0 0.0
      %3792 = vmatpush1.msra.mxu0 0.0
      %3793 = vmatprep.subr.mxu0 0.0
      %3794 = vmatpush1.msra.mxu0 0.0
      %3795 = vmatprep.subr.mxu0 0.0
      %3796 = vmatpush1.msra.mxu0 0.0
      %3797 = vmatprep.subr.mxu0 0.0
      %3798 = vmatpush1.msra.mxu0 0.0
      %3799 = vmatprep.subr.mxu0 0.0
      %3800 = vmatpush1.msra.mxu0 0.0
      %3801 = vmatprep.subr.mxu0 0.0
      %3802 = vmatpush1.msra.mxu0 0.0
      %3803 = vmatprep.subr.mxu0 0.0
      %3804 = vmatpush1.msra.mxu0 0.0
      %3805 = vmatprep.subr.mxu0 0.0
      %3806 = vmatpush1.msra.mxu0 0.0
      %3807 = vmatprep.subr.mxu0 0.0
      %3808 = vmatpush1.msra.mxu0 0.0
      %3809 = vmatprep.subr.mxu0 0.0
      %3810 = vmatpush1.msra.mxu0 0.0
      %3811 = vmatprep.subr.mxu0 0.0
      %3812 = vmatpush1.msra.mxu0 0.0
      %3813 = vmatprep.subr.mxu0 0.0
      %3814 = vmatpush1.msra.mxu0 0.0
      %3815 = vmatprep.subr.mxu0 0.0
      %3816 = vmatpush1.msra.mxu0 0.0
      %3817 = vmatprep.subr.mxu0 0.0
      %3818 = vmatpush1.msra.mxu0 0.0
      %3819 = vmatprep.subr.mxu0 0.0
      %3820 = vmatpush1.msra.mxu0 0.0
      %3821 = vmatprep.subr.mxu0 0.0
      %3822 = vmatpush1.msra.mxu0 0.0
      %3823 = vmatprep.mubr.f32.mxu0 0.0
      %3824 = vmatmul.mubr.f32.gmra.mrb[0].mxu0 %v3704
      %v3825 = vpop.f32.mrb[0].mxu0
      %v3826 = vadd.f32 %v3757, %v3825
      %v3827 = vpop.f32.mrb[0].mxu0
      %3828 = vmatprep.mubr.f32.mxu0 0.0
      %3829 = vmatmul.mubr.f32.gmra.mrb[0].mxu0 %v3705
      %v3830 = vpop.f32.mrb[0].mxu0
      %v3831 = vadd.f32 %v3757, %v3830
      %v3832 = vpop.f32.mrb[0].mxu0
      %3833 = vmatprep.mubr.f32.mxu0 0.0
      %3834 = vmatmul.mubr.f32.gmra.mrb[0].mxu0 %v3706
      %v3835 = vpop.f32.mrb[0].mxu0
      %v3836 = vadd.f32 %v3757, %v3835
      %v3837 = vpop.f32.mrb[0].mxu0
      %3838 = vmatprep.mubr.f32.mxu0 0.0
      %3839 = vmatmul.mubr.f32.gmra.mrb[0].mxu0 %v3707
      %v3840 = vpop.f32.mrb[0].mxu0
      %v3841 = vadd.f32 %v3757, %v3840
      %v3842 = vpop.f32.mrb[0].mxu0
      %3843 = vmatprep.mubr.f32.mxu0 0.0
      %3844 = vmatmul.mubr.f32.gmra.mrb[0].mxu0 %v3708
      %v3845 = vpop.f32.mrb[0].mxu0
      %v3846 = vadd.f32 %v3757, %v3845
      %v3847 = vpop.f32.mrb[0].mxu0
      %3848 = vmatprep.mubr.f32.mxu0 0.0
      %3849 = vmatmul.mubr.f32.gmra.mrb[0].mxu0 %v3709
      %v3850 = vpop.f32.mrb[0].mxu0
      %v3851 = vadd.f32 %v3757, %v3850
      %v3852 = vpop.f32.mrb[0].mxu0
      %3853 = vmatprep.mubr.f32.mxu0 0.0
      %3854 = vmatmul.mubr.f32.gmra.mrb[0].mxu0 %v3710
      %v3855 = vpop.f32.mrb[0].mxu0
      %v3856 = vadd.f32 %v3757, %v3855
      %v3857 = vpop.f32.mrb[0].mxu0
      %3858 = vmatprep.mubr.f32.mxu0 0.0
      %3859 = vmatmul.mubr.f32.gmra.mrb[0].mxu0 %v3711
      %v3860 = vpop.f32.mrb[0].mxu0
      %v3861 = vadd.f32 %v3757, %v3860
      %v3862 = vpop.f32.mrb[0].mxu0
      %3863 = vmatprep.mubr.f32.mxu0 0.0
      %3864 = vmatmul.mubr.f32.gmra.mrb[0].mxu0 %v3712
      %v3865 = vpop.f32.mrb[0].mxu0
      %v3866 = vadd.f32 %v3757, %v3865
      %v3867 = vpop.f32.mrb[0].mxu0
      %3868 = vmatprep.mubr.f32.mxu0 0.0
      %3869 = vmatmul.mubr.f32.gmra.mrb[0].mxu0 %v3713
      %v3870 = vpop.f32.mrb[0].mxu0
      %v3871 = vadd.f32 %v3757, %v3870
      %v3872 = vpop.f32.mrb[0].mxu0
      %3873 = vmatprep.mubr.f32.mxu0 0.0
      %3874 = vmatmul.mubr.f32.gmra.mrb[0].mxu0 %v3714
      %v3875 = vpop.f32.mrb[0].mxu0
      %v3876 = vadd.f32 %v3757, %v3875
      %v3877 = vpop.f32.mrb[0].mxu0
      %3878 = vmatprep.mubr.f32.mxu0 0.0
      %3879 = vmatmul.mubr.f32.gmra.mrb[0].mxu0 %v3715
      %v3880 = vpop.f32.mrb[0].mxu0
      %v3881 = vadd.f32 %v3757, %v3880
      %v3882 = vpop.f32.mrb[0].mxu0
      %3883 = vmatprep.mubr.f32.mxu0 0.0
      %3884 = vmatmul.mubr.f32.gmra.mrb[0].mxu0 %v3716
      %v3885 = vpop.f32.mrb[0].mxu0
      %v3886 = vadd.f32 %v3757, %v3885
      %v3887 = vpop.f32.mrb[0].mxu0
      %3888 = vmatprep.mubr.f32.mxu0 0.0
      %3889 = vmatmul.mubr.f32.gmra.mrb[0].mxu0 %v3717
      %v3890 = vpop.f32.mrb[0].mxu0
      %v3891 = vadd.f32 %v3757, %v3890
      %v3892 = vpop.f32.mrb[0].mxu0
      %3893 = vmatprep.mubr.f32.mxu0 0.0
      %3894 = vmatmul.mubr.f32.gmra.mrb[0].mxu0 %v3718
      %v3895 = vpop.f32.mrb[0].mxu0
      %v3896 = vadd.f32 %v3757, %v3895
      %v3897 = vpop.f32.mrb[0].mxu0
      %3898 = vmatprep.mubr.f32.mxu0 0.0
      %3899 = vmatmul.mubr.f32.gmra.mrb[0].mxu0 %v3719
      %v3900 = vpop.f32.mrb[0].mxu0
      %v3901 = vadd.f32 %v3757, %v3900
      %v3902 = vpop.f32.mrb[0].mxu0
      %3903 = vmatprep.mubr.f32.mxu0 0.0
      %3904 = vmatmul.mubr.f32.gmra.mrb[0].mxu0 %v3720
      %v3905 = vpop.f32.mrb[0].mxu0
      %v3906 = vadd.f32 %v3757, %v3905
      %v3907 = vpop.f32.mrb[0].mxu0
      %3908 = vmatprep.mubr.f32.mxu0 0.0
      %3909 = vmatmul.mubr.f32.gmra.mrb[0].mxu0 %v3721
      %v3910 = vpop.f32.mrb[0].mxu0
      %v3911 = vadd.f32 %v3757, %v3910
      %v3912 = vpop.f32.mrb[0].mxu0
      %3913 = vmatprep.mubr.f32.mxu0 0.0
      %3914 = vmatmul.mubr.f32.gmra.mrb[0].mxu0 %v3722
      %v3915 = vpop.f32.mrb[0].mxu0
      %v3916 = vadd.f32 %v3757, %v3915
      %v3917 = vpop.f32.mrb[0].mxu0
      %3918 = vmatprep.mubr.f32.mxu0 0.0
      %3919 = vmatmul.mubr.f32.gmra.mrb[0].mxu0 %v3723
      %v3920 = vpop.f32.mrb[0].mxu0
      %v3921 = vadd.f32 %v3757, %v3920
      %v3922 = vpop.f32.mrb[0].mxu0
      %3923 = vmatprep.mubr.f32.mxu0 0.0
      %3924 = vmatmul.mubr.f32.gmra.mrb[0].mxu0 %v3724
      %v3925 = vpop.f32.mrb[0].mxu0
      %v3926 = vadd.f32 %v3757, %v3925
      %v3927 = vpop.f32.mrb[0].mxu0
      %3928 = vmatprep.mubr.f32.mxu0 0.0
      %3929 = vmatmul.mubr.f32.gmra.mrb[0].mxu0 %v3725
      %v3930 = vpop.f32.mrb[0].mxu0
      %v3931 = vadd.f32 %v3757, %v3930
      %v3932 = vpop.f32.mrb[0].mxu0
      %3933 = vmatprep.mubr.f32.mxu0 0.0
      %3934 = vmatmul.mubr.f32.gmra.mrb[0].mxu0 %v3726
      %v3935 = vpop.f32.mrb[0].mxu0
      %v3936 = vadd.f32 %v3757, %v3935
      %v3937 = vpop.f32.mrb[0].mxu0
      %3938 = vmatprep.mubr.f32.mxu0 0.0
      %3939 = vmatmul.mubr.f32.gmra.mrb[0].mxu0 %v3727
      %v3940 = vpop.f32.mrb[0].mxu0
      %v3941 = vadd.f32 %v3757, %v3940
      %v3942 = vpop.f32.mrb[0].mxu0
      %3943 = vmatprep.mubr.f32.mxu0 0.0
      %3944 = vmatmul.mubr.f32.gmra.mrb[0].mxu0 %v3728
      %v3945 = vpop.f32.mrb[0].mxu0
      %v3946 = vadd.f32 %v3757, %v3945
      %v3947 = vpop.f32.mrb[0].mxu0
      %3948 = vmatprep.mubr.f32.mxu0 0.0
      %3949 = vmatmul.mubr.f32.gmra.mrb[0].mxu0 %v3729
      %v3950 = vpop.f32.mrb[0].mxu0
      %v3951 = vadd.f32 %v3757, %v3950
      %v3952 = vpop.f32.mrb[0].mxu0
      %3953 = vmatprep.mubr.f32.mxu0 0.0
      %3954 = vmatmul.mubr.f32.gmra.mrb[0].mxu0 %v3730
      %v3955 = vpop.f32.mrb[0].mxu0
      %v3956 = vadd.f32 %v3757, %v3955
      %v3957 = vpop.f32.mrb[0].mxu0
      %3958 = vmatprep.mubr.f32.mxu0 0.0
      %3959 = vmatmul.mubr.f32.gmra.mrb[0].mxu0 %v3731
      %v3960 = vpop.f32.mrb[0].mxu0
      %v3961 = vadd.f32 %v3757, %v3960
      %v3962 = vpop.f32.mrb[0].mxu0
      %3963 = vmatprep.mubr.f32.mxu0 0.0
      %3964 = vmatmul.mubr.f32.gmra.mrb[0].mxu0 %v3732
      %v3965 = vpop.f32.mrb[0].mxu0
      %v3966 = vadd.f32 %v3757, %v3965
      %v3967 = vpop.f32.mrb[0].mxu0
      %3968 = vmatprep.mubr.f32.mxu0 0.0
      %3969 = vmatmul.mubr.f32.gmra.mrb[0].mxu0 %v3733
      %v3970 = vpop.f32.mrb[0].mxu0
      %v3971 = vadd.f32 %v3757, %v3970
      %v3972 = vpop.f32.mrb[0].mxu0
      %3973 = vmatprep.mubr.f32.mxu0 0.0
      %3974 = vmatmul.mubr.f32.gmra.mrb[0].mxu0 %v3734
      %v3975 = vpop.f32.mrb[0].mxu0
      %v3976 = vadd.f32 %v3757, %v3975
      %v3977 = vpop.f32.mrb[0].mxu0
      %3978 = vmatprep.mubr.f32.mxu0 0.0
      %3979 = vmatmul.mubr.f32.gmra.mrb[0].mxu0 %v3735
      %v3980 = vpop.f32.mrb[0].mxu0
      %v3981 = vadd.f32 %v3757, %v3980
      %v3982 = vpop.f32.mrb[0].mxu0
      %3983 = vdwg.mxu0
      %3984 = vst [vmem:[%s298] sm:$0xff] %v3826
      %3985 = vst [vmem:[%s298 + $0x8] sm:$0xff] %v3831
      %3986 = vst [vmem:[%s298 + $0x10] sm:$0xff] %v3836
      %3987 = vst [vmem:[%s298 + $0x18] sm:$0xff] %v3841
      %3988 = vst [vmem:[%s298 + $0x20] sm:$0xff] %v3846
      %3989 = vst [vmem:[%s298 + $0x28] sm:$0xff] %v3851
      %3990 = vst [vmem:[%s298 + $0x30] sm:$0xff] %v3856
      %3991 = vst [vmem:[%s298 + $0x38] sm:$0xff] %v3861
      %3992 = vst [vmem:[%s298 + $0x40] sm:$0xff] %v3866
      %3993 = vst [vmem:[%s298 + $0x48] sm:$0xff] %v3871
      %3994 = vst [vmem:[%s298 + $0x50] sm:$0xff] %v3876
      %3995 = vst [vmem:[%s298 + $0x58] sm:$0xff] %v3881
      %3996 = vst [vmem:[%s298 + $0x60] sm:$0xff] %v3886
      %3997 = vst [vmem:[%s298 + $0x68] sm:$0xff] %v3891
      %3998 = vst [vmem:[%s298 + $0x70] sm:$0xff] %v3896
      %3999 = vst [vmem:[%s298 + $0x78] sm:$0xff] %v3901
      %4000 = vst [vmem:[%s298 + $0x80] sm:$0xff] %v3906
      %4001 = vst [vmem:[%s298 + $0x88] sm:$0xff] %v3911
      %4002 = vst [vmem:[%s298 + $0x90] sm:$0xff] %v3916
      %4003 = vst [vmem:[%s298 + $0x98] sm:$0xff] %v3921
      %4004 = vst [vmem:[%s298 + $0xa0] sm:$0xff] %v3926
      %4005 = vst [vmem:[%s298 + $0xa8] sm:$0xff] %v3931
      %4006 = vst [vmem:[%s298 + $0xb0] sm:$0xff] %v3936
      %4007 = vst [vmem:[%s298 + $0xb8] sm:$0xff] %v3941
      %4008 = vst [vmem:[%s298 + $0xc0] sm:$0xff] %v3946
      %4009 = vst [vmem:[%s298 + $0xc8] sm:$0xff] %v3951
      %4010 = vst [vmem:[%s298 + $0xd0] sm:$0xff] %v3956
      %4011 = vst [vmem:[%s298 + $0xd8] sm:$0xff] %v3961
      %4012 = vst [vmem:[%s298 + $0xe0] sm:$0xff] %v3966
      %4013 = vst [vmem:[%s298 + $0xe8] sm:$0xff] %v3971
      %4014 = vst [vmem:[%s298 + $0xf0] sm:$0xff] %v3976
      %4015 = vst [vmem:[%s298 + $0xf8] sm:$0xff] %v3981
      %p4016 = scmp.lt.s32.totalorder %s18, 1
      %s4017 = scalar_select %p4016, %s18, 1
      %s4018 = smul.addr %s4017, 32
      %s4019 = smul.addr %s4018, 8
      %s4020 = scalar_lea.vmem %s7, %s4019
      // Predicated region
      $region49: #{sdunet_forward.9} parent=47 // pred_check
        %p4021 = pneg %p193
      $region50: #{sdunet_forward.9} parent=47 // pred_check_branch
        %4023 = sbr.rel (%p4021) target = $region52
      $region51: #{sdunet_forward.9} parent=47 // pred_region
        _
      $region52: #{sdunet_forward.9} parent=47 // pred_fallthru
        _
    $region48: #{sdunet_forward.9} parent=5 // pred_fallthru
      _
    %p4024 = scmp.le.s32.totalorder 2, %s13
    // Predicated region
    $region53: #{sdunet_forward.9} parent=5 // pred_check
      %p4025 = pneg %p4024
    $region54: #{sdunet_forward.9} parent=5 // pred_check_branch
      %4027 = sbr.rel (%p4025) target = $region56
    $region55: #{sdunet_forward.9} parent=5 // pred_region
      %s4028 = ssub.s32 %s13, 2
      // Predicated region
      $region57: #{sdunet_forward.9} parent=55 // pred_check
        %p4029 = pneg %p199
      $region58: #{sdunet_forward.9} parent=55 // pred_check_branch
        %4031 = sbr.rel (%p4029) target = $region60
      $region59: #{sdunet_forward.9} parent=55 // pred_region
        %p4032 = scmp.lt.s32.totalorder %s19, 1
        %s4033 = scalar_select %p4032, %s19, 1
        %s4034 = smul.addr %s4033, 32
        %s4035 = smul.addr %s4034, 8
        %s4036 = scalar_lea.vmem %s7, %s4035
      $region60: #{sdunet_forward.9} parent=55 // pred_fallthru
        _
    $region56: #{sdunet_forward.9} parent=5 // pred_fallthru
      _
  $region6: #{sdunet_forward.9} parent=0 // loop_footer
    %s17 = sadd.s32 1, %s13
  $region7: #{sdunet_forward.9} parent=0 // loop_footer_branch
    %12 = sbr.rel target = $region3
  $region8: #{sdunet_forward.9} parent=0 // loop_exit
    _

</llo_original>
